<compile_context>
chip_gen: v7x
topology: tpu7x:2x2x1
jax: 0.10.0
libtpu: 0.0.40
codegen_flags: <defaults>
</compile_context>

<pallas_src>
import functools

import jax
import jax.numpy as jnp
from jax.experimental import pallas as pl
from jax.experimental.pallas import tpu as pltpu


# ----------------------------- Pallas kernels ------------------------------ #

def _tower_kernel(*refs, depth):
    """Fused stem conv + BN/ReLU + full residual tower (whole batch).

    Ref layout (inputs, then outputs, then scratch):
      inputs : xpad (N,H+2,W+2,Cin) f32, w_stem (9,Cin,C) bf16,
               stem bn scale (1,C) f32, stem bn bias (1,C) f32,
               then per block: bn1_s, bn1_b, conv1_w (9,C,C) bf16,
                               bn2_s, bn2_b, conv2_w (9,C,C) bf16
      output : s (N,H,W,C) f32
      scratch: pad (N,H+2,W+2,C) f32 zero-halo buffer (halo stays zero).
    """
    n_in = 4 + 6 * depth
    xpad_ref, w_stem_ref, bns_s_ref, bns_b_ref = refs[:4]
    blk_refs = refs[4:n_in]
    out_ref = refs[n_in]
    pad_ref = refs[n_in + 1]

    N, H, W, C = out_ref.shape

    def conv3x3(xp, w_ref):
        """xp: (N,H+2,W+2,Cin) f32 value; w_ref: (9,Cin,Cout) bf16 ref."""
        cin = xp.shape[-1]
        cout = w_ref.shape[-1]
        acc = jnp.zeros((N * H * W, cout), jnp.float32)
        for dy in range(3):
            for dx in range(3):
                tap = xp[:, dy:dy + H, dx:dx + W, :].reshape(N * H * W, cin)
                acc = acc + jnp.dot(tap.astype(jnp.bfloat16),
                                    w_ref[dy * 3 + dx],
                                    preferred_element_type=jnp.float32)
        return acc                                    # (N*H*W, Cout) f32

    # stem: relu(bn1(conv1(x)))  -- BN+ReLU fused into the conv epilogue.
    s = conv3x3(xpad_ref[...], w_stem_ref)
    s = jnp.maximum(s * bns_s_ref[...] + bns_b_ref[...], 0.0)

    # Zero the padded scratch once; only the interior is ever rewritten, so the
    # halo stays zero (zero padding applied AFTER BN+ReLU, matching PyTorch).
    pad_ref[...] = jnp.zeros_like(pad_ref)

    # residual tower: x + conv2(relu(bn2(conv1(relu(bn1(x))))))
    for b in range(depth):
        b1s, b1b, w1, b2s, b2b, w2 = blk_refs[6 * b:6 * (b + 1)]

        out = jnp.maximum(s * b1s[...] + b1b[...], 0.0)          # bn1 + relu
        pad_ref[:, pl.ds(1, H), pl.ds(1, W), :] = out.reshape(N, H, W, C)
        out = conv3x3(pad_ref[...], w1)                          # conv1
        out = jnp.maximum(out * b2s[...] + b2b[...], 0.0)        # bn2 + relu
        pad_ref[:, pl.ds(1, H), pl.ds(1, W), :] = out.reshape(N, H, W, C)
        out = conv3x3(pad_ref[...], w2)                          # conv2
        s = s + out                                              # residual add

    out_ref[...] = s.reshape(N, H, W, C)


def _heads_kernel(*refs, n_v, n_pi):
    """Value + policy heads fully fused (dense chains + log_softmax).

    refs: s_flat (N, H*W*C) f32,
          value-head layers (w, b) * n_v   (first layer pre-folded with 1x1 conv + BN),
          policy-head layers (w, b) * n_pi (first layer pre-folded with 1x1 conv + BN),
          outputs: log_pi (N, A), log_v (N, Vout).
    """
    s_ref = refs[0]
    v_refs = refs[1:1 + 2 * n_v]
    pi_refs = refs[1 + 2 * n_v:1 + 2 * (n_v + n_pi)]
    log_pi_ref, log_v_ref = refs[1 + 2 * (n_v + n_pi):]

    s = s_ref[...]

    def dense_chain(x, layer_refs):
        for i in range(len(layer_refs) // 2):
            w = layer_refs[2 * i][...]
            b = layer_refs[2 * i + 1][...]
            x = jnp.dot(x, w, preferred_element_type=jnp.float32) + b
        return x

    def log_softmax(x):
        m = jnp.max(x, axis=-1, keepdims=True)
        lse = jnp.log(jnp.sum(jnp.exp(x - m), axis=-1, keepdims=True)) + m
        return x - lse

    log_v_ref[...] = log_softmax(dense_chain(s, v_refs)).astype(log_v_ref.dtype)
    log_pi_ref[...] = log_softmax(dense_chain(s, pi_refs)).astype(log_pi_ref.dtype)


# ----------------------------- kernel wrappers ------------------------------ #

def tower_forward(xpad, w_stem, bn_stem, blocks):
    """xpad: (N,H+2,W+2,Cin) f32; w_stem/(block convs): (9,Cin,Cout) bf16."""
    N = xpad.shape[0]
    H = xpad.shape[1] - 2
    W = xpad.shape[2] - 2
    C = w_stem.shape[-1]
    args = [xpad, w_stem, bn_stem[0], bn_stem[1]]
    for blk in blocks:
        args += [blk['bn1'][0], blk['bn1'][1], blk['conv1_w'],
                 blk['bn2'][0], blk['bn2'][1], blk['conv2_w']]
    return pl.pallas_call(
        functools.partial(_tower_kernel, depth=len(blocks)),
        out_shape=jax.ShapeDtypeStruct((N, H, W, C), jnp.float32),
        scratch_shapes=[pltpu.VMEM((N, H + 2, W + 2, C), jnp.float32)],
    )(*args)


def heads_forward(s_flat, v_layers, pi_layers):
    """s_flat: (N, H*W*C) f32; *_layers: lists of (w, b) with w: (in, out)."""
    N = s_flat.shape[0]
    action_size = pi_layers[-1][0].shape[1]
    v_out = v_layers[-1][0].shape[1]
    args = [s_flat]
    for w, b in v_layers:
        args += [w, b]
    for w, b in pi_layers:
        args += [w, b]
    return pl.pallas_call(
        functools.partial(_heads_kernel, n_v=len(v_layers), n_pi=len(pi_layers)),
        out_shape=(jax.ShapeDtypeStruct((N, action_size), jnp.float32),
                   jax.ShapeDtypeStruct((N, v_out), jnp.float32)),
    )(*args)


def fold_head_first_layer(conv_w, bn_scale, bn_bias, fc_w, fc_b, H, W):
    """Fold 1x1 conv + folded BN + NCHW flatten into the first dense layer.

    conv_w : (C, Ch)           1x1 conv weight (in, out)
    bn_*   : (1, Ch)           folded BatchNorm scale / bias
    fc_w   : (Ch*H*W, hidden)  first dense weight, rows in torch-flatten (c,h,w) order
    fc_b   : (1, hidden)
    Returns (Weff: (H*W*C, hidden) for NHWC-flattened features, beff: (1, hidden)).
    """
    C, Ch = conv_w.shape
    hidden = fc_w.shape[1]
    w_r = fc_w.reshape(Ch, H, W, hidden)
    scale = bn_scale.reshape(Ch)
    bias = bn_bias.reshape(Ch)
    weff = jnp.einsum('kc,c,chwo->hwko', conv_w, scale, w_r).reshape(H * W * C, hidden)
    beff = fc_b + jnp.einsum('c,chwo->o', bias, w_r).reshape(1, hidden)
    return weff, beff


# ----------------------------- parameter setup ------------------------------ #

def make_bn_params(key, C):
    k1, k2, k3, k4 = jax.random.split(key, 4)
    gamma = jax.random.uniform(k1, (C,), minval=0.8, maxval=1.2)
    beta = 0.1 * jax.random.normal(k2, (C,))
    mean = 0.1 * jax.random.normal(k3, (C,))
    var = jax.random.uniform(k4, (C,), minval=0.5, maxval=1.5)
    scale = gamma * jax.lax.rsqrt(var + 1e-5)
    bias = beta - mean * scale
    return (scale.reshape(1, C).astype(jnp.float32),
            bias.reshape(1, C).astype(jnp.float32))


def init_params(key, *, channels, board_x, board_y, num_channels, depth,
                value_head_channels, policy_head_channels,
                value_dense_layers, policy_dense_layers, v_out, action_size):
    keys = iter(jax.random.split(key, 64))
    nk = lambda: next(keys)

    def conv_w(cin, cout, k):
        return (jax.random.normal(nk(), (k, k, cin, cout))
                / jnp.sqrt(float(k * k * cin))).astype(jnp.float32)

    def fc_stack(sizes):
        # Weights stored (in, out); the FIRST layer's input rows follow the
        # torch.flatten(NCHW) ordering, i.e. (c, h, w).
        stack = []
        for i in range(len(sizes) - 1):
            w = (jax.random.normal(nk(), (sizes[i], sizes[i + 1]))
                 / jnp.sqrt(float(sizes[i]))).astype(jnp.float32)
            b = (0.01 * jax.random.normal(nk(), (1, sizes[i + 1]))).astype(jnp.float32)
            stack.append((w, b))
        return stack

    p = {}
    p['conv1_w'] = conv_w(channels, num_channels, 3)
    p['bn1'] = make_bn_params(nk(), num_channels)
    p['blocks'] = []
    for _ in range(depth):
        p['blocks'].append({
            'bn1': make_bn_params(nk(), num_channels),
            'conv1_w': conv_w(num_channels, num_channels, 3),
            'bn2': make_bn_params(nk(), num_channels),
            'conv2_w': conv_w(num_channels, num_channels, 3),
        })
    p['v_conv_w'] = (jax.random.normal(nk(), (num_channels, value_head_channels))
                     / jnp.sqrt(float(num_channels))).astype(jnp.float32)
    p['v_bn'] = make_bn_params(nk(), value_head_channels)
    p['v_fc'] = fc_stack([board_x * board_y * value_head_channels]
                         + value_dense_layers + [v_out])
    p['pi_conv_w'] = (jax.random.normal(nk(), (num_channels, policy_head_channels))
                      / jnp.sqrt(float(num_channels))).astype(jnp.float32)
    p['pi_bn'] = make_bn_params(nk(), policy_head_channels)
    p['pi_fc'] = fc_stack([board_x * board_y * policy_head_channels]
                          + policy_dense_layers + [action_size])
    return p


# ------------------------------- forward pass ------------------------------- #

def resnet_forward(params, s_nchw, *, channels, board_x, board_y):
    N = s_nchw.shape[0]
    s = s_nchw.reshape(N, channels, board_x, board_y)         # s.view(-1, C, X, Y)
    s = jnp.transpose(s, (0, 2, 3, 1)).astype(jnp.float32)    # NCHW -> NHWC
    xpad = jnp.pad(s, ((0, 0), (1, 1), (1, 1), (0, 0)))       # pad ONCE (stem only)

    def prep_w(w):   # (3,3,Cin,Cout) f32 -> (9,Cin,Cout) bf16, tap = dy*3+dx
        return w.reshape(9, w.shape[2], w.shape[3]).astype(jnp.bfloat16)

    blocks = [{'bn1': blk['bn1'], 'conv1_w': prep_w(blk['conv1_w']),
               'bn2': blk['bn2'], 'conv2_w': prep_w(blk['conv2_w'])}
              for blk in params['blocks']]

    # Fused stem + residual tower (single pallas_call, all weights in VMEM).
    feat = tower_forward(xpad, prep_w(params['conv1_w']), params['bn1'], blocks)
    C = feat.shape[-1]
    s_flat = feat.reshape(N, board_x * board_y * C)           # (h, w, c) order

    # Heads: fold conv1x1 + BN + NCHW flatten into the first dense layer, then
    # run both dense chains + log_softmax in one fused kernel.
    v_layers = [fold_head_first_layer(params['v_conv_w'], *params['v_bn'],
                                      *params['v_fc'][0], board_x, board_y)]
    v_layers += list(params['v_fc'][1:])
    pi_layers = [fold_head_first_layer(params['pi_conv_w'], *params['pi_bn'],
                                       *params['pi_fc'][0], board_x, board_y)]
    pi_layers += list(params['pi_fc'][1:])

    log_pi, log_v = heads_forward(s_flat, v_layers, pi_layers)
    return log_pi, log_v


# ----------------------------------- main ----------------------------------- #

if __name__ == "__main__":
    # Small, module-consistent configuration.
    channels, board_x, board_y = 4, 8, 8        # game_cls.observation_size()
    num_channels, depth = 32, 2                 # args.num_channels, args.depth
    value_head_channels, policy_head_channels = 2, 4
    value_dense_layers, policy_dense_layers = [32], [64]
    num_players, has_draw = 2, 1
    action_size = board_x * board_y + 1         # 65

    key = jax.random.PRNGKey(0)
    kx, kp = jax.random.split(key)
    x = jax.random.normal(kx, (2, channels, board_x, board_y), dtype=jnp.float32)

    params = init_params(
        kp, channels=channels, board_x=board_x, board_y=board_y,
        num_channels=num_channels, depth=depth,
        value_head_channels=value_head_channels,
        policy_head_channels=policy_head_channels,
        value_dense_layers=value_dense_layers,
        policy_dense_layers=policy_dense_layers,
        v_out=num_players + has_draw, action_size=action_size)

    fwd = jax.jit(functools.partial(resnet_forward, channels=channels,
                                    board_x=board_x, board_y=board_y))
    log_pi, log_v = fwd(params, x)
    jax.block_until_ready((log_pi, log_v))

    assert log_pi.shape == (2, action_size)
    assert log_v.shape == (2, num_players + has_draw)
    # log_softmax rows must exp-sum to 1
    assert bool(jnp.allclose(jnp.sum(jnp.exp(log_pi), axis=1), 1.0, atol=1e-4))
    assert bool(jnp.allclose(jnp.sum(jnp.exp(log_v), axis=1), 1.0, atol=1e-4))
    print("KERNEL_OK")
</pallas_src>

<mosaic_0001>
module attributes {stable_mosaic.version = 11 : i64} {
  func.func @_tower_kernel(%arg0: memref<2x10x10x4xf32, #tpu.memory_space<vmem>>, %arg1: memref<9x4x32xbf16, #tpu.memory_space<vmem>>, %arg2: memref<1x32xf32, #tpu.memory_space<vmem>>, %arg3: memref<1x32xf32, #tpu.memory_space<vmem>>, %arg4: memref<1x32xf32, #tpu.memory_space<vmem>>, %arg5: memref<1x32xf32, #tpu.memory_space<vmem>>, %arg6: memref<9x32x32xbf16, #tpu.memory_space<vmem>>, %arg7: memref<1x32xf32, #tpu.memory_space<vmem>>, %arg8: memref<1x32xf32, #tpu.memory_space<vmem>>, %arg9: memref<9x32x32xbf16, #tpu.memory_space<vmem>>, %arg10: memref<1x32xf32, #tpu.memory_space<vmem>>, %arg11: memref<1x32xf32, #tpu.memory_space<vmem>>, %arg12: memref<9x32x32xbf16, #tpu.memory_space<vmem>>, %arg13: memref<1x32xf32, #tpu.memory_space<vmem>>, %arg14: memref<1x32xf32, #tpu.memory_space<vmem>>, %arg15: memref<9x32x32xbf16, #tpu.memory_space<vmem>>, %arg16: memref<2x8x8x32xf32, #tpu.memory_space<vmem>>, %arg17: memref<2x10x10x32xf32, #tpu.memory_space<vmem>>) attributes {dimension_semantics = [], scalar_prefetch = 0 : i64, scratch_operands = 1 : i64, tpu.core_type = #tpu.core_type<tc>} {
    %c0 = arith.constant 0 : index
    %c0_0 = arith.constant 0 : index
    %c0_1 = arith.constant 0 : index
    %c0_2 = arith.constant 0 : index
    %0 = vector.load %arg0[%c0, %c0_0, %c0_1, %c0_2] : memref<2x10x10x4xf32, #tpu.memory_space<vmem>>, vector<2x10x10x4xf32>
    %cst = arith.constant 0.000000e+00 : f32
    %1 = vector.broadcast %cst : f32 to vector<128x32xf32>
    %2 = vector.extract_strided_slice %0 {offsets = [0, 0, 0, 0], sizes = [2, 8, 8, 4], strides = [1, 1, 1, 1]} : vector<2x10x10x4xf32> to vector<2x8x8x4xf32>
    %3 = vector.shape_cast %2 : vector<2x8x8x4xf32> to vector<128x4xf32>
    %4 = arith.truncf %3 : vector<128x4xf32> to vector<128x4xbf16>
    %c0_3 = arith.constant 0 : index
    %c0_4 = arith.constant 0 : index
    %c0_5 = arith.constant 0 : index
    %5 = vector.load %arg1[%c0_3, %c0_4, %c0_5] : memref<9x4x32xbf16, #tpu.memory_space<vmem>>, vector<1x4x32xbf16>
    %6 = vector.shape_cast %5 : vector<1x4x32xbf16> to vector<4x32xbf16>
    %cst_6 = arith.constant dense<0.000000e+00> : vector<128x32xf32>
    %7 = tpu.matmul %4, %6, %cst_6 {dimension_numbers = #tpu.dot_dimension_numbers<[1], [0], [0], [1], [0, 0, 1, 1], [], []>} : vector<128x4xbf16>, vector<4x32xbf16>, vector<128x32xf32> -> vector<128x32xf32>
    %8 = arith.addf %1, %7 : vector<128x32xf32>
    %9 = vector.extract_strided_slice %0 {offsets = [0, 0, 1, 0], sizes = [2, 8, 8, 4], strides = [1, 1, 1, 1]} : vector<2x10x10x4xf32> to vector<2x8x8x4xf32>
    %10 = vector.shape_cast %9 : vector<2x8x8x4xf32> to vector<128x4xf32>
    %11 = arith.truncf %10 : vector<128x4xf32> to vector<128x4xbf16>
    %c1 = arith.constant 1 : index
    %c0_7 = arith.constant 0 : index
    %c0_8 = arith.constant 0 : index
    %12 = vector.load %arg1[%c1, %c0_7, %c0_8] : memref<9x4x32xbf16, #tpu.memory_space<vmem>>, vector<1x4x32xbf16>
    %13 = vector.shape_cast %12 : vector<1x4x32xbf16> to vector<4x32xbf16>
    %cst_9 = arith.constant dense<0.000000e+00> : vector<128x32xf32>
    %14 = tpu.matmul %11, %13, %cst_9 {dimension_numbers = #tpu.dot_dimension_numbers<[1], [0], [0], [1], [0, 0, 1, 1], [], []>} : vector<128x4xbf16>, vector<4x32xbf16>, vector<128x32xf32> -> vector<128x32xf32>
    %15 = arith.addf %8, %14 : vector<128x32xf32>
    %16 = vector.extract_strided_slice %0 {offsets = [0, 0, 2, 0], sizes = [2, 8, 8, 4], strides = [1, 1, 1, 1]} : vector<2x10x10x4xf32> to vector<2x8x8x4xf32>
    %17 = vector.shape_cast %16 : vector<2x8x8x4xf32> to vector<128x4xf32>
    %18 = arith.truncf %17 : vector<128x4xf32> to vector<128x4xbf16>
    %c2 = arith.constant 2 : index
    %c0_10 = arith.constant 0 : index
    %c0_11 = arith.constant 0 : index
    %19 = vector.load %arg1[%c2, %c0_10, %c0_11] : memref<9x4x32xbf16, #tpu.memory_space<vmem>>, vector<1x4x32xbf16>
    %20 = vector.shape_cast %19 : vector<1x4x32xbf16> to vector<4x32xbf16>
    %cst_12 = arith.constant dense<0.000000e+00> : vector<128x32xf32>
    %21 = tpu.matmul %18, %20, %cst_12 {dimension_numbers = #tpu.dot_dimension_numbers<[1], [0], [0], [1], [0, 0, 1, 1], [], []>} : vector<128x4xbf16>, vector<4x32xbf16>, vector<128x32xf32> -> vector<128x32xf32>
    %22 = arith.addf %15, %21 : vector<128x32xf32>
    %23 = vector.extract_strided_slice %0 {offsets = [0, 1, 0, 0], sizes = [2, 8, 8, 4], strides = [1, 1, 1, 1]} : vector<2x10x10x4xf32> to vector<2x8x8x4xf32>
    %24 = vector.shape_cast %23 : vector<2x8x8x4xf32> to vector<128x4xf32>
    %25 = arith.truncf %24 : vector<128x4xf32> to vector<128x4xbf16>
    %c3 = arith.constant 3 : index
    %c0_13 = arith.constant 0 : index
    %c0_14 = arith.constant 0 : index
    %26 = vector.load %arg1[%c3, %c0_13, %c0_14] : memref<9x4x32xbf16, #tpu.memory_space<vmem>>, vector<1x4x32xbf16>
    %27 = vector.shape_cast %26 : vector<1x4x32xbf16> to vector<4x32xbf16>
    %cst_15 = arith.constant dense<0.000000e+00> : vector<128x32xf32>
    %28 = tpu.matmul %25, %27, %cst_15 {dimension_numbers = #tpu.dot_dimension_numbers<[1], [0], [0], [1], [0, 0, 1, 1], [], []>} : vector<128x4xbf16>, vector<4x32xbf16>, vector<128x32xf32> -> vector<128x32xf32>
    %29 = arith.addf %22, %28 : vector<128x32xf32>
    %30 = vector.extract_strided_slice %0 {offsets = [0, 1, 1, 0], sizes = [2, 8, 8, 4], strides = [1, 1, 1, 1]} : vector<2x10x10x4xf32> to vector<2x8x8x4xf32>
    %31 = vector.shape_cast %30 : vector<2x8x8x4xf32> to vector<128x4xf32>
    %32 = arith.truncf %31 : vector<128x4xf32> to vector<128x4xbf16>
    %c4 = arith.constant 4 : index
    %c0_16 = arith.constant 0 : index
    %c0_17 = arith.constant 0 : index
    %33 = vector.load %arg1[%c4, %c0_16, %c0_17] : memref<9x4x32xbf16, #tpu.memory_space<vmem>>, vector<1x4x32xbf16>
    %34 = vector.shape_cast %33 : vector<1x4x32xbf16> to vector<4x32xbf16>
    %cst_18 = arith.constant dense<0.000000e+00> : vector<128x32xf32>
    %35 = tpu.matmul %32, %34, %cst_18 {dimension_numbers = #tpu.dot_dimension_numbers<[1], [0], [0], [1], [0, 0, 1, 1], [], []>} : vector<128x4xbf16>, vector<4x32xbf16>, vector<128x32xf32> -> vector<128x32xf32>
    %36 = arith.addf %29, %35 : vector<128x32xf32>
    %37 = vector.extract_strided_slice %0 {offsets = [0, 1, 2, 0], sizes = [2, 8, 8, 4], strides = [1, 1, 1, 1]} : vector<2x10x10x4xf32> to vector<2x8x8x4xf32>
    %38 = vector.shape_cast %37 : vector<2x8x8x4xf32> to vector<128x4xf32>
    %39 = arith.truncf %38 : vector<128x4xf32> to vector<128x4xbf16>
    %c5 = arith.constant 5 : index
    %c0_19 = arith.constant 0 : index
    %c0_20 = arith.constant 0 : index
    %40 = vector.load %arg1[%c5, %c0_19, %c0_20] : memref<9x4x32xbf16, #tpu.memory_space<vmem>>, vector<1x4x32xbf16>
    %41 = vector.shape_cast %40 : vector<1x4x32xbf16> to vector<4x32xbf16>
    %cst_21 = arith.constant dense<0.000000e+00> : vector<128x32xf32>
    %42 = tpu.matmul %39, %41, %cst_21 {dimension_numbers = #tpu.dot_dimension_numbers<[1], [0], [0], [1], [0, 0, 1, 1], [], []>} : vector<128x4xbf16>, vector<4x32xbf16>, vector<128x32xf32> -> vector<128x32xf32>
    %43 = arith.addf %36, %42 : vector<128x32xf32>
    %44 = vector.extract_strided_slice %0 {offsets = [0, 2, 0, 0], sizes = [2, 8, 8, 4], strides = [1, 1, 1, 1]} : vector<2x10x10x4xf32> to vector<2x8x8x4xf32>
    %45 = vector.shape_cast %44 : vector<2x8x8x4xf32> to vector<128x4xf32>
    %46 = arith.truncf %45 : vector<128x4xf32> to vector<128x4xbf16>
    %c6 = arith.constant 6 : index
    %c0_22 = arith.constant 0 : index
    %c0_23 = arith.constant 0 : index
    %47 = vector.load %arg1[%c6, %c0_22, %c0_23] : memref<9x4x32xbf16, #tpu.memory_space<vmem>>, vector<1x4x32xbf16>
    %48 = vector.shape_cast %47 : vector<1x4x32xbf16> to vector<4x32xbf16>
    %cst_24 = arith.constant dense<0.000000e+00> : vector<128x32xf32>
    %49 = tpu.matmul %46, %48, %cst_24 {dimension_numbers = #tpu.dot_dimension_numbers<[1], [0], [0], [1], [0, 0, 1, 1], [], []>} : vector<128x4xbf16>, vector<4x32xbf16>, vector<128x32xf32> -> vector<128x32xf32>
    %50 = arith.addf %43, %49 : vector<128x32xf32>
    %51 = vector.extract_strided_slice %0 {offsets = [0, 2, 1, 0], sizes = [2, 8, 8, 4], strides = [1, 1, 1, 1]} : vector<2x10x10x4xf32> to vector<2x8x8x4xf32>
    %52 = vector.shape_cast %51 : vector<2x8x8x4xf32> to vector<128x4xf32>
    %53 = arith.truncf %52 : vector<128x4xf32> to vector<128x4xbf16>
    %c7 = arith.constant 7 : index
    %c0_25 = arith.constant 0 : index
    %c0_26 = arith.constant 0 : index
    %54 = vector.load %arg1[%c7, %c0_25, %c0_26] : memref<9x4x32xbf16, #tpu.memory_space<vmem>>, vector<1x4x32xbf16>
    %55 = vector.shape_cast %54 : vector<1x4x32xbf16> to vector<4x32xbf16>
    %cst_27 = arith.constant dense<0.000000e+00> : vector<128x32xf32>
    %56 = tpu.matmul %53, %55, %cst_27 {dimension_numbers = #tpu.dot_dimension_numbers<[1], [0], [0], [1], [0, 0, 1, 1], [], []>} : vector<128x4xbf16>, vector<4x32xbf16>, vector<128x32xf32> -> vector<128x32xf32>
    %57 = arith.addf %50, %56 : vector<128x32xf32>
    %58 = vector.extract_strided_slice %0 {offsets = [0, 2, 2, 0], sizes = [2, 8, 8, 4], strides = [1, 1, 1, 1]} : vector<2x10x10x4xf32> to vector<2x8x8x4xf32>
    %59 = vector.shape_cast %58 : vector<2x8x8x4xf32> to vector<128x4xf32>
    %60 = arith.truncf %59 : vector<128x4xf32> to vector<128x4xbf16>
    %c8 = arith.constant 8 : index
    %c0_28 = arith.constant 0 : index
    %c0_29 = arith.constant 0 : index
    %61 = vector.load %arg1[%c8, %c0_28, %c0_29] : memref<9x4x32xbf16, #tpu.memory_space<vmem>>, vector<1x4x32xbf16>
    %62 = vector.shape_cast %61 : vector<1x4x32xbf16> to vector<4x32xbf16>
    %cst_30 = arith.constant dense<0.000000e+00> : vector<128x32xf32>
    %63 = tpu.matmul %60, %62, %cst_30 {dimension_numbers = #tpu.dot_dimension_numbers<[1], [0], [0], [1], [0, 0, 1, 1], [], []>} : vector<128x4xbf16>, vector<4x32xbf16>, vector<128x32xf32> -> vector<128x32xf32>
    %64 = arith.addf %57, %63 : vector<128x32xf32>
    %c0_31 = arith.constant 0 : index
    %c0_32 = arith.constant 0 : index
    %65 = vector.load %arg2[%c0_31, %c0_32] : memref<1x32xf32, #tpu.memory_space<vmem>>, vector<1x32xf32>
    %66 = vector.broadcast %65 : vector<1x32xf32> to vector<128x32xf32>
    %67 = arith.mulf %64, %66 : vector<128x32xf32>
    %c0_33 = arith.constant 0 : index
    %c0_34 = arith.constant 0 : index
    %68 = vector.load %arg3[%c0_33, %c0_34] : memref<1x32xf32, #tpu.memory_space<vmem>>, vector<1x32xf32>
    %69 = vector.broadcast %68 : vector<1x32xf32> to vector<128x32xf32>
    %70 = arith.addf %67, %69 : vector<128x32xf32>
    %cst_35 = arith.constant 0.000000e+00 : f32
    %71 = vector.broadcast %cst_35 : f32 to vector<128x32xf32>
    %72 = arith.maximumf %70, %71 : vector<128x32xf32>
    %cst_36 = arith.constant 0.000000e+00 : f32
    %73 = vector.broadcast %cst_36 : f32 to vector<2x10x10x32xf32>
    %c0_37 = arith.constant 0 : index
    %c0_38 = arith.constant 0 : index
    %c0_39 = arith.constant 0 : index
    %c0_40 = arith.constant 0 : index
    %74 = vector.load %arg17[%c0_37, %c0_38, %c0_39, %c0_40] : memref<2x10x10x32xf32, #tpu.memory_space<vmem>>, vector<2x10x10x32xf32>
    tpu.vector_store %arg17[%c0_37, %c0_38, %c0_39, %c0_40], %73 {strides = array<i32>} : memref<2x10x10x32xf32, #tpu.memory_space<vmem>>, vector<2x10x10x32xf32>,
    %c0_41 = arith.constant 0 : index
    %c0_42 = arith.constant 0 : index
    %75 = vector.load %arg4[%c0_41, %c0_42] : memref<1x32xf32, #tpu.memory_space<vmem>>, vector<1x32xf32>
    %76 = vector.broadcast %75 : vector<1x32xf32> to vector<128x32xf32>
    %77 = arith.mulf %72, %76 : vector<128x32xf32>
    %c0_43 = arith.constant 0 : index
    %c0_44 = arith.constant 0 : index
    %78 = vector.load %arg5[%c0_43, %c0_44] : memref<1x32xf32, #tpu.memory_space<vmem>>, vector<1x32xf32>
    %79 = vector.broadcast %78 : vector<1x32xf32> to vector<128x32xf32>
    %80 = arith.addf %77, %79 : vector<128x32xf32>
    %cst_45 = arith.constant 0.000000e+00 : f32
    %81 = vector.broadcast %cst_45 : f32 to vector<128x32xf32>
    %82 = arith.maximumf %80, %81 : vector<128x32xf32>
    %83 = vector.shape_cast %82 : vector<128x32xf32> to vector<2x8x8x32xf32>
    %c0_46 = arith.constant 0 : index
    %c1_47 = arith.constant 1 : index
    %c1_48 = arith.constant 1 : index
    %c0_49 = arith.constant 0 : index
    %84 = vector.load %arg17[%c0_46, %c1_47, %c1_48, %c0_49] : memref<2x10x10x32xf32, #tpu.memory_space<vmem>>, vector<2x8x8x32xf32>
    tpu.vector_store %arg17[%c0_46, %c1_47, %c1_48, %c0_49], %83 {strides = array<i32>} : memref<2x10x10x32xf32, #tpu.memory_space<vmem>>, vector<2x8x8x32xf32>,
    %c0_50 = arith.constant 0 : index
    %c0_51 = arith.constant 0 : index
    %c0_52 = arith.constant 0 : index
    %c0_53 = arith.constant 0 : index
    %85 = vector.load %arg17[%c0_50, %c0_51, %c0_52, %c0_53] : memref<2x10x10x32xf32, #tpu.memory_space<vmem>>, vector<2x10x10x32xf32>
    %cst_54 = arith.constant 0.000000e+00 : f32
    %86 = vector.broadcast %cst_54 : f32 to vector<128x32xf32>
    %87 = vector.extract_strided_slice %85 {offsets = [0, 0, 0, 0], sizes = [2, 8, 8, 32], strides = [1, 1, 1, 1]} : vector<2x10x10x32xf32> to vector<2x8x8x32xf32>
    %88 = vector.shape_cast %87 : vector<2x8x8x32xf32> to vector<128x32xf32>
    %89 = arith.truncf %88 : vector<128x32xf32> to vector<128x32xbf16>
    %c0_55 = arith.constant 0 : index
    %c0_56 = arith.constant 0 : index
    %c0_57 = arith.constant 0 : index
    %90 = vector.load %arg6[%c0_55, %c0_56, %c0_57] : memref<9x32x32xbf16, #tpu.memory_space<vmem>>, vector<1x32x32xbf16>
    %91 = vector.shape_cast %90 : vector<1x32x32xbf16> to vector<32x32xbf16>
    %cst_58 = arith.constant dense<0.000000e+00> : vector<128x32xf32>
    %92 = tpu.matmul %89, %91, %cst_58 {dimension_numbers = #tpu.dot_dimension_numbers<[1], [0], [0], [1], [0, 0, 1, 1], [], []>} : vector<128x32xbf16>, vector<32x32xbf16>, vector<128x32xf32> -> vector<128x32xf32>
    %93 = arith.addf %86, %92 : vector<128x32xf32>
    %94 = vector.extract_strided_slice %85 {offsets = [0, 0, 1, 0], sizes = [2, 8, 8, 32], strides = [1, 1, 1, 1]} : vector<2x10x10x32xf32> to vector<2x8x8x32xf32>
    %95 = vector.shape_cast %94 : vector<2x8x8x32xf32> to vector<128x32xf32>
    %96 = arith.truncf %95 : vector<128x32xf32> to vector<128x32xbf16>
    %c1_59 = arith.constant 1 : index
    %c0_60 = arith.constant 0 : index
    %c0_61 = arith.constant 0 : index
    %97 = vector.load %arg6[%c1_59, %c0_60, %c0_61] : memref<9x32x32xbf16, #tpu.memory_space<vmem>>, vector<1x32x32xbf16>
    %98 = vector.shape_cast %97 : vector<1x32x32xbf16> to vector<32x32xbf16>
    %cst_62 = arith.constant dense<0.000000e+00> : vector<128x32xf32>
    %99 = tpu.matmul %96, %98, %cst_62 {dimension_numbers = #tpu.dot_dimension_numbers<[1], [0], [0], [1], [0, 0, 1, 1], [], []>} : vector<128x32xbf16>, vector<32x32xbf16>, vector<128x32xf32> -> vector<128x32xf32>
    %100 = arith.addf %93, %99 : vector<128x32xf32>
    %101 = vector.extract_strided_slice %85 {offsets = [0, 0, 2, 0], sizes = [2, 8, 8, 32], strides = [1, 1, 1, 1]} : vector<2x10x10x32xf32> to vector<2x8x8x32xf32>
    %102 = vector.shape_cast %101 : vector<2x8x8x32xf32> to vector<128x32xf32>
    %103 = arith.truncf %102 : vector<128x32xf32> to vector<128x32xbf16>
    %c2_63 = arith.constant 2 : index
    %c0_64 = arith.constant 0 : index
    %c0_65 = arith.constant 0 : index
    %104 = vector.load %arg6[%c2_63, %c0_64, %c0_65] : memref<9x32x32xbf16, #tpu.memory_space<vmem>>, vector<1x32x32xbf16>
    %105 = vector.shape_cast %104 : vector<1x32x32xbf16> to vector<32x32xbf16>
    %cst_66 = arith.constant dense<0.000000e+00> : vector<128x32xf32>
    %106 = tpu.matmul %103, %105, %cst_66 {dimension_numbers = #tpu.dot_dimension_numbers<[1], [0], [0], [1], [0, 0, 1, 1], [], []>} : vector<128x32xbf16>, vector<32x32xbf16>, vector<128x32xf32> -> vector<128x32xf32>
    %107 = arith.addf %100, %106 : vector<128x32xf32>
    %108 = vector.extract_strided_slice %85 {offsets = [0, 1, 0, 0], sizes = [2, 8, 8, 32], strides = [1, 1, 1, 1]} : vector<2x10x10x32xf32> to vector<2x8x8x32xf32>
    %109 = vector.shape_cast %108 : vector<2x8x8x32xf32> to vector<128x32xf32>
    %110 = arith.truncf %109 : vector<128x32xf32> to vector<128x32xbf16>
    %c3_67 = arith.constant 3 : index
    %c0_68 = arith.constant 0 : index
    %c0_69 = arith.constant 0 : index
    %111 = vector.load %arg6[%c3_67, %c0_68, %c0_69] : memref<9x32x32xbf16, #tpu.memory_space<vmem>>, vector<1x32x32xbf16>
    %112 = vector.shape_cast %111 : vector<1x32x32xbf16> to vector<32x32xbf16>
    %cst_70 = arith.constant dense<0.000000e+00> : vector<128x32xf32>
    %113 = tpu.matmul %110, %112, %cst_70 {dimension_numbers = #tpu.dot_dimension_numbers<[1], [0], [0], [1], [0, 0, 1, 1], [], []>} : vector<128x32xbf16>, vector<32x32xbf16>, vector<128x32xf32> -> vector<128x32xf32>
    %114 = arith.addf %107, %113 : vector<128x32xf32>
    %115 = vector.extract_strided_slice %85 {offsets = [0, 1, 1, 0], sizes = [2, 8, 8, 32], strides = [1, 1, 1, 1]} : vector<2x10x10x32xf32> to vector<2x8x8x32xf32>
    %116 = vector.shape_cast %115 : vector<2x8x8x32xf32> to vector<128x32xf32>
    %117 = arith.truncf %116 : vector<128x32xf32> to vector<128x32xbf16>
    %c4_71 = arith.constant 4 : index
    %c0_72 = arith.constant 0 : index
    %c0_73 = arith.constant 0 : index
    %118 = vector.load %arg6[%c4_71, %c0_72, %c0_73] : memref<9x32x32xbf16, #tpu.memory_space<vmem>>, vector<1x32x32xbf16>
    %119 = vector.shape_cast %118 : vector<1x32x32xbf16> to vector<32x32xbf16>
    %cst_74 = arith.constant dense<0.000000e+00> : vector<128x32xf32>
    %120 = tpu.matmul %117, %119, %cst_74 {dimension_numbers = #tpu.dot_dimension_numbers<[1], [0], [0], [1], [0, 0, 1, 1], [], []>} : vector<128x32xbf16>, vector<32x32xbf16>, vector<128x32xf32> -> vector<128x32xf32>
    %121 = arith.addf %114, %120 : vector<128x32xf32>
    %122 = vector.extract_strided_slice %85 {offsets = [0, 1, 2, 0], sizes = [2, 8, 8, 32], strides = [1, 1, 1, 1]} : vector<2x10x10x32xf32> to vector<2x8x8x32xf32>
    %123 = vector.shape_cast %122 : vector<2x8x8x32xf32> to vector<128x32xf32>
    %124 = arith.truncf %123 : vector<128x32xf32> to vector<128x32xbf16>
    %c5_75 = arith.constant 5 : index
    %c0_76 = arith.constant 0 : index
    %c0_77 = arith.constant 0 : index
    %125 = vector.load %arg6[%c5_75, %c0_76, %c0_77] : memref<9x32x32xbf16, #tpu.memory_space<vmem>>, vector<1x32x32xbf16>
    %126 = vector.shape_cast %125 : vector<1x32x32xbf16> to vector<32x32xbf16>
    %cst_78 = arith.constant dense<0.000000e+00> : vector<128x32xf32>
    %127 = tpu.matmul %124, %126, %cst_78 {dimension_numbers = #tpu.dot_dimension_numbers<[1], [0], [0], [1], [0, 0, 1, 1], [], []>} : vector<128x32xbf16>, vector<32x32xbf16>, vector<128x32xf32> -> vector<128x32xf32>
    %128 = arith.addf %121, %127 : vector<128x32xf32>
    %129 = vector.extract_strided_slice %85 {offsets = [0, 2, 0, 0], sizes = [2, 8, 8, 32], strides = [1, 1, 1, 1]} : vector<2x10x10x32xf32> to vector<2x8x8x32xf32>
    %130 = vector.shape_cast %129 : vector<2x8x8x32xf32> to vector<128x32xf32>
    %131 = arith.truncf %130 : vector<128x32xf32> to vector<128x32xbf16>
    %c6_79 = arith.constant 6 : index
    %c0_80 = arith.constant 0 : index
    %c0_81 = arith.constant 0 : index
    %132 = vector.load %arg6[%c6_79, %c0_80, %c0_81] : memref<9x32x32xbf16, #tpu.memory_space<vmem>>, vector<1x32x32xbf16>
    %133 = vector.shape_cast %132 : vector<1x32x32xbf16> to vector<32x32xbf16>
    %cst_82 = arith.constant dense<0.000000e+00> : vector<128x32xf32>
    %134 = tpu.matmul %131, %133, %cst_82 {dimension_numbers = #tpu.dot_dimension_numbers<[1], [0], [0], [1], [0, 0, 1, 1], [], []>} : vector<128x32xbf16>, vector<32x32xbf16>, vector<128x32xf32> -> vector<128x32xf32>
    %135 = arith.addf %128, %134 : vector<128x32xf32>
    %136 = vector.extract_strided_slice %85 {offsets = [0, 2, 1, 0], sizes = [2, 8, 8, 32], strides = [1, 1, 1, 1]} : vector<2x10x10x32xf32> to vector<2x8x8x32xf32>
    %137 = vector.shape_cast %136 : vector<2x8x8x32xf32> to vector<128x32xf32>
    %138 = arith.truncf %137 : vector<128x32xf32> to vector<128x32xbf16>
    %c7_83 = arith.constant 7 : index
    %c0_84 = arith.constant 0 : index
    %c0_85 = arith.constant 0 : index
    %139 = vector.load %arg6[%c7_83, %c0_84, %c0_85] : memref<9x32x32xbf16, #tpu.memory_space<vmem>>, vector<1x32x32xbf16>
    %140 = vector.shape_cast %139 : vector<1x32x32xbf16> to vector<32x32xbf16>
    %cst_86 = arith.constant dense<0.000000e+00> : vector<128x32xf32>
    %141 = tpu.matmul %138, %140, %cst_86 {dimension_numbers = #tpu.dot_dimension_numbers<[1], [0], [0], [1], [0, 0, 1, 1], [], []>} : vector<128x32xbf16>, vector<32x32xbf16>, vector<128x32xf32> -> vector<128x32xf32>
    %142 = arith.addf %135, %141 : vector<128x32xf32>
    %143 = vector.extract_strided_slice %85 {offsets = [0, 2, 2, 0], sizes = [2, 8, 8, 32], strides = [1, 1, 1, 1]} : vector<2x10x10x32xf32> to vector<2x8x8x32xf32>
    %144 = vector.shape_cast %143 : vector<2x8x8x32xf32> to vector<128x32xf32>
    %145 = arith.truncf %144 : vector<128x32xf32> to vector<128x32xbf16>
    %c8_87 = arith.constant 8 : index
    %c0_88 = arith.constant 0 : index
    %c0_89 = arith.constant 0 : index
    %146 = vector.load %arg6[%c8_87, %c0_88, %c0_89] : memref<9x32x32xbf16, #tpu.memory_space<vmem>>, vector<1x32x32xbf16>
    %147 = vector.shape_cast %146 : vector<1x32x32xbf16> to vector<32x32xbf16>
    %cst_90 = arith.constant dense<0.000000e+00> : vector<128x32xf32>
    %148 = tpu.matmul %145, %147, %cst_90 {dimension_numbers = #tpu.dot_dimension_numbers<[1], [0], [0], [1], [0, 0, 1, 1], [], []>} : vector<128x32xbf16>, vector<32x32xbf16>, vector<128x32xf32> -> vector<128x32xf32>
    %149 = arith.addf %142, %148 : vector<128x32xf32>
    %c0_91 = arith.constant 0 : index
    %c0_92 = arith.constant 0 : index
    %150 = vector.load %arg7[%c0_91, %c0_92] : memref<1x32xf32, #tpu.memory_space<vmem>>, vector<1x32xf32>
    %151 = vector.broadcast %150 : vector<1x32xf32> to vector<128x32xf32>
    %152 = arith.mulf %149, %151 : vector<128x32xf32>
    %c0_93 = arith.constant 0 : index
    %c0_94 = arith.constant 0 : index
    %153 = vector.load %arg8[%c0_93, %c0_94] : memref<1x32xf32, #tpu.memory_space<vmem>>, vector<1x32xf32>
    %154 = vector.broadcast %153 : vector<1x32xf32> to vector<128x32xf32>
    %155 = arith.addf %152, %154 : vector<128x32xf32>
    %cst_95 = arith.constant 0.000000e+00 : f32
    %156 = vector.broadcast %cst_95 : f32 to vector<128x32xf32>
    %157 = arith.maximumf %155, %156 : vector<128x32xf32>
    %158 = vector.shape_cast %157 : vector<128x32xf32> to vector<2x8x8x32xf32>
    %c0_96 = arith.constant 0 : index
    %c1_97 = arith.constant 1 : index
    %c1_98 = arith.constant 1 : index
    %c0_99 = arith.constant 0 : index
    %159 = vector.load %arg17[%c0_96, %c1_97, %c1_98, %c0_99] : memref<2x10x10x32xf32, #tpu.memory_space<vmem>>, vector<2x8x8x32xf32>
    tpu.vector_store %arg17[%c0_96, %c1_97, %c1_98, %c0_99], %158 {strides = array<i32>} : memref<2x10x10x32xf32, #tpu.memory_space<vmem>>, vector<2x8x8x32xf32>,
    %c0_100 = arith.constant 0 : index
    %c0_101 = arith.constant 0 : index
    %c0_102 = arith.constant 0 : index
    %c0_103 = arith.constant 0 : index
    %160 = vector.load %arg17[%c0_100, %c0_101, %c0_102, %c0_103] : memref<2x10x10x32xf32, #tpu.memory_space<vmem>>, vector<2x10x10x32xf32>
    %cst_104 = arith.constant 0.000000e+00 : f32
    %161 = vector.broadcast %cst_104 : f32 to vector<128x32xf32>
    %162 = vector.extract_strided_slice %160 {offsets = [0, 0, 0, 0], sizes = [2, 8, 8, 32], strides = [1, 1, 1, 1]} : vector<2x10x10x32xf32> to vector<2x8x8x32xf32>
    %163 = vector.shape_cast %162 : vector<2x8x8x32xf32> to vector<128x32xf32>
    %164 = arith.truncf %163 : vector<128x32xf32> to vector<128x32xbf16>
    %c0_105 = arith.constant 0 : index
    %c0_106 = arith.constant 0 : index
    %c0_107 = arith.constant 0 : index
    %165 = vector.load %arg9[%c0_105, %c0_106, %c0_107] : memref<9x32x32xbf16, #tpu.memory_space<vmem>>, vector<1x32x32xbf16>
    %166 = vector.shape_cast %165 : vector<1x32x32xbf16> to vector<32x32xbf16>
    %cst_108 = arith.constant dense<0.000000e+00> : vector<128x32xf32>
    %167 = tpu.matmul %164, %166, %cst_108 {dimension_numbers = #tpu.dot_dimension_numbers<[1], [0], [0], [1], [0, 0, 1, 1], [], []>} : vector<128x32xbf16>, vector<32x32xbf16>, vector<128x32xf32> -> vector<128x32xf32>
    %168 = arith.addf %161, %167 : vector<128x32xf32>
    %169 = vector.extract_strided_slice %160 {offsets = [0, 0, 1, 0], sizes = [2, 8, 8, 32], strides = [1, 1, 1, 1]} : vector<2x10x10x32xf32> to vector<2x8x8x32xf32>
    %170 = vector.shape_cast %169 : vector<2x8x8x32xf32> to vector<128x32xf32>
    %171 = arith.truncf %170 : vector<128x32xf32> to vector<128x32xbf16>
    %c1_109 = arith.constant 1 : index
    %c0_110 = arith.constant 0 : index
    %c0_111 = arith.constant 0 : index
    %172 = vector.load %arg9[%c1_109, %c0_110, %c0_111] : memref<9x32x32xbf16, #tpu.memory_space<vmem>>, vector<1x32x32xbf16>
    %173 = vector.shape_cast %172 : vector<1x32x32xbf16> to vector<32x32xbf16>
    %cst_112 = arith.constant dense<0.000000e+00> : vector<128x32xf32>
    %174 = tpu.matmul %171, %173, %cst_112 {dimension_numbers = #tpu.dot_dimension_numbers<[1], [0], [0], [1], [0, 0, 1, 1], [], []>} : vector<128x32xbf16>, vector<32x32xbf16>, vector<128x32xf32> -> vector<128x32xf32>
    %175 = arith.addf %168, %174 : vector<128x32xf32>
    %176 = vector.extract_strided_slice %160 {offsets = [0, 0, 2, 0], sizes = [2, 8, 8, 32], strides = [1, 1, 1, 1]} : vector<2x10x10x32xf32> to vector<2x8x8x32xf32>
    %177 = vector.shape_cast %176 : vector<2x8x8x32xf32> to vector<128x32xf32>
    %178 = arith.truncf %177 : vector<128x32xf32> to vector<128x32xbf16>
    %c2_113 = arith.constant 2 : index
    %c0_114 = arith.constant 0 : index
    %c0_115 = arith.constant 0 : index
    %179 = vector.load %arg9[%c2_113, %c0_114, %c0_115] : memref<9x32x32xbf16, #tpu.memory_space<vmem>>, vector<1x32x32xbf16>
    %180 = vector.shape_cast %179 : vector<1x32x32xbf16> to vector<32x32xbf16>
    %cst_116 = arith.constant dense<0.000000e+00> : vector<128x32xf32>
    %181 = tpu.matmul %178, %180, %cst_116 {dimension_numbers = #tpu.dot_dimension_numbers<[1], [0], [0], [1], [0, 0, 1, 1], [], []>} : vector<128x32xbf16>, vector<32x32xbf16>, vector<128x32xf32> -> vector<128x32xf32>
    %182 = arith.addf %175, %181 : vector<128x32xf32>
    %183 = vector.extract_strided_slice %160 {offsets = [0, 1, 0, 0], sizes = [2, 8, 8, 32], strides = [1, 1, 1, 1]} : vector<2x10x10x32xf32> to vector<2x8x8x32xf32>
    %184 = vector.shape_cast %183 : vector<2x8x8x32xf32> to vector<128x32xf32>
    %185 = arith.truncf %184 : vector<128x32xf32> to vector<128x32xbf16>
    %c3_117 = arith.constant 3 : index
    %c0_118 = arith.constant 0 : index
    %c0_119 = arith.constant 0 : index
    %186 = vector.load %arg9[%c3_117, %c0_118, %c0_119] : memref<9x32x32xbf16, #tpu.memory_space<vmem>>, vector<1x32x32xbf16>
    %187 = vector.shape_cast %186 : vector<1x32x32xbf16> to vector<32x32xbf16>
    %cst_120 = arith.constant dense<0.000000e+00> : vector<128x32xf32>
    %188 = tpu.matmul %185, %187, %cst_120 {dimension_numbers = #tpu.dot_dimension_numbers<[1], [0], [0], [1], [0, 0, 1, 1], [], []>} : vector<128x32xbf16>, vector<32x32xbf16>, vector<128x32xf32> -> vector<128x32xf32>
    %189 = arith.addf %182, %188 : vector<128x32xf32>
    %190 = vector.extract_strided_slice %160 {offsets = [0, 1, 1, 0], sizes = [2, 8, 8, 32], strides = [1, 1, 1, 1]} : vector<2x10x10x32xf32> to vector<2x8x8x32xf32>
    %191 = vector.shape_cast %190 : vector<2x8x8x32xf32> to vector<128x32xf32>
    %192 = arith.truncf %191 : vector<128x32xf32> to vector<128x32xbf16>
    %c4_121 = arith.constant 4 : index
    %c0_122 = arith.constant 0 : index
    %c0_123 = arith.constant 0 : index
    %193 = vector.load %arg9[%c4_121, %c0_122, %c0_123] : memref<9x32x32xbf16, #tpu.memory_space<vmem>>, vector<1x32x32xbf16>
    %194 = vector.shape_cast %193 : vector<1x32x32xbf16> to vector<32x32xbf16>
    %cst_124 = arith.constant dense<0.000000e+00> : vector<128x32xf32>
    %195 = tpu.matmul %192, %194, %cst_124 {dimension_numbers = #tpu.dot_dimension_numbers<[1], [0], [0], [1], [0, 0, 1, 1], [], []>} : vector<128x32xbf16>, vector<32x32xbf16>, vector<128x32xf32> -> vector<128x32xf32>
    %196 = arith.addf %189, %195 : vector<128x32xf32>
    %197 = vector.extract_strided_slice %160 {offsets = [0, 1, 2, 0], sizes = [2, 8, 8, 32], strides = [1, 1, 1, 1]} : vector<2x10x10x32xf32> to vector<2x8x8x32xf32>
    %198 = vector.shape_cast %197 : vector<2x8x8x32xf32> to vector<128x32xf32>
    %199 = arith.truncf %198 : vector<128x32xf32> to vector<128x32xbf16>
    %c5_125 = arith.constant 5 : index
    %c0_126 = arith.constant 0 : index
    %c0_127 = arith.constant 0 : index
    %200 = vector.load %arg9[%c5_125, %c0_126, %c0_127] : memref<9x32x32xbf16, #tpu.memory_space<vmem>>, vector<1x32x32xbf16>
    %201 = vector.shape_cast %200 : vector<1x32x32xbf16> to vector<32x32xbf16>
    %cst_128 = arith.constant dense<0.000000e+00> : vector<128x32xf32>
    %202 = tpu.matmul %199, %201, %cst_128 {dimension_numbers = #tpu.dot_dimension_numbers<[1], [0], [0], [1], [0, 0, 1, 1], [], []>} : vector<128x32xbf16>, vector<32x32xbf16>, vector<128x32xf32> -> vector<128x32xf32>
    %203 = arith.addf %196, %202 : vector<128x32xf32>
    %204 = vector.extract_strided_slice %160 {offsets = [0, 2, 0, 0], sizes = [2, 8, 8, 32], strides = [1, 1, 1, 1]} : vector<2x10x10x32xf32> to vector<2x8x8x32xf32>
    %205 = vector.shape_cast %204 : vector<2x8x8x32xf32> to vector<128x32xf32>
    %206 = arith.truncf %205 : vector<128x32xf32> to vector<128x32xbf16>
    %c6_129 = arith.constant 6 : index
    %c0_130 = arith.constant 0 : index
    %c0_131 = arith.constant 0 : index
    %207 = vector.load %arg9[%c6_129, %c0_130, %c0_131] : memref<9x32x32xbf16, #tpu.memory_space<vmem>>, vector<1x32x32xbf16>
    %208 = vector.shape_cast %207 : vector<1x32x32xbf16> to vector<32x32xbf16>
    %cst_132 = arith.constant dense<0.000000e+00> : vector<128x32xf32>
    %209 = tpu.matmul %206, %208, %cst_132 {dimension_numbers = #tpu.dot_dimension_numbers<[1], [0], [0], [1], [0, 0, 1, 1], [], []>} : vector<128x32xbf16>, vector<32x32xbf16>, vector<128x32xf32> -> vector<128x32xf32>
    %210 = arith.addf %203, %209 : vector<128x32xf32>
    %211 = vector.extract_strided_slice %160 {offsets = [0, 2, 1, 0], sizes = [2, 8, 8, 32], strides = [1, 1, 1, 1]} : vector<2x10x10x32xf32> to vector<2x8x8x32xf32>
    %212 = vector.shape_cast %211 : vector<2x8x8x32xf32> to vector<128x32xf32>
    %213 = arith.truncf %212 : vector<128x32xf32> to vector<128x32xbf16>
    %c7_133 = arith.constant 7 : index
    %c0_134 = arith.constant 0 : index
    %c0_135 = arith.constant 0 : index
    %214 = vector.load %arg9[%c7_133, %c0_134, %c0_135] : memref<9x32x32xbf16, #tpu.memory_space<vmem>>, vector<1x32x32xbf16>
    %215 = vector.shape_cast %214 : vector<1x32x32xbf16> to vector<32x32xbf16>
    %cst_136 = arith.constant dense<0.000000e+00> : vector<128x32xf32>
    %216 = tpu.matmul %213, %215, %cst_136 {dimension_numbers = #tpu.dot_dimension_numbers<[1], [0], [0], [1], [0, 0, 1, 1], [], []>} : vector<128x32xbf16>, vector<32x32xbf16>, vector<128x32xf32> -> vector<128x32xf32>
    %217 = arith.addf %210, %216 : vector<128x32xf32>
    %218 = vector.extract_strided_slice %160 {offsets = [0, 2, 2, 0], sizes = [2, 8, 8, 32], strides = [1, 1, 1, 1]} : vector<2x10x10x32xf32> to vector<2x8x8x32xf32>
    %219 = vector.shape_cast %218 : vector<2x8x8x32xf32> to vector<128x32xf32>
    %220 = arith.truncf %219 : vector<128x32xf32> to vector<128x32xbf16>
    %c8_137 = arith.constant 8 : index
    %c0_138 = arith.constant 0 : index
    %c0_139 = arith.constant 0 : index
    %221 = vector.load %arg9[%c8_137, %c0_138, %c0_139] : memref<9x32x32xbf16, #tpu.memory_space<vmem>>, vector<1x32x32xbf16>
    %222 = vector.shape_cast %221 : vector<1x32x32xbf16> to vector<32x32xbf16>
    %cst_140 = arith.constant dense<0.000000e+00> : vector<128x32xf32>
    %223 = tpu.matmul %220, %222, %cst_140 {dimension_numbers = #tpu.dot_dimension_numbers<[1], [0], [0], [1], [0, 0, 1, 1], [], []>} : vector<128x32xbf16>, vector<32x32xbf16>, vector<128x32xf32> -> vector<128x32xf32>
    %224 = arith.addf %217, %223 : vector<128x32xf32>
    %225 = arith.addf %72, %224 : vector<128x32xf32>
    %c0_141 = arith.constant 0 : index
    %c0_142 = arith.constant 0 : index
    %226 = vector.load %arg10[%c0_141, %c0_142] : memref<1x32xf32, #tpu.memory_space<vmem>>, vector<1x32xf32>
    %227 = vector.broadcast %226 : vector<1x32xf32> to vector<128x32xf32>
    %228 = arith.mulf %225, %227 : vector<128x32xf32>
    %c0_143 = arith.constant 0 : index
    %c0_144 = arith.constant 0 : index
    %229 = vector.load %arg11[%c0_143, %c0_144] : memref<1x32xf32, #tpu.memory_space<vmem>>, vector<1x32xf32>
    %230 = vector.broadcast %229 : vector<1x32xf32> to vector<128x32xf32>
    %231 = arith.addf %228, %230 : vector<128x32xf32>
    %cst_145 = arith.constant 0.000000e+00 : f32
    %232 = vector.broadcast %cst_145 : f32 to vector<128x32xf32>
    %233 = arith.maximumf %231, %232 : vector<128x32xf32>
    %234 = vector.shape_cast %233 : vector<128x32xf32> to vector<2x8x8x32xf32>
    %c0_146 = arith.constant 0 : index
    %c1_147 = arith.constant 1 : index
    %c1_148 = arith.constant 1 : index
    %c0_149 = arith.constant 0 : index
    %235 = vector.load %arg17[%c0_146, %c1_147, %c1_148, %c0_149] : memref<2x10x10x32xf32, #tpu.memory_space<vmem>>, vector<2x8x8x32xf32>
    tpu.vector_store %arg17[%c0_146, %c1_147, %c1_148, %c0_149], %234 {strides = array<i32>} : memref<2x10x10x32xf32, #tpu.memory_space<vmem>>, vector<2x8x8x32xf32>,
    %c0_150 = arith.constant 0 : index
    %c0_151 = arith.constant 0 : index
    %c0_152 = arith.constant 0 : index
    %c0_153 = arith.constant 0 : index
    %236 = vector.load %arg17[%c0_150, %c0_151, %c0_152, %c0_153] : memref<2x10x10x32xf32, #tpu.memory_space<vmem>>, vector<2x10x10x32xf32>
    %cst_154 = arith.constant 0.000000e+00 : f32
    %237 = vector.broadcast %cst_154 : f32 to vector<128x32xf32>
    %238 = vector.extract_strided_slice %236 {offsets = [0, 0, 0, 0], sizes = [2, 8, 8, 32], strides = [1, 1, 1, 1]} : vector<2x10x10x32xf32> to vector<2x8x8x32xf32>
    %239 = vector.shape_cast %238 : vector<2x8x8x32xf32> to vector<128x32xf32>
    %240 = arith.truncf %239 : vector<128x32xf32> to vector<128x32xbf16>
    %c0_155 = arith.constant 0 : index
    %c0_156 = arith.constant 0 : index
    %c0_157 = arith.constant 0 : index
    %241 = vector.load %arg12[%c0_155, %c0_156, %c0_157] : memref<9x32x32xbf16, #tpu.memory_space<vmem>>, vector<1x32x32xbf16>
    %242 = vector.shape_cast %241 : vector<1x32x32xbf16> to vector<32x32xbf16>
    %cst_158 = arith.constant dense<0.000000e+00> : vector<128x32xf32>
    %243 = tpu.matmul %240, %242, %cst_158 {dimension_numbers = #tpu.dot_dimension_numbers<[1], [0], [0], [1], [0, 0, 1, 1], [], []>} : vector<128x32xbf16>, vector<32x32xbf16>, vector<128x32xf32> -> vector<128x32xf32>
    %244 = arith.addf %237, %243 : vector<128x32xf32>
    %245 = vector.extract_strided_slice %236 {offsets = [0, 0, 1, 0], sizes = [2, 8, 8, 32], strides = [1, 1, 1, 1]} : vector<2x10x10x32xf32> to vector<2x8x8x32xf32>
    %246 = vector.shape_cast %245 : vector<2x8x8x32xf32> to vector<128x32xf32>
    %247 = arith.truncf %246 : vector<128x32xf32> to vector<128x32xbf16>
    %c1_159 = arith.constant 1 : index
    %c0_160 = arith.constant 0 : index
    %c0_161 = arith.constant 0 : index
    %248 = vector.load %arg12[%c1_159, %c0_160, %c0_161] : memref<9x32x32xbf16, #tpu.memory_space<vmem>>, vector<1x32x32xbf16>
    %249 = vector.shape_cast %248 : vector<1x32x32xbf16> to vector<32x32xbf16>
    %cst_162 = arith.constant dense<0.000000e+00> : vector<128x32xf32>
    %250 = tpu.matmul %247, %249, %cst_162 {dimension_numbers = #tpu.dot_dimension_numbers<[1], [0], [0], [1], [0, 0, 1, 1], [], []>} : vector<128x32xbf16>, vector<32x32xbf16>, vector<128x32xf32> -> vector<128x32xf32>
    %251 = arith.addf %244, %250 : vector<128x32xf32>
    %252 = vector.extract_strided_slice %236 {offsets = [0, 0, 2, 0], sizes = [2, 8, 8, 32], strides = [1, 1, 1, 1]} : vector<2x10x10x32xf32> to vector<2x8x8x32xf32>
    %253 = vector.shape_cast %252 : vector<2x8x8x32xf32> to vector<128x32xf32>
    %254 = arith.truncf %253 : vector<128x32xf32> to vector<128x32xbf16>
    %c2_163 = arith.constant 2 : index
    %c0_164 = arith.constant 0 : index
    %c0_165 = arith.constant 0 : index
    %255 = vector.load %arg12[%c2_163, %c0_164, %c0_165] : memref<9x32x32xbf16, #tpu.memory_space<vmem>>, vector<1x32x32xbf16>
    %256 = vector.shape_cast %255 : vector<1x32x32xbf16> to vector<32x32xbf16>
    %cst_166 = arith.constant dense<0.000000e+00> : vector<128x32xf32>
    %257 = tpu.matmul %254, %256, %cst_166 {dimension_numbers = #tpu.dot_dimension_numbers<[1], [0], [0], [1], [0, 0, 1, 1], [], []>} : vector<128x32xbf16>, vector<32x32xbf16>, vector<128x32xf32> -> vector<128x32xf32>
    %258 = arith.addf %251, %257 : vector<128x32xf32>
    %259 = vector.extract_strided_slice %236 {offsets = [0, 1, 0, 0], sizes = [2, 8, 8, 32], strides = [1, 1, 1, 1]} : vector<2x10x10x32xf32> to vector<2x8x8x32xf32>
    %260 = vector.shape_cast %259 : vector<2x8x8x32xf32> to vector<128x32xf32>
    %261 = arith.truncf %260 : vector<128x32xf32> to vector<128x32xbf16>
    %c3_167 = arith.constant 3 : index
    %c0_168 = arith.constant 0 : index
    %c0_169 = arith.constant 0 : index
    %262 = vector.load %arg12[%c3_167, %c0_168, %c0_169] : memref<9x32x32xbf16, #tpu.memory_space<vmem>>, vector<1x32x32xbf16>
    %263 = vector.shape_cast %262 : vector<1x32x32xbf16> to vector<32x32xbf16>
    %cst_170 = arith.constant dense<0.000000e+00> : vector<128x32xf32>
    %264 = tpu.matmul %261, %263, %cst_170 {dimension_numbers = #tpu.dot_dimension_numbers<[1], [0], [0], [1], [0, 0, 1, 1], [], []>} : vector<128x32xbf16>, vector<32x32xbf16>, vector<128x32xf32> -> vector<128x32xf32>
    %265 = arith.addf %258, %264 : vector<128x32xf32>
    %266 = vector.extract_strided_slice %236 {offsets = [0, 1, 1, 0], sizes = [2, 8, 8, 32], strides = [1, 1, 1, 1]} : vector<2x10x10x32xf32> to vector<2x8x8x32xf32>
    %267 = vector.shape_cast %266 : vector<2x8x8x32xf32> to vector<128x32xf32>
    %268 = arith.truncf %267 : vector<128x32xf32> to vector<128x32xbf16>
    %c4_171 = arith.constant 4 : index
    %c0_172 = arith.constant 0 : index
    %c0_173 = arith.constant 0 : index
    %269 = vector.load %arg12[%c4_171, %c0_172, %c0_173] : memref<9x32x32xbf16, #tpu.memory_space<vmem>>, vector<1x32x32xbf16>
    %270 = vector.shape_cast %269 : vector<1x32x32xbf16> to vector<32x32xbf16>
    %cst_174 = arith.constant dense<0.000000e+00> : vector<128x32xf32>
    %271 = tpu.matmul %268, %270, %cst_174 {dimension_numbers = #tpu.dot_dimension_numbers<[1], [0], [0], [1], [0, 0, 1, 1], [], []>} : vector<128x32xbf16>, vector<32x32xbf16>, vector<128x32xf32> -> vector<128x32xf32>
    %272 = arith.addf %265, %271 : vector<128x32xf32>
    %273 = vector.extract_strided_slice %236 {offsets = [0, 1, 2, 0], sizes = [2, 8, 8, 32], strides = [1, 1, 1, 1]} : vector<2x10x10x32xf32> to vector<2x8x8x32xf32>
    %274 = vector.shape_cast %273 : vector<2x8x8x32xf32> to vector<128x32xf32>
    %275 = arith.truncf %274 : vector<128x32xf32> to vector<128x32xbf16>
    %c5_175 = arith.constant 5 : index
    %c0_176 = arith.constant 0 : index
    %c0_177 = arith.constant 0 : index
    %276 = vector.load %arg12[%c5_175, %c0_176, %c0_177] : memref<9x32x32xbf16, #tpu.memory_space<vmem>>, vector<1x32x32xbf16>
    %277 = vector.shape_cast %276 : vector<1x32x32xbf16> to vector<32x32xbf16>
    %cst_178 = arith.constant dense<0.000000e+00> : vector<128x32xf32>
    %278 = tpu.matmul %275, %277, %cst_178 {dimension_numbers = #tpu.dot_dimension_numbers<[1], [0], [0], [1], [0, 0, 1, 1], [], []>} : vector<128x32xbf16>, vector<32x32xbf16>, vector<128x32xf32> -> vector<128x32xf32>
    %279 = arith.addf %272, %278 : vector<128x32xf32>
    %280 = vector.extract_strided_slice %236 {offsets = [0, 2, 0, 0], sizes = [2, 8, 8, 32], strides = [1, 1, 1, 1]} : vector<2x10x10x32xf32> to vector<2x8x8x32xf32>
    %281 = vector.shape_cast %280 : vector<2x8x8x32xf32> to vector<128x32xf32>
    %282 = arith.truncf %281 : vector<128x32xf32> to vector<128x32xbf16>
    %c6_179 = arith.constant 6 : index
    %c0_180 = arith.constant 0 : index
    %c0_181 = arith.constant 0 : index
    %283 = vector.load %arg12[%c6_179, %c0_180, %c0_181] : memref<9x32x32xbf16, #tpu.memory_space<vmem>>, vector<1x32x32xbf16>
    %284 = vector.shape_cast %283 : vector<1x32x32xbf16> to vector<32x32xbf16>
    %cst_182 = arith.constant dense<0.000000e+00> : vector<128x32xf32>
    %285 = tpu.matmul %282, %284, %cst_182 {dimension_numbers = #tpu.dot_dimension_numbers<[1], [0], [0], [1], [0, 0, 1, 1], [], []>} : vector<128x32xbf16>, vector<32x32xbf16>, vector<128x32xf32> -> vector<128x32xf32>
    %286 = arith.addf %279, %285 : vector<128x32xf32>
    %287 = vector.extract_strided_slice %236 {offsets = [0, 2, 1, 0], sizes = [2, 8, 8, 32], strides = [1, 1, 1, 1]} : vector<2x10x10x32xf32> to vector<2x8x8x32xf32>
    %288 = vector.shape_cast %287 : vector<2x8x8x32xf32> to vector<128x32xf32>
    %289 = arith.truncf %288 : vector<128x32xf32> to vector<128x32xbf16>
    %c7_183 = arith.constant 7 : index
    %c0_184 = arith.constant 0 : index
    %c0_185 = arith.constant 0 : index
    %290 = vector.load %arg12[%c7_183, %c0_184, %c0_185] : memref<9x32x32xbf16, #tpu.memory_space<vmem>>, vector<1x32x32xbf16>
    %291 = vector.shape_cast %290 : vector<1x32x32xbf16> to vector<32x32xbf16>
    %cst_186 = arith.constant dense<0.000000e+00> : vector<128x32xf32>
    %292 = tpu.matmul %289, %291, %cst_186 {dimension_numbers = #tpu.dot_dimension_numbers<[1], [0], [0], [1], [0, 0, 1, 1], [], []>} : vector<128x32xbf16>, vector<32x32xbf16>, vector<128x32xf32> -> vector<128x32xf32>
    %293 = arith.addf %286, %292 : vector<128x32xf32>
    %294 = vector.extract_strided_slice %236 {offsets = [0, 2, 2, 0], sizes = [2, 8, 8, 32], strides = [1, 1, 1, 1]} : vector<2x10x10x32xf32> to vector<2x8x8x32xf32>
    %295 = vector.shape_cast %294 : vector<2x8x8x32xf32> to vector<128x32xf32>
    %296 = arith.truncf %295 : vector<128x32xf32> to vector<128x32xbf16>
    %c8_187 = arith.constant 8 : index
    %c0_188 = arith.constant 0 : index
    %c0_189 = arith.constant 0 : index
    %297 = vector.load %arg12[%c8_187, %c0_188, %c0_189] : memref<9x32x32xbf16, #tpu.memory_space<vmem>>, vector<1x32x32xbf16>
    %298 = vector.shape_cast %297 : vector<1x32x32xbf16> to vector<32x32xbf16>
    %cst_190 = arith.constant dense<0.000000e+00> : vector<128x32xf32>
    %299 = tpu.matmul %296, %298, %cst_190 {dimension_numbers = #tpu.dot_dimension_numbers<[1], [0], [0], [1], [0, 0, 1, 1], [], []>} : vector<128x32xbf16>, vector<32x32xbf16>, vector<128x32xf32> -> vector<128x32xf32>
    %300 = arith.addf %293, %299 : vector<128x32xf32>
    %c0_191 = arith.constant 0 : index
    %c0_192 = arith.constant 0 : index
    %301 = vector.load %arg13[%c0_191, %c0_192] : memref<1x32xf32, #tpu.memory_space<vmem>>, vector<1x32xf32>
    %302 = vector.broadcast %301 : vector<1x32xf32> to vector<128x32xf32>
    %303 = arith.mulf %300, %302 : vector<128x32xf32>
    %c0_193 = arith.constant 0 : index
    %c0_194 = arith.constant 0 : index
    %304 = vector.load %arg14[%c0_193, %c0_194] : memref<1x32xf32, #tpu.memory_space<vmem>>, vector<1x32xf32>
    %305 = vector.broadcast %304 : vector<1x32xf32> to vector<128x32xf32>
    %306 = arith.addf %303, %305 : vector<128x32xf32>
    %cst_195 = arith.constant 0.000000e+00 : f32
    %307 = vector.broadcast %cst_195 : f32 to vector<128x32xf32>
    %308 = arith.maximumf %306, %307 : vector<128x32xf32>
    %309 = vector.shape_cast %308 : vector<128x32xf32> to vector<2x8x8x32xf32>
    %c0_196 = arith.constant 0 : index
    %c1_197 = arith.constant 1 : index
    %c1_198 = arith.constant 1 : index
    %c0_199 = arith.constant 0 : index
    %310 = vector.load %arg17[%c0_196, %c1_197, %c1_198, %c0_199] : memref<2x10x10x32xf32, #tpu.memory_space<vmem>>, vector<2x8x8x32xf32>
    tpu.vector_store %arg17[%c0_196, %c1_197, %c1_198, %c0_199], %309 {strides = array<i32>} : memref<2x10x10x32xf32, #tpu.memory_space<vmem>>, vector<2x8x8x32xf32>,
    %c0_200 = arith.constant 0 : index
    %c0_201 = arith.constant 0 : index
    %c0_202 = arith.constant 0 : index
    %c0_203 = arith.constant 0 : index
    %311 = vector.load %arg17[%c0_200, %c0_201, %c0_202, %c0_203] : memref<2x10x10x32xf32, #tpu.memory_space<vmem>>, vector<2x10x10x32xf32>
    %cst_204 = arith.constant 0.000000e+00 : f32
    %312 = vector.broadcast %cst_204 : f32 to vector<128x32xf32>
    %313 = vector.extract_strided_slice %311 {offsets = [0, 0, 0, 0], sizes = [2, 8, 8, 32], strides = [1, 1, 1, 1]} : vector<2x10x10x32xf32> to vector<2x8x8x32xf32>
    %314 = vector.shape_cast %313 : vector<2x8x8x32xf32> to vector<128x32xf32>
    %315 = arith.truncf %314 : vector<128x32xf32> to vector<128x32xbf16>
    %c0_205 = arith.constant 0 : index
    %c0_206 = arith.constant 0 : index
    %c0_207 = arith.constant 0 : index
    %316 = vector.load %arg15[%c0_205, %c0_206, %c0_207] : memref<9x32x32xbf16, #tpu.memory_space<vmem>>, vector<1x32x32xbf16>
    %317 = vector.shape_cast %316 : vector<1x32x32xbf16> to vector<32x32xbf16>
    %cst_208 = arith.constant dense<0.000000e+00> : vector<128x32xf32>
    %318 = tpu.matmul %315, %317, %cst_208 {dimension_numbers = #tpu.dot_dimension_numbers<[1], [0], [0], [1], [0, 0, 1, 1], [], []>} : vector<128x32xbf16>, vector<32x32xbf16>, vector<128x32xf32> -> vector<128x32xf32>
    %319 = arith.addf %312, %318 : vector<128x32xf32>
    %320 = vector.extract_strided_slice %311 {offsets = [0, 0, 1, 0], sizes = [2, 8, 8, 32], strides = [1, 1, 1, 1]} : vector<2x10x10x32xf32> to vector<2x8x8x32xf32>
    %321 = vector.shape_cast %320 : vector<2x8x8x32xf32> to vector<128x32xf32>
    %322 = arith.truncf %321 : vector<128x32xf32> to vector<128x32xbf16>
    %c1_209 = arith.constant 1 : index
    %c0_210 = arith.constant 0 : index
    %c0_211 = arith.constant 0 : index
    %323 = vector.load %arg15[%c1_209, %c0_210, %c0_211] : memref<9x32x32xbf16, #tpu.memory_space<vmem>>, vector<1x32x32xbf16>
    %324 = vector.shape_cast %323 : vector<1x32x32xbf16> to vector<32x32xbf16>
    %cst_212 = arith.constant dense<0.000000e+00> : vector<128x32xf32>
    %325 = tpu.matmul %322, %324, %cst_212 {dimension_numbers = #tpu.dot_dimension_numbers<[1], [0], [0], [1], [0, 0, 1, 1], [], []>} : vector<128x32xbf16>, vector<32x32xbf16>, vector<128x32xf32> -> vector<128x32xf32>
    %326 = arith.addf %319, %325 : vector<128x32xf32>
    %327 = vector.extract_strided_slice %311 {offsets = [0, 0, 2, 0], sizes = [2, 8, 8, 32], strides = [1, 1, 1, 1]} : vector<2x10x10x32xf32> to vector<2x8x8x32xf32>
    %328 = vector.shape_cast %327 : vector<2x8x8x32xf32> to vector<128x32xf32>
    %329 = arith.truncf %328 : vector<128x32xf32> to vector<128x32xbf16>
    %c2_213 = arith.constant 2 : index
    %c0_214 = arith.constant 0 : index
    %c0_215 = arith.constant 0 : index
    %330 = vector.load %arg15[%c2_213, %c0_214, %c0_215] : memref<9x32x32xbf16, #tpu.memory_space<vmem>>, vector<1x32x32xbf16>
    %331 = vector.shape_cast %330 : vector<1x32x32xbf16> to vector<32x32xbf16>
    %cst_216 = arith.constant dense<0.000000e+00> : vector<128x32xf32>
    %332 = tpu.matmul %329, %331, %cst_216 {dimension_numbers = #tpu.dot_dimension_numbers<[1], [0], [0], [1], [0, 0, 1, 1], [], []>} : vector<128x32xbf16>, vector<32x32xbf16>, vector<128x32xf32> -> vector<128x32xf32>
    %333 = arith.addf %326, %332 : vector<128x32xf32>
    %334 = vector.extract_strided_slice %311 {offsets = [0, 1, 0, 0], sizes = [2, 8, 8, 32], strides = [1, 1, 1, 1]} : vector<2x10x10x32xf32> to vector<2x8x8x32xf32>
    %335 = vector.shape_cast %334 : vector<2x8x8x32xf32> to vector<128x32xf32>
    %336 = arith.truncf %335 : vector<128x32xf32> to vector<128x32xbf16>
    %c3_217 = arith.constant 3 : index
    %c0_218 = arith.constant 0 : index
    %c0_219 = arith.constant 0 : index
    %337 = vector.load %arg15[%c3_217, %c0_218, %c0_219] : memref<9x32x32xbf16, #tpu.memory_space<vmem>>, vector<1x32x32xbf16>
    %338 = vector.shape_cast %337 : vector<1x32x32xbf16> to vector<32x32xbf16>
    %cst_220 = arith.constant dense<0.000000e+00> : vector<128x32xf32>
    %339 = tpu.matmul %336, %338, %cst_220 {dimension_numbers = #tpu.dot_dimension_numbers<[1], [0], [0], [1], [0, 0, 1, 1], [], []>} : vector<128x32xbf16>, vector<32x32xbf16>, vector<128x32xf32> -> vector<128x32xf32>
    %340 = arith.addf %333, %339 : vector<128x32xf32>
    %341 = vector.extract_strided_slice %311 {offsets = [0, 1, 1, 0], sizes = [2, 8, 8, 32], strides = [1, 1, 1, 1]} : vector<2x10x10x32xf32> to vector<2x8x8x32xf32>
    %342 = vector.shape_cast %341 : vector<2x8x8x32xf32> to vector<128x32xf32>
    %343 = arith.truncf %342 : vector<128x32xf32> to vector<128x32xbf16>
    %c4_221 = arith.constant 4 : index
    %c0_222 = arith.constant 0 : index
    %c0_223 = arith.constant 0 : index
    %344 = vector.load %arg15[%c4_221, %c0_222, %c0_223] : memref<9x32x32xbf16, #tpu.memory_space<vmem>>, vector<1x32x32xbf16>
    %345 = vector.shape_cast %344 : vector<1x32x32xbf16> to vector<32x32xbf16>
    %cst_224 = arith.constant dense<0.000000e+00> : vector<128x32xf32>
    %346 = tpu.matmul %343, %345, %cst_224 {dimension_numbers = #tpu.dot_dimension_numbers<[1], [0], [0], [1], [0, 0, 1, 1], [], []>} : vector<128x32xbf16>, vector<32x32xbf16>, vector<128x32xf32> -> vector<128x32xf32>
    %347 = arith.addf %340, %346 : vector<128x32xf32>
    %348 = vector.extract_strided_slice %311 {offsets = [0, 1, 2, 0], sizes = [2, 8, 8, 32], strides = [1, 1, 1, 1]} : vector<2x10x10x32xf32> to vector<2x8x8x32xf32>
    %349 = vector.shape_cast %348 : vector<2x8x8x32xf32> to vector<128x32xf32>
    %350 = arith.truncf %349 : vector<128x32xf32> to vector<128x32xbf16>
    %c5_225 = arith.constant 5 : index
    %c0_226 = arith.constant 0 : index
    %c0_227 = arith.constant 0 : index
    %351 = vector.load %arg15[%c5_225, %c0_226, %c0_227] : memref<9x32x32xbf16, #tpu.memory_space<vmem>>, vector<1x32x32xbf16>
    %352 = vector.shape_cast %351 : vector<1x32x32xbf16> to vector<32x32xbf16>
    %cst_228 = arith.constant dense<0.000000e+00> : vector<128x32xf32>
    %353 = tpu.matmul %350, %352, %cst_228 {dimension_numbers = #tpu.dot_dimension_numbers<[1], [0], [0], [1], [0, 0, 1, 1], [], []>} : vector<128x32xbf16>, vector<32x32xbf16>, vector<128x32xf32> -> vector<128x32xf32>
    %354 = arith.addf %347, %353 : vector<128x32xf32>
    %355 = vector.extract_strided_slice %311 {offsets = [0, 2, 0, 0], sizes = [2, 8, 8, 32], strides = [1, 1, 1, 1]} : vector<2x10x10x32xf32> to vector<2x8x8x32xf32>
    %356 = vector.shape_cast %355 : vector<2x8x8x32xf32> to vector<128x32xf32>
    %357 = arith.truncf %356 : vector<128x32xf32> to vector<128x32xbf16>
    %c6_229 = arith.constant 6 : index
    %c0_230 = arith.constant 0 : index
    %c0_231 = arith.constant 0 : index
    %358 = vector.load %arg15[%c6_229, %c0_230, %c0_231] : memref<9x32x32xbf16, #tpu.memory_space<vmem>>, vector<1x32x32xbf16>
    %359 = vector.shape_cast %358 : vector<1x32x32xbf16> to vector<32x32xbf16>
    %cst_232 = arith.constant dense<0.000000e+00> : vector<128x32xf32>
    %360 = tpu.matmul %357, %359, %cst_232 {dimension_numbers = #tpu.dot_dimension_numbers<[1], [0], [0], [1], [0, 0, 1, 1], [], []>} : vector<128x32xbf16>, vector<32x32xbf16>, vector<128x32xf32> -> vector<128x32xf32>
    %361 = arith.addf %354, %360 : vector<128x32xf32>
    %362 = vector.extract_strided_slice %311 {offsets = [0, 2, 1, 0], sizes = [2, 8, 8, 32], strides = [1, 1, 1, 1]} : vector<2x10x10x32xf32> to vector<2x8x8x32xf32>
    %363 = vector.shape_cast %362 : vector<2x8x8x32xf32> to vector<128x32xf32>
    %364 = arith.truncf %363 : vector<128x32xf32> to vector<128x32xbf16>
    %c7_233 = arith.constant 7 : index
    %c0_234 = arith.constant 0 : index
    %c0_235 = arith.constant 0 : index
    %365 = vector.load %arg15[%c7_233, %c0_234, %c0_235] : memref<9x32x32xbf16, #tpu.memory_space<vmem>>, vector<1x32x32xbf16>
    %366 = vector.shape_cast %365 : vector<1x32x32xbf16> to vector<32x32xbf16>
    %cst_236 = arith.constant dense<0.000000e+00> : vector<128x32xf32>
    %367 = tpu.matmul %364, %366, %cst_236 {dimension_numbers = #tpu.dot_dimension_numbers<[1], [0], [0], [1], [0, 0, 1, 1], [], []>} : vector<128x32xbf16>, vector<32x32xbf16>, vector<128x32xf32> -> vector<128x32xf32>
    %368 = arith.addf %361, %367 : vector<128x32xf32>
    %369 = vector.extract_strided_slice %311 {offsets = [0, 2, 2, 0], sizes = [2, 8, 8, 32], strides = [1, 1, 1, 1]} : vector<2x10x10x32xf32> to vector<2x8x8x32xf32>
    %370 = vector.shape_cast %369 : vector<2x8x8x32xf32> to vector<128x32xf32>
    %371 = arith.truncf %370 : vector<128x32xf32> to vector<128x32xbf16>
    %c8_237 = arith.constant 8 : index
    %c0_238 = arith.constant 0 : index
    %c0_239 = arith.constant 0 : index
    %372 = vector.load %arg15[%c8_237, %c0_238, %c0_239] : memref<9x32x32xbf16, #tpu.memory_space<vmem>>, vector<1x32x32xbf16>
    %373 = vector.shape_cast %372 : vector<1x32x32xbf16> to vector<32x32xbf16>
    %cst_240 = arith.constant dense<0.000000e+00> : vector<128x32xf32>
    %374 = tpu.matmul %371, %373, %cst_240 {dimension_numbers = #tpu.dot_dimension_numbers<[1], [0], [0], [1], [0, 0, 1, 1], [], []>} : vector<128x32xbf16>, vector<32x32xbf16>, vector<128x32xf32> -> vector<128x32xf32>
    %375 = arith.addf %368, %374 : vector<128x32xf32>
    %376 = arith.addf %225, %375 : vector<128x32xf32>
    %377 = vector.shape_cast %376 : vector<128x32xf32> to vector<2x8x8x32xf32>
    %c0_241 = arith.constant 0 : index
    %c0_242 = arith.constant 0 : index
    %c0_243 = arith.constant 0 : index
    %c0_244 = arith.constant 0 : index
    %378 = vector.load %arg16[%c0_241, %c0_242, %c0_243, %c0_244] : memref<2x8x8x32xf32, #tpu.memory_space<vmem>>, vector<2x8x8x32xf32>
    tpu.vector_store %arg16[%c0_241, %c0_242, %c0_243, %c0_244], %377 {strides = array<i32>} : memref<2x8x8x32xf32, #tpu.memory_space<vmem>>, vector<2x8x8x32xf32>,
    return
  }
}

module attributes {stable_mosaic.version = 11 : i64} {
  func.func @_heads_kernel(%arg0: memref<2x2048xf32, #tpu.memory_space<vmem>>, %arg1: memref<2048x32xf32, #tpu.memory_space<vmem>>, %arg2: memref<1x32xf32, #tpu.memory_space<vmem>>, %arg3: memref<32x3xf32, #tpu.memory_space<vmem>>, %arg4: memref<1x3xf32, #tpu.memory_space<vmem>>, %arg5: memref<2048x64xf32, #tpu.memory_space<vmem>>, %arg6: memref<1x64xf32, #tpu.memory_space<vmem>>, %arg7: memref<64x65xf32, #tpu.memory_space<vmem>>, %arg8: memref<1x65xf32, #tpu.memory_space<vmem>>, %arg9: memref<2x65xf32, #tpu.memory_space<vmem>>, %arg10: memref<2x3xf32, #tpu.memory_space<vmem>>) attributes {dimension_semantics = [], scalar_prefetch = 0 : i64, scratch_operands = 0 : i64, tpu.core_type = #tpu.core_type<tc>} {
    %c0 = arith.constant 0 : index
    %c0_0 = arith.constant 0 : index
    %0 = vector.load %arg0[%c0, %c0_0] : memref<2x2048xf32, #tpu.memory_space<vmem>>, vector<2x2048xf32>
    %c0_1 = arith.constant 0 : index
    %c0_2 = arith.constant 0 : index
    %1 = vector.load %arg1[%c0_1, %c0_2] : memref<2048x32xf32, #tpu.memory_space<vmem>>, vector<2048x32xf32>
    %c0_3 = arith.constant 0 : index
    %c0_4 = arith.constant 0 : index
    %2 = vector.load %arg2[%c0_3, %c0_4] : memref<1x32xf32, #tpu.memory_space<vmem>>, vector<1x32xf32>
    %cst = arith.constant dense<0.000000e+00> : vector<2x32xf32>
    %3 = tpu.matmul %0, %1, %cst {dimension_numbers = #tpu.dot_dimension_numbers<[1], [0], [0], [1], [0, 0, 1, 1], [], []>} : vector<2x2048xf32>, vector<2048x32xf32>, vector<2x32xf32> -> vector<2x32xf32>
    %4 = vector.broadcast %2 : vector<1x32xf32> to vector<2x32xf32>
    %5 = arith.addf %3, %4 : vector<2x32xf32>
    %c0_5 = arith.constant 0 : index
    %c0_6 = arith.constant 0 : index
    %6 = vector.load %arg3[%c0_5, %c0_6] : memref<32x3xf32, #tpu.memory_space<vmem>>, vector<32x3xf32>
    %c0_7 = arith.constant 0 : index
    %c0_8 = arith.constant 0 : index
    %7 = vector.load %arg4[%c0_7, %c0_8] : memref<1x3xf32, #tpu.memory_space<vmem>>, vector<1x3xf32>
    %cst_9 = arith.constant dense<0.000000e+00> : vector<2x3xf32>
    %8 = tpu.matmul %5, %6, %cst_9 {dimension_numbers = #tpu.dot_dimension_numbers<[1], [0], [0], [1], [0, 0, 1, 1], [], []>} : vector<2x32xf32>, vector<32x3xf32>, vector<2x3xf32> -> vector<2x3xf32>
    %9 = vector.broadcast %7 : vector<1x3xf32> to vector<2x3xf32>
    %10 = arith.addf %8, %9 : vector<2x3xf32>
    %cst_10 = arith.constant dense<0xFF800000> : vector<2xf32>
    %11 = vector.multi_reduction <maximumf>, %10, %cst_10 [1] : vector<2x3xf32> to vector<2xf32>
    %12 = vector.shape_cast %11 : vector<2xf32> to vector<2x1xf32>
    %13 = vector.broadcast %12 : vector<2x1xf32> to vector<2x3xf32>
    %14 = arith.subf %10, %13 : vector<2x3xf32>
    %15 = math.exp %14 : vector<2x3xf32>
    %cst_11 = arith.constant dense<0.000000e+00> : vector<2xf32>
    %16 = vector.multi_reduction <add>, %15, %cst_11 [1] : vector<2x3xf32> to vector<2xf32>
    %17 = vector.shape_cast %16 : vector<2xf32> to vector<2x1xf32>
    %18 = math.log %17 : vector<2x1xf32>
    %19 = arith.addf %18, %12 : vector<2x1xf32>
    %20 = vector.broadcast %19 : vector<2x1xf32> to vector<2x3xf32>
    %21 = arith.subf %10, %20 : vector<2x3xf32>
    %c0_12 = arith.constant 0 : index
    %c0_13 = arith.constant 0 : index
    %22 = vector.load %arg10[%c0_12, %c0_13] : memref<2x3xf32, #tpu.memory_space<vmem>>, vector<2x3xf32>
    tpu.vector_store %arg10[%c0_12, %c0_13], %21 {strides = array<i32>} : memref<2x3xf32, #tpu.memory_space<vmem>>, vector<2x3xf32>,
    %c0_14 = arith.constant 0 : index
    %c0_15 = arith.constant 0 : index
    %23 = vector.load %arg5[%c0_14, %c0_15] : memref<2048x64xf32, #tpu.memory_space<vmem>>, vector<2048x64xf32>
    %c0_16 = arith.constant 0 : index
    %c0_17 = arith.constant 0 : index
    %24 = vector.load %arg6[%c0_16, %c0_17] : memref<1x64xf32, #tpu.memory_space<vmem>>, vector<1x64xf32>
    %cst_18 = arith.constant dense<0.000000e+00> : vector<2x64xf32>
    %25 = tpu.matmul %0, %23, %cst_18 {dimension_numbers = #tpu.dot_dimension_numbers<[1], [0], [0], [1], [0, 0, 1, 1], [], []>} : vector<2x2048xf32>, vector<2048x64xf32>, vector<2x64xf32> -> vector<2x64xf32>
    %26 = vector.broadcast %24 : vector<1x64xf32> to vector<2x64xf32>
    %27 = arith.addf %25, %26 : vector<2x64xf32>
    %c0_19 = arith.constant 0 : index
    %c0_20 = arith.constant 0 : index
    %28 = vector.load %arg7[%c0_19, %c0_20] : memref<64x65xf32, #tpu.memory_space<vmem>>, vector<64x65xf32>
    %c0_21 = arith.constant 0 : index
    %c0_22 = arith.constant 0 : index
    %29 = vector.load %arg8[%c0_21, %c0_22] : memref<1x65xf32, #tpu.memory_space<vmem>>, vector<1x65xf32>
    %cst_23 = arith.constant dense<0.000000e+00> : vector<2x65xf32>
    %30 = tpu.matmul %27, %28, %cst_23 {dimension_numbers = #tpu.dot_dimension_numbers<[1], [0], [0], [1], [0, 0, 1, 1], [], []>} : vector<2x64xf32>, vector<64x65xf32>, vector<2x65xf32> -> vector<2x65xf32>
    %31 = vector.broadcast %29 : vector<1x65xf32> to vector<2x65xf32>
    %32 = arith.addf %30, %31 : vector<2x65xf32>
    %cst_24 = arith.constant dense<0xFF800000> : vector<2xf32>
    %33 = vector.multi_reduction <maximumf>, %32, %cst_24 [1] : vector<2x65xf32> to vector<2xf32>
    %34 = vector.shape_cast %33 : vector<2xf32> to vector<2x1xf32>
    %35 = vector.broadcast %34 : vector<2x1xf32> to vector<2x65xf32>
    %36 = arith.subf %32, %35 : vector<2x65xf32>
    %37 = math.exp %36 : vector<2x65xf32>
    %cst_25 = arith.constant dense<0.000000e+00> : vector<2xf32>
    %38 = vector.multi_reduction <add>, %37, %cst_25 [1] : vector<2x65xf32> to vector<2xf32>
    %39 = vector.shape_cast %38 : vector<2xf32> to vector<2x1xf32>
    %40 = math.log %39 : vector<2x1xf32>
    %41 = arith.addf %40, %34 : vector<2x1xf32>
    %42 = vector.broadcast %41 : vector<2x1xf32> to vector<2x65xf32>
    %43 = arith.subf %32, %42 : vector<2x65xf32>
    %c0_26 = arith.constant 0 : index
    %c0_27 = arith.constant 0 : index
    %44 = vector.load %arg9[%c0_26, %c0_27] : memref<2x65xf32, #tpu.memory_space<vmem>>, vector<2x65xf32>
    tpu.vector_store %arg9[%c0_26, %c0_27], %43 {strides = array<i32>} : memref<2x65xf32, #tpu.memory_space<vmem>>, vector<2x65xf32>,
    return
  }
}

</mosaic_0001>

<llo_original>
// kernel: resnet_forward.3
$region0: #{resnet_forward.3}
  #allocation0 [shape = 'u32[]', space=smem, size = 0x4, offset = 0x4, fixed_abs, tag = 'smem constant byte address 0x4 - core index']
  #allocation1 [shape = 'u32[144,128]{1,0:T(1,128)}', space=vmem, size = 0x12000, scoped, tag = 'internal scratch']
  %s0 = inlined_call_operand.vmem [shape: f32[2,2048], index: 0, kind: input, shape index: {}]
  %s1 = inlined_call_operand.vmem [shape: f32[2048,32], index: 1, kind: input, shape index: {}]
  %s2 = inlined_call_operand.vmem [shape: f32[1,32], index: 2, kind: input, shape index: {}]
  %s3 = inlined_call_operand.vmem [shape: f32[32,3], index: 3, kind: input, shape index: {}]
  %s4 = inlined_call_operand.vmem [shape: f32[1,3], index: 4, kind: input, shape index: {}]
  %s5 = inlined_call_operand.vmem [shape: f32[2048,64], index: 5, kind: input, shape index: {}]
  %s6 = inlined_call_operand.vmem [shape: f32[1,64], index: 6, kind: input, shape index: {}]
  %s7 = inlined_call_operand.vmem [shape: f32[64,65], index: 7, kind: input, shape index: {}]
  %s8 = inlined_call_operand.vmem [shape: f32[1,65], index: 8, kind: input, shape index: {}]
  %s9 = inlined_call_operand.hbm [shape: f32[2,65], index: 9, kind: output, shape index: {0}]
  %s10 = inlined_call_operand.hbm [shape: f32[2,3], index: 10, kind: output, shape index: {1}]
  %11 = xla_tuple %s9, %s10
  %s12 = sld [smem:[#allocation0]]
  $region54: #{resnet_forward.3} parent=0
    _
  %s14 = ssub.s32 1, %s12
  %s15 = scalar_select 0, %s14, %s12
  $region1: #{resnet_forward.3} parent=0
    #allocation2 [shape = 'u8[1024]{0}', space=vmem, size = 0x400, scoped, tag = 'output window, operand 0, single buffered']
    #allocation3 [shape = 's32[1]{0}', space=sflag, size = 0x4, scoped, tag = 'scoped memory for resnet_forward.3']
    #allocation4 [shape = 'u8[1024]{0}', space=vmem, size = 0x400, scoped, tag = 'output window, operand 1, single buffered']
    #allocation5 [shape = 's32[1]{0}', space=sflag, size = 0x4, scoped, tag = 'scoped memory for resnet_forward.3']
    %16 = vsyncpa [#allocation3], 0
    %17 = vsyncpa [#allocation5], 0
    // Predicated region
    $region2: #{resnet_forward.3} parent=1 // pred_check
      _
    $region3: #{resnet_forward.3} parent=1 // pred_check_branch
      %19 = sbr.rel (0) target = $region5
    $region4: #{resnet_forward.3} parent=1 // pred_region
      _
    $region5: #{resnet_forward.3} parent=1 // pred_fallthru
      _
    // Predicated region
    $region6: #{resnet_forward.3} parent=1 // pred_check
      _
    $region7: #{resnet_forward.3} parent=1 // pred_check_branch
      %21 = sbr.rel (0) target = $region9
    $region8: #{resnet_forward.3} parent=1 // pred_region
      _
    $region9: #{resnet_forward.3} parent=1 // pred_fallthru
      _
    // Predicated region
    $region10: #{resnet_forward.3} parent=1 // pred_check
      _
    $region11: #{resnet_forward.3} parent=1 // pred_check_branch
      %23 = sbr.rel (0) target = $region13
    $region12: #{resnet_forward.3} parent=1 // pred_region
      _
    $region13: #{resnet_forward.3} parent=1 // pred_fallthru
      _
    // Predicated region
    $region14: #{resnet_forward.3} parent=1 // pred_check
      _
    $region15: #{resnet_forward.3} parent=1 // pred_check_branch
      %25 = sbr.rel (0) target = $region17
    $region16: #{resnet_forward.3} parent=1 // pred_region
      _
    $region17: #{resnet_forward.3} parent=1 // pred_fallthru
      _
    // Predicated region
    $region18: #{resnet_forward.3} parent=1 // pred_check
      _
    $region19: #{resnet_forward.3} parent=1 // pred_check_branch
      %27 = sbr.rel (0) target = $region21
    $region20: #{resnet_forward.3} parent=1 // pred_region
      _
    $region21: #{resnet_forward.3} parent=1 // pred_fallthru
      _
    // Predicated region
    $region22: #{resnet_forward.3} parent=1 // pred_check
      _
    $region23: #{resnet_forward.3} parent=1 // pred_check_branch
      %29 = sbr.rel (0) target = $region25
    $region24: #{resnet_forward.3} parent=1 // pred_region
      _
    $region25: #{resnet_forward.3} parent=1 // pred_fallthru
      _
    // Predicated region
    $region26: #{resnet_forward.3} parent=1 // pred_check
      _
    $region27: #{resnet_forward.3} parent=1 // pred_check_branch
      %31 = sbr.rel (0) target = $region29
    $region28: #{resnet_forward.3} parent=1 // pred_region
      _
    $region29: #{resnet_forward.3} parent=1 // pred_fallthru
      _
    // Predicated region
    $region30: #{resnet_forward.3} parent=1 // pred_check
      _
    $region31: #{resnet_forward.3} parent=1 // pred_check_branch
      %33 = sbr.rel (0) target = $region33
    $region32: #{resnet_forward.3} parent=1 // pred_region
      _
    $region33: #{resnet_forward.3} parent=1 // pred_fallthru
      _
    // Predicated region
    $region34: #{resnet_forward.3} parent=1 // pred_check
      _
    $region35: #{resnet_forward.3} parent=1 // pred_check_branch
      %35 = sbr.rel (0) target = $region37
    $region36: #{resnet_forward.3} parent=1 // pred_region
      _
    $region37: #{resnet_forward.3} parent=1 // pred_fallthru
      _
    %v36 = vld [vmem:[%s0] sm:$0xff]
    %v37 = vld [vmem:[%s0 + $0x8] sm:$0xff]
    %v38 = vld [vmem:[%s0 + $0x10] sm:$0xff]
    %v39 = vld [vmem:[%s0 + $0x18] sm:$0xff]
    %v40 = vld [vmem:[%s1] sm:$0xff]
    %v41 = vld [vmem:[%s1 + $0x8] sm:$0xff]
    %v42 = vld [vmem:[%s1 + $0x10] sm:$0xff]
    %v43 = vld [vmem:[%s1 + $0x18] sm:$0xff]
    %v44 = vld [vmem:[%s1 + $0x20] sm:$0xff]
    %v45 = vld [vmem:[%s1 + $0x28] sm:$0xff]
    %v46 = vld [vmem:[%s1 + $0x30] sm:$0xff]
    %v47 = vld [vmem:[%s1 + $0x38] sm:$0xff]
    %v48 = vld [vmem:[%s1 + $0x40] sm:$0xff]
    %v49 = vld [vmem:[%s1 + $0x48] sm:$0xff]
    %v50 = vld [vmem:[%s1 + $0x50] sm:$0xff]
    %v51 = vld [vmem:[%s1 + $0x58] sm:$0xff]
    %v52 = vld [vmem:[%s1 + $0x60] sm:$0xff]
    %v53 = vld [vmem:[%s1 + $0x68] sm:$0xff]
    %v54 = vld [vmem:[%s1 + $0x70] sm:$0xff]
    %v55 = vld [vmem:[%s1 + $0x78] sm:$0xff]
    %v56 = vld [vmem:[%s1 + $0x80] sm:$0xff]
    %v57 = vld [vmem:[%s1 + $0x88] sm:$0xff]
    %v58 = vld [vmem:[%s1 + $0x90] sm:$0xff]
    %v59 = vld [vmem:[%s1 + $0x98] sm:$0xff]
    %v60 = vld [vmem:[%s1 + $0xa0] sm:$0xff]
    %v61 = vld [vmem:[%s1 + $0xa8] sm:$0xff]
    %v62 = vld [vmem:[%s1 + $0xb0] sm:$0xff]
    %v63 = vld [vmem:[%s1 + $0xb8] sm:$0xff]
    %v64 = vld [vmem:[%s1 + $0xc0] sm:$0xff]
    %v65 = vld [vmem:[%s1 + $0xc8] sm:$0xff]
    %v66 = vld [vmem:[%s1 + $0xd0] sm:$0xff]
    %v67 = vld [vmem:[%s1 + $0xd8] sm:$0xff]
    %v68 = vld [vmem:[%s1 + $0xe0] sm:$0xff]
    %v69 = vld [vmem:[%s1 + $0xe8] sm:$0xff]
    %v70 = vld [vmem:[%s1 + $0xf0] sm:$0xff]
    %v71 = vld [vmem:[%s1 + $0xf8] sm:$0xff]
    %v72 = vld [vmem:[%s1 + $0x100] sm:$0xff]
    %v73 = vld [vmem:[%s1 + $0x108] sm:$0xff]
    %v74 = vld [vmem:[%s1 + $0x110] sm:$0xff]
    %v75 = vld [vmem:[%s1 + $0x118] sm:$0xff]
    %v76 = vld [vmem:[%s1 + $0x120] sm:$0xff]
    %v77 = vld [vmem:[%s1 + $0x128] sm:$0xff]
    %v78 = vld [vmem:[%s1 + $0x130] sm:$0xff]
    %v79 = vld [vmem:[%s1 + $0x138] sm:$0xff]
    %v80 = vld [vmem:[%s1 + $0x140] sm:$0xff]
    %v81 = vld [vmem:[%s1 + $0x148] sm:$0xff]
    %v82 = vld [vmem:[%s1 + $0x150] sm:$0xff]
    %v83 = vld [vmem:[%s1 + $0x158] sm:$0xff]
    %v84 = vld [vmem:[%s1 + $0x160] sm:$0xff]
    %v85 = vld [vmem:[%s1 + $0x168] sm:$0xff]
    %v86 = vld [vmem:[%s1 + $0x170] sm:$0xff]
    %v87 = vld [vmem:[%s1 + $0x178] sm:$0xff]
    %v88 = vld [vmem:[%s1 + $0x180] sm:$0xff]
    %v89 = vld [vmem:[%s1 + $0x188] sm:$0xff]
    %v90 = vld [vmem:[%s1 + $0x190] sm:$0xff]
    %v91 = vld [vmem:[%s1 + $0x198] sm:$0xff]
    %v92 = vld [vmem:[%s1 + $0x1a0] sm:$0xff]
    %v93 = vld [vmem:[%s1 + $0x1a8] sm:$0xff]
    %v94 = vld [vmem:[%s1 + $0x1b0] sm:$0xff]
    %v95 = vld [vmem:[%s1 + $0x1b8] sm:$0xff]
    %v96 = vld [vmem:[%s1 + $0x1c0] sm:$0xff]
    %v97 = vld [vmem:[%s1 + $0x1c8] sm:$0xff]
    %v98 = vld [vmem:[%s1 + $0x1d0] sm:$0xff]
    %v99 = vld [vmem:[%s1 + $0x1d8] sm:$0xff]
    %v100 = vld [vmem:[%s1 + $0x1e0] sm:$0xff]
    %v101 = vld [vmem:[%s1 + $0x1e8] sm:$0xff]
    %v102 = vld [vmem:[%s1 + $0x1f0] sm:$0xff]
    %v103 = vld [vmem:[%s1 + $0x1f8] sm:$0xff]
    %v104 = vld [vmem:[%s1 + $0x200] sm:$0xff]
    %v105 = vld [vmem:[%s1 + $0x208] sm:$0xff]
    %v106 = vld [vmem:[%s1 + $0x210] sm:$0xff]
    %v107 = vld [vmem:[%s1 + $0x218] sm:$0xff]
    %v108 = vld [vmem:[%s1 + $0x220] sm:$0xff]
    %v109 = vld [vmem:[%s1 + $0x228] sm:$0xff]
    %v110 = vld [vmem:[%s1 + $0x230] sm:$0xff]
    %v111 = vld [vmem:[%s1 + $0x238] sm:$0xff]
    %v112 = vld [vmem:[%s1 + $0x240] sm:$0xff]
    %v113 = vld [vmem:[%s1 + $0x248] sm:$0xff]
    %v114 = vld [vmem:[%s1 + $0x250] sm:$0xff]
    %v115 = vld [vmem:[%s1 + $0x258] sm:$0xff]
    %v116 = vld [vmem:[%s1 + $0x260] sm:$0xff]
    %v117 = vld [vmem:[%s1 + $0x268] sm:$0xff]
    %v118 = vld [vmem:[%s1 + $0x270] sm:$0xff]
    %v119 = vld [vmem:[%s1 + $0x278] sm:$0xff]
    %v120 = vld [vmem:[%s1 + $0x280] sm:$0xff]
    %v121 = vld [vmem:[%s1 + $0x288] sm:$0xff]
    %v122 = vld [vmem:[%s1 + $0x290] sm:$0xff]
    %v123 = vld [vmem:[%s1 + $0x298] sm:$0xff]
    %v124 = vld [vmem:[%s1 + $0x2a0] sm:$0xff]
    %v125 = vld [vmem:[%s1 + $0x2a8] sm:$0xff]
    %v126 = vld [vmem:[%s1 + $0x2b0] sm:$0xff]
    %v127 = vld [vmem:[%s1 + $0x2b8] sm:$0xff]
    %v128 = vld [vmem:[%s1 + $0x2c0] sm:$0xff]
    %v129 = vld [vmem:[%s1 + $0x2c8] sm:$0xff]
    %v130 = vld [vmem:[%s1 + $0x2d0] sm:$0xff]
    %v131 = vld [vmem:[%s1 + $0x2d8] sm:$0xff]
    %v132 = vld [vmem:[%s1 + $0x2e0] sm:$0xff]
    %v133 = vld [vmem:[%s1 + $0x2e8] sm:$0xff]
    %v134 = vld [vmem:[%s1 + $0x2f0] sm:$0xff]
    %v135 = vld [vmem:[%s1 + $0x2f8] sm:$0xff]
    %v136 = vld [vmem:[%s1 + $0x300] sm:$0xff]
    %v137 = vld [vmem:[%s1 + $0x308] sm:$0xff]
    %v138 = vld [vmem:[%s1 + $0x310] sm:$0xff]
    %v139 = vld [vmem:[%s1 + $0x318] sm:$0xff]
    %v140 = vld [vmem:[%s1 + $0x320] sm:$0xff]
    %v141 = vld [vmem:[%s1 + $0x328] sm:$0xff]
    %v142 = vld [vmem:[%s1 + $0x330] sm:$0xff]
    %v143 = vld [vmem:[%s1 + $0x338] sm:$0xff]
    %v144 = vld [vmem:[%s1 + $0x340] sm:$0xff]
    %v145 = vld [vmem:[%s1 + $0x348] sm:$0xff]
    %v146 = vld [vmem:[%s1 + $0x350] sm:$0xff]
    %v147 = vld [vmem:[%s1 + $0x358] sm:$0xff]
    %v148 = vld [vmem:[%s1 + $0x360] sm:$0xff]
    %v149 = vld [vmem:[%s1 + $0x368] sm:$0xff]
    %v150 = vld [vmem:[%s1 + $0x370] sm:$0xff]
    %v151 = vld [vmem:[%s1 + $0x378] sm:$0xff]
    %v152 = vld [vmem:[%s1 + $0x380] sm:$0xff]
    %v153 = vld [vmem:[%s1 + $0x388] sm:$0xff]
    %v154 = vld [vmem:[%s1 + $0x390] sm:$0xff]
    %v155 = vld [vmem:[%s1 + $0x398] sm:$0xff]
    %v156 = vld [vmem:[%s1 + $0x3a0] sm:$0xff]
    %v157 = vld [vmem:[%s1 + $0x3a8] sm:$0xff]
    %v158 = vld [vmem:[%s1 + $0x3b0] sm:$0xff]
    %v159 = vld [vmem:[%s1 + $0x3b8] sm:$0xff]
    %v160 = vld [vmem:[%s1 + $0x3c0] sm:$0xff]
    %v161 = vld [vmem:[%s1 + $0x3c8] sm:$0xff]
    %v162 = vld [vmem:[%s1 + $0x3d0] sm:$0xff]
    %v163 = vld [vmem:[%s1 + $0x3d8] sm:$0xff]
    %v164 = vld [vmem:[%s1 + $0x3e0] sm:$0xff]
    %v165 = vld [vmem:[%s1 + $0x3e8] sm:$0xff]
    %v166 = vld [vmem:[%s1 + $0x3f0] sm:$0xff]
    %v167 = vld [vmem:[%s1 + $0x3f8] sm:$0xff]
    %v168 = vld [vmem:[%s1 + $0x400] sm:$0xff]
    %v169 = vld [vmem:[%s1 + $0x408] sm:$0xff]
    %v170 = vld [vmem:[%s1 + $0x410] sm:$0xff]
    %v171 = vld [vmem:[%s1 + $0x418] sm:$0xff]
    %v172 = vld [vmem:[%s1 + $0x420] sm:$0xff]
    %v173 = vld [vmem:[%s1 + $0x428] sm:$0xff]
    %v174 = vld [vmem:[%s1 + $0x430] sm:$0xff]
    %v175 = vld [vmem:[%s1 + $0x438] sm:$0xff]
    %v176 = vld [vmem:[%s1 + $0x440] sm:$0xff]
    %v177 = vld [vmem:[%s1 + $0x448] sm:$0xff]
    %v178 = vld [vmem:[%s1 + $0x450] sm:$0xff]
    %v179 = vld [vmem:[%s1 + $0x458] sm:$0xff]
    %v180 = vld [vmem:[%s1 + $0x460] sm:$0xff]
    %v181 = vld [vmem:[%s1 + $0x468] sm:$0xff]
    %v182 = vld [vmem:[%s1 + $0x470] sm:$0xff]
    %v183 = vld [vmem:[%s1 + $0x478] sm:$0xff]
    %v184 = vld [vmem:[%s1 + $0x480] sm:$0xff]
    %v185 = vld [vmem:[%s1 + $0x488] sm:$0xff]
    %v186 = vld [vmem:[%s1 + $0x490] sm:$0xff]
    %v187 = vld [vmem:[%s1 + $0x498] sm:$0xff]
    %v188 = vld [vmem:[%s1 + $0x4a0] sm:$0xff]
    %v189 = vld [vmem:[%s1 + $0x4a8] sm:$0xff]
    %v190 = vld [vmem:[%s1 + $0x4b0] sm:$0xff]
    %v191 = vld [vmem:[%s1 + $0x4b8] sm:$0xff]
    %v192 = vld [vmem:[%s1 + $0x4c0] sm:$0xff]
    %v193 = vld [vmem:[%s1 + $0x4c8] sm:$0xff]
    %v194 = vld [vmem:[%s1 + $0x4d0] sm:$0xff]
    %v195 = vld [vmem:[%s1 + $0x4d8] sm:$0xff]
    %v196 = vld [vmem:[%s1 + $0x4e0] sm:$0xff]
    %v197 = vld [vmem:[%s1 + $0x4e8] sm:$0xff]
    %v198 = vld [vmem:[%s1 + $0x4f0] sm:$0xff]
    %v199 = vld [vmem:[%s1 + $0x4f8] sm:$0xff]
    %v200 = vld [vmem:[%s1 + $0x500] sm:$0xff]
    %v201 = vld [vmem:[%s1 + $0x508] sm:$0xff]
    %v202 = vld [vmem:[%s1 + $0x510] sm:$0xff]
    %v203 = vld [vmem:[%s1 + $0x518] sm:$0xff]
    %v204 = vld [vmem:[%s1 + $0x520] sm:$0xff]
    %v205 = vld [vmem:[%s1 + $0x528] sm:$0xff]
    %v206 = vld [vmem:[%s1 + $0x530] sm:$0xff]
    %v207 = vld [vmem:[%s1 + $0x538] sm:$0xff]
    %v208 = vld [vmem:[%s1 + $0x540] sm:$0xff]
    %v209 = vld [vmem:[%s1 + $0x548] sm:$0xff]
    %v210 = vld [vmem:[%s1 + $0x550] sm:$0xff]
    %v211 = vld [vmem:[%s1 + $0x558] sm:$0xff]
    %v212 = vld [vmem:[%s1 + $0x560] sm:$0xff]
    %v213 = vld [vmem:[%s1 + $0x568] sm:$0xff]
    %v214 = vld [vmem:[%s1 + $0x570] sm:$0xff]
    %v215 = vld [vmem:[%s1 + $0x578] sm:$0xff]
    %v216 = vld [vmem:[%s1 + $0x580] sm:$0xff]
    %v217 = vld [vmem:[%s1 + $0x588] sm:$0xff]
    %v218 = vld [vmem:[%s1 + $0x590] sm:$0xff]
    %v219 = vld [vmem:[%s1 + $0x598] sm:$0xff]
    %v220 = vld [vmem:[%s1 + $0x5a0] sm:$0xff]
    %v221 = vld [vmem:[%s1 + $0x5a8] sm:$0xff]
    %v222 = vld [vmem:[%s1 + $0x5b0] sm:$0xff]
    %v223 = vld [vmem:[%s1 + $0x5b8] sm:$0xff]
    %v224 = vld [vmem:[%s1 + $0x5c0] sm:$0xff]
    %v225 = vld [vmem:[%s1 + $0x5c8] sm:$0xff]
    %v226 = vld [vmem:[%s1 + $0x5d0] sm:$0xff]
    %v227 = vld [vmem:[%s1 + $0x5d8] sm:$0xff]
    %v228 = vld [vmem:[%s1 + $0x5e0] sm:$0xff]
    %v229 = vld [vmem:[%s1 + $0x5e8] sm:$0xff]
    %v230 = vld [vmem:[%s1 + $0x5f0] sm:$0xff]
    %v231 = vld [vmem:[%s1 + $0x5f8] sm:$0xff]
    %v232 = vld [vmem:[%s1 + $0x600] sm:$0xff]
    %v233 = vld [vmem:[%s1 + $0x608] sm:$0xff]
    %v234 = vld [vmem:[%s1 + $0x610] sm:$0xff]
    %v235 = vld [vmem:[%s1 + $0x618] sm:$0xff]
    %v236 = vld [vmem:[%s1 + $0x620] sm:$0xff]
    %v237 = vld [vmem:[%s1 + $0x628] sm:$0xff]
    %v238 = vld [vmem:[%s1 + $0x630] sm:$0xff]
    %v239 = vld [vmem:[%s1 + $0x638] sm:$0xff]
    %v240 = vld [vmem:[%s1 + $0x640] sm:$0xff]
    %v241 = vld [vmem:[%s1 + $0x648] sm:$0xff]
    %v242 = vld [vmem:[%s1 + $0x650] sm:$0xff]
    %v243 = vld [vmem:[%s1 + $0x658] sm:$0xff]
    %v244 = vld [vmem:[%s1 + $0x660] sm:$0xff]
    %v245 = vld [vmem:[%s1 + $0x668] sm:$0xff]
    %v246 = vld [vmem:[%s1 + $0x670] sm:$0xff]
    %v247 = vld [vmem:[%s1 + $0x678] sm:$0xff]
    %v248 = vld [vmem:[%s1 + $0x680] sm:$0xff]
    %v249 = vld [vmem:[%s1 + $0x688] sm:$0xff]
    %v250 = vld [vmem:[%s1 + $0x690] sm:$0xff]
    %v251 = vld [vmem:[%s1 + $0x698] sm:$0xff]
    %v252 = vld [vmem:[%s1 + $0x6a0] sm:$0xff]
    %v253 = vld [vmem:[%s1 + $0x6a8] sm:$0xff]
    %v254 = vld [vmem:[%s1 + $0x6b0] sm:$0xff]
    %v255 = vld [vmem:[%s1 + $0x6b8] sm:$0xff]
    %v256 = vld [vmem:[%s1 + $0x6c0] sm:$0xff]
    %v257 = vld [vmem:[%s1 + $0x6c8] sm:$0xff]
    %v258 = vld [vmem:[%s1 + $0x6d0] sm:$0xff]
    %v259 = vld [vmem:[%s1 + $0x6d8] sm:$0xff]
    %v260 = vld [vmem:[%s1 + $0x6e0] sm:$0xff]
    %v261 = vld [vmem:[%s1 + $0x6e8] sm:$0xff]
    %v262 = vld [vmem:[%s1 + $0x6f0] sm:$0xff]
    %v263 = vld [vmem:[%s1 + $0x6f8] sm:$0xff]
    %v264 = vld [vmem:[%s1 + $0x700] sm:$0xff]
    %v265 = vld [vmem:[%s1 + $0x708] sm:$0xff]
    %v266 = vld [vmem:[%s1 + $0x710] sm:$0xff]
    %v267 = vld [vmem:[%s1 + $0x718] sm:$0xff]
    %v268 = vld [vmem:[%s1 + $0x720] sm:$0xff]
    %v269 = vld [vmem:[%s1 + $0x728] sm:$0xff]
    %v270 = vld [vmem:[%s1 + $0x730] sm:$0xff]
    %v271 = vld [vmem:[%s1 + $0x738] sm:$0xff]
    %v272 = vld [vmem:[%s1 + $0x740] sm:$0xff]
    %v273 = vld [vmem:[%s1 + $0x748] sm:$0xff]
    %v274 = vld [vmem:[%s1 + $0x750] sm:$0xff]
    %v275 = vld [vmem:[%s1 + $0x758] sm:$0xff]
    %v276 = vld [vmem:[%s1 + $0x760] sm:$0xff]
    %v277 = vld [vmem:[%s1 + $0x768] sm:$0xff]
    %v278 = vld [vmem:[%s1 + $0x770] sm:$0xff]
    %v279 = vld [vmem:[%s1 + $0x778] sm:$0xff]
    %v280 = vld [vmem:[%s1 + $0x780] sm:$0xff]
    %v281 = vld [vmem:[%s1 + $0x788] sm:$0xff]
    %v282 = vld [vmem:[%s1 + $0x790] sm:$0xff]
    %v283 = vld [vmem:[%s1 + $0x798] sm:$0xff]
    %v284 = vld [vmem:[%s1 + $0x7a0] sm:$0xff]
    %v285 = vld [vmem:[%s1 + $0x7a8] sm:$0xff]
    %v286 = vld [vmem:[%s1 + $0x7b0] sm:$0xff]
    %v287 = vld [vmem:[%s1 + $0x7b8] sm:$0xff]
    %v288 = vld [vmem:[%s1 + $0x7c0] sm:$0xff]
    %v289 = vld [vmem:[%s1 + $0x7c8] sm:$0xff]
    %v290 = vld [vmem:[%s1 + $0x7d0] sm:$0xff]
    %v291 = vld [vmem:[%s1 + $0x7d8] sm:$0xff]
    %v292 = vld [vmem:[%s1 + $0x7e0] sm:$0xff]
    %v293 = vld [vmem:[%s1 + $0x7e8] sm:$0xff]
    %v294 = vld [vmem:[%s1 + $0x7f0] sm:$0xff]
    %v295 = vld [vmem:[%s1 + $0x7f8] sm:$0xff]
    %v296 = vld [vmem:[%s2] sm:$0x1]
    %v298 = vlaneseq
    %v299 = vshrl.u32 %v298, 7
    %v300 = vsub.s32 0, %v299
    %v301 = vrot.slane %v296, %v300
    %v307 = vcombine.high %v36, %v36
    %v309 = vunpack.c.l.s4 1983009808
    %v310 = vunpack.c.0.s8 %v309
    %v311 = vlaneseq
    %v312 = vshrl.u32 %v311, 7
    %v313 = vsub.s32 %v310, %v312
    %v314 = vrot.slane %v36, %v313
    %v316 = vunpack.c.l.s4 1983009808
    %v317 = vunpack.c.0.s8 %v316
    %v318 = vlaneseq
    %v319 = vshrl.u32 %v318, 7
    %v320 = vsub.s32 %v317, %v319
    %v321 = vrot.slane %v307, %v320
    %v322 = vcombine.high %v314, %v314
    %v323 = vcombine.high %v321, %v321
    %v324 = vcombine.high %v37, %v37
    %v326 = vunpack.c.l.s4 1983009808
    %v327 = vunpack.c.0.s8 %v326
    %v328 = vlaneseq
    %v329 = vshrl.u32 %v328, 7
    %v330 = vsub.s32 %v327, %v329
    %v331 = vrot.slane %v37, %v330
    %v333 = vunpack.c.l.s4 1983009808
    %v334 = vunpack.c.0.s8 %v333
    %v335 = vlaneseq
    %v336 = vshrl.u32 %v335, 7
    %v337 = vsub.s32 %v334, %v336
    %v338 = vrot.slane %v324, %v337
    %v339 = vcombine.high %v331, %v331
    %v340 = vcombine.high %v338, %v338
    %v341 = vcombine.high %v38, %v38
    %v343 = vunpack.c.l.s4 1983009808
    %v344 = vunpack.c.0.s8 %v343
    %v345 = vlaneseq
    %v346 = vshrl.u32 %v345, 7
    %v347 = vsub.s32 %v344, %v346
    %v348 = vrot.slane %v38, %v347
    %v350 = vunpack.c.l.s4 1983009808
    %v351 = vunpack.c.0.s8 %v350
    %v352 = vlaneseq
    %v353 = vshrl.u32 %v352, 7
    %v354 = vsub.s32 %v351, %v353
    %v355 = vrot.slane %v341, %v354
    %v356 = vcombine.high %v348, %v348
    %v357 = vcombine.high %v355, %v355
    %v358 = vcombine.high %v39, %v39
    %v360 = vunpack.c.l.s4 1983009808
    %v361 = vunpack.c.0.s8 %v360
    %v362 = vlaneseq
    %v363 = vshrl.u32 %v362, 7
    %v364 = vsub.s32 %v361, %v363
    %v365 = vrot.slane %v39, %v364
    %v367 = vunpack.c.l.s4 1983009808
    %v368 = vunpack.c.0.s8 %v367
    %v369 = vlaneseq
    %v370 = vshrl.u32 %v369, 7
    %v371 = vsub.s32 %v368, %v370
    %v372 = vrot.slane %v358, %v371
    %v373 = vcombine.high %v365, %v365
    %v374 = vcombine.high %v372, %v372
    %391 = vmatprep.subr.mxu0 0.0
    %392 = vmatpush1.msra.mxu0 %v40
    %393 = vmatprep.subr.mxu0 0.0
    %394 = vmatpush1.msra.mxu0 %v41
    %395 = vmatprep.subr.mxu0 0.0
    %396 = vmatpush1.msra.mxu0 %v42
    %397 = vmatprep.subr.mxu0 0.0
    %398 = vmatpush1.msra.mxu0 %v43
    %399 = vmatprep.subr.mxu0 0.0
    %400 = vmatpush1.msra.mxu0 %v44
    %401 = vmatprep.subr.mxu0 0.0
    %402 = vmatpush1.msra.mxu0 %v45
    %403 = vmatprep.subr.mxu0 0.0
    %404 = vmatpush1.msra.mxu0 %v46
    %405 = vmatprep.subr.mxu0 0.0
    %406 = vmatpush1.msra.mxu0 %v47
    %407 = vmatprep.subr.mxu0 0.0
    %408 = vmatpush1.msra.mxu0 %v48
    %409 = vmatprep.subr.mxu0 0.0
    %410 = vmatpush1.msra.mxu0 %v49
    %411 = vmatprep.subr.mxu0 0.0
    %412 = vmatpush1.msra.mxu0 %v50
    %413 = vmatprep.subr.mxu0 0.0
    %414 = vmatpush1.msra.mxu0 %v51
    %415 = vmatprep.subr.mxu0 0.0
    %416 = vmatpush1.msra.mxu0 %v52
    %417 = vmatprep.subr.mxu0 0.0
    %418 = vmatpush1.msra.mxu0 %v53
    %419 = vmatprep.subr.mxu0 0.0
    %420 = vmatpush1.msra.mxu0 %v54
    %421 = vmatprep.subr.mxu0 0.0
    %422 = vmatpush1.msra.mxu0 %v55
    %423 = vmatprep.subr.mxu0 0.0
    %424 = vmatpush1.msra.mxu0 %v56
    %425 = vmatprep.subr.mxu0 0.0
    %426 = vmatpush1.msra.mxu0 %v57
    %427 = vmatprep.subr.mxu0 0.0
    %428 = vmatpush1.msra.mxu0 %v58
    %429 = vmatprep.subr.mxu0 0.0
    %430 = vmatpush1.msra.mxu0 %v59
    %431 = vmatprep.subr.mxu0 0.0
    %432 = vmatpush1.msra.mxu0 %v60
    %433 = vmatprep.subr.mxu0 0.0
    %434 = vmatpush1.msra.mxu0 %v61
    %435 = vmatprep.subr.mxu0 0.0
    %436 = vmatpush1.msra.mxu0 %v62
    %437 = vmatprep.subr.mxu0 0.0
    %438 = vmatpush1.msra.mxu0 %v63
    %439 = vmatprep.subr.mxu0 0.0
    %440 = vmatpush1.msra.mxu0 %v64
    %441 = vmatprep.subr.mxu0 0.0
    %442 = vmatpush1.msra.mxu0 %v65
    %443 = vmatprep.subr.mxu0 0.0
    %444 = vmatpush1.msra.mxu0 %v66
    %445 = vmatprep.subr.mxu0 0.0
    %446 = vmatpush1.msra.mxu0 %v67
    %447 = vmatprep.subr.mxu0 0.0
    %448 = vmatpush1.msra.mxu0 %v68
    %449 = vmatprep.subr.mxu0 0.0
    %450 = vmatpush1.msra.mxu0 %v69
    %451 = vmatprep.subr.mxu0 0.0
    %452 = vmatpush1.msra.mxu0 %v70
    %453 = vmatprep.subr.mxu0 0.0
    %454 = vmatpush1.msra.mxu0 %v71
    %455 = vmatprep.mubr.f32.mxu0 %v322
    %456 = vmatmul.mubr.f32.gmra.mrb[0].mxu0 %v314
    %v457 = vpop.f32.mrb[0].mxu0
    %v458 = vadd.f32 %v301, %v457
    %v459 = vpop.f32.mrb[0].mxu0
    %460 = vdwg.mxu0
    %461 = vmatprep.subr.mxu0 0.0
    %462 = vmatpush1.msra.mxu0 %v72
    %463 = vmatprep.subr.mxu0 0.0
    %464 = vmatpush1.msra.mxu0 %v73
    %465 = vmatprep.subr.mxu0 0.0
    %466 = vmatpush1.msra.mxu0 %v74
    %467 = vmatprep.subr.mxu0 0.0
    %468 = vmatpush1.msra.mxu0 %v75
    %469 = vmatprep.subr.mxu0 0.0
    %470 = vmatpush1.msra.mxu0 %v76
    %471 = vmatprep.subr.mxu0 0.0
    %472 = vmatpush1.msra.mxu0 %v77
    %473 = vmatprep.subr.mxu0 0.0
    %474 = vmatpush1.msra.mxu0 %v78
    %475 = vmatprep.subr.mxu0 0.0
    %476 = vmatpush1.msra.mxu0 %v79
    %477 = vmatprep.subr.mxu0 0.0
    %478 = vmatpush1.msra.mxu0 %v80
    %479 = vmatprep.subr.mxu0 0.0
    %480 = vmatpush1.msra.mxu0 %v81
    %481 = vmatprep.subr.mxu0 0.0
    %482 = vmatpush1.msra.mxu0 %v82
    %483 = vmatprep.subr.mxu0 0.0
    %484 = vmatpush1.msra.mxu0 %v83
    %485 = vmatprep.subr.mxu0 0.0
    %486 = vmatpush1.msra.mxu0 %v84
    %487 = vmatprep.subr.mxu0 0.0
    %488 = vmatpush1.msra.mxu0 %v85
    %489 = vmatprep.subr.mxu0 0.0
    %490 = vmatpush1.msra.mxu0 %v86
    %491 = vmatprep.subr.mxu0 0.0
    %492 = vmatpush1.msra.mxu0 %v87
    %493 = vmatprep.subr.mxu0 0.0
    %494 = vmatpush1.msra.mxu0 %v88
    %495 = vmatprep.subr.mxu0 0.0
    %496 = vmatpush1.msra.mxu0 %v89
    %497 = vmatprep.subr.mxu0 0.0
    %498 = vmatpush1.msra.mxu0 %v90
    %499 = vmatprep.subr.mxu0 0.0
    %500 = vmatpush1.msra.mxu0 %v91
    %501 = vmatprep.subr.mxu0 0.0
    %502 = vmatpush1.msra.mxu0 %v92
    %503 = vmatprep.subr.mxu0 0.0
    %504 = vmatpush1.msra.mxu0 %v93
    %505 = vmatprep.subr.mxu0 0.0
    %506 = vmatpush1.msra.mxu0 %v94
    %507 = vmatprep.subr.mxu0 0.0
    %508 = vmatpush1.msra.mxu0 %v95
    %509 = vmatprep.subr.mxu0 0.0
    %510 = vmatpush1.msra.mxu0 %v96
    %511 = vmatprep.subr.mxu0 0.0
    %512 = vmatpush1.msra.mxu0 %v97
    %513 = vmatprep.subr.mxu0 0.0
    %514 = vmatpush1.msra.mxu0 %v98
    %515 = vmatprep.subr.mxu0 0.0
    %516 = vmatpush1.msra.mxu0 %v99
    %517 = vmatprep.subr.mxu0 0.0
    %518 = vmatpush1.msra.mxu0 %v100
    %519 = vmatprep.subr.mxu0 0.0
    %520 = vmatpush1.msra.mxu0 %v101
    %521 = vmatprep.subr.mxu0 0.0
    %522 = vmatpush1.msra.mxu0 %v102
    %523 = vmatprep.subr.mxu0 0.0
    %524 = vmatpush1.msra.mxu0 %v103
    %525 = vmatprep.mubr.f32.mxu0 %v323
    %526 = vmatmul.mubr.f32.gmra.mrb[0].mxu0 %v321
    %v527 = vpop.f32.mrb[0].mxu0
    %v528 = vadd.f32 %v458, %v527
    %v529 = vpop.f32.mrb[0].mxu0
    %530 = vdwg.mxu0
    %531 = vmatprep.subr.mxu0 0.0
    %532 = vmatpush1.msra.mxu0 %v104
    %533 = vmatprep.subr.mxu0 0.0
    %534 = vmatpush1.msra.mxu0 %v105
    %535 = vmatprep.subr.mxu0 0.0
    %536 = vmatpush1.msra.mxu0 %v106
    %537 = vmatprep.subr.mxu0 0.0
    %538 = vmatpush1.msra.mxu0 %v107
    %539 = vmatprep.subr.mxu0 0.0
    %540 = vmatpush1.msra.mxu0 %v108
    %541 = vmatprep.subr.mxu0 0.0
    %542 = vmatpush1.msra.mxu0 %v109
    %543 = vmatprep.subr.mxu0 0.0
    %544 = vmatpush1.msra.mxu0 %v110
    %545 = vmatprep.subr.mxu0 0.0
    %546 = vmatpush1.msra.mxu0 %v111
    %547 = vmatprep.subr.mxu0 0.0
    %548 = vmatpush1.msra.mxu0 %v112
    %549 = vmatprep.subr.mxu0 0.0
    %550 = vmatpush1.msra.mxu0 %v113
    %551 = vmatprep.subr.mxu0 0.0
    %552 = vmatpush1.msra.mxu0 %v114
    %553 = vmatprep.subr.mxu0 0.0
    %554 = vmatpush1.msra.mxu0 %v115
    %555 = vmatprep.subr.mxu0 0.0
    %556 = vmatpush1.msra.mxu0 %v116
    %557 = vmatprep.subr.mxu0 0.0
    %558 = vmatpush1.msra.mxu0 %v117
    %559 = vmatprep.subr.mxu0 0.0
    %560 = vmatpush1.msra.mxu0 %v118
    %561 = vmatprep.subr.mxu0 0.0
    %562 = vmatpush1.msra.mxu0 %v119
    %563 = vmatprep.subr.mxu0 0.0
    %564 = vmatpush1.msra.mxu0 %v120
    %565 = vmatprep.subr.mxu0 0.0
    %566 = vmatpush1.msra.mxu0 %v121
    %567 = vmatprep.subr.mxu0 0.0
    %568 = vmatpush1.msra.mxu0 %v122
    %569 = vmatprep.subr.mxu0 0.0
    %570 = vmatpush1.msra.mxu0 %v123
    %571 = vmatprep.subr.mxu0 0.0
    %572 = vmatpush1.msra.mxu0 %v124
    %573 = vmatprep.subr.mxu0 0.0
    %574 = vmatpush1.msra.mxu0 %v125
    %575 = vmatprep.subr.mxu0 0.0
    %576 = vmatpush1.msra.mxu0 %v126
    %577 = vmatprep.subr.mxu0 0.0
    %578 = vmatpush1.msra.mxu0 %v127
    %579 = vmatprep.subr.mxu0 0.0
    %580 = vmatpush1.msra.mxu0 %v128
    %581 = vmatprep.subr.mxu0 0.0
    %582 = vmatpush1.msra.mxu0 %v129
    %583 = vmatprep.subr.mxu0 0.0
    %584 = vmatpush1.msra.mxu0 %v130
    %585 = vmatprep.subr.mxu0 0.0
    %586 = vmatpush1.msra.mxu0 %v131
    %587 = vmatprep.subr.mxu0 0.0
    %588 = vmatpush1.msra.mxu0 %v132
    %589 = vmatprep.subr.mxu0 0.0
    %590 = vmatpush1.msra.mxu0 %v133
    %591 = vmatprep.subr.mxu0 0.0
    %592 = vmatpush1.msra.mxu0 %v134
    %593 = vmatprep.subr.mxu0 0.0
    %594 = vmatpush1.msra.mxu0 %v135
    %595 = vmatprep.mubr.f32.mxu0 %v339
    %596 = vmatmul.mubr.f32.gmra.mrb[0].mxu0 %v331
    %v597 = vpop.f32.mrb[0].mxu0
    %v598 = vadd.f32 %v528, %v597
    %v599 = vpop.f32.mrb[0].mxu0
    %600 = vdwg.mxu0
    %601 = vmatprep.subr.mxu0 0.0
    %602 = vmatpush1.msra.mxu0 %v136
    %603 = vmatprep.subr.mxu0 0.0
    %604 = vmatpush1.msra.mxu0 %v137
    %605 = vmatprep.subr.mxu0 0.0
    %606 = vmatpush1.msra.mxu0 %v138
    %607 = vmatprep.subr.mxu0 0.0
    %608 = vmatpush1.msra.mxu0 %v139
    %609 = vmatprep.subr.mxu0 0.0
    %610 = vmatpush1.msra.mxu0 %v140
    %611 = vmatprep.subr.mxu0 0.0
    %612 = vmatpush1.msra.mxu0 %v141
    %613 = vmatprep.subr.mxu0 0.0
    %614 = vmatpush1.msra.mxu0 %v142
    %615 = vmatprep.subr.mxu0 0.0
    %616 = vmatpush1.msra.mxu0 %v143
    %617 = vmatprep.subr.mxu0 0.0
    %618 = vmatpush1.msra.mxu0 %v144
    %619 = vmatprep.subr.mxu0 0.0
    %620 = vmatpush1.msra.mxu0 %v145
    %621 = vmatprep.subr.mxu0 0.0
    %622 = vmatpush1.msra.mxu0 %v146
    %623 = vmatprep.subr.mxu0 0.0
    %624 = vmatpush1.msra.mxu0 %v147
    %625 = vmatprep.subr.mxu0 0.0
    %626 = vmatpush1.msra.mxu0 %v148
    %627 = vmatprep.subr.mxu0 0.0
    %628 = vmatpush1.msra.mxu0 %v149
    %629 = vmatprep.subr.mxu0 0.0
    %630 = vmatpush1.msra.mxu0 %v150
    %631 = vmatprep.subr.mxu0 0.0
    %632 = vmatpush1.msra.mxu0 %v151
    %633 = vmatprep.subr.mxu0 0.0
    %634 = vmatpush1.msra.mxu0 %v152
    %635 = vmatprep.subr.mxu0 0.0
    %636 = vmatpush1.msra.mxu0 %v153
    %637 = vmatprep.subr.mxu0 0.0
    %638 = vmatpush1.msra.mxu0 %v154
    %639 = vmatprep.subr.mxu0 0.0
    %640 = vmatpush1.msra.mxu0 %v155
    %641 = vmatprep.subr.mxu0 0.0
    %642 = vmatpush1.msra.mxu0 %v156
    %643 = vmatprep.subr.mxu0 0.0
    %644 = vmatpush1.msra.mxu0 %v157
    %645 = vmatprep.subr.mxu0 0.0
    %646 = vmatpush1.msra.mxu0 %v158
    %647 = vmatprep.subr.mxu0 0.0
    %648 = vmatpush1.msra.mxu0 %v159
    %649 = vmatprep.subr.mxu0 0.0
    %650 = vmatpush1.msra.mxu0 %v160
    %651 = vmatprep.subr.mxu0 0.0
    %652 = vmatpush1.msra.mxu0 %v161
    %653 = vmatprep.subr.mxu0 0.0
    %654 = vmatpush1.msra.mxu0 %v162
    %655 = vmatprep.subr.mxu0 0.0
    %656 = vmatpush1.msra.mxu0 %v163
    %657 = vmatprep.subr.mxu0 0.0
    %658 = vmatpush1.msra.mxu0 %v164
    %659 = vmatprep.subr.mxu0 0.0
    %660 = vmatpush1.msra.mxu0 %v165
    %661 = vmatprep.subr.mxu0 0.0
    %662 = vmatpush1.msra.mxu0 %v166
    %663 = vmatprep.subr.mxu0 0.0
    %664 = vmatpush1.msra.mxu0 %v167
    %665 = vmatprep.mubr.f32.mxu0 %v340
    %666 = vmatmul.mubr.f32.gmra.mrb[0].mxu0 %v338
    %v667 = vpop.f32.mrb[0].mxu0
    %v668 = vadd.f32 %v598, %v667
    %v669 = vpop.f32.mrb[0].mxu0
    %670 = vdwg.mxu0
    %671 = vmatprep.subr.mxu0 0.0
    %672 = vmatpush1.msra.mxu0 %v168
    %673 = vmatprep.subr.mxu0 0.0
    %674 = vmatpush1.msra.mxu0 %v169
    %675 = vmatprep.subr.mxu0 0.0
    %676 = vmatpush1.msra.mxu0 %v170
    %677 = vmatprep.subr.mxu0 0.0
    %678 = vmatpush1.msra.mxu0 %v171
    %679 = vmatprep.subr.mxu0 0.0
    %680 = vmatpush1.msra.mxu0 %v172
    %681 = vmatprep.subr.mxu0 0.0
    %682 = vmatpush1.msra.mxu0 %v173
    %683 = vmatprep.subr.mxu0 0.0
    %684 = vmatpush1.msra.mxu0 %v174
    %685 = vmatprep.subr.mxu0 0.0
    %686 = vmatpush1.msra.mxu0 %v175
    %687 = vmatprep.subr.mxu0 0.0
    %688 = vmatpush1.msra.mxu0 %v176
    %689 = vmatprep.subr.mxu0 0.0
    %690 = vmatpush1.msra.mxu0 %v177
    %691 = vmatprep.subr.mxu0 0.0
    %692 = vmatpush1.msra.mxu0 %v178
    %693 = vmatprep.subr.mxu0 0.0
    %694 = vmatpush1.msra.mxu0 %v179
    %695 = vmatprep.subr.mxu0 0.0
    %696 = vmatpush1.msra.mxu0 %v180
    %697 = vmatprep.subr.mxu0 0.0
    %698 = vmatpush1.msra.mxu0 %v181
    %699 = vmatprep.subr.mxu0 0.0
    %700 = vmatpush1.msra.mxu0 %v182
    %701 = vmatprep.subr.mxu0 0.0
    %702 = vmatpush1.msra.mxu0 %v183
    %703 = vmatprep.subr.mxu0 0.0
    %704 = vmatpush1.msra.mxu0 %v184
    %705 = vmatprep.subr.mxu0 0.0
    %706 = vmatpush1.msra.mxu0 %v185
    %707 = vmatprep.subr.mxu0 0.0
    %708 = vmatpush1.msra.mxu0 %v186
    %709 = vmatprep.subr.mxu0 0.0
    %710 = vmatpush1.msra.mxu0 %v187
    %711 = vmatprep.subr.mxu0 0.0
    %712 = vmatpush1.msra.mxu0 %v188
    %713 = vmatprep.subr.mxu0 0.0
    %714 = vmatpush1.msra.mxu0 %v189
    %715 = vmatprep.subr.mxu0 0.0
    %716 = vmatpush1.msra.mxu0 %v190
    %717 = vmatprep.subr.mxu0 0.0
    %718 = vmatpush1.msra.mxu0 %v191
    %719 = vmatprep.subr.mxu0 0.0
    %720 = vmatpush1.msra.mxu0 %v192
    %721 = vmatprep.subr.mxu0 0.0
    %722 = vmatpush1.msra.mxu0 %v193
    %723 = vmatprep.subr.mxu0 0.0
    %724 = vmatpush1.msra.mxu0 %v194
    %725 = vmatprep.subr.mxu0 0.0
    %726 = vmatpush1.msra.mxu0 %v195
    %727 = vmatprep.subr.mxu0 0.0
    %728 = vmatpush1.msra.mxu0 %v196
    %729 = vmatprep.subr.mxu0 0.0
    %730 = vmatpush1.msra.mxu0 %v197
    %731 = vmatprep.subr.mxu0 0.0
    %732 = vmatpush1.msra.mxu0 %v198
    %733 = vmatprep.subr.mxu0 0.0
    %734 = vmatpush1.msra.mxu0 %v199
    %735 = vmatprep.mubr.f32.mxu0 %v356
    %736 = vmatmul.mubr.f32.gmra.mrb[0].mxu0 %v348
    %v737 = vpop.f32.mrb[0].mxu0
    %v738 = vadd.f32 %v668, %v737
    %v739 = vpop.f32.mrb[0].mxu0
    %740 = vdwg.mxu0
    %741 = vmatprep.subr.mxu0 0.0
    %742 = vmatpush1.msra.mxu0 %v200
    %743 = vmatprep.subr.mxu0 0.0
    %744 = vmatpush1.msra.mxu0 %v201
    %745 = vmatprep.subr.mxu0 0.0
    %746 = vmatpush1.msra.mxu0 %v202
    %747 = vmatprep.subr.mxu0 0.0
    %748 = vmatpush1.msra.mxu0 %v203
    %749 = vmatprep.subr.mxu0 0.0
    %750 = vmatpush1.msra.mxu0 %v204
    %751 = vmatprep.subr.mxu0 0.0
    %752 = vmatpush1.msra.mxu0 %v205
    %753 = vmatprep.subr.mxu0 0.0
    %754 = vmatpush1.msra.mxu0 %v206
    %755 = vmatprep.subr.mxu0 0.0
    %756 = vmatpush1.msra.mxu0 %v207
    %757 = vmatprep.subr.mxu0 0.0
    %758 = vmatpush1.msra.mxu0 %v208
    %759 = vmatprep.subr.mxu0 0.0
    %760 = vmatpush1.msra.mxu0 %v209
    %761 = vmatprep.subr.mxu0 0.0
    %762 = vmatpush1.msra.mxu0 %v210
    %763 = vmatprep.subr.mxu0 0.0
    %764 = vmatpush1.msra.mxu0 %v211
    %765 = vmatprep.subr.mxu0 0.0
    %766 = vmatpush1.msra.mxu0 %v212
    %767 = vmatprep.subr.mxu0 0.0
    %768 = vmatpush1.msra.mxu0 %v213
    %769 = vmatprep.subr.mxu0 0.0
    %770 = vmatpush1.msra.mxu0 %v214
    %771 = vmatprep.subr.mxu0 0.0
    %772 = vmatpush1.msra.mxu0 %v215
    %773 = vmatprep.subr.mxu0 0.0
    %774 = vmatpush1.msra.mxu0 %v216
    %775 = vmatprep.subr.mxu0 0.0
    %776 = vmatpush1.msra.mxu0 %v217
    %777 = vmatprep.subr.mxu0 0.0
    %778 = vmatpush1.msra.mxu0 %v218
    %779 = vmatprep.subr.mxu0 0.0
    %780 = vmatpush1.msra.mxu0 %v219
    %781 = vmatprep.subr.mxu0 0.0
    %782 = vmatpush1.msra.mxu0 %v220
    %783 = vmatprep.subr.mxu0 0.0
    %784 = vmatpush1.msra.mxu0 %v221
    %785 = vmatprep.subr.mxu0 0.0
    %786 = vmatpush1.msra.mxu0 %v222
    %787 = vmatprep.subr.mxu0 0.0
    %788 = vmatpush1.msra.mxu0 %v223
    %789 = vmatprep.subr.mxu0 0.0
    %790 = vmatpush1.msra.mxu0 %v224
    %791 = vmatprep.subr.mxu0 0.0
    %792 = vmatpush1.msra.mxu0 %v225
    %793 = vmatprep.subr.mxu0 0.0
    %794 = vmatpush1.msra.mxu0 %v226
    %795 = vmatprep.subr.mxu0 0.0
    %796 = vmatpush1.msra.mxu0 %v227
    %797 = vmatprep.subr.mxu0 0.0
    %798 = vmatpush1.msra.mxu0 %v228
    %799 = vmatprep.subr.mxu0 0.0
    %800 = vmatpush1.msra.mxu0 %v229
    %801 = vmatprep.subr.mxu0 0.0
    %802 = vmatpush1.msra.mxu0 %v230
    %803 = vmatprep.subr.mxu0 0.0
    %804 = vmatpush1.msra.mxu0 %v231
    %805 = vmatprep.mubr.f32.mxu0 %v357
    %806 = vmatmul.mubr.f32.gmra.mrb[0].mxu0 %v355
    %v807 = vpop.f32.mrb[0].mxu0
    %v808 = vadd.f32 %v738, %v807
    %v809 = vpop.f32.mrb[0].mxu0
    %810 = vdwg.mxu0
    %811 = vmatprep.subr.mxu0 0.0
    %812 = vmatpush1.msra.mxu0 %v232
    %813 = vmatprep.subr.mxu0 0.0
    %814 = vmatpush1.msra.mxu0 %v233
    %815 = vmatprep.subr.mxu0 0.0
    %816 = vmatpush1.msra.mxu0 %v234
    %817 = vmatprep.subr.mxu0 0.0
    %818 = vmatpush1.msra.mxu0 %v235
    %819 = vmatprep.subr.mxu0 0.0
    %820 = vmatpush1.msra.mxu0 %v236
    %821 = vmatprep.subr.mxu0 0.0
    %822 = vmatpush1.msra.mxu0 %v237
    %823 = vmatprep.subr.mxu0 0.0
    %824 = vmatpush1.msra.mxu0 %v238
    %825 = vmatprep.subr.mxu0 0.0
    %826 = vmatpush1.msra.mxu0 %v239
    %827 = vmatprep.subr.mxu0 0.0
    %828 = vmatpush1.msra.mxu0 %v240
    %829 = vmatprep.subr.mxu0 0.0
    %830 = vmatpush1.msra.mxu0 %v241
    %831 = vmatprep.subr.mxu0 0.0
    %832 = vmatpush1.msra.mxu0 %v242
    %833 = vmatprep.subr.mxu0 0.0
    %834 = vmatpush1.msra.mxu0 %v243
    %835 = vmatprep.subr.mxu0 0.0
    %836 = vmatpush1.msra.mxu0 %v244
    %837 = vmatprep.subr.mxu0 0.0
    %838 = vmatpush1.msra.mxu0 %v245
    %839 = vmatprep.subr.mxu0 0.0
    %840 = vmatpush1.msra.mxu0 %v246
    %841 = vmatprep.subr.mxu0 0.0
    %842 = vmatpush1.msra.mxu0 %v247
    %843 = vmatprep.subr.mxu0 0.0
    %844 = vmatpush1.msra.mxu0 %v248
    %845 = vmatprep.subr.mxu0 0.0
    %846 = vmatpush1.msra.mxu0 %v249
    %847 = vmatprep.subr.mxu0 0.0
    %848 = vmatpush1.msra.mxu0 %v250
    %849 = vmatprep.subr.mxu0 0.0
    %850 = vmatpush1.msra.mxu0 %v251
    %851 = vmatprep.subr.mxu0 0.0
    %852 = vmatpush1.msra.mxu0 %v252
    %853 = vmatprep.subr.mxu0 0.0
    %854 = vmatpush1.msra.mxu0 %v253
    %855 = vmatprep.subr.mxu0 0.0
    %856 = vmatpush1.msra.mxu0 %v254
    %857 = vmatprep.subr.mxu0 0.0
    %858 = vmatpush1.msra.mxu0 %v255
    %859 = vmatprep.subr.mxu0 0.0
    %860 = vmatpush1.msra.mxu0 %v256
    %861 = vmatprep.subr.mxu0 0.0
    %862 = vmatpush1.msra.mxu0 %v257
    %863 = vmatprep.subr.mxu0 0.0
    %864 = vmatpush1.msra.mxu0 %v258
    %865 = vmatprep.subr.mxu0 0.0
    %866 = vmatpush1.msra.mxu0 %v259
    %867 = vmatprep.subr.mxu0 0.0
    %868 = vmatpush1.msra.mxu0 %v260
    %869 = vmatprep.subr.mxu0 0.0
    %870 = vmatpush1.msra.mxu0 %v261
    %871 = vmatprep.subr.mxu0 0.0
    %872 = vmatpush1.msra.mxu0 %v262
    %873 = vmatprep.subr.mxu0 0.0
    %874 = vmatpush1.msra.mxu0 %v263
    %875 = vmatprep.mubr.f32.mxu0 %v373
    %876 = vmatmul.mubr.f32.gmra.mrb[0].mxu0 %v365
    %v877 = vpop.f32.mrb[0].mxu0
    %v878 = vadd.f32 %v808, %v877
    %v879 = vpop.f32.mrb[0].mxu0
    %880 = vdwg.mxu0
    %881 = vmatprep.subr.mxu0 0.0
    %882 = vmatpush1.msra.mxu0 %v264
    %883 = vmatprep.subr.mxu0 0.0
    %884 = vmatpush1.msra.mxu0 %v265
    %885 = vmatprep.subr.mxu0 0.0
    %886 = vmatpush1.msra.mxu0 %v266
    %887 = vmatprep.subr.mxu0 0.0
    %888 = vmatpush1.msra.mxu0 %v267
    %889 = vmatprep.subr.mxu0 0.0
    %890 = vmatpush1.msra.mxu0 %v268
    %891 = vmatprep.subr.mxu0 0.0
    %892 = vmatpush1.msra.mxu0 %v269
    %893 = vmatprep.subr.mxu0 0.0
    %894 = vmatpush1.msra.mxu0 %v270
    %895 = vmatprep.subr.mxu0 0.0
    %896 = vmatpush1.msra.mxu0 %v271
    %897 = vmatprep.subr.mxu0 0.0
    %898 = vmatpush1.msra.mxu0 %v272
    %899 = vmatprep.subr.mxu0 0.0
    %900 = vmatpush1.msra.mxu0 %v273
    %901 = vmatprep.subr.mxu0 0.0
    %902 = vmatpush1.msra.mxu0 %v274
    %903 = vmatprep.subr.mxu0 0.0
    %904 = vmatpush1.msra.mxu0 %v275
    %905 = vmatprep.subr.mxu0 0.0
    %906 = vmatpush1.msra.mxu0 %v276
    %907 = vmatprep.subr.mxu0 0.0
    %908 = vmatpush1.msra.mxu0 %v277
    %909 = vmatprep.subr.mxu0 0.0
    %910 = vmatpush1.msra.mxu0 %v278
    %911 = vmatprep.subr.mxu0 0.0
    %912 = vmatpush1.msra.mxu0 %v279
    %913 = vmatprep.subr.mxu0 0.0
    %914 = vmatpush1.msra.mxu0 %v280
    %915 = vmatprep.subr.mxu0 0.0
    %916 = vmatpush1.msra.mxu0 %v281
    %917 = vmatprep.subr.mxu0 0.0
    %918 = vmatpush1.msra.mxu0 %v282
    %919 = vmatprep.subr.mxu0 0.0
    %920 = vmatpush1.msra.mxu0 %v283
    %921 = vmatprep.subr.mxu0 0.0
    %922 = vmatpush1.msra.mxu0 %v284
    %923 = vmatprep.subr.mxu0 0.0
    %924 = vmatpush1.msra.mxu0 %v285
    %925 = vmatprep.subr.mxu0 0.0
    %926 = vmatpush1.msra.mxu0 %v286
    %927 = vmatprep.subr.mxu0 0.0
    %928 = vmatpush1.msra.mxu0 %v287
    %929 = vmatprep.subr.mxu0 0.0
    %930 = vmatpush1.msra.mxu0 %v288
    %931 = vmatprep.subr.mxu0 0.0
    %932 = vmatpush1.msra.mxu0 %v289
    %933 = vmatprep.subr.mxu0 0.0
    %934 = vmatpush1.msra.mxu0 %v290
    %935 = vmatprep.subr.mxu0 0.0
    %936 = vmatpush1.msra.mxu0 %v291
    %937 = vmatprep.subr.mxu0 0.0
    %938 = vmatpush1.msra.mxu0 %v292
    %939 = vmatprep.subr.mxu0 0.0
    %940 = vmatpush1.msra.mxu0 %v293
    %941 = vmatprep.subr.mxu0 0.0
    %942 = vmatpush1.msra.mxu0 %v294
    %943 = vmatprep.subr.mxu0 0.0
    %944 = vmatpush1.msra.mxu0 %v295
    %945 = vmatprep.mubr.f32.mxu0 %v374
    %946 = vmatmul.mubr.f32.gmra.mrb[0].mxu0 %v372
    %v947 = vpop.f32.mrb[0].mxu0
    %v948 = vadd.f32 %v878, %v947
    %v949 = vpop.f32.mrb[0].mxu0
    %950 = vdwg.mxu0
    %v951 = vld [vmem:[%s3] sm:$0xff]
    %v952 = vld [vmem:[%s3 + $0x8] sm:$0xff]
    %v953 = vld [vmem:[%s3 + $0x10] sm:$0xff]
    %v954 = vld [vmem:[%s3 + $0x18] sm:$0xff]
    %v955 = vld [vmem:[%s4] sm:$0x1]
    %v957 = vlaneseq
    %v958 = vshrl.u32 %v957, 7
    %v959 = vsub.s32 0, %v958
    %v960 = vrot.slane %v955, %v959
    %vm962 = vcmask 261120
    %v964 = vsel %vm962, %v948, 0
    %966 = vmatprep.subr.mxu0 0.0
    %967 = vmatpush1.msra.mxu0 %v951
    %968 = vmatprep.subr.mxu0 0.0
    %969 = vmatpush1.msra.mxu0 %v952
    %970 = vmatprep.subr.mxu0 0.0
    %971 = vmatpush1.msra.mxu0 %v953
    %972 = vmatprep.subr.mxu0 0.0
    %973 = vmatpush1.msra.mxu0 %v954
    %974 = vmatprep.subr.mxu0 0.0
    %975 = vmatpush1.msra.mxu0 0.0
    %976 = vmatprep.subr.mxu0 0.0
    %977 = vmatpush1.msra.mxu0 0.0
    %978 = vmatprep.subr.mxu0 0.0
    %979 = vmatpush1.msra.mxu0 0.0
    %980 = vmatprep.subr.mxu0 0.0
    %981 = vmatpush1.msra.mxu0 0.0
    %982 = vmatprep.subr.mxu0 0.0
    %983 = vmatpush1.msra.mxu0 0.0
    %984 = vmatprep.subr.mxu0 0.0
    %985 = vmatpush1.msra.mxu0 0.0
    %986 = vmatprep.subr.mxu0 0.0
    %987 = vmatpush1.msra.mxu0 0.0
    %988 = vmatprep.subr.mxu0 0.0
    %989 = vmatpush1.msra.mxu0 0.0
    %990 = vmatprep.subr.mxu0 0.0
    %991 = vmatpush1.msra.mxu0 0.0
    %992 = vmatprep.subr.mxu0 0.0
    %993 = vmatpush1.msra.mxu0 0.0
    %994 = vmatprep.subr.mxu0 0.0
    %995 = vmatpush1.msra.mxu0 0.0
    %996 = vmatprep.subr.mxu0 0.0
    %997 = vmatpush1.msra.mxu0 0.0
    %998 = vmatprep.subr.mxu0 0.0
    %999 = vmatpush1.msra.mxu0 0.0
    %1000 = vmatprep.subr.mxu0 0.0
    %1001 = vmatpush1.msra.mxu0 0.0
    %1002 = vmatprep.subr.mxu0 0.0
    %1003 = vmatpush1.msra.mxu0 0.0
    %1004 = vmatprep.subr.mxu0 0.0
    %1005 = vmatpush1.msra.mxu0 0.0
    %1006 = vmatprep.subr.mxu0 0.0
    %1007 = vmatpush1.msra.mxu0 0.0
    %1008 = vmatprep.subr.mxu0 0.0
    %1009 = vmatpush1.msra.mxu0 0.0
    %1010 = vmatprep.subr.mxu0 0.0
    %1011 = vmatpush1.msra.mxu0 0.0
    %1012 = vmatprep.subr.mxu0 0.0
    %1013 = vmatpush1.msra.mxu0 0.0
    %1014 = vmatprep.subr.mxu0 0.0
    %1015 = vmatpush1.msra.mxu0 0.0
    %1016 = vmatprep.subr.mxu0 0.0
    %1017 = vmatpush1.msra.mxu0 0.0
    %1018 = vmatprep.subr.mxu0 0.0
    %1019 = vmatpush1.msra.mxu0 0.0
    %1020 = vmatprep.subr.mxu0 0.0
    %1021 = vmatpush1.msra.mxu0 0.0
    %1022 = vmatprep.subr.mxu0 0.0
    %1023 = vmatpush1.msra.mxu0 0.0
    %1024 = vmatprep.subr.mxu0 0.0
    %1025 = vmatpush1.msra.mxu0 0.0
    %1026 = vmatprep.subr.mxu0 0.0
    %1027 = vmatpush1.msra.mxu0 0.0
    %1028 = vmatprep.subr.mxu0 0.0
    %1029 = vmatpush1.msra.mxu0 0.0
    %1030 = vmatprep.mubr.f32.mxu0 0.0
    %1031 = vmatmul.mubr.f32.gmra.mrb[0].mxu0 %v964
    %v1032 = vpop.f32.mrb[0].mxu0
    %v1033 = vadd.f32 %v960, %v1032
    %v1034 = vpop.f32.mrb[0].mxu0
    %1035 = vdwg.mxu0
    %vm1036 = vcmask 17408
    %v1037 = vsel %vm1036, %v1033, -inf
    %1038 = vmax.xlane.f32.xlu0 %v1037
    %v1039 = vpop.xlane.xlu0 %1038
    %v1040 = vsub.f32 %v1033, %v1039
    %v1041 = vmul.f32 %v1040, 1.442695
    %v1042 = vpow.pop %v1041
    %v1043 = vsel %vm1036, %v1042, 0.0
    %1044 = vadd.xlane.f32.xlu0 %v1043
    %v1045 = vpop.xlane.xlu0 %1044
    %v1046 = vlog2.pop %v1045
    %v1047 = vmul.f32 %v1046, 0.6931472
    %v1048 = vadd.f32 %v1047, %v1039
    %v1049 = vsub.f32 %v1033, %v1048
    %1050 = vst.msk [vmem:[#allocation4] sm:$0x3] %vm1036, %v1049
    %v1051 = vld [vmem:[%s5] sm:$0xff]
    %v1052 = vld [vmem:[%s5 + $0x8] sm:$0xff]
    %v1053 = vld [vmem:[%s5 + $0x10] sm:$0xff]
    %v1054 = vld [vmem:[%s5 + $0x18] sm:$0xff]
    %v1055 = vld [vmem:[%s5 + $0x20] sm:$0xff]
    %v1056 = vld [vmem:[%s5 + $0x28] sm:$0xff]
    %v1057 = vld [vmem:[%s5 + $0x30] sm:$0xff]
    %v1058 = vld [vmem:[%s5 + $0x38] sm:$0xff]
    %v1059 = vld [vmem:[%s5 + $0x40] sm:$0xff]
    %v1060 = vld [vmem:[%s5 + $0x48] sm:$0xff]
    %v1061 = vld [vmem:[%s5 + $0x50] sm:$0xff]
    %v1062 = vld [vmem:[%s5 + $0x58] sm:$0xff]
    %v1063 = vld [vmem:[%s5 + $0x60] sm:$0xff]
    %v1064 = vld [vmem:[%s5 + $0x68] sm:$0xff]
    %v1065 = vld [vmem:[%s5 + $0x70] sm:$0xff]
    %v1066 = vld [vmem:[%s5 + $0x78] sm:$0xff]
    %v1067 = vld [vmem:[%s5 + $0x80] sm:$0xff]
    %v1068 = vld [vmem:[%s5 + $0x88] sm:$0xff]
    %v1069 = vld [vmem:[%s5 + $0x90] sm:$0xff]
    %v1070 = vld [vmem:[%s5 + $0x98] sm:$0xff]
    %v1071 = vld [vmem:[%s5 + $0xa0] sm:$0xff]
    %v1072 = vld [vmem:[%s5 + $0xa8] sm:$0xff]
    %v1073 = vld [vmem:[%s5 + $0xb0] sm:$0xff]
    %v1074 = vld [vmem:[%s5 + $0xb8] sm:$0xff]
    %v1075 = vld [vmem:[%s5 + $0xc0] sm:$0xff]
    %v1076 = vld [vmem:[%s5 + $0xc8] sm:$0xff]
    %v1077 = vld [vmem:[%s5 + $0xd0] sm:$0xff]
    %v1078 = vld [vmem:[%s5 + $0xd8] sm:$0xff]
    %v1079 = vld [vmem:[%s5 + $0xe0] sm:$0xff]
    %v1080 = vld [vmem:[%s5 + $0xe8] sm:$0xff]
    %v1081 = vld [vmem:[%s5 + $0xf0] sm:$0xff]
    %v1082 = vld [vmem:[%s5 + $0xf8] sm:$0xff]
    %v1083 = vld [vmem:[%s5 + $0x100] sm:$0xff]
    %v1084 = vld [vmem:[%s5 + $0x108] sm:$0xff]
    %v1085 = vld [vmem:[%s5 + $0x110] sm:$0xff]
    %v1086 = vld [vmem:[%s5 + $0x118] sm:$0xff]
    %v1087 = vld [vmem:[%s5 + $0x120] sm:$0xff]
    %v1088 = vld [vmem:[%s5 + $0x128] sm:$0xff]
    %v1089 = vld [vmem:[%s5 + $0x130] sm:$0xff]
    %v1090 = vld [vmem:[%s5 + $0x138] sm:$0xff]
    %v1091 = vld [vmem:[%s5 + $0x140] sm:$0xff]
    %v1092 = vld [vmem:[%s5 + $0x148] sm:$0xff]
    %v1093 = vld [vmem:[%s5 + $0x150] sm:$0xff]
    %v1094 = vld [vmem:[%s5 + $0x158] sm:$0xff]
    %v1095 = vld [vmem:[%s5 + $0x160] sm:$0xff]
    %v1096 = vld [vmem:[%s5 + $0x168] sm:$0xff]
    %v1097 = vld [vmem:[%s5 + $0x170] sm:$0xff]
    %v1098 = vld [vmem:[%s5 + $0x178] sm:$0xff]
    %v1099 = vld [vmem:[%s5 + $0x180] sm:$0xff]
    %v1100 = vld [vmem:[%s5 + $0x188] sm:$0xff]
    %v1101 = vld [vmem:[%s5 + $0x190] sm:$0xff]
    %v1102 = vld [vmem:[%s5 + $0x198] sm:$0xff]
    %v1103 = vld [vmem:[%s5 + $0x1a0] sm:$0xff]
    %v1104 = vld [vmem:[%s5 + $0x1a8] sm:$0xff]
    %v1105 = vld [vmem:[%s5 + $0x1b0] sm:$0xff]
    %v1106 = vld [vmem:[%s5 + $0x1b8] sm:$0xff]
    %v1107 = vld [vmem:[%s5 + $0x1c0] sm:$0xff]
    %v1108 = vld [vmem:[%s5 + $0x1c8] sm:$0xff]
    %v1109 = vld [vmem:[%s5 + $0x1d0] sm:$0xff]
    %v1110 = vld [vmem:[%s5 + $0x1d8] sm:$0xff]
    %v1111 = vld [vmem:[%s5 + $0x1e0] sm:$0xff]
    %v1112 = vld [vmem:[%s5 + $0x1e8] sm:$0xff]
    %v1113 = vld [vmem:[%s5 + $0x1f0] sm:$0xff]
    %v1114 = vld [vmem:[%s5 + $0x1f8] sm:$0xff]
    %v1115 = vld [vmem:[%s5 + $0x200] sm:$0xff]
    %v1116 = vld [vmem:[%s5 + $0x208] sm:$0xff]
    %v1117 = vld [vmem:[%s5 + $0x210] sm:$0xff]
    %v1118 = vld [vmem:[%s5 + $0x218] sm:$0xff]
    %v1119 = vld [vmem:[%s5 + $0x220] sm:$0xff]
    %v1120 = vld [vmem:[%s5 + $0x228] sm:$0xff]
    %v1121 = vld [vmem:[%s5 + $0x230] sm:$0xff]
    %v1122 = vld [vmem:[%s5 + $0x238] sm:$0xff]
    %v1123 = vld [vmem:[%s5 + $0x240] sm:$0xff]
    %v1124 = vld [vmem:[%s5 + $0x248] sm:$0xff]
    %v1125 = vld [vmem:[%s5 + $0x250] sm:$0xff]
    %v1126 = vld [vmem:[%s5 + $0x258] sm:$0xff]
    %v1127 = vld [vmem:[%s5 + $0x260] sm:$0xff]
    %v1128 = vld [vmem:[%s5 + $0x268] sm:$0xff]
    %v1129 = vld [vmem:[%s5 + $0x270] sm:$0xff]
    %v1130 = vld [vmem:[%s5 + $0x278] sm:$0xff]
    %v1131 = vld [vmem:[%s5 + $0x280] sm:$0xff]
    %v1132 = vld [vmem:[%s5 + $0x288] sm:$0xff]
    %v1133 = vld [vmem:[%s5 + $0x290] sm:$0xff]
    %v1134 = vld [vmem:[%s5 + $0x298] sm:$0xff]
    %v1135 = vld [vmem:[%s5 + $0x2a0] sm:$0xff]
    %v1136 = vld [vmem:[%s5 + $0x2a8] sm:$0xff]
    %v1137 = vld [vmem:[%s5 + $0x2b0] sm:$0xff]
    %v1138 = vld [vmem:[%s5 + $0x2b8] sm:$0xff]
    %v1139 = vld [vmem:[%s5 + $0x2c0] sm:$0xff]
    %v1140 = vld [vmem:[%s5 + $0x2c8] sm:$0xff]
    %v1141 = vld [vmem:[%s5 + $0x2d0] sm:$0xff]
    %v1142 = vld [vmem:[%s5 + $0x2d8] sm:$0xff]
    %v1143 = vld [vmem:[%s5 + $0x2e0] sm:$0xff]
    %v1144 = vld [vmem:[%s5 + $0x2e8] sm:$0xff]
    %v1145 = vld [vmem:[%s5 + $0x2f0] sm:$0xff]
    %v1146 = vld [vmem:[%s5 + $0x2f8] sm:$0xff]
    %v1147 = vld [vmem:[%s5 + $0x300] sm:$0xff]
    %v1148 = vld [vmem:[%s5 + $0x308] sm:$0xff]
    %v1149 = vld [vmem:[%s5 + $0x310] sm:$0xff]
    %v1150 = vld [vmem:[%s5 + $0x318] sm:$0xff]
    %v1151 = vld [vmem:[%s5 + $0x320] sm:$0xff]
    %v1152 = vld [vmem:[%s5 + $0x328] sm:$0xff]
    %v1153 = vld [vmem:[%s5 + $0x330] sm:$0xff]
    %v1154 = vld [vmem:[%s5 + $0x338] sm:$0xff]
    %v1155 = vld [vmem:[%s5 + $0x340] sm:$0xff]
    %v1156 = vld [vmem:[%s5 + $0x348] sm:$0xff]
    %v1157 = vld [vmem:[%s5 + $0x350] sm:$0xff]
    %v1158 = vld [vmem:[%s5 + $0x358] sm:$0xff]
    %v1159 = vld [vmem:[%s5 + $0x360] sm:$0xff]
    %v1160 = vld [vmem:[%s5 + $0x368] sm:$0xff]
    %v1161 = vld [vmem:[%s5 + $0x370] sm:$0xff]
    %v1162 = vld [vmem:[%s5 + $0x378] sm:$0xff]
    %v1163 = vld [vmem:[%s5 + $0x380] sm:$0xff]
    %v1164 = vld [vmem:[%s5 + $0x388] sm:$0xff]
    %v1165 = vld [vmem:[%s5 + $0x390] sm:$0xff]
    %v1166 = vld [vmem:[%s5 + $0x398] sm:$0xff]
    %v1167 = vld [vmem:[%s5 + $0x3a0] sm:$0xff]
    %v1168 = vld [vmem:[%s5 + $0x3a8] sm:$0xff]
    %v1169 = vld [vmem:[%s5 + $0x3b0] sm:$0xff]
    %v1170 = vld [vmem:[%s5 + $0x3b8] sm:$0xff]
    %v1171 = vld [vmem:[%s5 + $0x3c0] sm:$0xff]
    %v1172 = vld [vmem:[%s5 + $0x3c8] sm:$0xff]
    %v1173 = vld [vmem:[%s5 + $0x3d0] sm:$0xff]
    %v1174 = vld [vmem:[%s5 + $0x3d8] sm:$0xff]
    %v1175 = vld [vmem:[%s5 + $0x3e0] sm:$0xff]
    %v1176 = vld [vmem:[%s5 + $0x3e8] sm:$0xff]
    %v1177 = vld [vmem:[%s5 + $0x3f0] sm:$0xff]
    %v1178 = vld [vmem:[%s5 + $0x3f8] sm:$0xff]
    %v1179 = vld [vmem:[%s5 + $0x400] sm:$0xff]
    %v1180 = vld [vmem:[%s5 + $0x408] sm:$0xff]
    %v1181 = vld [vmem:[%s5 + $0x410] sm:$0xff]
    %v1182 = vld [vmem:[%s5 + $0x418] sm:$0xff]
    %v1183 = vld [vmem:[%s5 + $0x420] sm:$0xff]
    %v1184 = vld [vmem:[%s5 + $0x428] sm:$0xff]
    %v1185 = vld [vmem:[%s5 + $0x430] sm:$0xff]
    %v1186 = vld [vmem:[%s5 + $0x438] sm:$0xff]
    %v1187 = vld [vmem:[%s5 + $0x440] sm:$0xff]
    %v1188 = vld [vmem:[%s5 + $0x448] sm:$0xff]
    %v1189 = vld [vmem:[%s5 + $0x450] sm:$0xff]
    %v1190 = vld [vmem:[%s5 + $0x458] sm:$0xff]
    %v1191 = vld [vmem:[%s5 + $0x460] sm:$0xff]
    %v1192 = vld [vmem:[%s5 + $0x468] sm:$0xff]
    %v1193 = vld [vmem:[%s5 + $0x470] sm:$0xff]
    %v1194 = vld [vmem:[%s5 + $0x478] sm:$0xff]
    %v1195 = vld [vmem:[%s5 + $0x480] sm:$0xff]
    %v1196 = vld [vmem:[%s5 + $0x488] sm:$0xff]
    %v1197 = vld [vmem:[%s5 + $0x490] sm:$0xff]
    %v1198 = vld [vmem:[%s5 + $0x498] sm:$0xff]
    %v1199 = vld [vmem:[%s5 + $0x4a0] sm:$0xff]
    %v1200 = vld [vmem:[%s5 + $0x4a8] sm:$0xff]
    %v1201 = vld [vmem:[%s5 + $0x4b0] sm:$0xff]
    %v1202 = vld [vmem:[%s5 + $0x4b8] sm:$0xff]
    %v1203 = vld [vmem:[%s5 + $0x4c0] sm:$0xff]
    %v1204 = vld [vmem:[%s5 + $0x4c8] sm:$0xff]
    %v1205 = vld [vmem:[%s5 + $0x4d0] sm:$0xff]
    %v1206 = vld [vmem:[%s5 + $0x4d8] sm:$0xff]
    %v1207 = vld [vmem:[%s5 + $0x4e0] sm:$0xff]
    %v1208 = vld [vmem:[%s5 + $0x4e8] sm:$0xff]
    %v1209 = vld [vmem:[%s5 + $0x4f0] sm:$0xff]
    %v1210 = vld [vmem:[%s5 + $0x4f8] sm:$0xff]
    %v1211 = vld [vmem:[%s5 + $0x500] sm:$0xff]
    %v1212 = vld [vmem:[%s5 + $0x508] sm:$0xff]
    %v1213 = vld [vmem:[%s5 + $0x510] sm:$0xff]
    %v1214 = vld [vmem:[%s5 + $0x518] sm:$0xff]
    %v1215 = vld [vmem:[%s5 + $0x520] sm:$0xff]
    %v1216 = vld [vmem:[%s5 + $0x528] sm:$0xff]
    %v1217 = vld [vmem:[%s5 + $0x530] sm:$0xff]
    %v1218 = vld [vmem:[%s5 + $0x538] sm:$0xff]
    %v1219 = vld [vmem:[%s5 + $0x540] sm:$0xff]
    %v1220 = vld [vmem:[%s5 + $0x548] sm:$0xff]
    %v1221 = vld [vmem:[%s5 + $0x550] sm:$0xff]
    %v1222 = vld [vmem:[%s5 + $0x558] sm:$0xff]
    %v1223 = vld [vmem:[%s5 + $0x560] sm:$0xff]
    %v1224 = vld [vmem:[%s5 + $0x568] sm:$0xff]
    %v1225 = vld [vmem:[%s5 + $0x570] sm:$0xff]
    %v1226 = vld [vmem:[%s5 + $0x578] sm:$0xff]
    %v1227 = vld [vmem:[%s5 + $0x580] sm:$0xff]
    %v1228 = vld [vmem:[%s5 + $0x588] sm:$0xff]
    %v1229 = vld [vmem:[%s5 + $0x590] sm:$0xff]
    %v1230 = vld [vmem:[%s5 + $0x598] sm:$0xff]
    %v1231 = vld [vmem:[%s5 + $0x5a0] sm:$0xff]
    %v1232 = vld [vmem:[%s5 + $0x5a8] sm:$0xff]
    %v1233 = vld [vmem:[%s5 + $0x5b0] sm:$0xff]
    %v1234 = vld [vmem:[%s5 + $0x5b8] sm:$0xff]
    %v1235 = vld [vmem:[%s5 + $0x5c0] sm:$0xff]
    %v1236 = vld [vmem:[%s5 + $0x5c8] sm:$0xff]
    %v1237 = vld [vmem:[%s5 + $0x5d0] sm:$0xff]
    %v1238 = vld [vmem:[%s5 + $0x5d8] sm:$0xff]
    %v1239 = vld [vmem:[%s5 + $0x5e0] sm:$0xff]
    %v1240 = vld [vmem:[%s5 + $0x5e8] sm:$0xff]
    %v1241 = vld [vmem:[%s5 + $0x5f0] sm:$0xff]
    %v1242 = vld [vmem:[%s5 + $0x5f8] sm:$0xff]
    %v1243 = vld [vmem:[%s5 + $0x600] sm:$0xff]
    %v1244 = vld [vmem:[%s5 + $0x608] sm:$0xff]
    %v1245 = vld [vmem:[%s5 + $0x610] sm:$0xff]
    %v1246 = vld [vmem:[%s5 + $0x618] sm:$0xff]
    %v1247 = vld [vmem:[%s5 + $0x620] sm:$0xff]
    %v1248 = vld [vmem:[%s5 + $0x628] sm:$0xff]
    %v1249 = vld [vmem:[%s5 + $0x630] sm:$0xff]
    %v1250 = vld [vmem:[%s5 + $0x638] sm:$0xff]
    %v1251 = vld [vmem:[%s5 + $0x640] sm:$0xff]
    %v1252 = vld [vmem:[%s5 + $0x648] sm:$0xff]
    %v1253 = vld [vmem:[%s5 + $0x650] sm:$0xff]
    %v1254 = vld [vmem:[%s5 + $0x658] sm:$0xff]
    %v1255 = vld [vmem:[%s5 + $0x660] sm:$0xff]
    %v1256 = vld [vmem:[%s5 + $0x668] sm:$0xff]
    %v1257 = vld [vmem:[%s5 + $0x670] sm:$0xff]
    %v1258 = vld [vmem:[%s5 + $0x678] sm:$0xff]
    %v1259 = vld [vmem:[%s5 + $0x680] sm:$0xff]
    %v1260 = vld [vmem:[%s5 + $0x688] sm:$0xff]
    %v1261 = vld [vmem:[%s5 + $0x690] sm:$0xff]
    %v1262 = vld [vmem:[%s5 + $0x698] sm:$0xff]
    %v1263 = vld [vmem:[%s5 + $0x6a0] sm:$0xff]
    %v1264 = vld [vmem:[%s5 + $0x6a8] sm:$0xff]
    %v1265 = vld [vmem:[%s5 + $0x6b0] sm:$0xff]
    %v1266 = vld [vmem:[%s5 + $0x6b8] sm:$0xff]
    %v1267 = vld [vmem:[%s5 + $0x6c0] sm:$0xff]
    %v1268 = vld [vmem:[%s5 + $0x6c8] sm:$0xff]
    %v1269 = vld [vmem:[%s5 + $0x6d0] sm:$0xff]
    %v1270 = vld [vmem:[%s5 + $0x6d8] sm:$0xff]
    %v1271 = vld [vmem:[%s5 + $0x6e0] sm:$0xff]
    %v1272 = vld [vmem:[%s5 + $0x6e8] sm:$0xff]
    %v1273 = vld [vmem:[%s5 + $0x6f0] sm:$0xff]
    %v1274 = vld [vmem:[%s5 + $0x6f8] sm:$0xff]
    %v1275 = vld [vmem:[%s5 + $0x700] sm:$0xff]
    %v1276 = vld [vmem:[%s5 + $0x708] sm:$0xff]
    %v1277 = vld [vmem:[%s5 + $0x710] sm:$0xff]
    %v1278 = vld [vmem:[%s5 + $0x718] sm:$0xff]
    %v1279 = vld [vmem:[%s5 + $0x720] sm:$0xff]
    %v1280 = vld [vmem:[%s5 + $0x728] sm:$0xff]
    %v1281 = vld [vmem:[%s5 + $0x730] sm:$0xff]
    %v1282 = vld [vmem:[%s5 + $0x738] sm:$0xff]
    %v1283 = vld [vmem:[%s5 + $0x740] sm:$0xff]
    %v1284 = vld [vmem:[%s5 + $0x748] sm:$0xff]
    %v1285 = vld [vmem:[%s5 + $0x750] sm:$0xff]
    %v1286 = vld [vmem:[%s5 + $0x758] sm:$0xff]
    %v1287 = vld [vmem:[%s5 + $0x760] sm:$0xff]
    %v1288 = vld [vmem:[%s5 + $0x768] sm:$0xff]
    %v1289 = vld [vmem:[%s5 + $0x770] sm:$0xff]
    %v1290 = vld [vmem:[%s5 + $0x778] sm:$0xff]
    %v1291 = vld [vmem:[%s5 + $0x780] sm:$0xff]
    %v1292 = vld [vmem:[%s5 + $0x788] sm:$0xff]
    %v1293 = vld [vmem:[%s5 + $0x790] sm:$0xff]
    %v1294 = vld [vmem:[%s5 + $0x798] sm:$0xff]
    %v1295 = vld [vmem:[%s5 + $0x7a0] sm:$0xff]
    %v1296 = vld [vmem:[%s5 + $0x7a8] sm:$0xff]
    %v1297 = vld [vmem:[%s5 + $0x7b0] sm:$0xff]
    %v1298 = vld [vmem:[%s5 + $0x7b8] sm:$0xff]
    %v1299 = vld [vmem:[%s5 + $0x7c0] sm:$0xff]
    %v1300 = vld [vmem:[%s5 + $0x7c8] sm:$0xff]
    %v1301 = vld [vmem:[%s5 + $0x7d0] sm:$0xff]
    %v1302 = vld [vmem:[%s5 + $0x7d8] sm:$0xff]
    %v1303 = vld [vmem:[%s5 + $0x7e0] sm:$0xff]
    %v1304 = vld [vmem:[%s5 + $0x7e8] sm:$0xff]
    %v1305 = vld [vmem:[%s5 + $0x7f0] sm:$0xff]
    %v1306 = vld [vmem:[%s5 + $0x7f8] sm:$0xff]
    %v1307 = vld [vmem:[%s6] sm:$0x1]
    %v1309 = vlaneseq
    %v1310 = vshrl.u32 %v1309, 7
    %v1311 = vsub.s32 0, %v1310
    %v1312 = vrot.slane %v1307, %v1311
    %1314 = vmatprep.subr.mxu0 0.0
    %1315 = vmatpush1.msra.mxu0 %v1051
    %1316 = vmatprep.subr.mxu0 0.0
    %1317 = vmatpush1.msra.mxu0 %v1052
    %1318 = vmatprep.subr.mxu0 0.0
    %1319 = vmatpush1.msra.mxu0 %v1053
    %1320 = vmatprep.subr.mxu0 0.0
    %1321 = vmatpush1.msra.mxu0 %v1054
    %1322 = vmatprep.subr.mxu0 0.0
    %1323 = vmatpush1.msra.mxu0 %v1055
    %1324 = vmatprep.subr.mxu0 0.0
    %1325 = vmatpush1.msra.mxu0 %v1056
    %1326 = vmatprep.subr.mxu0 0.0
    %1327 = vmatpush1.msra.mxu0 %v1057
    %1328 = vmatprep.subr.mxu0 0.0
    %1329 = vmatpush1.msra.mxu0 %v1058
    %1330 = vmatprep.subr.mxu0 0.0
    %1331 = vmatpush1.msra.mxu0 %v1059
    %1332 = vmatprep.subr.mxu0 0.0
    %1333 = vmatpush1.msra.mxu0 %v1060
    %1334 = vmatprep.subr.mxu0 0.0
    %1335 = vmatpush1.msra.mxu0 %v1061
    %1336 = vmatprep.subr.mxu0 0.0
    %1337 = vmatpush1.msra.mxu0 %v1062
    %1338 = vmatprep.subr.mxu0 0.0
    %1339 = vmatpush1.msra.mxu0 %v1063
    %1340 = vmatprep.subr.mxu0 0.0
    %1341 = vmatpush1.msra.mxu0 %v1064
    %1342 = vmatprep.subr.mxu0 0.0
    %1343 = vmatpush1.msra.mxu0 %v1065
    %1344 = vmatprep.subr.mxu0 0.0
    %1345 = vmatpush1.msra.mxu0 %v1066
    %1346 = vmatprep.subr.mxu0 0.0
    %1347 = vmatpush1.msra.mxu0 %v1067
    %1348 = vmatprep.subr.mxu0 0.0
    %1349 = vmatpush1.msra.mxu0 %v1068
    %1350 = vmatprep.subr.mxu0 0.0
    %1351 = vmatpush1.msra.mxu0 %v1069
    %1352 = vmatprep.subr.mxu0 0.0
    %1353 = vmatpush1.msra.mxu0 %v1070
    %1354 = vmatprep.subr.mxu0 0.0
    %1355 = vmatpush1.msra.mxu0 %v1071
    %1356 = vmatprep.subr.mxu0 0.0
    %1357 = vmatpush1.msra.mxu0 %v1072
    %1358 = vmatprep.subr.mxu0 0.0
    %1359 = vmatpush1.msra.mxu0 %v1073
    %1360 = vmatprep.subr.mxu0 0.0
    %1361 = vmatpush1.msra.mxu0 %v1074
    %1362 = vmatprep.subr.mxu0 0.0
    %1363 = vmatpush1.msra.mxu0 %v1075
    %1364 = vmatprep.subr.mxu0 0.0
    %1365 = vmatpush1.msra.mxu0 %v1076
    %1366 = vmatprep.subr.mxu0 0.0
    %1367 = vmatpush1.msra.mxu0 %v1077
    %1368 = vmatprep.subr.mxu0 0.0
    %1369 = vmatpush1.msra.mxu0 %v1078
    %1370 = vmatprep.subr.mxu0 0.0
    %1371 = vmatpush1.msra.mxu0 %v1079
    %1372 = vmatprep.subr.mxu0 0.0
    %1373 = vmatpush1.msra.mxu0 %v1080
    %1374 = vmatprep.subr.mxu0 0.0
    %1375 = vmatpush1.msra.mxu0 %v1081
    %1376 = vmatprep.subr.mxu0 0.0
    %1377 = vmatpush1.msra.mxu0 %v1082
    %1378 = vmatprep.mubr.f32.mxu0 %v322
    %1379 = vmatmul.mubr.f32.gmra.mrb[0].mxu0 %v314
    %v1380 = vpop.f32.mrb[0].mxu0
    %v1381 = vadd.f32 %v1312, %v1380
    %v1382 = vpop.f32.mrb[0].mxu0
    %1383 = vdwg.mxu0
    %1384 = vmatprep.subr.mxu0 0.0
    %1385 = vmatpush1.msra.mxu0 %v1083
    %1386 = vmatprep.subr.mxu0 0.0
    %1387 = vmatpush1.msra.mxu0 %v1084
    %1388 = vmatprep.subr.mxu0 0.0
    %1389 = vmatpush1.msra.mxu0 %v1085
    %1390 = vmatprep.subr.mxu0 0.0
    %1391 = vmatpush1.msra.mxu0 %v1086
    %1392 = vmatprep.subr.mxu0 0.0
    %1393 = vmatpush1.msra.mxu0 %v1087
    %1394 = vmatprep.subr.mxu0 0.0
    %1395 = vmatpush1.msra.mxu0 %v1088
    %1396 = vmatprep.subr.mxu0 0.0
    %1397 = vmatpush1.msra.mxu0 %v1089
    %1398 = vmatprep.subr.mxu0 0.0
    %1399 = vmatpush1.msra.mxu0 %v1090
    %1400 = vmatprep.subr.mxu0 0.0
    %1401 = vmatpush1.msra.mxu0 %v1091
    %1402 = vmatprep.subr.mxu0 0.0
    %1403 = vmatpush1.msra.mxu0 %v1092
    %1404 = vmatprep.subr.mxu0 0.0
    %1405 = vmatpush1.msra.mxu0 %v1093
    %1406 = vmatprep.subr.mxu0 0.0
    %1407 = vmatpush1.msra.mxu0 %v1094
    %1408 = vmatprep.subr.mxu0 0.0
    %1409 = vmatpush1.msra.mxu0 %v1095
    %1410 = vmatprep.subr.mxu0 0.0
    %1411 = vmatpush1.msra.mxu0 %v1096
    %1412 = vmatprep.subr.mxu0 0.0
    %1413 = vmatpush1.msra.mxu0 %v1097
    %1414 = vmatprep.subr.mxu0 0.0
    %1415 = vmatpush1.msra.mxu0 %v1098
    %1416 = vmatprep.subr.mxu0 0.0
    %1417 = vmatpush1.msra.mxu0 %v1099
    %1418 = vmatprep.subr.mxu0 0.0
    %1419 = vmatpush1.msra.mxu0 %v1100
    %1420 = vmatprep.subr.mxu0 0.0
    %1421 = vmatpush1.msra.mxu0 %v1101
    %1422 = vmatprep.subr.mxu0 0.0
    %1423 = vmatpush1.msra.mxu0 %v1102
    %1424 = vmatprep.subr.mxu0 0.0
    %1425 = vmatpush1.msra.mxu0 %v1103
    %1426 = vmatprep.subr.mxu0 0.0
    %1427 = vmatpush1.msra.mxu0 %v1104
    %1428 = vmatprep.subr.mxu0 0.0
    %1429 = vmatpush1.msra.mxu0 %v1105
    %1430 = vmatprep.subr.mxu0 0.0
    %1431 = vmatpush1.msra.mxu0 %v1106
    %1432 = vmatprep.subr.mxu0 0.0
    %1433 = vmatpush1.msra.mxu0 %v1107
    %1434 = vmatprep.subr.mxu0 0.0
    %1435 = vmatpush1.msra.mxu0 %v1108
    %1436 = vmatprep.subr.mxu0 0.0
    %1437 = vmatpush1.msra.mxu0 %v1109
    %1438 = vmatprep.subr.mxu0 0.0
    %1439 = vmatpush1.msra.mxu0 %v1110
    %1440 = vmatprep.subr.mxu0 0.0
    %1441 = vmatpush1.msra.mxu0 %v1111
    %1442 = vmatprep.subr.mxu0 0.0
    %1443 = vmatpush1.msra.mxu0 %v1112
    %1444 = vmatprep.subr.mxu0 0.0
    %1445 = vmatpush1.msra.mxu0 %v1113
    %1446 = vmatprep.subr.mxu0 0.0
    %1447 = vmatpush1.msra.mxu0 %v1114
    %1448 = vmatprep.mubr.f32.mxu0 %v323
    %1449 = vmatmul.mubr.f32.gmra.mrb[0].mxu0 %v321
    %v1450 = vpop.f32.mrb[0].mxu0
    %v1451 = vadd.f32 %v1381, %v1450
    %v1452 = vpop.f32.mrb[0].mxu0
    %1453 = vdwg.mxu0
    %1454 = vmatprep.subr.mxu0 0.0
    %1455 = vmatpush1.msra.mxu0 %v1115
    %1456 = vmatprep.subr.mxu0 0.0
    %1457 = vmatpush1.msra.mxu0 %v1116
    %1458 = vmatprep.subr.mxu0 0.0
    %1459 = vmatpush1.msra.mxu0 %v1117
    %1460 = vmatprep.subr.mxu0 0.0
    %1461 = vmatpush1.msra.mxu0 %v1118
    %1462 = vmatprep.subr.mxu0 0.0
    %1463 = vmatpush1.msra.mxu0 %v1119
    %1464 = vmatprep.subr.mxu0 0.0
    %1465 = vmatpush1.msra.mxu0 %v1120
    %1466 = vmatprep.subr.mxu0 0.0
    %1467 = vmatpush1.msra.mxu0 %v1121
    %1468 = vmatprep.subr.mxu0 0.0
    %1469 = vmatpush1.msra.mxu0 %v1122
    %1470 = vmatprep.subr.mxu0 0.0
    %1471 = vmatpush1.msra.mxu0 %v1123
    %1472 = vmatprep.subr.mxu0 0.0
    %1473 = vmatpush1.msra.mxu0 %v1124
    %1474 = vmatprep.subr.mxu0 0.0
    %1475 = vmatpush1.msra.mxu0 %v1125
    %1476 = vmatprep.subr.mxu0 0.0
    %1477 = vmatpush1.msra.mxu0 %v1126
    %1478 = vmatprep.subr.mxu0 0.0
    %1479 = vmatpush1.msra.mxu0 %v1127
    %1480 = vmatprep.subr.mxu0 0.0
    %1481 = vmatpush1.msra.mxu0 %v1128
    %1482 = vmatprep.subr.mxu0 0.0
    %1483 = vmatpush1.msra.mxu0 %v1129
    %1484 = vmatprep.subr.mxu0 0.0
    %1485 = vmatpush1.msra.mxu0 %v1130
    %1486 = vmatprep.subr.mxu0 0.0
    %1487 = vmatpush1.msra.mxu0 %v1131
    %1488 = vmatprep.subr.mxu0 0.0
    %1489 = vmatpush1.msra.mxu0 %v1132
    %1490 = vmatprep.subr.mxu0 0.0
    %1491 = vmatpush1.msra.mxu0 %v1133
    %1492 = vmatprep.subr.mxu0 0.0
    %1493 = vmatpush1.msra.mxu0 %v1134
    %1494 = vmatprep.subr.mxu0 0.0
    %1495 = vmatpush1.msra.mxu0 %v1135
    %1496 = vmatprep.subr.mxu0 0.0
    %1497 = vmatpush1.msra.mxu0 %v1136
    %1498 = vmatprep.subr.mxu0 0.0
    %1499 = vmatpush1.msra.mxu0 %v1137
    %1500 = vmatprep.subr.mxu0 0.0
    %1501 = vmatpush1.msra.mxu0 %v1138
    %1502 = vmatprep.subr.mxu0 0.0
    %1503 = vmatpush1.msra.mxu0 %v1139
    %1504 = vmatprep.subr.mxu0 0.0
    %1505 = vmatpush1.msra.mxu0 %v1140
    %1506 = vmatprep.subr.mxu0 0.0
    %1507 = vmatpush1.msra.mxu0 %v1141
    %1508 = vmatprep.subr.mxu0 0.0
    %1509 = vmatpush1.msra.mxu0 %v1142
    %1510 = vmatprep.subr.mxu0 0.0
    %1511 = vmatpush1.msra.mxu0 %v1143
    %1512 = vmatprep.subr.mxu0 0.0
    %1513 = vmatpush1.msra.mxu0 %v1144
    %1514 = vmatprep.subr.mxu0 0.0
    %1515 = vmatpush1.msra.mxu0 %v1145
    %1516 = vmatprep.subr.mxu0 0.0
    %1517 = vmatpush1.msra.mxu0 %v1146
    %1518 = vmatprep.mubr.f32.mxu0 %v339
    %1519 = vmatmul.mubr.f32.gmra.mrb[0].mxu0 %v331
    %v1520 = vpop.f32.mrb[0].mxu0
    %v1521 = vadd.f32 %v1451, %v1520
    %v1522 = vpop.f32.mrb[0].mxu0
    %1523 = vdwg.mxu0
    %1524 = vmatprep.subr.mxu0 0.0
    %1525 = vmatpush1.msra.mxu0 %v1147
    %1526 = vmatprep.subr.mxu0 0.0
    %1527 = vmatpush1.msra.mxu0 %v1148
    %1528 = vmatprep.subr.mxu0 0.0
    %1529 = vmatpush1.msra.mxu0 %v1149
    %1530 = vmatprep.subr.mxu0 0.0
    %1531 = vmatpush1.msra.mxu0 %v1150
    %1532 = vmatprep.subr.mxu0 0.0
    %1533 = vmatpush1.msra.mxu0 %v1151
    %1534 = vmatprep.subr.mxu0 0.0
    %1535 = vmatpush1.msra.mxu0 %v1152
    %1536 = vmatprep.subr.mxu0 0.0
    %1537 = vmatpush1.msra.mxu0 %v1153
    %1538 = vmatprep.subr.mxu0 0.0
    %1539 = vmatpush1.msra.mxu0 %v1154
    %1540 = vmatprep.subr.mxu0 0.0
    %1541 = vmatpush1.msra.mxu0 %v1155
    %1542 = vmatprep.subr.mxu0 0.0
    %1543 = vmatpush1.msra.mxu0 %v1156
    %1544 = vmatprep.subr.mxu0 0.0
    %1545 = vmatpush1.msra.mxu0 %v1157
    %1546 = vmatprep.subr.mxu0 0.0
    %1547 = vmatpush1.msra.mxu0 %v1158
    %1548 = vmatprep.subr.mxu0 0.0
    %1549 = vmatpush1.msra.mxu0 %v1159
    %1550 = vmatprep.subr.mxu0 0.0
    %1551 = vmatpush1.msra.mxu0 %v1160
    %1552 = vmatprep.subr.mxu0 0.0
    %1553 = vmatpush1.msra.mxu0 %v1161
    %1554 = vmatprep.subr.mxu0 0.0
    %1555 = vmatpush1.msra.mxu0 %v1162
    %1556 = vmatprep.subr.mxu0 0.0
    %1557 = vmatpush1.msra.mxu0 %v1163
    %1558 = vmatprep.subr.mxu0 0.0
    %1559 = vmatpush1.msra.mxu0 %v1164
    %1560 = vmatprep.subr.mxu0 0.0
    %1561 = vmatpush1.msra.mxu0 %v1165
    %1562 = vmatprep.subr.mxu0 0.0
    %1563 = vmatpush1.msra.mxu0 %v1166
    %1564 = vmatprep.subr.mxu0 0.0
    %1565 = vmatpush1.msra.mxu0 %v1167
    %1566 = vmatprep.subr.mxu0 0.0
    %1567 = vmatpush1.msra.mxu0 %v1168
    %1568 = vmatprep.subr.mxu0 0.0
    %1569 = vmatpush1.msra.mxu0 %v1169
    %1570 = vmatprep.subr.mxu0 0.0
    %1571 = vmatpush1.msra.mxu0 %v1170
    %1572 = vmatprep.subr.mxu0 0.0
    %1573 = vmatpush1.msra.mxu0 %v1171
    %1574 = vmatprep.subr.mxu0 0.0
    %1575 = vmatpush1.msra.mxu0 %v1172
    %1576 = vmatprep.subr.mxu0 0.0
    %1577 = vmatpush1.msra.mxu0 %v1173
    %1578 = vmatprep.subr.mxu0 0.0
    %1579 = vmatpush1.msra.mxu0 %v1174
    %1580 = vmatprep.subr.mxu0 0.0
    %1581 = vmatpush1.msra.mxu0 %v1175
    %1582 = vmatprep.subr.mxu0 0.0
    %1583 = vmatpush1.msra.mxu0 %v1176
    %1584 = vmatprep.subr.mxu0 0.0
    %1585 = vmatpush1.msra.mxu0 %v1177
    %1586 = vmatprep.subr.mxu0 0.0
    %1587 = vmatpush1.msra.mxu0 %v1178
    %1588 = vmatprep.mubr.f32.mxu0 %v340
    %1589 = vmatmul.mubr.f32.gmra.mrb[0].mxu0 %v338
    %v1590 = vpop.f32.mrb[0].mxu0
    %v1591 = vadd.f32 %v1521, %v1590
    %v1592 = vpop.f32.mrb[0].mxu0
    %1593 = vdwg.mxu0
    %1594 = vmatprep.subr.mxu0 0.0
    %1595 = vmatpush1.msra.mxu0 %v1179
    %1596 = vmatprep.subr.mxu0 0.0
    %1597 = vmatpush1.msra.mxu0 %v1180
    %1598 = vmatprep.subr.mxu0 0.0
    %1599 = vmatpush1.msra.mxu0 %v1181
    %1600 = vmatprep.subr.mxu0 0.0
    %1601 = vmatpush1.msra.mxu0 %v1182
    %1602 = vmatprep.subr.mxu0 0.0
    %1603 = vmatpush1.msra.mxu0 %v1183
    %1604 = vmatprep.subr.mxu0 0.0
    %1605 = vmatpush1.msra.mxu0 %v1184
    %1606 = vmatprep.subr.mxu0 0.0
    %1607 = vmatpush1.msra.mxu0 %v1185
    %1608 = vmatprep.subr.mxu0 0.0
    %1609 = vmatpush1.msra.mxu0 %v1186
    %1610 = vmatprep.subr.mxu0 0.0
    %1611 = vmatpush1.msra.mxu0 %v1187
    %1612 = vmatprep.subr.mxu0 0.0
    %1613 = vmatpush1.msra.mxu0 %v1188
    %1614 = vmatprep.subr.mxu0 0.0
    %1615 = vmatpush1.msra.mxu0 %v1189
    %1616 = vmatprep.subr.mxu0 0.0
    %1617 = vmatpush1.msra.mxu0 %v1190
    %1618 = vmatprep.subr.mxu0 0.0
    %1619 = vmatpush1.msra.mxu0 %v1191
    %1620 = vmatprep.subr.mxu0 0.0
    %1621 = vmatpush1.msra.mxu0 %v1192
    %1622 = vmatprep.subr.mxu0 0.0
    %1623 = vmatpush1.msra.mxu0 %v1193
    %1624 = vmatprep.subr.mxu0 0.0
    %1625 = vmatpush1.msra.mxu0 %v1194
    %1626 = vmatprep.subr.mxu0 0.0
    %1627 = vmatpush1.msra.mxu0 %v1195
    %1628 = vmatprep.subr.mxu0 0.0
    %1629 = vmatpush1.msra.mxu0 %v1196
    %1630 = vmatprep.subr.mxu0 0.0
    %1631 = vmatpush1.msra.mxu0 %v1197
    %1632 = vmatprep.subr.mxu0 0.0
    %1633 = vmatpush1.msra.mxu0 %v1198
    %1634 = vmatprep.subr.mxu0 0.0
    %1635 = vmatpush1.msra.mxu0 %v1199
    %1636 = vmatprep.subr.mxu0 0.0
    %1637 = vmatpush1.msra.mxu0 %v1200
    %1638 = vmatprep.subr.mxu0 0.0
    %1639 = vmatpush1.msra.mxu0 %v1201
    %1640 = vmatprep.subr.mxu0 0.0
    %1641 = vmatpush1.msra.mxu0 %v1202
    %1642 = vmatprep.subr.mxu0 0.0
    %1643 = vmatpush1.msra.mxu0 %v1203
    %1644 = vmatprep.subr.mxu0 0.0
    %1645 = vmatpush1.msra.mxu0 %v1204
    %1646 = vmatprep.subr.mxu0 0.0
    %1647 = vmatpush1.msra.mxu0 %v1205
    %1648 = vmatprep.subr.mxu0 0.0
    %1649 = vmatpush1.msra.mxu0 %v1206
    %1650 = vmatprep.subr.mxu0 0.0
    %1651 = vmatpush1.msra.mxu0 %v1207
    %1652 = vmatprep.subr.mxu0 0.0
    %1653 = vmatpush1.msra.mxu0 %v1208
    %1654 = vmatprep.subr.mxu0 0.0
    %1655 = vmatpush1.msra.mxu0 %v1209
    %1656 = vmatprep.subr.mxu0 0.0
    %1657 = vmatpush1.msra.mxu0 %v1210
    %1658 = vmatprep.mubr.f32.mxu0 %v356
    %1659 = vmatmul.mubr.f32.gmra.mrb[0].mxu0 %v348
    %v1660 = vpop.f32.mrb[0].mxu0
    %v1661 = vadd.f32 %v1591, %v1660
    %v1662 = vpop.f32.mrb[0].mxu0
    %1663 = vdwg.mxu0
    %1664 = vmatprep.subr.mxu0 0.0
    %1665 = vmatpush1.msra.mxu0 %v1211
    %1666 = vmatprep.subr.mxu0 0.0
    %1667 = vmatpush1.msra.mxu0 %v1212
    %1668 = vmatprep.subr.mxu0 0.0
    %1669 = vmatpush1.msra.mxu0 %v1213
    %1670 = vmatprep.subr.mxu0 0.0
    %1671 = vmatpush1.msra.mxu0 %v1214
    %1672 = vmatprep.subr.mxu0 0.0
    %1673 = vmatpush1.msra.mxu0 %v1215
    %1674 = vmatprep.subr.mxu0 0.0
    %1675 = vmatpush1.msra.mxu0 %v1216
    %1676 = vmatprep.subr.mxu0 0.0
    %1677 = vmatpush1.msra.mxu0 %v1217
    %1678 = vmatprep.subr.mxu0 0.0
    %1679 = vmatpush1.msra.mxu0 %v1218
    %1680 = vmatprep.subr.mxu0 0.0
    %1681 = vmatpush1.msra.mxu0 %v1219
    %1682 = vmatprep.subr.mxu0 0.0
    %1683 = vmatpush1.msra.mxu0 %v1220
    %1684 = vmatprep.subr.mxu0 0.0
    %1685 = vmatpush1.msra.mxu0 %v1221
    %1686 = vmatprep.subr.mxu0 0.0
    %1687 = vmatpush1.msra.mxu0 %v1222
    %1688 = vmatprep.subr.mxu0 0.0
    %1689 = vmatpush1.msra.mxu0 %v1223
    %1690 = vmatprep.subr.mxu0 0.0
    %1691 = vmatpush1.msra.mxu0 %v1224
    %1692 = vmatprep.subr.mxu0 0.0
    %1693 = vmatpush1.msra.mxu0 %v1225
    %1694 = vmatprep.subr.mxu0 0.0
    %1695 = vmatpush1.msra.mxu0 %v1226
    %1696 = vmatprep.subr.mxu0 0.0
    %1697 = vmatpush1.msra.mxu0 %v1227
    %1698 = vmatprep.subr.mxu0 0.0
    %1699 = vmatpush1.msra.mxu0 %v1228
    %1700 = vmatprep.subr.mxu0 0.0
    %1701 = vmatpush1.msra.mxu0 %v1229
    %1702 = vmatprep.subr.mxu0 0.0
    %1703 = vmatpush1.msra.mxu0 %v1230
    %1704 = vmatprep.subr.mxu0 0.0
    %1705 = vmatpush1.msra.mxu0 %v1231
    %1706 = vmatprep.subr.mxu0 0.0
    %1707 = vmatpush1.msra.mxu0 %v1232
    %1708 = vmatprep.subr.mxu0 0.0
    %1709 = vmatpush1.msra.mxu0 %v1233
    %1710 = vmatprep.subr.mxu0 0.0
    %1711 = vmatpush1.msra.mxu0 %v1234
    %1712 = vmatprep.subr.mxu0 0.0
    %1713 = vmatpush1.msra.mxu0 %v1235
    %1714 = vmatprep.subr.mxu0 0.0
    %1715 = vmatpush1.msra.mxu0 %v1236
    %1716 = vmatprep.subr.mxu0 0.0
    %1717 = vmatpush1.msra.mxu0 %v1237
    %1718 = vmatprep.subr.mxu0 0.0
    %1719 = vmatpush1.msra.mxu0 %v1238
    %1720 = vmatprep.subr.mxu0 0.0
    %1721 = vmatpush1.msra.mxu0 %v1239
    %1722 = vmatprep.subr.mxu0 0.0
    %1723 = vmatpush1.msra.mxu0 %v1240
    %1724 = vmatprep.subr.mxu0 0.0
    %1725 = vmatpush1.msra.mxu0 %v1241
    %1726 = vmatprep.subr.mxu0 0.0
    %1727 = vmatpush1.msra.mxu0 %v1242
    %1728 = vmatprep.mubr.f32.mxu0 %v357
    %1729 = vmatmul.mubr.f32.gmra.mrb[0].mxu0 %v355
    %v1730 = vpop.f32.mrb[0].mxu0
    %v1731 = vadd.f32 %v1661, %v1730
    %v1732 = vpop.f32.mrb[0].mxu0
    %1733 = vdwg.mxu0
    %1734 = vmatprep.subr.mxu0 0.0
    %1735 = vmatpush1.msra.mxu0 %v1243
    %1736 = vmatprep.subr.mxu0 0.0
    %1737 = vmatpush1.msra.mxu0 %v1244
    %1738 = vmatprep.subr.mxu0 0.0
    %1739 = vmatpush1.msra.mxu0 %v1245
    %1740 = vmatprep.subr.mxu0 0.0
    %1741 = vmatpush1.msra.mxu0 %v1246
    %1742 = vmatprep.subr.mxu0 0.0
    %1743 = vmatpush1.msra.mxu0 %v1247
    %1744 = vmatprep.subr.mxu0 0.0
    %1745 = vmatpush1.msra.mxu0 %v1248
    %1746 = vmatprep.subr.mxu0 0.0
    %1747 = vmatpush1.msra.mxu0 %v1249
    %1748 = vmatprep.subr.mxu0 0.0
    %1749 = vmatpush1.msra.mxu0 %v1250
    %1750 = vmatprep.subr.mxu0 0.0
    %1751 = vmatpush1.msra.mxu0 %v1251
    %1752 = vmatprep.subr.mxu0 0.0
    %1753 = vmatpush1.msra.mxu0 %v1252
    %1754 = vmatprep.subr.mxu0 0.0
    %1755 = vmatpush1.msra.mxu0 %v1253
    %1756 = vmatprep.subr.mxu0 0.0
    %1757 = vmatpush1.msra.mxu0 %v1254
    %1758 = vmatprep.subr.mxu0 0.0
    %1759 = vmatpush1.msra.mxu0 %v1255
    %1760 = vmatprep.subr.mxu0 0.0
    %1761 = vmatpush1.msra.mxu0 %v1256
    %1762 = vmatprep.subr.mxu0 0.0
    %1763 = vmatpush1.msra.mxu0 %v1257
    %1764 = vmatprep.subr.mxu0 0.0
    %1765 = vmatpush1.msra.mxu0 %v1258
    %1766 = vmatprep.subr.mxu0 0.0
    %1767 = vmatpush1.msra.mxu0 %v1259
    %1768 = vmatprep.subr.mxu0 0.0
    %1769 = vmatpush1.msra.mxu0 %v1260
    %1770 = vmatprep.subr.mxu0 0.0
    %1771 = vmatpush1.msra.mxu0 %v1261
    %1772 = vmatprep.subr.mxu0 0.0
    %1773 = vmatpush1.msra.mxu0 %v1262
    %1774 = vmatprep.subr.mxu0 0.0
    %1775 = vmatpush1.msra.mxu0 %v1263
    %1776 = vmatprep.subr.mxu0 0.0
    %1777 = vmatpush1.msra.mxu0 %v1264
    %1778 = vmatprep.subr.mxu0 0.0
    %1779 = vmatpush1.msra.mxu0 %v1265
    %1780 = vmatprep.subr.mxu0 0.0
    %1781 = vmatpush1.msra.mxu0 %v1266
    %1782 = vmatprep.subr.mxu0 0.0
    %1783 = vmatpush1.msra.mxu0 %v1267
    %1784 = vmatprep.subr.mxu0 0.0
    %1785 = vmatpush1.msra.mxu0 %v1268
    %1786 = vmatprep.subr.mxu0 0.0
    %1787 = vmatpush1.msra.mxu0 %v1269
    %1788 = vmatprep.subr.mxu0 0.0
    %1789 = vmatpush1.msra.mxu0 %v1270
    %1790 = vmatprep.subr.mxu0 0.0
    %1791 = vmatpush1.msra.mxu0 %v1271
    %1792 = vmatprep.subr.mxu0 0.0
    %1793 = vmatpush1.msra.mxu0 %v1272
    %1794 = vmatprep.subr.mxu0 0.0
    %1795 = vmatpush1.msra.mxu0 %v1273
    %1796 = vmatprep.subr.mxu0 0.0
    %1797 = vmatpush1.msra.mxu0 %v1274
    %1798 = vmatprep.mubr.f32.mxu0 %v373
    %1799 = vmatmul.mubr.f32.gmra.mrb[0].mxu0 %v365
    %v1800 = vpop.f32.mrb[0].mxu0
    %v1801 = vadd.f32 %v1731, %v1800
    %v1802 = vpop.f32.mrb[0].mxu0
    %1803 = vdwg.mxu0
    %1804 = vmatprep.subr.mxu0 0.0
    %1805 = vmatpush1.msra.mxu0 %v1275
    %1806 = vmatprep.subr.mxu0 0.0
    %1807 = vmatpush1.msra.mxu0 %v1276
    %1808 = vmatprep.subr.mxu0 0.0
    %1809 = vmatpush1.msra.mxu0 %v1277
    %1810 = vmatprep.subr.mxu0 0.0
    %1811 = vmatpush1.msra.mxu0 %v1278
    %1812 = vmatprep.subr.mxu0 0.0
    %1813 = vmatpush1.msra.mxu0 %v1279
    %1814 = vmatprep.subr.mxu0 0.0
    %1815 = vmatpush1.msra.mxu0 %v1280
    %1816 = vmatprep.subr.mxu0 0.0
    %1817 = vmatpush1.msra.mxu0 %v1281
    %1818 = vmatprep.subr.mxu0 0.0
    %1819 = vmatpush1.msra.mxu0 %v1282
    %1820 = vmatprep.subr.mxu0 0.0
    %1821 = vmatpush1.msra.mxu0 %v1283
    %1822 = vmatprep.subr.mxu0 0.0
    %1823 = vmatpush1.msra.mxu0 %v1284
    %1824 = vmatprep.subr.mxu0 0.0
    %1825 = vmatpush1.msra.mxu0 %v1285
    %1826 = vmatprep.subr.mxu0 0.0
    %1827 = vmatpush1.msra.mxu0 %v1286
    %1828 = vmatprep.subr.mxu0 0.0
    %1829 = vmatpush1.msra.mxu0 %v1287
    %1830 = vmatprep.subr.mxu0 0.0
    %1831 = vmatpush1.msra.mxu0 %v1288
    %1832 = vmatprep.subr.mxu0 0.0
    %1833 = vmatpush1.msra.mxu0 %v1289
    %1834 = vmatprep.subr.mxu0 0.0
    %1835 = vmatpush1.msra.mxu0 %v1290
    %1836 = vmatprep.subr.mxu0 0.0
    %1837 = vmatpush1.msra.mxu0 %v1291
    %1838 = vmatprep.subr.mxu0 0.0
    %1839 = vmatpush1.msra.mxu0 %v1292
    %1840 = vmatprep.subr.mxu0 0.0
    %1841 = vmatpush1.msra.mxu0 %v1293
    %1842 = vmatprep.subr.mxu0 0.0
    %1843 = vmatpush1.msra.mxu0 %v1294
    %1844 = vmatprep.subr.mxu0 0.0
    %1845 = vmatpush1.msra.mxu0 %v1295
    %1846 = vmatprep.subr.mxu0 0.0
    %1847 = vmatpush1.msra.mxu0 %v1296
    %1848 = vmatprep.subr.mxu0 0.0
    %1849 = vmatpush1.msra.mxu0 %v1297
    %1850 = vmatprep.subr.mxu0 0.0
    %1851 = vmatpush1.msra.mxu0 %v1298
    %1852 = vmatprep.subr.mxu0 0.0
    %1853 = vmatpush1.msra.mxu0 %v1299
    %1854 = vmatprep.subr.mxu0 0.0
    %1855 = vmatpush1.msra.mxu0 %v1300
    %1856 = vmatprep.subr.mxu0 0.0
    %1857 = vmatpush1.msra.mxu0 %v1301
    %1858 = vmatprep.subr.mxu0 0.0
    %1859 = vmatpush1.msra.mxu0 %v1302
    %1860 = vmatprep.subr.mxu0 0.0
    %1861 = vmatpush1.msra.mxu0 %v1303
    %1862 = vmatprep.subr.mxu0 0.0
    %1863 = vmatpush1.msra.mxu0 %v1304
    %1864 = vmatprep.subr.mxu0 0.0
    %1865 = vmatpush1.msra.mxu0 %v1305
    %1866 = vmatprep.subr.mxu0 0.0
    %1867 = vmatpush1.msra.mxu0 %v1306
    %1868 = vmatprep.mubr.f32.mxu0 %v374
    %1869 = vmatmul.mubr.f32.gmra.mrb[0].mxu0 %v372
    %v1870 = vpop.f32.mrb[0].mxu0
    %v1871 = vadd.f32 %v1801, %v1870
    %v1872 = vpop.f32.mrb[0].mxu0
    %1873 = vdwg.mxu0
    %v1874 = vld [vmem:[%s7] sm:$0xff]
    %v1875 = vld [vmem:[%s7 + $0x8] sm:$0xff]
    %v1876 = vld [vmem:[%s7 + $0x10] sm:$0xff]
    %v1877 = vld [vmem:[%s7 + $0x18] sm:$0xff]
    %v1878 = vld [vmem:[%s7 + $0x20] sm:$0xff]
    %v1879 = vld [vmem:[%s7 + $0x28] sm:$0xff]
    %v1880 = vld [vmem:[%s7 + $0x30] sm:$0xff]
    %v1881 = vld [vmem:[%s7 + $0x38] sm:$0xff]
    %v1882 = vld [vmem:[%s8] sm:$0x1]
    %v1884 = vlaneseq
    %v1885 = vshrl.u32 %v1884, 7
    %v1886 = vsub.s32 0, %v1885
    %v1887 = vrot.slane %v1882, %v1886
    %vm1889 = vcmask 523264
    %v1891 = vsel %vm1889, %v1871, 0
    %1893 = vmatprep.subr.mxu0 0.0
    %1894 = vmatpush1.msra.mxu0 %v1874
    %1895 = vmatprep.subr.mxu0 0.0
    %1896 = vmatpush1.msra.mxu0 %v1875
    %1897 = vmatprep.subr.mxu0 0.0
    %1898 = vmatpush1.msra.mxu0 %v1876
    %1899 = vmatprep.subr.mxu0 0.0
    %1900 = vmatpush1.msra.mxu0 %v1877
    %1901 = vmatprep.subr.mxu0 0.0
    %1902 = vmatpush1.msra.mxu0 %v1878
    %1903 = vmatprep.subr.mxu0 0.0
    %1904 = vmatpush1.msra.mxu0 %v1879
    %1905 = vmatprep.subr.mxu0 0.0
    %1906 = vmatpush1.msra.mxu0 %v1880
    %1907 = vmatprep.subr.mxu0 0.0
    %1908 = vmatpush1.msra.mxu0 %v1881
    %1909 = vmatprep.subr.mxu0 0.0
    %1910 = vmatpush1.msra.mxu0 0.0
    %1911 = vmatprep.subr.mxu0 0.0
    %1912 = vmatpush1.msra.mxu0 0.0
    %1913 = vmatprep.subr.mxu0 0.0
    %1914 = vmatpush1.msra.mxu0 0.0
    %1915 = vmatprep.subr.mxu0 0.0
    %1916 = vmatpush1.msra.mxu0 0.0
    %1917 = vmatprep.subr.mxu0 0.0
    %1918 = vmatpush1.msra.mxu0 0.0
    %1919 = vmatprep.subr.mxu0 0.0
    %1920 = vmatpush1.msra.mxu0 0.0
    %1921 = vmatprep.subr.mxu0 0.0
    %1922 = vmatpush1.msra.mxu0 0.0
    %1923 = vmatprep.subr.mxu0 0.0
    %1924 = vmatpush1.msra.mxu0 0.0
    %1925 = vmatprep.subr.mxu0 0.0
    %1926 = vmatpush1.msra.mxu0 0.0
    %1927 = vmatprep.subr.mxu0 0.0
    %1928 = vmatpush1.msra.mxu0 0.0
    %1929 = vmatprep.subr.mxu0 0.0
    %1930 = vmatpush1.msra.mxu0 0.0
    %1931 = vmatprep.subr.mxu0 0.0
    %1932 = vmatpush1.msra.mxu0 0.0
    %1933 = vmatprep.subr.mxu0 0.0
    %1934 = vmatpush1.msra.mxu0 0.0
    %1935 = vmatprep.subr.mxu0 0.0
    %1936 = vmatpush1.msra.mxu0 0.0
    %1937 = vmatprep.subr.mxu0 0.0
    %1938 = vmatpush1.msra.mxu0 0.0
    %1939 = vmatprep.subr.mxu0 0.0
    %1940 = vmatpush1.msra.mxu0 0.0
    %1941 = vmatprep.subr.mxu0 0.0
    %1942 = vmatpush1.msra.mxu0 0.0
    %1943 = vmatprep.subr.mxu0 0.0
    %1944 = vmatpush1.msra.mxu0 0.0
    %1945 = vmatprep.subr.mxu0 0.0
    %1946 = vmatpush1.msra.mxu0 0.0
    %1947 = vmatprep.subr.mxu0 0.0
    %1948 = vmatpush1.msra.mxu0 0.0
    %1949 = vmatprep.subr.mxu0 0.0
    %1950 = vmatpush1.msra.mxu0 0.0
    %1951 = vmatprep.subr.mxu0 0.0
    %1952 = vmatpush1.msra.mxu0 0.0
    %1953 = vmatprep.subr.mxu0 0.0
    %1954 = vmatpush1.msra.mxu0 0.0
    %1955 = vmatprep.subr.mxu0 0.0
    %1956 = vmatpush1.msra.mxu0 0.0
    %1957 = vmatprep.mubr.f32.mxu0 0.0
    %1958 = vmatmul.mubr.f32.gmra.mrb[0].mxu0 %v1891
    %v1959 = vpop.f32.mrb[0].mxu0
    %v1960 = vadd.f32 %v1887, %v1959
    %v1961 = vpop.f32.mrb[0].mxu0
    %1962 = vdwg.mxu0
    %vm1963 = vcmask 525312
    %v1964 = vsel %vm1963, %v1960, -inf
    %1965 = vmax.xlane.f32.xlu0 %v1964
    %v1966 = vpop.xlane.xlu0 %1965
    %v1967 = vsub.f32 %v1960, %v1966
    %v1968 = vmul.f32 %v1967, 1.442695
    %v1969 = vpow.pop %v1968
    %v1970 = vsel %vm1963, %v1969, 0.0
    %1971 = vadd.xlane.f32.xlu0 %v1970
    %v1972 = vpop.xlane.xlu0 %1971
    %v1973 = vlog2.pop %v1972
    %v1974 = vmul.f32 %v1973, 0.6931472
    %v1975 = vadd.f32 %v1974, %v1966
    %v1976 = vsub.f32 %v1960, %v1975
    %1977 = vst.msk [vmem:[#allocation2] sm:$0x3] %vm1963, %v1976
    // Predicated region
    $region38: #{resnet_forward.3} parent=1 // pred_check
      _
    $region39: #{resnet_forward.3} parent=1 // pred_check_branch
      %1979 = sbr.rel (0) target = $region41
    $region40: #{resnet_forward.3} parent=1 // pred_region
      %s1981 = ssub.s32 32, 32
      %1982 = vsyncadd [#allocation3], %s1981
      %s1984 = sshll.u32 [#allocation2], 4
      %s1985 = int_to_ptr.vmem [resolvable:$true] %s1984
      %1987 = dma.vmem_to_hbm [thread:$0]  %s1985, 32, %s9, [#allocation3]
    $region41: #{resnet_forward.3} parent=1 // pred_fallthru
      _
    // Predicated region
    $region42: #{resnet_forward.3} parent=1 // pred_check
      _
    $region43: #{resnet_forward.3} parent=1 // pred_check_branch
      %1989 = sbr.rel (0) target = $region45
    $region44: #{resnet_forward.3} parent=1 // pred_region
      %s1991 = ssub.s32 32, 32
      %1992 = vsyncadd [#allocation5], %s1991
      %s1994 = sshll.u32 [#allocation4], 4
      %s1995 = int_to_ptr.vmem [resolvable:$true] %s1994
      %1997 = dma.vmem_to_hbm [thread:$0]  %s1995, 32, %s10, [#allocation5]
    $region45: #{resnet_forward.3} parent=1 // pred_fallthru
      _
    // Predicated region
    $region46: #{resnet_forward.3} parent=1 // pred_check
      _
    $region47: #{resnet_forward.3} parent=1 // pred_check_branch
      %1999 = sbr.rel (0) target = $region49
    $region48: #{resnet_forward.3} parent=1 // pred_region
      %2000 = dma.done [#allocation3], 32
    $region49: #{resnet_forward.3} parent=1 // pred_fallthru
      _
    // Predicated region
    $region50: #{resnet_forward.3} parent=1 // pred_check
      _
    $region51: #{resnet_forward.3} parent=1 // pred_check_branch
      %2002 = sbr.rel (0) target = $region53
    $region52: #{resnet_forward.3} parent=1 // pred_region
      %2003 = dma.done [#allocation5], 32
    $region53: #{resnet_forward.3} parent=1 // pred_fallthru
      _
    %2004 = vsyncpa [#allocation3], 1
    %2005 = vsyncpa [#allocation5], 1

// kernel: resnet_forward.2
$region0: #{resnet_forward.2}
  #allocation0 [shape = 'u32[]', space=smem, size = 0x4, offset = 0x4, fixed_abs, tag = 'smem constant byte address 0x4 - core index']
  #allocation1 [shape = 'u32[144,128]{1,0:T(1,128)}', space=vmem, size = 0x12000, scoped, tag = 'internal scratch']
  #allocation2 [shape = 'f32[2,10,10,32]{3,2,1,0:T(8,128)}', space=vmem, size = 0x28000, scoped, tag = 'scratch operand']
  %s0 = inlined_call_operand.vmem [shape: f32[2,10,10,4], index: 0, kind: input, shape index: {}]
  %s1 = inlined_call_operand.vmem [shape: bf16[9,4,32], index: 1, kind: input, shape index: {}]
  %s2 = inlined_call_operand.vmem [shape: f32[1,32], index: 2, kind: input, shape index: {}]
  %s3 = inlined_call_operand.vmem [shape: f32[1,32], index: 3, kind: input, shape index: {}]
  %s4 = inlined_call_operand.vmem [shape: f32[1,32], index: 4, kind: input, shape index: {}]
  %s5 = inlined_call_operand.vmem [shape: f32[1,32], index: 5, kind: input, shape index: {}]
  %s6 = inlined_call_operand.vmem [shape: bf16[9,32,32], index: 6, kind: input, shape index: {}]
  %s7 = inlined_call_operand.vmem [shape: f32[1,32], index: 7, kind: input, shape index: {}]
  %s8 = inlined_call_operand.vmem [shape: f32[1,32], index: 8, kind: input, shape index: {}]
  %s9 = inlined_call_operand.vmem [shape: bf16[9,32,32], index: 9, kind: input, shape index: {}]
  %s10 = inlined_call_operand.vmem [shape: f32[1,32], index: 10, kind: input, shape index: {}]
  %s11 = inlined_call_operand.vmem [shape: f32[1,32], index: 11, kind: input, shape index: {}]
  %s12 = inlined_call_operand.vmem [shape: bf16[9,32,32], index: 12, kind: input, shape index: {}]
  %s13 = inlined_call_operand.vmem [shape: f32[1,32], index: 13, kind: input, shape index: {}]
  %s14 = inlined_call_operand.vmem [shape: f32[1,32], index: 14, kind: input, shape index: {}]
  %s15 = inlined_call_operand.vmem [shape: bf16[9,32,32], index: 15, kind: input, shape index: {}]
  %s16 = inlined_call_operand.vmem [shape: f32[2,8,8,32], index: 16, kind: output, shape index: {}]
  %s17 = sld [smem:[#allocation0]]
  $region74: #{resnet_forward.2} parent=0
    _
  %s19 = ssub.s32 1, %s17
  %s20 = scalar_select 0, %s19, %s17
  // Predicated region
  $region2: #{resnet_forward.2} parent=0 // pred_check
    _
  $region3: #{resnet_forward.2} parent=0 // pred_check_branch
    %22 = sbr.rel (0) target = $region5
  $region4: #{resnet_forward.2} parent=0 // pred_region
    _
  $region5: #{resnet_forward.2} parent=0 // pred_fallthru
    _
  // Predicated region
  $region6: #{resnet_forward.2} parent=0 // pred_check
    _
  $region7: #{resnet_forward.2} parent=0 // pred_check_branch
    %24 = sbr.rel (0) target = $region9
  $region8: #{resnet_forward.2} parent=0 // pred_region
    _
  $region9: #{resnet_forward.2} parent=0 // pred_fallthru
    _
  // Predicated region
  $region10: #{resnet_forward.2} parent=0 // pred_check
    _
  $region11: #{resnet_forward.2} parent=0 // pred_check_branch
    %26 = sbr.rel (0) target = $region13
  $region12: #{resnet_forward.2} parent=0 // pred_region
    _
  $region13: #{resnet_forward.2} parent=0 // pred_fallthru
    _
  // Predicated region
  $region14: #{resnet_forward.2} parent=0 // pred_check
    _
  $region15: #{resnet_forward.2} parent=0 // pred_check_branch
    %28 = sbr.rel (0) target = $region17
  $region16: #{resnet_forward.2} parent=0 // pred_region
    _
  $region17: #{resnet_forward.2} parent=0 // pred_fallthru
    _
  // Predicated region
  $region18: #{resnet_forward.2} parent=0 // pred_check
    _
  $region19: #{resnet_forward.2} parent=0 // pred_check_branch
    %30 = sbr.rel (0) target = $region21
  $region20: #{resnet_forward.2} parent=0 // pred_region
    _
  $region21: #{resnet_forward.2} parent=0 // pred_fallthru
    _
  // Predicated region
  $region22: #{resnet_forward.2} parent=0 // pred_check
    _
  $region23: #{resnet_forward.2} parent=0 // pred_check_branch
    %32 = sbr.rel (0) target = $region25
  $region24: #{resnet_forward.2} parent=0 // pred_region
    _
  $region25: #{resnet_forward.2} parent=0 // pred_fallthru
    _
  // Predicated region
  $region26: #{resnet_forward.2} parent=0 // pred_check
    _
  $region27: #{resnet_forward.2} parent=0 // pred_check_branch
    %34 = sbr.rel (0) target = $region29
  $region28: #{resnet_forward.2} parent=0 // pred_region
    _
  $region29: #{resnet_forward.2} parent=0 // pred_fallthru
    _
  // Predicated region
  $region30: #{resnet_forward.2} parent=0 // pred_check
    _
  $region31: #{resnet_forward.2} parent=0 // pred_check_branch
    %36 = sbr.rel (0) target = $region33
  $region32: #{resnet_forward.2} parent=0 // pred_region
    _
  $region33: #{resnet_forward.2} parent=0 // pred_fallthru
    _
  // Predicated region
  $region34: #{resnet_forward.2} parent=0 // pred_check
    _
  $region35: #{resnet_forward.2} parent=0 // pred_check_branch
    %38 = sbr.rel (0) target = $region37
  $region36: #{resnet_forward.2} parent=0 // pred_region
    _
  $region37: #{resnet_forward.2} parent=0 // pred_fallthru
    _
  // Predicated region
  $region38: #{resnet_forward.2} parent=0 // pred_check
    _
  $region39: #{resnet_forward.2} parent=0 // pred_check_branch
    %40 = sbr.rel (0) target = $region41
  $region40: #{resnet_forward.2} parent=0 // pred_region
    _
  $region41: #{resnet_forward.2} parent=0 // pred_fallthru
    _
  // Predicated region
  $region42: #{resnet_forward.2} parent=0 // pred_check
    _
  $region43: #{resnet_forward.2} parent=0 // pred_check_branch
    %42 = sbr.rel (0) target = $region45
  $region44: #{resnet_forward.2} parent=0 // pred_region
    _
  $region45: #{resnet_forward.2} parent=0 // pred_fallthru
    _
  // Predicated region
  $region46: #{resnet_forward.2} parent=0 // pred_check
    _
  $region47: #{resnet_forward.2} parent=0 // pred_check_branch
    %44 = sbr.rel (0) target = $region49
  $region48: #{resnet_forward.2} parent=0 // pred_region
    _
  $region49: #{resnet_forward.2} parent=0 // pred_fallthru
    _
  // Predicated region
  $region50: #{resnet_forward.2} parent=0 // pred_check
    _
  $region51: #{resnet_forward.2} parent=0 // pred_check_branch
    %46 = sbr.rel (0) target = $region53
  $region52: #{resnet_forward.2} parent=0 // pred_region
    _
  $region53: #{resnet_forward.2} parent=0 // pred_fallthru
    _
  // Predicated region
  $region54: #{resnet_forward.2} parent=0 // pred_check
    _
  $region55: #{resnet_forward.2} parent=0 // pred_check_branch
    %48 = sbr.rel (0) target = $region57
  $region56: #{resnet_forward.2} parent=0 // pred_region
    _
  $region57: #{resnet_forward.2} parent=0 // pred_fallthru
    _
  // Predicated region
  $region58: #{resnet_forward.2} parent=0 // pred_check
    _
  $region59: #{resnet_forward.2} parent=0 // pred_check_branch
    %50 = sbr.rel (0) target = $region61
  $region60: #{resnet_forward.2} parent=0 // pred_region
    _
  $region61: #{resnet_forward.2} parent=0 // pred_fallthru
    _
  // Predicated region
  $region62: #{resnet_forward.2} parent=0 // pred_check
    _
  $region63: #{resnet_forward.2} parent=0 // pred_check_branch
    %52 = sbr.rel (0) target = $region65
  $region64: #{resnet_forward.2} parent=0 // pred_region
    _
  $region65: #{resnet_forward.2} parent=0 // pred_fallthru
    _
  %v54 = vld [vmem:[%s0] sm:$0xff]
  %v55 = vld [vmem:[%s0 + $0x8] sm:$0x3]
  %v56 = vld [vmem:[%s0 + $0x10] sm:$0xff]
  %v57 = vld [vmem:[%s0 + $0x18] sm:$0x3]
  %v58 = vld [vmem:[%s0 + $0x20] sm:$0xff]
  %v59 = vld [vmem:[%s0 + $0x28] sm:$0x3]
  %v60 = vld [vmem:[%s0 + $0x30] sm:$0xff]
  %v61 = vld [vmem:[%s0 + $0x38] sm:$0x3]
  %v62 = vld [vmem:[%s0 + $0x40] sm:$0xff]
  %v63 = vld [vmem:[%s0 + $0x48] sm:$0x3]
  %v64 = vld [vmem:[%s0 + $0x50] sm:$0xff]
  %v65 = vld [vmem:[%s0 + $0x58] sm:$0x3]
  %v66 = vld [vmem:[%s0 + $0x60] sm:$0xff]
  %v67 = vld [vmem:[%s0 + $0x68] sm:$0x3]
  %v68 = vld [vmem:[%s0 + $0x70] sm:$0xff]
  %v69 = vld [vmem:[%s0 + $0x78] sm:$0x3]
  %v70 = vld [vmem:[%s0 + $0x80] sm:$0xff]
  %v71 = vld [vmem:[%s0 + $0x88] sm:$0x3]
  %v72 = vld [vmem:[%s0 + $0x90] sm:$0xff]
  %v73 = vld [vmem:[%s0 + $0x98] sm:$0x3]
  %v74 = vld [vmem:[%s0 + $0xa0] sm:$0xff]
  %v75 = vld [vmem:[%s0 + $0xa8] sm:$0x3]
  %v76 = vld [vmem:[%s0 + $0xb0] sm:$0xff]
  %v77 = vld [vmem:[%s0 + $0xb8] sm:$0x3]
  %v78 = vld [vmem:[%s0 + $0xc0] sm:$0xff]
  %v79 = vld [vmem:[%s0 + $0xc8] sm:$0x3]
  %v80 = vld [vmem:[%s0 + $0xd0] sm:$0xff]
  %v81 = vld [vmem:[%s0 + $0xd8] sm:$0x3]
  %v82 = vld [vmem:[%s0 + $0xe0] sm:$0xff]
  %v83 = vld [vmem:[%s0 + $0xe8] sm:$0x3]
  %v84 = vld [vmem:[%s0 + $0xf0] sm:$0xff]
  %v85 = vld [vmem:[%s0 + $0xf8] sm:$0x3]
  %v86 = vld [vmem:[%s0 + $0x100] sm:$0xff]
  %v87 = vld [vmem:[%s0 + $0x108] sm:$0x3]
  %v88 = vld [vmem:[%s0 + $0x110] sm:$0xff]
  %v89 = vld [vmem:[%s0 + $0x118] sm:$0x3]
  %v90 = vld [vmem:[%s0 + $0x120] sm:$0xff]
  %v91 = vld [vmem:[%s0 + $0x128] sm:$0x3]
  %v92 = vld [vmem:[%s0 + $0x130] sm:$0xff]
  %v93 = vld [vmem:[%s0 + $0x138] sm:$0x3]
  %v94 = vpack.c.bf16 %v56, %v54
  %v95 = vpack.c.bf16 %v60, %v58
  %v96 = vpack.c.bf16 %v64, %v62
  %v97 = vpack.c.bf16 %v68, %v66
  %v98 = vpack.c.bf16 %v76, %v74
  %v99 = vpack.c.bf16 %v80, %v78
  %v100 = vpack.c.bf16 %v84, %v82
  %v101 = vpack.c.bf16 %v88, %v86
  %v102 = vld [vmem:[%s1] sm:$0x3]
  %vm135 = vcmask 1046528
  %v136 = vrot.slane %v54, 1
  %v137 = vrot.slane %v55, 1
  %v138 = vsel %vm135, %v136, %v137
  %v139 = vrot.slane %v56, 1
  %v140 = vrot.slane %v57, 1
  %v141 = vsel %vm135, %v139, %v140
  %v142 = vrot.slane %v58, 1
  %v143 = vrot.slane %v59, 1
  %v144 = vsel %vm135, %v142, %v143
  %v145 = vrot.slane %v60, 1
  %v146 = vrot.slane %v61, 1
  %v147 = vsel %vm135, %v145, %v146
  %v148 = vrot.slane %v62, 1
  %v149 = vrot.slane %v63, 1
  %v150 = vsel %vm135, %v148, %v149
  %v151 = vrot.slane %v64, 1
  %v152 = vrot.slane %v65, 1
  %v153 = vsel %vm135, %v151, %v152
  %v154 = vrot.slane %v66, 1
  %v155 = vrot.slane %v67, 1
  %v156 = vsel %vm135, %v154, %v155
  %v157 = vrot.slane %v68, 1
  %v158 = vrot.slane %v69, 1
  %v159 = vsel %vm135, %v157, %v158
  %v160 = vrot.slane %v74, 1
  %v161 = vrot.slane %v75, 1
  %v162 = vsel %vm135, %v160, %v161
  %v163 = vrot.slane %v76, 1
  %v164 = vrot.slane %v77, 1
  %v165 = vsel %vm135, %v163, %v164
  %v166 = vrot.slane %v78, 1
  %v167 = vrot.slane %v79, 1
  %v168 = vsel %vm135, %v166, %v167
  %v169 = vrot.slane %v80, 1
  %v170 = vrot.slane %v81, 1
  %v171 = vsel %vm135, %v169, %v170
  %v172 = vrot.slane %v82, 1
  %v173 = vrot.slane %v83, 1
  %v174 = vsel %vm135, %v172, %v173
  %v175 = vrot.slane %v84, 1
  %v176 = vrot.slane %v85, 1
  %v177 = vsel %vm135, %v175, %v176
  %v178 = vrot.slane %v86, 1
  %v179 = vrot.slane %v87, 1
  %v180 = vsel %vm135, %v178, %v179
  %v181 = vrot.slane %v88, 1
  %v182 = vrot.slane %v89, 1
  %v183 = vsel %vm135, %v181, %v182
  %v200 = vpack.c.bf16 %v141, %v138
  %v201 = vpack.c.bf16 %v147, %v144
  %v202 = vpack.c.bf16 %v153, %v150
  %v203 = vpack.c.bf16 %v159, %v156
  %v204 = vpack.c.bf16 %v165, %v162
  %v205 = vpack.c.bf16 %v171, %v168
  %v206 = vpack.c.bf16 %v177, %v174
  %v207 = vpack.c.bf16 %v183, %v180
  %s208 = scalar_lea.vmem %s1, 2
  %v209 = vld [vmem:[%s208] sm:$0x3]
  %vm210 = vcmask 31744
  %v212 = vsel %vm210, %v200, 0
  %v215 = vsel %vm210, %v201, 0
  %v218 = vsel %vm210, %v202, 0
  %v221 = vsel %vm210, %v203, 0
  %v224 = vsel %vm210, %v204, 0
  %v227 = vsel %vm210, %v205, 0
  %v230 = vsel %vm210, %v206, 0
  %v233 = vsel %vm210, %v207, 0
  %vm235 = vcmask 1041408
  %v237 = vsel %vm235, %v209, 0
  %239 = vmatprep.subr.bf16.mxu0 0
  %240 = vmatpush1.bf16.msra.mxu0 %v237
  %241 = vmatprep.subr.bf16.mxu0 0
  %242 = vmatpush1.bf16.msra.mxu0 0
  %243 = vmatprep.subr.bf16.mxu0 0
  %244 = vmatpush1.bf16.msra.mxu0 0
  %245 = vmatprep.subr.bf16.mxu0 0
  %246 = vmatpush1.bf16.msra.mxu0 0
  %247 = vmatprep.subr.bf16.mxu0 0
  %248 = vmatpush1.bf16.msra.mxu0 0
  %249 = vmatprep.subr.bf16.mxu0 0
  %250 = vmatpush1.bf16.msra.mxu0 0
  %251 = vmatprep.subr.bf16.mxu0 0
  %252 = vmatpush1.bf16.msra.mxu0 0
  %253 = vmatprep.subr.bf16.mxu0 0
  %254 = vmatpush1.bf16.msra.mxu0 0
  %255 = vmatprep.subr.bf16.mxu0 0
  %256 = vmatpush1.bf16.msra.mxu0 0
  %257 = vmatprep.subr.bf16.mxu0 0
  %258 = vmatpush1.bf16.msra.mxu0 0
  %259 = vmatprep.subr.bf16.mxu0 0
  %260 = vmatpush1.bf16.msra.mxu0 0
  %261 = vmatprep.subr.bf16.mxu0 0
  %262 = vmatpush1.bf16.msra.mxu0 0
  %263 = vmatprep.subr.bf16.mxu0 0
  %264 = vmatpush1.bf16.msra.mxu0 0
  %265 = vmatprep.subr.bf16.mxu0 0
  %266 = vmatpush1.bf16.msra.mxu0 0
  %267 = vmatprep.subr.bf16.mxu0 0
  %268 = vmatpush1.bf16.msra.mxu0 0
  %269 = vmatprep.subr.bf16.mxu0 0
  %270 = vmatpush1.bf16.msra.mxu0 0
  %271 = vmatprep.mubr.bf16.mxu0 0
  %272 = vmatmul.mubr.bf16.gmra.mrb[0].mxu0 %v212
  %v273 = vpop.f32.mrb[0].mxu0
  %v274 = vadd.f32 0.0, %v273
  %v275 = vpop.f32.mrb[0].mxu0
  %v276 = vpop.f32.mrb[0].mxu0
  %v277 = vadd.f32 0.0, %v276
  %v278 = vpop.f32.mrb[0].mxu0
  %279 = vmatprep.mubr.bf16.mxu0 0
  %280 = vmatmul.mubr.bf16.gmra.mrb[0].mxu0 %v215
  %v281 = vpop.f32.mrb[0].mxu0
  %v282 = vadd.f32 0.0, %v281
  %v283 = vpop.f32.mrb[0].mxu0
  %v284 = vpop.f32.mrb[0].mxu0
  %v285 = vadd.f32 0.0, %v284
  %v286 = vpop.f32.mrb[0].mxu0
  %287 = vmatprep.mubr.bf16.mxu0 0
  %288 = vmatmul.mubr.bf16.gmra.mrb[0].mxu0 %v218
  %v289 = vpop.f32.mrb[0].mxu0
  %v290 = vadd.f32 0.0, %v289
  %v291 = vpop.f32.mrb[0].mxu0
  %v292 = vpop.f32.mrb[0].mxu0
  %v293 = vadd.f32 0.0, %v292
  %v294 = vpop.f32.mrb[0].mxu0
  %295 = vmatprep.mubr.bf16.mxu0 0
  %296 = vmatmul.mubr.bf16.gmra.mrb[0].mxu0 %v221
  %v297 = vpop.f32.mrb[0].mxu0
  %v298 = vadd.f32 0.0, %v297
  %v299 = vpop.f32.mrb[0].mxu0
  %v300 = vpop.f32.mrb[0].mxu0
  %v301 = vadd.f32 0.0, %v300
  %v302 = vpop.f32.mrb[0].mxu0
  %303 = vmatprep.mubr.bf16.mxu0 0
  %304 = vmatmul.mubr.bf16.gmra.mrb[0].mxu0 %v224
  %v305 = vpop.f32.mrb[0].mxu0
  %v306 = vadd.f32 0.0, %v305
  %v307 = vpop.f32.mrb[0].mxu0
  %v308 = vpop.f32.mrb[0].mxu0
  %v309 = vadd.f32 0.0, %v308
  %v310 = vpop.f32.mrb[0].mxu0
  %311 = vmatprep.mubr.bf16.mxu0 0
  %312 = vmatmul.mubr.bf16.gmra.mrb[0].mxu0 %v227
  %v313 = vpop.f32.mrb[0].mxu0
  %v314 = vadd.f32 0.0, %v313
  %v315 = vpop.f32.mrb[0].mxu0
  %v316 = vpop.f32.mrb[0].mxu0
  %v317 = vadd.f32 0.0, %v316
  %v318 = vpop.f32.mrb[0].mxu0
  %319 = vmatprep.mubr.bf16.mxu0 0
  %320 = vmatmul.mubr.bf16.gmra.mrb[0].mxu0 %v230
  %v321 = vpop.f32.mrb[0].mxu0
  %v322 = vadd.f32 0.0, %v321
  %v323 = vpop.f32.mrb[0].mxu0
  %v324 = vpop.f32.mrb[0].mxu0
  %v325 = vadd.f32 0.0, %v324
  %v326 = vpop.f32.mrb[0].mxu0
  %327 = vmatprep.mubr.bf16.mxu0 0
  %328 = vmatmul.mubr.bf16.gmra.mrb[0].mxu0 %v233
  %v329 = vpop.f32.mrb[0].mxu0
  %v330 = vadd.f32 0.0, %v329
  %v331 = vpop.f32.mrb[0].mxu0
  %v332 = vpop.f32.mrb[0].mxu0
  %v333 = vadd.f32 0.0, %v332
  %v334 = vpop.f32.mrb[0].mxu0
  %335 = vdwg.mxu0
  %v337 = vsel %vm210, %v94, 0
  %v340 = vsel %vm210, %v95, 0
  %v343 = vsel %vm210, %v96, 0
  %v346 = vsel %vm210, %v97, 0
  %v349 = vsel %vm210, %v98, 0
  %v352 = vsel %vm210, %v99, 0
  %v355 = vsel %vm210, %v100, 0
  %v358 = vsel %vm210, %v101, 0
  %v361 = vsel %vm235, %v102, 0
  %363 = vmatprep.subr.bf16.mxu0 0
  %364 = vmatpush1.bf16.msra.mxu0 %v361
  %365 = vmatprep.subr.bf16.mxu0 0
  %366 = vmatpush1.bf16.msra.mxu0 0
  %367 = vmatprep.subr.bf16.mxu0 0
  %368 = vmatpush1.bf16.msra.mxu0 0
  %369 = vmatprep.subr.bf16.mxu0 0
  %370 = vmatpush1.bf16.msra.mxu0 0
  %371 = vmatprep.subr.bf16.mxu0 0
  %372 = vmatpush1.bf16.msra.mxu0 0
  %373 = vmatprep.subr.bf16.mxu0 0
  %374 = vmatpush1.bf16.msra.mxu0 0
  %375 = vmatprep.subr.bf16.mxu0 0
  %376 = vmatpush1.bf16.msra.mxu0 0
  %377 = vmatprep.subr.bf16.mxu0 0
  %378 = vmatpush1.bf16.msra.mxu0 0
  %379 = vmatprep.subr.bf16.mxu0 0
  %380 = vmatpush1.bf16.msra.mxu0 0
  %381 = vmatprep.subr.bf16.mxu0 0
  %382 = vmatpush1.bf16.msra.mxu0 0
  %383 = vmatprep.subr.bf16.mxu0 0
  %384 = vmatpush1.bf16.msra.mxu0 0
  %385 = vmatprep.subr.bf16.mxu0 0
  %386 = vmatpush1.bf16.msra.mxu0 0
  %387 = vmatprep.subr.bf16.mxu0 0
  %388 = vmatpush1.bf16.msra.mxu0 0
  %389 = vmatprep.subr.bf16.mxu0 0
  %390 = vmatpush1.bf16.msra.mxu0 0
  %391 = vmatprep.subr.bf16.mxu0 0
  %392 = vmatpush1.bf16.msra.mxu0 0
  %393 = vmatprep.subr.bf16.mxu0 0
  %394 = vmatpush1.bf16.msra.mxu0 0
  %395 = vmatprep.mubr.bf16.mxu0 0
  %396 = vmatmul.mubr.bf16.gmra.mrb[0].mxu0 %v337
  %v397 = vpop.f32.mrb[0].mxu0
  %v398 = vadd.f32 %v274, %v397
  %v399 = vpop.f32.mrb[0].mxu0
  %v400 = vpop.f32.mrb[0].mxu0
  %v401 = vadd.f32 %v277, %v400
  %v402 = vpop.f32.mrb[0].mxu0
  %403 = vmatprep.mubr.bf16.mxu0 0
  %404 = vmatmul.mubr.bf16.gmra.mrb[0].mxu0 %v340
  %v405 = vpop.f32.mrb[0].mxu0
  %v406 = vadd.f32 %v282, %v405
  %v407 = vpop.f32.mrb[0].mxu0
  %v408 = vpop.f32.mrb[0].mxu0
  %v409 = vadd.f32 %v285, %v408
  %v410 = vpop.f32.mrb[0].mxu0
  %411 = vmatprep.mubr.bf16.mxu0 0
  %412 = vmatmul.mubr.bf16.gmra.mrb[0].mxu0 %v343
  %v413 = vpop.f32.mrb[0].mxu0
  %v414 = vadd.f32 %v290, %v413
  %v415 = vpop.f32.mrb[0].mxu0
  %v416 = vpop.f32.mrb[0].mxu0
  %v417 = vadd.f32 %v293, %v416
  %v418 = vpop.f32.mrb[0].mxu0
  %419 = vmatprep.mubr.bf16.mxu0 0
  %420 = vmatmul.mubr.bf16.gmra.mrb[0].mxu0 %v346
  %v421 = vpop.f32.mrb[0].mxu0
  %v422 = vadd.f32 %v298, %v421
  %v423 = vpop.f32.mrb[0].mxu0
  %v424 = vpop.f32.mrb[0].mxu0
  %v425 = vadd.f32 %v301, %v424
  %v426 = vpop.f32.mrb[0].mxu0
  %427 = vmatprep.mubr.bf16.mxu0 0
  %428 = vmatmul.mubr.bf16.gmra.mrb[0].mxu0 %v349
  %v429 = vpop.f32.mrb[0].mxu0
  %v430 = vadd.f32 %v306, %v429
  %v431 = vpop.f32.mrb[0].mxu0
  %v432 = vpop.f32.mrb[0].mxu0
  %v433 = vadd.f32 %v309, %v432
  %v434 = vpop.f32.mrb[0].mxu0
  %435 = vmatprep.mubr.bf16.mxu0 0
  %436 = vmatmul.mubr.bf16.gmra.mrb[0].mxu0 %v352
  %v437 = vpop.f32.mrb[0].mxu0
  %v438 = vadd.f32 %v314, %v437
  %v439 = vpop.f32.mrb[0].mxu0
  %v440 = vpop.f32.mrb[0].mxu0
  %v441 = vadd.f32 %v317, %v440
  %v442 = vpop.f32.mrb[0].mxu0
  %443 = vmatprep.mubr.bf16.mxu0 0
  %444 = vmatmul.mubr.bf16.gmra.mrb[0].mxu0 %v355
  %v445 = vpop.f32.mrb[0].mxu0
  %v446 = vadd.f32 %v322, %v445
  %v447 = vpop.f32.mrb[0].mxu0
  %v448 = vpop.f32.mrb[0].mxu0
  %v449 = vadd.f32 %v325, %v448
  %v450 = vpop.f32.mrb[0].mxu0
  %451 = vmatprep.mubr.bf16.mxu0 0
  %452 = vmatmul.mubr.bf16.gmra.mrb[0].mxu0 %v358
  %v453 = vpop.f32.mrb[0].mxu0
  %v454 = vadd.f32 %v330, %v453
  %v455 = vpop.f32.mrb[0].mxu0
  %v456 = vpop.f32.mrb[0].mxu0
  %v457 = vadd.f32 %v333, %v456
  %v458 = vpop.f32.mrb[0].mxu0
  %459 = vdwg.mxu0
  %vm460 = vcmask 1045504
  %v461 = vrot.slane %v54, 2
  %v462 = vrot.slane %v55, 2
  %v463 = vsel %vm460, %v461, %v462
  %v464 = vrot.slane %v56, 2
  %v465 = vrot.slane %v57, 2
  %v466 = vsel %vm460, %v464, %v465
  %v467 = vrot.slane %v58, 2
  %v468 = vrot.slane %v59, 2
  %v469 = vsel %vm460, %v467, %v468
  %v470 = vrot.slane %v60, 2
  %v471 = vrot.slane %v61, 2
  %v472 = vsel %vm460, %v470, %v471
  %v473 = vrot.slane %v62, 2
  %v474 = vrot.slane %v63, 2
  %v475 = vsel %vm460, %v473, %v474
  %v476 = vrot.slane %v64, 2
  %v477 = vrot.slane %v65, 2
  %v478 = vsel %vm460, %v476, %v477
  %v479 = vrot.slane %v66, 2
  %v480 = vrot.slane %v67, 2
  %v481 = vsel %vm460, %v479, %v480
  %v482 = vrot.slane %v68, 2
  %v483 = vrot.slane %v69, 2
  %v484 = vsel %vm460, %v482, %v483
  %v485 = vrot.slane %v74, 2
  %v486 = vrot.slane %v75, 2
  %v487 = vsel %vm460, %v485, %v486
  %v488 = vrot.slane %v76, 2
  %v489 = vrot.slane %v77, 2
  %v490 = vsel %vm460, %v488, %v489
  %v491 = vrot.slane %v78, 2
  %v492 = vrot.slane %v79, 2
  %v493 = vsel %vm460, %v491, %v492
  %v494 = vrot.slane %v80, 2
  %v495 = vrot.slane %v81, 2
  %v496 = vsel %vm460, %v494, %v495
  %v497 = vrot.slane %v82, 2
  %v498 = vrot.slane %v83, 2
  %v499 = vsel %vm460, %v497, %v498
  %v500 = vrot.slane %v84, 2
  %v501 = vrot.slane %v85, 2
  %v502 = vsel %vm460, %v500, %v501
  %v503 = vrot.slane %v86, 2
  %v504 = vrot.slane %v87, 2
  %v505 = vsel %vm460, %v503, %v504
  %v506 = vrot.slane %v88, 2
  %v507 = vrot.slane %v89, 2
  %v508 = vsel %vm460, %v506, %v507
  %v525 = vpack.c.bf16 %v466, %v463
  %v526 = vpack.c.bf16 %v472, %v469
  %v527 = vpack.c.bf16 %v478, %v475
  %v528 = vpack.c.bf16 %v484, %v481
  %v529 = vpack.c.bf16 %v490, %v487
  %v530 = vpack.c.bf16 %v496, %v493
  %v531 = vpack.c.bf16 %v502, %v499
  %v532 = vpack.c.bf16 %v508, %v505
  %s533 = scalar_lea.vmem %s1, 4
  %v534 = vld [vmem:[%s533] sm:$0x3]
  %v536 = vsel %vm210, %v525, 0
  %v539 = vsel %vm210, %v526, 0
  %v542 = vsel %vm210, %v527, 0
  %v545 = vsel %vm210, %v528, 0
  %v548 = vsel %vm210, %v529, 0
  %v551 = vsel %vm210, %v530, 0
  %v554 = vsel %vm210, %v531, 0
  %v557 = vsel %vm210, %v532, 0
  %v560 = vsel %vm235, %v534, 0
  %562 = vmatprep.subr.bf16.mxu0 0
  %563 = vmatpush1.bf16.msra.mxu0 %v560
  %564 = vmatprep.subr.bf16.mxu0 0
  %565 = vmatpush1.bf16.msra.mxu0 0
  %566 = vmatprep.subr.bf16.mxu0 0
  %567 = vmatpush1.bf16.msra.mxu0 0
  %568 = vmatprep.subr.bf16.mxu0 0
  %569 = vmatpush1.bf16.msra.mxu0 0
  %570 = vmatprep.subr.bf16.mxu0 0
  %571 = vmatpush1.bf16.msra.mxu0 0
  %572 = vmatprep.subr.bf16.mxu0 0
  %573 = vmatpush1.bf16.msra.mxu0 0
  %574 = vmatprep.subr.bf16.mxu0 0
  %575 = vmatpush1.bf16.msra.mxu0 0
  %576 = vmatprep.subr.bf16.mxu0 0
  %577 = vmatpush1.bf16.msra.mxu0 0
  %578 = vmatprep.subr.bf16.mxu0 0
  %579 = vmatpush1.bf16.msra.mxu0 0
  %580 = vmatprep.subr.bf16.mxu0 0
  %581 = vmatpush1.bf16.msra.mxu0 0
  %582 = vmatprep.subr.bf16.mxu0 0
  %583 = vmatpush1.bf16.msra.mxu0 0
  %584 = vmatprep.subr.bf16.mxu0 0
  %585 = vmatpush1.bf16.msra.mxu0 0
  %586 = vmatprep.subr.bf16.mxu0 0
  %587 = vmatpush1.bf16.msra.mxu0 0
  %588 = vmatprep.subr.bf16.mxu0 0
  %589 = vmatpush1.bf16.msra.mxu0 0
  %590 = vmatprep.subr.bf16.mxu0 0
  %591 = vmatpush1.bf16.msra.mxu0 0
  %592 = vmatprep.subr.bf16.mxu0 0
  %593 = vmatpush1.bf16.msra.mxu0 0
  %594 = vmatprep.mubr.bf16.mxu0 0
  %595 = vmatmul.mubr.bf16.gmra.mrb[0].mxu0 %v536
  %v596 = vpop.f32.mrb[0].mxu0
  %v597 = vadd.f32 0.0, %v596
  %v598 = vpop.f32.mrb[0].mxu0
  %v599 = vpop.f32.mrb[0].mxu0
  %v600 = vadd.f32 0.0, %v599
  %v601 = vpop.f32.mrb[0].mxu0
  %602 = vmatprep.mubr.bf16.mxu0 0
  %603 = vmatmul.mubr.bf16.gmra.mrb[0].mxu0 %v539
  %v604 = vpop.f32.mrb[0].mxu0
  %v605 = vadd.f32 0.0, %v604
  %v606 = vpop.f32.mrb[0].mxu0
  %v607 = vpop.f32.mrb[0].mxu0
  %v608 = vadd.f32 0.0, %v607
  %v609 = vpop.f32.mrb[0].mxu0
  %610 = vmatprep.mubr.bf16.mxu0 0
  %611 = vmatmul.mubr.bf16.gmra.mrb[0].mxu0 %v542
  %v612 = vpop.f32.mrb[0].mxu0
  %v613 = vadd.f32 0.0, %v612
  %v614 = vpop.f32.mrb[0].mxu0
  %v615 = vpop.f32.mrb[0].mxu0
  %v616 = vadd.f32 0.0, %v615
  %v617 = vpop.f32.mrb[0].mxu0
  %618 = vmatprep.mubr.bf16.mxu0 0
  %619 = vmatmul.mubr.bf16.gmra.mrb[0].mxu0 %v545
  %v620 = vpop.f32.mrb[0].mxu0
  %v621 = vadd.f32 0.0, %v620
  %v622 = vpop.f32.mrb[0].mxu0
  %v623 = vpop.f32.mrb[0].mxu0
  %v624 = vadd.f32 0.0, %v623
  %v625 = vpop.f32.mrb[0].mxu0
  %626 = vmatprep.mubr.bf16.mxu0 0
  %627 = vmatmul.mubr.bf16.gmra.mrb[0].mxu0 %v548
  %v628 = vpop.f32.mrb[0].mxu0
  %v629 = vadd.f32 0.0, %v628
  %v630 = vpop.f32.mrb[0].mxu0
  %v631 = vpop.f32.mrb[0].mxu0
  %v632 = vadd.f32 0.0, %v631
  %v633 = vpop.f32.mrb[0].mxu0
  %634 = vmatprep.mubr.bf16.mxu0 0
  %635 = vmatmul.mubr.bf16.gmra.mrb[0].mxu0 %v551
  %v636 = vpop.f32.mrb[0].mxu0
  %v637 = vadd.f32 0.0, %v636
  %v638 = vpop.f32.mrb[0].mxu0
  %v639 = vpop.f32.mrb[0].mxu0
  %v640 = vadd.f32 0.0, %v639
  %v641 = vpop.f32.mrb[0].mxu0
  %642 = vmatprep.mubr.bf16.mxu0 0
  %643 = vmatmul.mubr.bf16.gmra.mrb[0].mxu0 %v554
  %v644 = vpop.f32.mrb[0].mxu0
  %v645 = vadd.f32 0.0, %v644
  %v646 = vpop.f32.mrb[0].mxu0
  %v647 = vpop.f32.mrb[0].mxu0
  %v648 = vadd.f32 0.0, %v647
  %v649 = vpop.f32.mrb[0].mxu0
  %650 = vmatprep.mubr.bf16.mxu0 0
  %651 = vmatmul.mubr.bf16.gmra.mrb[0].mxu0 %v557
  %v652 = vpop.f32.mrb[0].mxu0
  %v653 = vadd.f32 0.0, %v652
  %v654 = vpop.f32.mrb[0].mxu0
  %v655 = vpop.f32.mrb[0].mxu0
  %v656 = vadd.f32 0.0, %v655
  %v657 = vpop.f32.mrb[0].mxu0
  %658 = vdwg.mxu0
  %v659 = vadd.f32 %v398, %v597
  %v660 = vadd.f32 %v401, %v600
  %v661 = vadd.f32 %v406, %v605
  %v662 = vadd.f32 %v409, %v608
  %v663 = vadd.f32 %v414, %v613
  %v664 = vadd.f32 %v417, %v616
  %v665 = vadd.f32 %v422, %v621
  %v666 = vadd.f32 %v425, %v624
  %v667 = vadd.f32 %v430, %v629
  %v668 = vadd.f32 %v433, %v632
  %v669 = vadd.f32 %v438, %v637
  %v670 = vadd.f32 %v441, %v640
  %v671 = vadd.f32 %v446, %v645
  %v672 = vadd.f32 %v449, %v648
  %v673 = vadd.f32 %v454, %v653
  %v674 = vadd.f32 %v457, %v656
  %v675 = vpack.c.bf16 %v58, %v56
  %v676 = vpack.c.bf16 %v62, %v60
  %v677 = vpack.c.bf16 %v66, %v64
  %v678 = vpack.c.bf16 %v70, %v68
  %v679 = vpack.c.bf16 %v78, %v76
  %v680 = vpack.c.bf16 %v82, %v80
  %v681 = vpack.c.bf16 %v86, %v84
  %v682 = vpack.c.bf16 %v90, %v88
  %s683 = scalar_lea.vmem %s1, 6
  %v684 = vld [vmem:[%s683] sm:$0x3]
  %v686 = vsel %vm210, %v675, 0
  %v689 = vsel %vm210, %v676, 0
  %v692 = vsel %vm210, %v677, 0
  %v695 = vsel %vm210, %v678, 0
  %v698 = vsel %vm210, %v679, 0
  %v701 = vsel %vm210, %v680, 0
  %v704 = vsel %vm210, %v681, 0
  %v707 = vsel %vm210, %v682, 0
  %v710 = vsel %vm235, %v684, 0
  %712 = vmatprep.subr.bf16.mxu0 0
  %713 = vmatpush1.bf16.msra.mxu0 %v710
  %714 = vmatprep.subr.bf16.mxu0 0
  %715 = vmatpush1.bf16.msra.mxu0 0
  %716 = vmatprep.subr.bf16.mxu0 0
  %717 = vmatpush1.bf16.msra.mxu0 0
  %718 = vmatprep.subr.bf16.mxu0 0
  %719 = vmatpush1.bf16.msra.mxu0 0
  %720 = vmatprep.subr.bf16.mxu0 0
  %721 = vmatpush1.bf16.msra.mxu0 0
  %722 = vmatprep.subr.bf16.mxu0 0
  %723 = vmatpush1.bf16.msra.mxu0 0
  %724 = vmatprep.subr.bf16.mxu0 0
  %725 = vmatpush1.bf16.msra.mxu0 0
  %726 = vmatprep.subr.bf16.mxu0 0
  %727 = vmatpush1.bf16.msra.mxu0 0
  %728 = vmatprep.subr.bf16.mxu0 0
  %729 = vmatpush1.bf16.msra.mxu0 0
  %730 = vmatprep.subr.bf16.mxu0 0
  %731 = vmatpush1.bf16.msra.mxu0 0
  %732 = vmatprep.subr.bf16.mxu0 0
  %733 = vmatpush1.bf16.msra.mxu0 0
  %734 = vmatprep.subr.bf16.mxu0 0
  %735 = vmatpush1.bf16.msra.mxu0 0
  %736 = vmatprep.subr.bf16.mxu0 0
  %737 = vmatpush1.bf16.msra.mxu0 0
  %738 = vmatprep.subr.bf16.mxu0 0
  %739 = vmatpush1.bf16.msra.mxu0 0
  %740 = vmatprep.subr.bf16.mxu0 0
  %741 = vmatpush1.bf16.msra.mxu0 0
  %742 = vmatprep.subr.bf16.mxu0 0
  %743 = vmatpush1.bf16.msra.mxu0 0
  %744 = vmatprep.mubr.bf16.mxu0 0
  %745 = vmatmul.mubr.bf16.gmra.mrb[0].mxu0 %v686
  %v746 = vpop.f32.mrb[0].mxu0
  %v747 = vadd.f32 0.0, %v746
  %v748 = vpop.f32.mrb[0].mxu0
  %v749 = vpop.f32.mrb[0].mxu0
  %v750 = vadd.f32 0.0, %v749
  %v751 = vpop.f32.mrb[0].mxu0
  %752 = vmatprep.mubr.bf16.mxu0 0
  %753 = vmatmul.mubr.bf16.gmra.mrb[0].mxu0 %v689
  %v754 = vpop.f32.mrb[0].mxu0
  %v755 = vadd.f32 0.0, %v754
  %v756 = vpop.f32.mrb[0].mxu0
  %v757 = vpop.f32.mrb[0].mxu0
  %v758 = vadd.f32 0.0, %v757
  %v759 = vpop.f32.mrb[0].mxu0
  %760 = vmatprep.mubr.bf16.mxu0 0
  %761 = vmatmul.mubr.bf16.gmra.mrb[0].mxu0 %v692
  %v762 = vpop.f32.mrb[0].mxu0
  %v763 = vadd.f32 0.0, %v762
  %v764 = vpop.f32.mrb[0].mxu0
  %v765 = vpop.f32.mrb[0].mxu0
  %v766 = vadd.f32 0.0, %v765
  %v767 = vpop.f32.mrb[0].mxu0
  %768 = vmatprep.mubr.bf16.mxu0 0
  %769 = vmatmul.mubr.bf16.gmra.mrb[0].mxu0 %v695
  %v770 = vpop.f32.mrb[0].mxu0
  %v771 = vadd.f32 0.0, %v770
  %v772 = vpop.f32.mrb[0].mxu0
  %v773 = vpop.f32.mrb[0].mxu0
  %v774 = vadd.f32 0.0, %v773
  %v775 = vpop.f32.mrb[0].mxu0
  %776 = vmatprep.mubr.bf16.mxu0 0
  %777 = vmatmul.mubr.bf16.gmra.mrb[0].mxu0 %v698
  %v778 = vpop.f32.mrb[0].mxu0
  %v779 = vadd.f32 0.0, %v778
  %v780 = vpop.f32.mrb[0].mxu0
  %v781 = vpop.f32.mrb[0].mxu0
  %v782 = vadd.f32 0.0, %v781
  %v783 = vpop.f32.mrb[0].mxu0
  %784 = vmatprep.mubr.bf16.mxu0 0
  %785 = vmatmul.mubr.bf16.gmra.mrb[0].mxu0 %v701
  %v786 = vpop.f32.mrb[0].mxu0
  %v787 = vadd.f32 0.0, %v786
  %v788 = vpop.f32.mrb[0].mxu0
  %v789 = vpop.f32.mrb[0].mxu0
  %v790 = vadd.f32 0.0, %v789
  %v791 = vpop.f32.mrb[0].mxu0
  %792 = vmatprep.mubr.bf16.mxu0 0
  %793 = vmatmul.mubr.bf16.gmra.mrb[0].mxu0 %v704
  %v794 = vpop.f32.mrb[0].mxu0
  %v795 = vadd.f32 0.0, %v794
  %v796 = vpop.f32.mrb[0].mxu0
  %v797 = vpop.f32.mrb[0].mxu0
  %v798 = vadd.f32 0.0, %v797
  %v799 = vpop.f32.mrb[0].mxu0
  %800 = vmatprep.mubr.bf16.mxu0 0
  %801 = vmatmul.mubr.bf16.gmra.mrb[0].mxu0 %v707
  %v802 = vpop.f32.mrb[0].mxu0
  %v803 = vadd.f32 0.0, %v802
  %v804 = vpop.f32.mrb[0].mxu0
  %v805 = vpop.f32.mrb[0].mxu0
  %v806 = vadd.f32 0.0, %v805
  %v807 = vpop.f32.mrb[0].mxu0
  %808 = vdwg.mxu0
  %v809 = vadd.f32 %v659, %v747
  %v810 = vadd.f32 %v660, %v750
  %v811 = vadd.f32 %v661, %v755
  %v812 = vadd.f32 %v662, %v758
  %v813 = vadd.f32 %v663, %v763
  %v814 = vadd.f32 %v664, %v766
  %v815 = vadd.f32 %v665, %v771
  %v816 = vadd.f32 %v666, %v774
  %v817 = vadd.f32 %v667, %v779
  %v818 = vadd.f32 %v668, %v782
  %v819 = vadd.f32 %v669, %v787
  %v820 = vadd.f32 %v670, %v790
  %v821 = vadd.f32 %v671, %v795
  %v822 = vadd.f32 %v672, %v798
  %v823 = vadd.f32 %v673, %v803
  %v824 = vadd.f32 %v674, %v806
  %v829 = vrot.slane %v70, 1
  %v830 = vrot.slane %v71, 1
  %v831 = vsel %vm135, %v829, %v830
  %v832 = vrot.slane %v90, 1
  %v833 = vrot.slane %v91, 1
  %v834 = vsel %vm135, %v832, %v833
  %v837 = vpack.c.bf16 %v144, %v141
  %v838 = vpack.c.bf16 %v150, %v147
  %v839 = vpack.c.bf16 %v156, %v153
  %v840 = vpack.c.bf16 %v831, %v159
  %v841 = vpack.c.bf16 %v168, %v165
  %v842 = vpack.c.bf16 %v174, %v171
  %v843 = vpack.c.bf16 %v180, %v177
  %v844 = vpack.c.bf16 %v834, %v183
  %s845 = scalar_lea.vmem %s1, 8
  %v846 = vld [vmem:[%s845] sm:$0x3]
  %v848 = vsel %vm210, %v837, 0
  %v851 = vsel %vm210, %v838, 0
  %v854 = vsel %vm210, %v839, 0
  %v857 = vsel %vm210, %v840, 0
  %v860 = vsel %vm210, %v841, 0
  %v863 = vsel %vm210, %v842, 0
  %v866 = vsel %vm210, %v843, 0
  %v869 = vsel %vm210, %v844, 0
  %v872 = vsel %vm235, %v846, 0
  %874 = vmatprep.subr.bf16.mxu0 0
  %875 = vmatpush1.bf16.msra.mxu0 %v872
  %876 = vmatprep.subr.bf16.mxu0 0
  %877 = vmatpush1.bf16.msra.mxu0 0
  %878 = vmatprep.subr.bf16.mxu0 0
  %879 = vmatpush1.bf16.msra.mxu0 0
  %880 = vmatprep.subr.bf16.mxu0 0
  %881 = vmatpush1.bf16.msra.mxu0 0
  %882 = vmatprep.subr.bf16.mxu0 0
  %883 = vmatpush1.bf16.msra.mxu0 0
  %884 = vmatprep.subr.bf16.mxu0 0
  %885 = vmatpush1.bf16.msra.mxu0 0
  %886 = vmatprep.subr.bf16.mxu0 0
  %887 = vmatpush1.bf16.msra.mxu0 0
  %888 = vmatprep.subr.bf16.mxu0 0
  %889 = vmatpush1.bf16.msra.mxu0 0
  %890 = vmatprep.subr.bf16.mxu0 0
  %891 = vmatpush1.bf16.msra.mxu0 0
  %892 = vmatprep.subr.bf16.mxu0 0
  %893 = vmatpush1.bf16.msra.mxu0 0
  %894 = vmatprep.subr.bf16.mxu0 0
  %895 = vmatpush1.bf16.msra.mxu0 0
  %896 = vmatprep.subr.bf16.mxu0 0
  %897 = vmatpush1.bf16.msra.mxu0 0
  %898 = vmatprep.subr.bf16.mxu0 0
  %899 = vmatpush1.bf16.msra.mxu0 0
  %900 = vmatprep.subr.bf16.mxu0 0
  %901 = vmatpush1.bf16.msra.mxu0 0
  %902 = vmatprep.subr.bf16.mxu0 0
  %903 = vmatpush1.bf16.msra.mxu0 0
  %904 = vmatprep.subr.bf16.mxu0 0
  %905 = vmatpush1.bf16.msra.mxu0 0
  %906 = vmatprep.mubr.bf16.mxu0 0
  %907 = vmatmul.mubr.bf16.gmra.mrb[0].mxu0 %v848
  %v908 = vpop.f32.mrb[0].mxu0
  %v909 = vadd.f32 0.0, %v908
  %v910 = vpop.f32.mrb[0].mxu0
  %v911 = vpop.f32.mrb[0].mxu0
  %v912 = vadd.f32 0.0, %v911
  %v913 = vpop.f32.mrb[0].mxu0
  %914 = vmatprep.mubr.bf16.mxu0 0
  %915 = vmatmul.mubr.bf16.gmra.mrb[0].mxu0 %v851
  %v916 = vpop.f32.mrb[0].mxu0
  %v917 = vadd.f32 0.0, %v916
  %v918 = vpop.f32.mrb[0].mxu0
  %v919 = vpop.f32.mrb[0].mxu0
  %v920 = vadd.f32 0.0, %v919
  %v921 = vpop.f32.mrb[0].mxu0
  %922 = vmatprep.mubr.bf16.mxu0 0
  %923 = vmatmul.mubr.bf16.gmra.mrb[0].mxu0 %v854
  %v924 = vpop.f32.mrb[0].mxu0
  %v925 = vadd.f32 0.0, %v924
  %v926 = vpop.f32.mrb[0].mxu0
  %v927 = vpop.f32.mrb[0].mxu0
  %v928 = vadd.f32 0.0, %v927
  %v929 = vpop.f32.mrb[0].mxu0
  %930 = vmatprep.mubr.bf16.mxu0 0
  %931 = vmatmul.mubr.bf16.gmra.mrb[0].mxu0 %v857
  %v932 = vpop.f32.mrb[0].mxu0
  %v933 = vadd.f32 0.0, %v932
  %v934 = vpop.f32.mrb[0].mxu0
  %v935 = vpop.f32.mrb[0].mxu0
  %v936 = vadd.f32 0.0, %v935
  %v937 = vpop.f32.mrb[0].mxu0
  %938 = vmatprep.mubr.bf16.mxu0 0
  %939 = vmatmul.mubr.bf16.gmra.mrb[0].mxu0 %v860
  %v940 = vpop.f32.mrb[0].mxu0
  %v941 = vadd.f32 0.0, %v940
  %v942 = vpop.f32.mrb[0].mxu0
  %v943 = vpop.f32.mrb[0].mxu0
  %v944 = vadd.f32 0.0, %v943
  %v945 = vpop.f32.mrb[0].mxu0
  %946 = vmatprep.mubr.bf16.mxu0 0
  %947 = vmatmul.mubr.bf16.gmra.mrb[0].mxu0 %v863
  %v948 = vpop.f32.mrb[0].mxu0
  %v949 = vadd.f32 0.0, %v948
  %v950 = vpop.f32.mrb[0].mxu0
  %v951 = vpop.f32.mrb[0].mxu0
  %v952 = vadd.f32 0.0, %v951
  %v953 = vpop.f32.mrb[0].mxu0
  %954 = vmatprep.mubr.bf16.mxu0 0
  %955 = vmatmul.mubr.bf16.gmra.mrb[0].mxu0 %v866
  %v956 = vpop.f32.mrb[0].mxu0
  %v957 = vadd.f32 0.0, %v956
  %v958 = vpop.f32.mrb[0].mxu0
  %v959 = vpop.f32.mrb[0].mxu0
  %v960 = vadd.f32 0.0, %v959
  %v961 = vpop.f32.mrb[0].mxu0
  %962 = vmatprep.mubr.bf16.mxu0 0
  %963 = vmatmul.mubr.bf16.gmra.mrb[0].mxu0 %v869
  %v964 = vpop.f32.mrb[0].mxu0
  %v965 = vadd.f32 0.0, %v964
  %v966 = vpop.f32.mrb[0].mxu0
  %v967 = vpop.f32.mrb[0].mxu0
  %v968 = vadd.f32 0.0, %v967
  %v969 = vpop.f32.mrb[0].mxu0
  %970 = vdwg.mxu0
  %v971 = vadd.f32 %v809, %v909
  %v972 = vadd.f32 %v810, %v912
  %v973 = vadd.f32 %v811, %v917
  %v974 = vadd.f32 %v812, %v920
  %v975 = vadd.f32 %v813, %v925
  %v976 = vadd.f32 %v814, %v928
  %v977 = vadd.f32 %v815, %v933
  %v978 = vadd.f32 %v816, %v936
  %v979 = vadd.f32 %v817, %v941
  %v980 = vadd.f32 %v818, %v944
  %v981 = vadd.f32 %v819, %v949
  %v982 = vadd.f32 %v820, %v952
  %v983 = vadd.f32 %v821, %v957
  %v984 = vadd.f32 %v822, %v960
  %v985 = vadd.f32 %v823, %v965
  %v986 = vadd.f32 %v824, %v968
  %v987 = vrot.slane %v70, 2
  %v988 = vrot.slane %v71, 2
  %v989 = vsel %vm460, %v987, %v988
  %v990 = vrot.slane %v90, 2
  %v991 = vrot.slane %v91, 2
  %v992 = vsel %vm460, %v990, %v991
  %v995 = vpack.c.bf16 %v469, %v466
  %v996 = vpack.c.bf16 %v475, %v472
  %v997 = vpack.c.bf16 %v481, %v478
  %v998 = vpack.c.bf16 %v989, %v484
  %v999 = vpack.c.bf16 %v493, %v490
  %v1000 = vpack.c.bf16 %v499, %v496
  %v1001 = vpack.c.bf16 %v505, %v502
  %v1002 = vpack.c.bf16 %v992, %v508
  %s1003 = scalar_lea.vmem %s1, 10
  %v1004 = vld [vmem:[%s1003] sm:$0x3]
  %v1006 = vsel %vm210, %v995, 0
  %v1009 = vsel %vm210, %v996, 0
  %v1012 = vsel %vm210, %v997, 0
  %v1015 = vsel %vm210, %v998, 0
  %v1018 = vsel %vm210, %v999, 0
  %v1021 = vsel %vm210, %v1000, 0
  %v1024 = vsel %vm210, %v1001, 0
  %v1027 = vsel %vm210, %v1002, 0
  %v1030 = vsel %vm235, %v1004, 0
  %1032 = vmatprep.subr.bf16.mxu0 0
  %1033 = vmatpush1.bf16.msra.mxu0 %v1030
  %1034 = vmatprep.subr.bf16.mxu0 0
  %1035 = vmatpush1.bf16.msra.mxu0 0
  %1036 = vmatprep.subr.bf16.mxu0 0
  %1037 = vmatpush1.bf16.msra.mxu0 0
  %1038 = vmatprep.subr.bf16.mxu0 0
  %1039 = vmatpush1.bf16.msra.mxu0 0
  %1040 = vmatprep.subr.bf16.mxu0 0
  %1041 = vmatpush1.bf16.msra.mxu0 0
  %1042 = vmatprep.subr.bf16.mxu0 0
  %1043 = vmatpush1.bf16.msra.mxu0 0
  %1044 = vmatprep.subr.bf16.mxu0 0
  %1045 = vmatpush1.bf16.msra.mxu0 0
  %1046 = vmatprep.subr.bf16.mxu0 0
  %1047 = vmatpush1.bf16.msra.mxu0 0
  %1048 = vmatprep.subr.bf16.mxu0 0
  %1049 = vmatpush1.bf16.msra.mxu0 0
  %1050 = vmatprep.subr.bf16.mxu0 0
  %1051 = vmatpush1.bf16.msra.mxu0 0
  %1052 = vmatprep.subr.bf16.mxu0 0
  %1053 = vmatpush1.bf16.msra.mxu0 0
  %1054 = vmatprep.subr.bf16.mxu0 0
  %1055 = vmatpush1.bf16.msra.mxu0 0
  %1056 = vmatprep.subr.bf16.mxu0 0
  %1057 = vmatpush1.bf16.msra.mxu0 0
  %1058 = vmatprep.subr.bf16.mxu0 0
  %1059 = vmatpush1.bf16.msra.mxu0 0
  %1060 = vmatprep.subr.bf16.mxu0 0
  %1061 = vmatpush1.bf16.msra.mxu0 0
  %1062 = vmatprep.subr.bf16.mxu0 0
  %1063 = vmatpush1.bf16.msra.mxu0 0
  %1064 = vmatprep.mubr.bf16.mxu0 0
  %1065 = vmatmul.mubr.bf16.gmra.mrb[0].mxu0 %v1006
  %v1066 = vpop.f32.mrb[0].mxu0
  %v1067 = vadd.f32 0.0, %v1066
  %v1068 = vpop.f32.mrb[0].mxu0
  %v1069 = vpop.f32.mrb[0].mxu0
  %v1070 = vadd.f32 0.0, %v1069
  %v1071 = vpop.f32.mrb[0].mxu0
  %1072 = vmatprep.mubr.bf16.mxu0 0
  %1073 = vmatmul.mubr.bf16.gmra.mrb[0].mxu0 %v1009
  %v1074 = vpop.f32.mrb[0].mxu0
  %v1075 = vadd.f32 0.0, %v1074
  %v1076 = vpop.f32.mrb[0].mxu0
  %v1077 = vpop.f32.mrb[0].mxu0
  %v1078 = vadd.f32 0.0, %v1077
  %v1079 = vpop.f32.mrb[0].mxu0
  %1080 = vmatprep.mubr.bf16.mxu0 0
  %1081 = vmatmul.mubr.bf16.gmra.mrb[0].mxu0 %v1012
  %v1082 = vpop.f32.mrb[0].mxu0
  %v1083 = vadd.f32 0.0, %v1082
  %v1084 = vpop.f32.mrb[0].mxu0
  %v1085 = vpop.f32.mrb[0].mxu0
  %v1086 = vadd.f32 0.0, %v1085
  %v1087 = vpop.f32.mrb[0].mxu0
  %1088 = vmatprep.mubr.bf16.mxu0 0
  %1089 = vmatmul.mubr.bf16.gmra.mrb[0].mxu0 %v1015
  %v1090 = vpop.f32.mrb[0].mxu0
  %v1091 = vadd.f32 0.0, %v1090
  %v1092 = vpop.f32.mrb[0].mxu0
  %v1093 = vpop.f32.mrb[0].mxu0
  %v1094 = vadd.f32 0.0, %v1093
  %v1095 = vpop.f32.mrb[0].mxu0
  %1096 = vmatprep.mubr.bf16.mxu0 0
  %1097 = vmatmul.mubr.bf16.gmra.mrb[0].mxu0 %v1018
  %v1098 = vpop.f32.mrb[0].mxu0
  %v1099 = vadd.f32 0.0, %v1098
  %v1100 = vpop.f32.mrb[0].mxu0
  %v1101 = vpop.f32.mrb[0].mxu0
  %v1102 = vadd.f32 0.0, %v1101
  %v1103 = vpop.f32.mrb[0].mxu0
  %1104 = vmatprep.mubr.bf16.mxu0 0
  %1105 = vmatmul.mubr.bf16.gmra.mrb[0].mxu0 %v1021
  %v1106 = vpop.f32.mrb[0].mxu0
  %v1107 = vadd.f32 0.0, %v1106
  %v1108 = vpop.f32.mrb[0].mxu0
  %v1109 = vpop.f32.mrb[0].mxu0
  %v1110 = vadd.f32 0.0, %v1109
  %v1111 = vpop.f32.mrb[0].mxu0
  %1112 = vmatprep.mubr.bf16.mxu0 0
  %1113 = vmatmul.mubr.bf16.gmra.mrb[0].mxu0 %v1024
  %v1114 = vpop.f32.mrb[0].mxu0
  %v1115 = vadd.f32 0.0, %v1114
  %v1116 = vpop.f32.mrb[0].mxu0
  %v1117 = vpop.f32.mrb[0].mxu0
  %v1118 = vadd.f32 0.0, %v1117
  %v1119 = vpop.f32.mrb[0].mxu0
  %1120 = vmatprep.mubr.bf16.mxu0 0
  %1121 = vmatmul.mubr.bf16.gmra.mrb[0].mxu0 %v1027
  %v1122 = vpop.f32.mrb[0].mxu0
  %v1123 = vadd.f32 0.0, %v1122
  %v1124 = vpop.f32.mrb[0].mxu0
  %v1125 = vpop.f32.mrb[0].mxu0
  %v1126 = vadd.f32 0.0, %v1125
  %v1127 = vpop.f32.mrb[0].mxu0
  %1128 = vdwg.mxu0
  %v1129 = vadd.f32 %v971, %v1067
  %v1130 = vadd.f32 %v972, %v1070
  %v1131 = vadd.f32 %v973, %v1075
  %v1132 = vadd.f32 %v974, %v1078
  %v1133 = vadd.f32 %v975, %v1083
  %v1134 = vadd.f32 %v976, %v1086
  %v1135 = vadd.f32 %v977, %v1091
  %v1136 = vadd.f32 %v978, %v1094
  %v1137 = vadd.f32 %v979, %v1099
  %v1138 = vadd.f32 %v980, %v1102
  %v1139 = vadd.f32 %v981, %v1107
  %v1140 = vadd.f32 %v982, %v1110
  %v1141 = vadd.f32 %v983, %v1115
  %v1142 = vadd.f32 %v984, %v1118
  %v1143 = vadd.f32 %v985, %v1123
  %v1144 = vadd.f32 %v986, %v1126
  %v1145 = vpack.c.bf16 %v72, %v70
  %v1146 = vpack.c.bf16 %v92, %v90
  %s1147 = scalar_lea.vmem %s1, 12
  %v1148 = vld [vmem:[%s1147] sm:$0x3]
  %v1150 = vsel %vm210, %v1145, 0
  %v1153 = vsel %vm210, %v1146, 0
  %v1156 = vsel %vm235, %v1148, 0
  %1158 = vmatprep.subr.bf16.mxu0 0
  %1159 = vmatpush1.bf16.msra.mxu0 %v1156
  %1160 = vmatprep.subr.bf16.mxu0 0
  %1161 = vmatpush1.bf16.msra.mxu0 0
  %1162 = vmatprep.subr.bf16.mxu0 0
  %1163 = vmatpush1.bf16.msra.mxu0 0
  %1164 = vmatprep.subr.bf16.mxu0 0
  %1165 = vmatpush1.bf16.msra.mxu0 0
  %1166 = vmatprep.subr.bf16.mxu0 0
  %1167 = vmatpush1.bf16.msra.mxu0 0
  %1168 = vmatprep.subr.bf16.mxu0 0
  %1169 = vmatpush1.bf16.msra.mxu0 0
  %1170 = vmatprep.subr.bf16.mxu0 0
  %1171 = vmatpush1.bf16.msra.mxu0 0
  %1172 = vmatprep.subr.bf16.mxu0 0
  %1173 = vmatpush1.bf16.msra.mxu0 0
  %1174 = vmatprep.subr.bf16.mxu0 0
  %1175 = vmatpush1.bf16.msra.mxu0 0
  %1176 = vmatprep.subr.bf16.mxu0 0
  %1177 = vmatpush1.bf16.msra.mxu0 0
  %1178 = vmatprep.subr.bf16.mxu0 0
  %1179 = vmatpush1.bf16.msra.mxu0 0
  %1180 = vmatprep.subr.bf16.mxu0 0
  %1181 = vmatpush1.bf16.msra.mxu0 0
  %1182 = vmatprep.subr.bf16.mxu0 0
  %1183 = vmatpush1.bf16.msra.mxu0 0
  %1184 = vmatprep.subr.bf16.mxu0 0
  %1185 = vmatpush1.bf16.msra.mxu0 0
  %1186 = vmatprep.subr.bf16.mxu0 0
  %1187 = vmatpush1.bf16.msra.mxu0 0
  %1188 = vmatprep.subr.bf16.mxu0 0
  %1189 = vmatpush1.bf16.msra.mxu0 0
  %1190 = vmatprep.mubr.bf16.mxu0 0
  %1191 = vmatmul.mubr.bf16.gmra.mrb[0].mxu0 %v340
  %v1192 = vpop.f32.mrb[0].mxu0
  %v1193 = vadd.f32 0.0, %v1192
  %v1194 = vpop.f32.mrb[0].mxu0
  %v1195 = vpop.f32.mrb[0].mxu0
  %v1196 = vadd.f32 0.0, %v1195
  %v1197 = vpop.f32.mrb[0].mxu0
  %1198 = vmatprep.mubr.bf16.mxu0 0
  %1199 = vmatmul.mubr.bf16.gmra.mrb[0].mxu0 %v343
  %v1200 = vpop.f32.mrb[0].mxu0
  %v1201 = vadd.f32 0.0, %v1200
  %v1202 = vpop.f32.mrb[0].mxu0
  %v1203 = vpop.f32.mrb[0].mxu0
  %v1204 = vadd.f32 0.0, %v1203
  %v1205 = vpop.f32.mrb[0].mxu0
  %1206 = vmatprep.mubr.bf16.mxu0 0
  %1207 = vmatmul.mubr.bf16.gmra.mrb[0].mxu0 %v346
  %v1208 = vpop.f32.mrb[0].mxu0
  %v1209 = vadd.f32 0.0, %v1208
  %v1210 = vpop.f32.mrb[0].mxu0
  %v1211 = vpop.f32.mrb[0].mxu0
  %v1212 = vadd.f32 0.0, %v1211
  %v1213 = vpop.f32.mrb[0].mxu0
  %1214 = vmatprep.mubr.bf16.mxu0 0
  %1215 = vmatmul.mubr.bf16.gmra.mrb[0].mxu0 %v1150
  %v1216 = vpop.f32.mrb[0].mxu0
  %v1217 = vadd.f32 0.0, %v1216
  %v1218 = vpop.f32.mrb[0].mxu0
  %v1219 = vpop.f32.mrb[0].mxu0
  %v1220 = vadd.f32 0.0, %v1219
  %v1221 = vpop.f32.mrb[0].mxu0
  %1222 = vmatprep.mubr.bf16.mxu0 0
  %1223 = vmatmul.mubr.bf16.gmra.mrb[0].mxu0 %v352
  %v1224 = vpop.f32.mrb[0].mxu0
  %v1225 = vadd.f32 0.0, %v1224
  %v1226 = vpop.f32.mrb[0].mxu0
  %v1227 = vpop.f32.mrb[0].mxu0
  %v1228 = vadd.f32 0.0, %v1227
  %v1229 = vpop.f32.mrb[0].mxu0
  %1230 = vmatprep.mubr.bf16.mxu0 0
  %1231 = vmatmul.mubr.bf16.gmra.mrb[0].mxu0 %v355
  %v1232 = vpop.f32.mrb[0].mxu0
  %v1233 = vadd.f32 0.0, %v1232
  %v1234 = vpop.f32.mrb[0].mxu0
  %v1235 = vpop.f32.mrb[0].mxu0
  %v1236 = vadd.f32 0.0, %v1235
  %v1237 = vpop.f32.mrb[0].mxu0
  %1238 = vmatprep.mubr.bf16.mxu0 0
  %1239 = vmatmul.mubr.bf16.gmra.mrb[0].mxu0 %v358
  %v1240 = vpop.f32.mrb[0].mxu0
  %v1241 = vadd.f32 0.0, %v1240
  %v1242 = vpop.f32.mrb[0].mxu0
  %v1243 = vpop.f32.mrb[0].mxu0
  %v1244 = vadd.f32 0.0, %v1243
  %v1245 = vpop.f32.mrb[0].mxu0
  %1246 = vmatprep.mubr.bf16.mxu0 0
  %1247 = vmatmul.mubr.bf16.gmra.mrb[0].mxu0 %v1153
  %v1248 = vpop.f32.mrb[0].mxu0
  %v1249 = vadd.f32 0.0, %v1248
  %v1250 = vpop.f32.mrb[0].mxu0
  %v1251 = vpop.f32.mrb[0].mxu0
  %v1252 = vadd.f32 0.0, %v1251
  %v1253 = vpop.f32.mrb[0].mxu0
  %1254 = vdwg.mxu0
  %v1255 = vadd.f32 %v1129, %v1193
  %v1256 = vadd.f32 %v1130, %v1196
  %v1257 = vadd.f32 %v1131, %v1201
  %v1258 = vadd.f32 %v1132, %v1204
  %v1259 = vadd.f32 %v1133, %v1209
  %v1260 = vadd.f32 %v1134, %v1212
  %v1261 = vadd.f32 %v1135, %v1217
  %v1262 = vadd.f32 %v1136, %v1220
  %v1263 = vadd.f32 %v1137, %v1225
  %v1264 = vadd.f32 %v1138, %v1228
  %v1265 = vadd.f32 %v1139, %v1233
  %v1266 = vadd.f32 %v1140, %v1236
  %v1267 = vadd.f32 %v1141, %v1241
  %v1268 = vadd.f32 %v1142, %v1244
  %v1269 = vadd.f32 %v1143, %v1249
  %v1270 = vadd.f32 %v1144, %v1252
  %v1275 = vrot.slane %v72, 1
  %v1276 = vrot.slane %v73, 1
  %v1277 = vsel %vm135, %v1275, %v1276
  %v1278 = vrot.slane %v92, 1
  %v1279 = vrot.slane %v93, 1
  %v1280 = vsel %vm135, %v1278, %v1279
  %v1283 = vpack.c.bf16 %v1277, %v831
  %v1284 = vpack.c.bf16 %v1280, %v834
  %s1285 = scalar_lea.vmem %s1, 14
  %v1286 = vld [vmem:[%s1285] sm:$0x3]
  %v1288 = vsel %vm210, %v1283, 0
  %v1291 = vsel %vm210, %v1284, 0
  %v1294 = vsel %vm235, %v1286, 0
  %1296 = vmatprep.subr.bf16.mxu0 0
  %1297 = vmatpush1.bf16.msra.mxu0 %v1294
  %1298 = vmatprep.subr.bf16.mxu0 0
  %1299 = vmatpush1.bf16.msra.mxu0 0
  %1300 = vmatprep.subr.bf16.mxu0 0
  %1301 = vmatpush1.bf16.msra.mxu0 0
  %1302 = vmatprep.subr.bf16.mxu0 0
  %1303 = vmatpush1.bf16.msra.mxu0 0
  %1304 = vmatprep.subr.bf16.mxu0 0
  %1305 = vmatpush1.bf16.msra.mxu0 0
  %1306 = vmatprep.subr.bf16.mxu0 0
  %1307 = vmatpush1.bf16.msra.mxu0 0
  %1308 = vmatprep.subr.bf16.mxu0 0
  %1309 = vmatpush1.bf16.msra.mxu0 0
  %1310 = vmatprep.subr.bf16.mxu0 0
  %1311 = vmatpush1.bf16.msra.mxu0 0
  %1312 = vmatprep.subr.bf16.mxu0 0
  %1313 = vmatpush1.bf16.msra.mxu0 0
  %1314 = vmatprep.subr.bf16.mxu0 0
  %1315 = vmatpush1.bf16.msra.mxu0 0
  %1316 = vmatprep.subr.bf16.mxu0 0
  %1317 = vmatpush1.bf16.msra.mxu0 0
  %1318 = vmatprep.subr.bf16.mxu0 0
  %1319 = vmatpush1.bf16.msra.mxu0 0
  %1320 = vmatprep.subr.bf16.mxu0 0
  %1321 = vmatpush1.bf16.msra.mxu0 0
  %1322 = vmatprep.subr.bf16.mxu0 0
  %1323 = vmatpush1.bf16.msra.mxu0 0
  %1324 = vmatprep.subr.bf16.mxu0 0
  %1325 = vmatpush1.bf16.msra.mxu0 0
  %1326 = vmatprep.subr.bf16.mxu0 0
  %1327 = vmatpush1.bf16.msra.mxu0 0
  %1328 = vmatprep.mubr.bf16.mxu0 0
  %1329 = vmatmul.mubr.bf16.gmra.mrb[0].mxu0 %v215
  %v1330 = vpop.f32.mrb[0].mxu0
  %v1331 = vadd.f32 0.0, %v1330
  %v1332 = vpop.f32.mrb[0].mxu0
  %v1333 = vpop.f32.mrb[0].mxu0
  %v1334 = vadd.f32 0.0, %v1333
  %v1335 = vpop.f32.mrb[0].mxu0
  %1336 = vmatprep.mubr.bf16.mxu0 0
  %1337 = vmatmul.mubr.bf16.gmra.mrb[0].mxu0 %v218
  %v1338 = vpop.f32.mrb[0].mxu0
  %v1339 = vadd.f32 0.0, %v1338
  %v1340 = vpop.f32.mrb[0].mxu0
  %v1341 = vpop.f32.mrb[0].mxu0
  %v1342 = vadd.f32 0.0, %v1341
  %v1343 = vpop.f32.mrb[0].mxu0
  %1344 = vmatprep.mubr.bf16.mxu0 0
  %1345 = vmatmul.mubr.bf16.gmra.mrb[0].mxu0 %v221
  %v1346 = vpop.f32.mrb[0].mxu0
  %v1347 = vadd.f32 0.0, %v1346
  %v1348 = vpop.f32.mrb[0].mxu0
  %v1349 = vpop.f32.mrb[0].mxu0
  %v1350 = vadd.f32 0.0, %v1349
  %v1351 = vpop.f32.mrb[0].mxu0
  %1352 = vmatprep.mubr.bf16.mxu0 0
  %1353 = vmatmul.mubr.bf16.gmra.mrb[0].mxu0 %v1288
  %v1354 = vpop.f32.mrb[0].mxu0
  %v1355 = vadd.f32 0.0, %v1354
  %v1356 = vpop.f32.mrb[0].mxu0
  %v1357 = vpop.f32.mrb[0].mxu0
  %v1358 = vadd.f32 0.0, %v1357
  %v1359 = vpop.f32.mrb[0].mxu0
  %1360 = vmatprep.mubr.bf16.mxu0 0
  %1361 = vmatmul.mubr.bf16.gmra.mrb[0].mxu0 %v227
  %v1362 = vpop.f32.mrb[0].mxu0
  %v1363 = vadd.f32 0.0, %v1362
  %v1364 = vpop.f32.mrb[0].mxu0
  %v1365 = vpop.f32.mrb[0].mxu0
  %v1366 = vadd.f32 0.0, %v1365
  %v1367 = vpop.f32.mrb[0].mxu0
  %1368 = vmatprep.mubr.bf16.mxu0 0
  %1369 = vmatmul.mubr.bf16.gmra.mrb[0].mxu0 %v230
  %v1370 = vpop.f32.mrb[0].mxu0
  %v1371 = vadd.f32 0.0, %v1370
  %v1372 = vpop.f32.mrb[0].mxu0
  %v1373 = vpop.f32.mrb[0].mxu0
  %v1374 = vadd.f32 0.0, %v1373
  %v1375 = vpop.f32.mrb[0].mxu0
  %1376 = vmatprep.mubr.bf16.mxu0 0
  %1377 = vmatmul.mubr.bf16.gmra.mrb[0].mxu0 %v233
  %v1378 = vpop.f32.mrb[0].mxu0
  %v1379 = vadd.f32 0.0, %v1378
  %v1380 = vpop.f32.mrb[0].mxu0
  %v1381 = vpop.f32.mrb[0].mxu0
  %v1382 = vadd.f32 0.0, %v1381
  %v1383 = vpop.f32.mrb[0].mxu0
  %1384 = vmatprep.mubr.bf16.mxu0 0
  %1385 = vmatmul.mubr.bf16.gmra.mrb[0].mxu0 %v1291
  %v1386 = vpop.f32.mrb[0].mxu0
  %v1387 = vadd.f32 0.0, %v1386
  %v1388 = vpop.f32.mrb[0].mxu0
  %v1389 = vpop.f32.mrb[0].mxu0
  %v1390 = vadd.f32 0.0, %v1389
  %v1391 = vpop.f32.mrb[0].mxu0
  %1392 = vdwg.mxu0
  %v1393 = vadd.f32 %v1255, %v1331
  %v1394 = vadd.f32 %v1256, %v1334
  %v1395 = vadd.f32 %v1257, %v1339
  %v1396 = vadd.f32 %v1258, %v1342
  %v1397 = vadd.f32 %v1259, %v1347
  %v1398 = vadd.f32 %v1260, %v1350
  %v1399 = vadd.f32 %v1261, %v1355
  %v1400 = vadd.f32 %v1262, %v1358
  %v1401 = vadd.f32 %v1263, %v1363
  %v1402 = vadd.f32 %v1264, %v1366
  %v1403 = vadd.f32 %v1265, %v1371
  %v1404 = vadd.f32 %v1266, %v1374
  %v1405 = vadd.f32 %v1267, %v1379
  %v1406 = vadd.f32 %v1268, %v1382
  %v1407 = vadd.f32 %v1269, %v1387
  %v1408 = vadd.f32 %v1270, %v1390
  %v1409 = vrot.slane %v72, 2
  %v1410 = vrot.slane %v73, 2
  %v1411 = vsel %vm460, %v1409, %v1410
  %v1412 = vrot.slane %v92, 2
  %v1413 = vrot.slane %v93, 2
  %v1414 = vsel %vm460, %v1412, %v1413
  %v1417 = vpack.c.bf16 %v1411, %v989
  %v1418 = vpack.c.bf16 %v1414, %v992
  %s1419 = scalar_lea.vmem %s1, 16
  %v1420 = vld [vmem:[%s1419] sm:$0x3]
  %v1422 = vsel %vm210, %v1417, 0
  %v1425 = vsel %vm210, %v1418, 0
  %v1428 = vsel %vm235, %v1420, 0
  %1430 = vmatprep.subr.bf16.mxu0 0
  %1431 = vmatpush1.bf16.msra.mxu0 %v1428
  %1432 = vmatprep.subr.bf16.mxu0 0
  %1433 = vmatpush1.bf16.msra.mxu0 0
  %1434 = vmatprep.subr.bf16.mxu0 0
  %1435 = vmatpush1.bf16.msra.mxu0 0
  %1436 = vmatprep.subr.bf16.mxu0 0
  %1437 = vmatpush1.bf16.msra.mxu0 0
  %1438 = vmatprep.subr.bf16.mxu0 0
  %1439 = vmatpush1.bf16.msra.mxu0 0
  %1440 = vmatprep.subr.bf16.mxu0 0
  %1441 = vmatpush1.bf16.msra.mxu0 0
  %1442 = vmatprep.subr.bf16.mxu0 0
  %1443 = vmatpush1.bf16.msra.mxu0 0
  %1444 = vmatprep.subr.bf16.mxu0 0
  %1445 = vmatpush1.bf16.msra.mxu0 0
  %1446 = vmatprep.subr.bf16.mxu0 0
  %1447 = vmatpush1.bf16.msra.mxu0 0
  %1448 = vmatprep.subr.bf16.mxu0 0
  %1449 = vmatpush1.bf16.msra.mxu0 0
  %1450 = vmatprep.subr.bf16.mxu0 0
  %1451 = vmatpush1.bf16.msra.mxu0 0
  %1452 = vmatprep.subr.bf16.mxu0 0
  %1453 = vmatpush1.bf16.msra.mxu0 0
  %1454 = vmatprep.subr.bf16.mxu0 0
  %1455 = vmatpush1.bf16.msra.mxu0 0
  %1456 = vmatprep.subr.bf16.mxu0 0
  %1457 = vmatpush1.bf16.msra.mxu0 0
  %1458 = vmatprep.subr.bf16.mxu0 0
  %1459 = vmatpush1.bf16.msra.mxu0 0
  %1460 = vmatprep.subr.bf16.mxu0 0
  %1461 = vmatpush1.bf16.msra.mxu0 0
  %1462 = vmatprep.mubr.bf16.mxu0 0
  %1463 = vmatmul.mubr.bf16.gmra.mrb[0].mxu0 %v539
  %v1464 = vpop.f32.mrb[0].mxu0
  %v1465 = vadd.f32 0.0, %v1464
  %v1466 = vpop.f32.mrb[0].mxu0
  %v1467 = vpop.f32.mrb[0].mxu0
  %v1468 = vadd.f32 0.0, %v1467
  %v1469 = vpop.f32.mrb[0].mxu0
  %1470 = vmatprep.mubr.bf16.mxu0 0
  %1471 = vmatmul.mubr.bf16.gmra.mrb[0].mxu0 %v542
  %v1472 = vpop.f32.mrb[0].mxu0
  %v1473 = vadd.f32 0.0, %v1472
  %v1474 = vpop.f32.mrb[0].mxu0
  %v1475 = vpop.f32.mrb[0].mxu0
  %v1476 = vadd.f32 0.0, %v1475
  %v1477 = vpop.f32.mrb[0].mxu0
  %1478 = vmatprep.mubr.bf16.mxu0 0
  %1479 = vmatmul.mubr.bf16.gmra.mrb[0].mxu0 %v545
  %v1480 = vpop.f32.mrb[0].mxu0
  %v1481 = vadd.f32 0.0, %v1480
  %v1482 = vpop.f32.mrb[0].mxu0
  %v1483 = vpop.f32.mrb[0].mxu0
  %v1484 = vadd.f32 0.0, %v1483
  %v1485 = vpop.f32.mrb[0].mxu0
  %1486 = vmatprep.mubr.bf16.mxu0 0
  %1487 = vmatmul.mubr.bf16.gmra.mrb[0].mxu0 %v1422
  %v1488 = vpop.f32.mrb[0].mxu0
  %v1489 = vadd.f32 0.0, %v1488
  %v1490 = vpop.f32.mrb[0].mxu0
  %v1491 = vpop.f32.mrb[0].mxu0
  %v1492 = vadd.f32 0.0, %v1491
  %v1493 = vpop.f32.mrb[0].mxu0
  %1494 = vmatprep.mubr.bf16.mxu0 0
  %1495 = vmatmul.mubr.bf16.gmra.mrb[0].mxu0 %v551
  %v1496 = vpop.f32.mrb[0].mxu0
  %v1497 = vadd.f32 0.0, %v1496
  %v1498 = vpop.f32.mrb[0].mxu0
  %v1499 = vpop.f32.mrb[0].mxu0
  %v1500 = vadd.f32 0.0, %v1499
  %v1501 = vpop.f32.mrb[0].mxu0
  %1502 = vmatprep.mubr.bf16.mxu0 0
  %1503 = vmatmul.mubr.bf16.gmra.mrb[0].mxu0 %v554
  %v1504 = vpop.f32.mrb[0].mxu0
  %v1505 = vadd.f32 0.0, %v1504
  %v1506 = vpop.f32.mrb[0].mxu0
  %v1507 = vpop.f32.mrb[0].mxu0
  %v1508 = vadd.f32 0.0, %v1507
  %v1509 = vpop.f32.mrb[0].mxu0
  %1510 = vmatprep.mubr.bf16.mxu0 0
  %1511 = vmatmul.mubr.bf16.gmra.mrb[0].mxu0 %v557
  %v1512 = vpop.f32.mrb[0].mxu0
  %v1513 = vadd.f32 0.0, %v1512
  %v1514 = vpop.f32.mrb[0].mxu0
  %v1515 = vpop.f32.mrb[0].mxu0
  %v1516 = vadd.f32 0.0, %v1515
  %v1517 = vpop.f32.mrb[0].mxu0
  %1518 = vmatprep.mubr.bf16.mxu0 0
  %1519 = vmatmul.mubr.bf16.gmra.mrb[0].mxu0 %v1425
  %v1520 = vpop.f32.mrb[0].mxu0
  %v1521 = vadd.f32 0.0, %v1520
  %v1522 = vpop.f32.mrb[0].mxu0
  %v1523 = vpop.f32.mrb[0].mxu0
  %v1524 = vadd.f32 0.0, %v1523
  %v1525 = vpop.f32.mrb[0].mxu0
  %1526 = vdwg.mxu0
  %v1527 = vadd.f32 %v1393, %v1465
  %v1528 = vadd.f32 %v1394, %v1468
  %v1529 = vadd.f32 %v1395, %v1473
  %v1530 = vadd.f32 %v1396, %v1476
  %v1531 = vadd.f32 %v1397, %v1481
  %v1532 = vadd.f32 %v1398, %v1484
  %v1533 = vadd.f32 %v1399, %v1489
  %v1534 = vadd.f32 %v1400, %v1492
  %v1535 = vadd.f32 %v1401, %v1497
  %v1536 = vadd.f32 %v1402, %v1500
  %v1537 = vadd.f32 %v1403, %v1505
  %v1538 = vadd.f32 %v1404, %v1508
  %v1539 = vadd.f32 %v1405, %v1513
  %v1540 = vadd.f32 %v1406, %v1516
  %v1541 = vadd.f32 %v1407, %v1521
  %v1542 = vadd.f32 %v1408, %v1524
  %v1543 = vld [vmem:[%s2] sm:$0x1]
  %v1545 = vlaneseq
  %v1546 = vshrl.u32 %v1545, 7
  %v1547 = vsub.s32 0, %v1546
  %v1548 = vrot.slane %v1543, %v1547
  %v1550 = vmul.f32 %v1527, %v1548
  %v1551 = vmul.f32 %v1528, %v1548
  %v1552 = vmul.f32 %v1529, %v1548
  %v1553 = vmul.f32 %v1530, %v1548
  %v1554 = vmul.f32 %v1531, %v1548
  %v1555 = vmul.f32 %v1532, %v1548
  %v1556 = vmul.f32 %v1533, %v1548
  %v1557 = vmul.f32 %v1534, %v1548
  %v1558 = vmul.f32 %v1535, %v1548
  %v1559 = vmul.f32 %v1536, %v1548
  %v1560 = vmul.f32 %v1537, %v1548
  %v1561 = vmul.f32 %v1538, %v1548
  %v1562 = vmul.f32 %v1539, %v1548
  %v1563 = vmul.f32 %v1540, %v1548
  %v1564 = vmul.f32 %v1541, %v1548
  %v1565 = vmul.f32 %v1542, %v1548
  %v1566 = vld [vmem:[%s3] sm:$0x1]
  %v1568 = vlaneseq
  %v1569 = vshrl.u32 %v1568, 7
  %v1570 = vsub.s32 0, %v1569
  %v1571 = vrot.slane %v1566, %v1570
  %v1573 = vadd.f32 %v1550, %v1571
  %v1574 = vadd.f32 %v1551, %v1571
  %v1575 = vadd.f32 %v1552, %v1571
  %v1576 = vadd.f32 %v1553, %v1571
  %v1577 = vadd.f32 %v1554, %v1571
  %v1578 = vadd.f32 %v1555, %v1571
  %v1579 = vadd.f32 %v1556, %v1571
  %v1580 = vadd.f32 %v1557, %v1571
  %v1581 = vadd.f32 %v1558, %v1571
  %v1582 = vadd.f32 %v1559, %v1571
  %v1583 = vadd.f32 %v1560, %v1571
  %v1584 = vadd.f32 %v1561, %v1571
  %v1585 = vadd.f32 %v1562, %v1571
  %v1586 = vadd.f32 %v1563, %v1571
  %v1587 = vadd.f32 %v1564, %v1571
  %v1588 = vadd.f32 %v1565, %v1571
  %v1589 = vmax.f32 %v1573, 0.0
  %v1590 = vmax.f32 %v1574, 0.0
  %v1591 = vmax.f32 %v1575, 0.0
  %v1592 = vmax.f32 %v1576, 0.0
  %v1593 = vmax.f32 %v1577, 0.0
  %v1594 = vmax.f32 %v1578, 0.0
  %v1595 = vmax.f32 %v1579, 0.0
  %v1596 = vmax.f32 %v1580, 0.0
  %v1597 = vmax.f32 %v1581, 0.0
  %v1598 = vmax.f32 %v1582, 0.0
  %v1599 = vmax.f32 %v1583, 0.0
  %v1600 = vmax.f32 %v1584, 0.0
  %v1601 = vmax.f32 %v1585, 0.0
  %v1602 = vmax.f32 %v1586, 0.0
  %v1603 = vmax.f32 %v1587, 0.0
  %v1604 = vmax.f32 %v1588, 0.0
  %vm1605 = vcmask 261120
  %1606 = vst.msk [vmem:[#allocation2] sm:$0xff] %vm1605, 0.0
  %vm1607 = vcmask 254976
  %1608 = vst.msk [vmem:[#allocation2 + $0x8] sm:$0x3] %vm1607, 0.0
  %1609 = vst.msk [vmem:[#allocation2 + $0x10] sm:$0xff] %vm1605, 0.0
  %1610 = vst.msk [vmem:[#allocation2 + $0x18] sm:$0x3] %vm1607, 0.0
  %1611 = vst.msk [vmem:[#allocation2 + $0x20] sm:$0xff] %vm1605, 0.0
  %1612 = vst.msk [vmem:[#allocation2 + $0x28] sm:$0x3] %vm1607, 0.0
  %1613 = vst.msk [vmem:[#allocation2 + $0x30] sm:$0xff] %vm1605, 0.0
  %1614 = vst.msk [vmem:[#allocation2 + $0x38] sm:$0x3] %vm1607, 0.0
  %1615 = vst.msk [vmem:[#allocation2 + $0x40] sm:$0xff] %vm1605, 0.0
  %1616 = vst.msk [vmem:[#allocation2 + $0x48] sm:$0x3] %vm1607, 0.0
  %1617 = vst.msk [vmem:[#allocation2 + $0x50] sm:$0xff] %vm1605, 0.0
  %1618 = vst.msk [vmem:[#allocation2 + $0x58] sm:$0x3] %vm1607, 0.0
  %1619 = vst.msk [vmem:[#allocation2 + $0x60] sm:$0xff] %vm1605, 0.0
  %1620 = vst.msk [vmem:[#allocation2 + $0x68] sm:$0x3] %vm1607, 0.0
  %1621 = vst.msk [vmem:[#allocation2 + $0x70] sm:$0xff] %vm1605, 0.0
  %1622 = vst.msk [vmem:[#allocation2 + $0x78] sm:$0x3] %vm1607, 0.0
  %1623 = vst.msk [vmem:[#allocation2 + $0x80] sm:$0xff] %vm1605, 0.0
  %1624 = vst.msk [vmem:[#allocation2 + $0x88] sm:$0x3] %vm1607, 0.0
  %1625 = vst.msk [vmem:[#allocation2 + $0x90] sm:$0xff] %vm1605, 0.0
  %1626 = vst.msk [vmem:[#allocation2 + $0x98] sm:$0x3] %vm1607, 0.0
  %1627 = vst.msk [vmem:[#allocation2 + $0xa0] sm:$0xff] %vm1605, 0.0
  %1628 = vst.msk [vmem:[#allocation2 + $0xa8] sm:$0x3] %vm1607, 0.0
  %1629 = vst.msk [vmem:[#allocation2 + $0xb0] sm:$0xff] %vm1605, 0.0
  %1630 = vst.msk [vmem:[#allocation2 + $0xb8] sm:$0x3] %vm1607, 0.0
  %1631 = vst.msk [vmem:[#allocation2 + $0xc0] sm:$0xff] %vm1605, 0.0
  %1632 = vst.msk [vmem:[#allocation2 + $0xc8] sm:$0x3] %vm1607, 0.0
  %1633 = vst.msk [vmem:[#allocation2 + $0xd0] sm:$0xff] %vm1605, 0.0
  %1634 = vst.msk [vmem:[#allocation2 + $0xd8] sm:$0x3] %vm1607, 0.0
  %1635 = vst.msk [vmem:[#allocation2 + $0xe0] sm:$0xff] %vm1605, 0.0
  %1636 = vst.msk [vmem:[#allocation2 + $0xe8] sm:$0x3] %vm1607, 0.0
  %1637 = vst.msk [vmem:[#allocation2 + $0xf0] sm:$0xff] %vm1605, 0.0
  %1638 = vst.msk [vmem:[#allocation2 + $0xf8] sm:$0x3] %vm1607, 0.0
  %1639 = vst.msk [vmem:[#allocation2 + $0x100] sm:$0xff] %vm1605, 0.0
  %1640 = vst.msk [vmem:[#allocation2 + $0x108] sm:$0x3] %vm1607, 0.0
  %1641 = vst.msk [vmem:[#allocation2 + $0x110] sm:$0xff] %vm1605, 0.0
  %1642 = vst.msk [vmem:[#allocation2 + $0x118] sm:$0x3] %vm1607, 0.0
  %1643 = vst.msk [vmem:[#allocation2 + $0x120] sm:$0xff] %vm1605, 0.0
  %1644 = vst.msk [vmem:[#allocation2 + $0x128] sm:$0x3] %vm1607, 0.0
  %1645 = vst.msk [vmem:[#allocation2 + $0x130] sm:$0xff] %vm1605, 0.0
  %1646 = vst.msk [vmem:[#allocation2 + $0x138] sm:$0x3] %vm1607, 0.0
  %v1647 = vld [vmem:[%s4] sm:$0x1]
  %v1649 = vlaneseq
  %v1650 = vshrl.u32 %v1649, 7
  %v1651 = vsub.s32 0, %v1650
  %v1652 = vrot.slane %v1647, %v1651
  %v1654 = vmul.f32 %v1589, %v1652
  %v1655 = vmul.f32 %v1590, %v1652
  %v1656 = vmul.f32 %v1591, %v1652
  %v1657 = vmul.f32 %v1592, %v1652
  %v1658 = vmul.f32 %v1593, %v1652
  %v1659 = vmul.f32 %v1594, %v1652
  %v1660 = vmul.f32 %v1595, %v1652
  %v1661 = vmul.f32 %v1596, %v1652
  %v1662 = vmul.f32 %v1597, %v1652
  %v1663 = vmul.f32 %v1598, %v1652
  %v1664 = vmul.f32 %v1599, %v1652
  %v1665 = vmul.f32 %v1600, %v1652
  %v1666 = vmul.f32 %v1601, %v1652
  %v1667 = vmul.f32 %v1602, %v1652
  %v1668 = vmul.f32 %v1603, %v1652
  %v1669 = vmul.f32 %v1604, %v1652
  %v1670 = vld [vmem:[%s5] sm:$0x1]
  %v1672 = vlaneseq
  %v1673 = vshrl.u32 %v1672, 7
  %v1674 = vsub.s32 0, %v1673
  %v1675 = vrot.slane %v1670, %v1674
  %v1677 = vadd.f32 %v1654, %v1675
  %v1678 = vadd.f32 %v1655, %v1675
  %v1679 = vadd.f32 %v1656, %v1675
  %v1680 = vadd.f32 %v1657, %v1675
  %v1681 = vadd.f32 %v1658, %v1675
  %v1682 = vadd.f32 %v1659, %v1675
  %v1683 = vadd.f32 %v1660, %v1675
  %v1684 = vadd.f32 %v1661, %v1675
  %v1685 = vadd.f32 %v1662, %v1675
  %v1686 = vadd.f32 %v1663, %v1675
  %v1687 = vadd.f32 %v1664, %v1675
  %v1688 = vadd.f32 %v1665, %v1675
  %v1689 = vadd.f32 %v1666, %v1675
  %v1690 = vadd.f32 %v1667, %v1675
  %v1691 = vadd.f32 %v1668, %v1675
  %v1692 = vadd.f32 %v1669, %v1675
  %v1693 = vmax.f32 %v1677, 0.0
  %v1694 = vmax.f32 %v1678, 0.0
  %v1695 = vmax.f32 %v1679, 0.0
  %v1696 = vmax.f32 %v1680, 0.0
  %v1697 = vmax.f32 %v1681, 0.0
  %v1698 = vmax.f32 %v1682, 0.0
  %v1699 = vmax.f32 %v1683, 0.0
  %v1700 = vmax.f32 %v1684, 0.0
  %v1701 = vmax.f32 %v1685, 0.0
  %v1702 = vmax.f32 %v1686, 0.0
  %v1703 = vmax.f32 %v1687, 0.0
  %v1704 = vmax.f32 %v1688, 0.0
  %v1705 = vmax.f32 %v1689, 0.0
  %v1706 = vmax.f32 %v1690, 0.0
  %v1707 = vmax.f32 %v1691, 0.0
  %v1708 = vmax.f32 %v1692, 0.0
  %s1709 = scalar_lea.vmem [#allocation2], 16
  %1710 = vst.msk [vmem:[%s1709 + $0x1] sm:$0xff] %vm1605, %v1693
  %1711 = vst.msk [vmem:[%s1709 + $0x11] sm:$0xff] %vm1605, %v1694
  %1712 = vst.msk [vmem:[%s1709 + $0x21] sm:$0xff] %vm1605, %v1695
  %1713 = vst.msk [vmem:[%s1709 + $0x31] sm:$0xff] %vm1605, %v1696
  %1714 = vst.msk [vmem:[%s1709 + $0x41] sm:$0xff] %vm1605, %v1697
  %1715 = vst.msk [vmem:[%s1709 + $0x51] sm:$0xff] %vm1605, %v1698
  %1716 = vst.msk [vmem:[%s1709 + $0x61] sm:$0xff] %vm1605, %v1699
  %1717 = vst.msk [vmem:[%s1709 + $0x71] sm:$0xff] %vm1605, %v1700
  %1718 = vst.msk [vmem:[%s1709 + $0xa1] sm:$0xff] %vm1605, %v1701
  %1719 = vst.msk [vmem:[%s1709 + $0xb1] sm:$0xff] %vm1605, %v1702
  %1720 = vst.msk [vmem:[%s1709 + $0xc1] sm:$0xff] %vm1605, %v1703
  %1721 = vst.msk [vmem:[%s1709 + $0xd1] sm:$0xff] %vm1605, %v1704
  %1722 = vst.msk [vmem:[%s1709 + $0xe1] sm:$0xff] %vm1605, %v1705
  %1723 = vst.msk [vmem:[%s1709 + $0xf1] sm:$0xff] %vm1605, %v1706
  %1724 = vst.msk [vmem:[%s1709 + $0x101] sm:$0xff] %vm1605, %v1707
  %1725 = vst.msk [vmem:[%s1709 + $0x111] sm:$0xff] %vm1605, %v1708
  %v1726 = vld [vmem:[#allocation2] sm:$0xff]
  %v1727 = vld [vmem:[#allocation2 + $0x8] sm:$0x3]
  %v1728 = vld [vmem:[#allocation2 + $0x10] sm:$0xff]
  %v1729 = vld [vmem:[#allocation2 + $0x18] sm:$0x3]
  %v1730 = vld [vmem:[#allocation2 + $0x20] sm:$0xff]
  %v1731 = vld [vmem:[#allocation2 + $0x28] sm:$0x3]
  %v1732 = vld [vmem:[#allocation2 + $0x30] sm:$0xff]
  %v1733 = vld [vmem:[#allocation2 + $0x38] sm:$0x3]
  %v1734 = vld [vmem:[#allocation2 + $0x40] sm:$0xff]
  %v1735 = vld [vmem:[#allocation2 + $0x48] sm:$0x3]
  %v1736 = vld [vmem:[#allocation2 + $0x50] sm:$0xff]
  %v1737 = vld [vmem:[#allocation2 + $0x58] sm:$0x3]
  %v1738 = vld [vmem:[#allocation2 + $0x60] sm:$0xff]
  %v1739 = vld [vmem:[#allocation2 + $0x68] sm:$0x3]
  %v1740 = vld [vmem:[#allocation2 + $0x70] sm:$0xff]
  %v1741 = vld [vmem:[#allocation2 + $0x78] sm:$0x3]
  %v1742 = vld [vmem:[#allocation2 + $0x80] sm:$0xff]
  %v1743 = vld [vmem:[#allocation2 + $0x88] sm:$0x3]
  %v1744 = vld [vmem:[#allocation2 + $0x90] sm:$0xff]
  %v1745 = vld [vmem:[#allocation2 + $0x98] sm:$0x3]
  %v1746 = vld [vmem:[#allocation2 + $0xa0] sm:$0xff]
  %v1747 = vld [vmem:[#allocation2 + $0xa8] sm:$0x3]
  %v1748 = vld [vmem:[#allocation2 + $0xb0] sm:$0xff]
  %v1749 = vld [vmem:[#allocation2 + $0xb8] sm:$0x3]
  %v1750 = vld [vmem:[#allocation2 + $0xc0] sm:$0xff]
  %v1751 = vld [vmem:[#allocation2 + $0xc8] sm:$0x3]
  %v1752 = vld [vmem:[#allocation2 + $0xd0] sm:$0xff]
  %v1753 = vld [vmem:[#allocation2 + $0xd8] sm:$0x3]
  %v1754 = vld [vmem:[#allocation2 + $0xe0] sm:$0xff]
  %v1755 = vld [vmem:[#allocation2 + $0xe8] sm:$0x3]
  %v1756 = vld [vmem:[#allocation2 + $0xf0] sm:$0xff]
  %v1757 = vld [vmem:[#allocation2 + $0xf8] sm:$0x3]
  %v1758 = vld [vmem:[#allocation2 + $0x100] sm:$0xff]
  %v1759 = vld [vmem:[#allocation2 + $0x108] sm:$0x3]
  %v1760 = vld [vmem:[#allocation2 + $0x110] sm:$0xff]
  %v1761 = vld [vmem:[#allocation2 + $0x118] sm:$0x3]
  %v1762 = vld [vmem:[#allocation2 + $0x120] sm:$0xff]
  %v1763 = vld [vmem:[#allocation2 + $0x128] sm:$0x3]
  %v1764 = vld [vmem:[#allocation2 + $0x130] sm:$0xff]
  %v1765 = vld [vmem:[#allocation2 + $0x138] sm:$0x3]
  %v1766 = vpack.c.bf16 %v1728, %v1726
  %v1767 = vpack.c.bf16 %v1732, %v1730
  %v1768 = vpack.c.bf16 %v1736, %v1734
  %v1769 = vpack.c.bf16 %v1740, %v1738
  %v1770 = vpack.c.bf16 %v1748, %v1746
  %v1771 = vpack.c.bf16 %v1752, %v1750
  %v1772 = vpack.c.bf16 %v1756, %v1754
  %v1773 = vpack.c.bf16 %v1760, %v1758
  %v1774 = vld [vmem:[%s6] sm:$0xf]
  %v1775 = vld [vmem:[%s6 + $0x4] sm:$0xf]
  %v1776 = vld [vmem:[%s6 + $0x8] sm:$0xf]
  %v1777 = vld [vmem:[%s6 + $0xc] sm:$0xf]
  %v1810 = vrot.slane %v1726, 1
  %v1811 = vrot.slane %v1727, 1
  %v1812 = vsel %vm135, %v1810, %v1811
  %v1813 = vrot.slane %v1728, 1
  %v1814 = vrot.slane %v1729, 1
  %v1815 = vsel %vm135, %v1813, %v1814
  %v1816 = vrot.slane %v1730, 1
  %v1817 = vrot.slane %v1731, 1
  %v1818 = vsel %vm135, %v1816, %v1817
  %v1819 = vrot.slane %v1732, 1
  %v1820 = vrot.slane %v1733, 1
  %v1821 = vsel %vm135, %v1819, %v1820
  %v1822 = vrot.slane %v1734, 1
  %v1823 = vrot.slane %v1735, 1
  %v1824 = vsel %vm135, %v1822, %v1823
  %v1825 = vrot.slane %v1736, 1
  %v1826 = vrot.slane %v1737, 1
  %v1827 = vsel %vm135, %v1825, %v1826
  %v1828 = vrot.slane %v1738, 1
  %v1829 = vrot.slane %v1739, 1
  %v1830 = vsel %vm135, %v1828, %v1829
  %v1831 = vrot.slane %v1740, 1
  %v1832 = vrot.slane %v1741, 1
  %v1833 = vsel %vm135, %v1831, %v1832
  %v1834 = vrot.slane %v1746, 1
  %v1835 = vrot.slane %v1747, 1
  %v1836 = vsel %vm135, %v1834, %v1835
  %v1837 = vrot.slane %v1748, 1
  %v1838 = vrot.slane %v1749, 1
  %v1839 = vsel %vm135, %v1837, %v1838
  %v1840 = vrot.slane %v1750, 1
  %v1841 = vrot.slane %v1751, 1
  %v1842 = vsel %vm135, %v1840, %v1841
  %v1843 = vrot.slane %v1752, 1
  %v1844 = vrot.slane %v1753, 1
  %v1845 = vsel %vm135, %v1843, %v1844
  %v1846 = vrot.slane %v1754, 1
  %v1847 = vrot.slane %v1755, 1
  %v1848 = vsel %vm135, %v1846, %v1847
  %v1849 = vrot.slane %v1756, 1
  %v1850 = vrot.slane %v1757, 1
  %v1851 = vsel %vm135, %v1849, %v1850
  %v1852 = vrot.slane %v1758, 1
  %v1853 = vrot.slane %v1759, 1
  %v1854 = vsel %vm135, %v1852, %v1853
  %v1855 = vrot.slane %v1760, 1
  %v1856 = vrot.slane %v1761, 1
  %v1857 = vsel %vm135, %v1855, %v1856
  %v1874 = vpack.c.bf16 %v1815, %v1812
  %v1875 = vpack.c.bf16 %v1821, %v1818
  %v1876 = vpack.c.bf16 %v1827, %v1824
  %v1877 = vpack.c.bf16 %v1833, %v1830
  %v1878 = vpack.c.bf16 %v1839, %v1836
  %v1879 = vpack.c.bf16 %v1845, %v1842
  %v1880 = vpack.c.bf16 %v1851, %v1848
  %v1881 = vpack.c.bf16 %v1857, %v1854
  %s1882 = scalar_lea.vmem %s6, 16
  %v1883 = vld [vmem:[%s1882] sm:$0xf]
  %v1884 = vld [vmem:[%s1882 + $0x4] sm:$0xf]
  %v1885 = vld [vmem:[%s1882 + $0x8] sm:$0xf]
  %v1886 = vld [vmem:[%s1882 + $0xc] sm:$0xf]
  %v1891 = vunpack.c.l.b16 %v1883
  %v1892 = vunpack.c.l.b16 %v1884
  %v1893 = vunpack.c.l.b16 %v1885
  %v1894 = vunpack.c.l.b16 %v1886
  %v1895 = vpack.c.b16 %v1892, %v1891
  %v1896 = vpack.c.b16 %v1894, %v1893
  %v1900 = vsel %vm1605, %v1874, 0
  %v1903 = vsel %vm1605, %v1875, 0
  %v1906 = vsel %vm1605, %v1876, 0
  %v1909 = vsel %vm1605, %v1877, 0
  %v1912 = vsel %vm1605, %v1878, 0
  %v1915 = vsel %vm1605, %v1879, 0
  %v1918 = vsel %vm1605, %v1880, 0
  %v1921 = vsel %vm1605, %v1881, 0
  %1923 = vmatprep.subr.bf16.mxu0 0
  %1924 = vmatpush1.bf16.msra.mxu0 %v1895
  %1925 = vmatprep.subr.bf16.mxu0 0
  %1926 = vmatpush1.bf16.msra.mxu0 %v1896
  %1927 = vmatprep.subr.bf16.mxu0 0
  %1928 = vmatpush1.bf16.msra.mxu0 0
  %1929 = vmatprep.subr.bf16.mxu0 0
  %1930 = vmatpush1.bf16.msra.mxu0 0
  %1931 = vmatprep.subr.bf16.mxu0 0
  %1932 = vmatpush1.bf16.msra.mxu0 0
  %1933 = vmatprep.subr.bf16.mxu0 0
  %1934 = vmatpush1.bf16.msra.mxu0 0
  %1935 = vmatprep.subr.bf16.mxu0 0
  %1936 = vmatpush1.bf16.msra.mxu0 0
  %1937 = vmatprep.subr.bf16.mxu0 0
  %1938 = vmatpush1.bf16.msra.mxu0 0
  %1939 = vmatprep.subr.bf16.mxu0 0
  %1940 = vmatpush1.bf16.msra.mxu0 0
  %1941 = vmatprep.subr.bf16.mxu0 0
  %1942 = vmatpush1.bf16.msra.mxu0 0
  %1943 = vmatprep.subr.bf16.mxu0 0
  %1944 = vmatpush1.bf16.msra.mxu0 0
  %1945 = vmatprep.subr.bf16.mxu0 0
  %1946 = vmatpush1.bf16.msra.mxu0 0
  %1947 = vmatprep.subr.bf16.mxu0 0
  %1948 = vmatpush1.bf16.msra.mxu0 0
  %1949 = vmatprep.subr.bf16.mxu0 0
  %1950 = vmatpush1.bf16.msra.mxu0 0
  %1951 = vmatprep.subr.bf16.mxu0 0
  %1952 = vmatpush1.bf16.msra.mxu0 0
  %1953 = vmatprep.subr.bf16.mxu0 0
  %1954 = vmatpush1.bf16.msra.mxu0 0
  %1955 = vmatprep.mubr.bf16.mxu0 0
  %1956 = vmatmul.mubr.bf16.gmra.mrb[0].mxu0 %v1900
  %v1957 = vpop.f32.mrb[0].mxu0
  %v1958 = vadd.f32 0.0, %v1957
  %v1959 = vpop.f32.mrb[0].mxu0
  %v1960 = vpop.f32.mrb[0].mxu0
  %v1961 = vadd.f32 0.0, %v1960
  %v1962 = vpop.f32.mrb[0].mxu0
  %1963 = vmatprep.mubr.bf16.mxu0 0
  %1964 = vmatmul.mubr.bf16.gmra.mrb[0].mxu0 %v1903
  %v1965 = vpop.f32.mrb[0].mxu0
  %v1966 = vadd.f32 0.0, %v1965
  %v1967 = vpop.f32.mrb[0].mxu0
  %v1968 = vpop.f32.mrb[0].mxu0
  %v1969 = vadd.f32 0.0, %v1968
  %v1970 = vpop.f32.mrb[0].mxu0
  %1971 = vmatprep.mubr.bf16.mxu0 0
  %1972 = vmatmul.mubr.bf16.gmra.mrb[0].mxu0 %v1906
  %v1973 = vpop.f32.mrb[0].mxu0
  %v1974 = vadd.f32 0.0, %v1973
  %v1975 = vpop.f32.mrb[0].mxu0
  %v1976 = vpop.f32.mrb[0].mxu0
  %v1977 = vadd.f32 0.0, %v1976
  %v1978 = vpop.f32.mrb[0].mxu0
  %1979 = vmatprep.mubr.bf16.mxu0 0
  %1980 = vmatmul.mubr.bf16.gmra.mrb[0].mxu0 %v1909
  %v1981 = vpop.f32.mrb[0].mxu0
  %v1982 = vadd.f32 0.0, %v1981
  %v1983 = vpop.f32.mrb[0].mxu0
  %v1984 = vpop.f32.mrb[0].mxu0
  %v1985 = vadd.f32 0.0, %v1984
  %v1986 = vpop.f32.mrb[0].mxu0
  %1987 = vmatprep.mubr.bf16.mxu0 0
  %1988 = vmatmul.mubr.bf16.gmra.mrb[0].mxu0 %v1912
  %v1989 = vpop.f32.mrb[0].mxu0
  %v1990 = vadd.f32 0.0, %v1989
  %v1991 = vpop.f32.mrb[0].mxu0
  %v1992 = vpop.f32.mrb[0].mxu0
  %v1993 = vadd.f32 0.0, %v1992
  %v1994 = vpop.f32.mrb[0].mxu0
  %1995 = vmatprep.mubr.bf16.mxu0 0
  %1996 = vmatmul.mubr.bf16.gmra.mrb[0].mxu0 %v1915
  %v1997 = vpop.f32.mrb[0].mxu0
  %v1998 = vadd.f32 0.0, %v1997
  %v1999 = vpop.f32.mrb[0].mxu0
  %v2000 = vpop.f32.mrb[0].mxu0
  %v2001 = vadd.f32 0.0, %v2000
  %v2002 = vpop.f32.mrb[0].mxu0
  %2003 = vmatprep.mubr.bf16.mxu0 0
  %2004 = vmatmul.mubr.bf16.gmra.mrb[0].mxu0 %v1918
  %v2005 = vpop.f32.mrb[0].mxu0
  %v2006 = vadd.f32 0.0, %v2005
  %v2007 = vpop.f32.mrb[0].mxu0
  %v2008 = vpop.f32.mrb[0].mxu0
  %v2009 = vadd.f32 0.0, %v2008
  %v2010 = vpop.f32.mrb[0].mxu0
  %2011 = vmatprep.mubr.bf16.mxu0 0
  %2012 = vmatmul.mubr.bf16.gmra.mrb[0].mxu0 %v1921
  %v2013 = vpop.f32.mrb[0].mxu0
  %v2014 = vadd.f32 0.0, %v2013
  %v2015 = vpop.f32.mrb[0].mxu0
  %v2016 = vpop.f32.mrb[0].mxu0
  %v2017 = vadd.f32 0.0, %v2016
  %v2018 = vpop.f32.mrb[0].mxu0
  %2019 = vdwg.mxu0
  %v2024 = vunpack.c.l.b16 %v1774
  %v2025 = vunpack.c.l.b16 %v1775
  %v2026 = vunpack.c.l.b16 %v1776
  %v2027 = vunpack.c.l.b16 %v1777
  %v2028 = vpack.c.b16 %v2025, %v2024
  %v2029 = vpack.c.b16 %v2027, %v2026
  %v2033 = vsel %vm1605, %v1766, 0
  %v2036 = vsel %vm1605, %v1767, 0
  %v2039 = vsel %vm1605, %v1768, 0
  %v2042 = vsel %vm1605, %v1769, 0
  %v2045 = vsel %vm1605, %v1770, 0
  %v2048 = vsel %vm1605, %v1771, 0
  %v2051 = vsel %vm1605, %v1772, 0
  %v2054 = vsel %vm1605, %v1773, 0
  %2056 = vmatprep.subr.bf16.mxu0 0
  %2057 = vmatpush1.bf16.msra.mxu0 %v2028
  %2058 = vmatprep.subr.bf16.mxu0 0
  %2059 = vmatpush1.bf16.msra.mxu0 %v2029
  %2060 = vmatprep.subr.bf16.mxu0 0
  %2061 = vmatpush1.bf16.msra.mxu0 0
  %2062 = vmatprep.subr.bf16.mxu0 0
  %2063 = vmatpush1.bf16.msra.mxu0 0
  %2064 = vmatprep.subr.bf16.mxu0 0
  %2065 = vmatpush1.bf16.msra.mxu0 0
  %2066 = vmatprep.subr.bf16.mxu0 0
  %2067 = vmatpush1.bf16.msra.mxu0 0
  %2068 = vmatprep.subr.bf16.mxu0 0
  %2069 = vmatpush1.bf16.msra.mxu0 0
  %2070 = vmatprep.subr.bf16.mxu0 0
  %2071 = vmatpush1.bf16.msra.mxu0 0
  %2072 = vmatprep.subr.bf16.mxu0 0
  %2073 = vmatpush1.bf16.msra.mxu0 0
  %2074 = vmatprep.subr.bf16.mxu0 0
  %2075 = vmatpush1.bf16.msra.mxu0 0
  %2076 = vmatprep.subr.bf16.mxu0 0
  %2077 = vmatpush1.bf16.msra.mxu0 0
  %2078 = vmatprep.subr.bf16.mxu0 0
  %2079 = vmatpush1.bf16.msra.mxu0 0
  %2080 = vmatprep.subr.bf16.mxu0 0
  %2081 = vmatpush1.bf16.msra.mxu0 0
  %2082 = vmatprep.subr.bf16.mxu0 0
  %2083 = vmatpush1.bf16.msra.mxu0 0
  %2084 = vmatprep.subr.bf16.mxu0 0
  %2085 = vmatpush1.bf16.msra.mxu0 0
  %2086 = vmatprep.subr.bf16.mxu0 0
  %2087 = vmatpush1.bf16.msra.mxu0 0
  %2088 = vmatprep.mubr.bf16.mxu0 0
  %2089 = vmatmul.mubr.bf16.gmra.mrb[0].mxu0 %v2033
  %v2090 = vpop.f32.mrb[0].mxu0
  %v2091 = vadd.f32 %v1958, %v2090
  %v2092 = vpop.f32.mrb[0].mxu0
  %v2093 = vpop.f32.mrb[0].mxu0
  %v2094 = vadd.f32 %v1961, %v2093
  %v2095 = vpop.f32.mrb[0].mxu0
  %2096 = vmatprep.mubr.bf16.mxu0 0
  %2097 = vmatmul.mubr.bf16.gmra.mrb[0].mxu0 %v2036
  %v2098 = vpop.f32.mrb[0].mxu0
  %v2099 = vadd.f32 %v1966, %v2098
  %v2100 = vpop.f32.mrb[0].mxu0
  %v2101 = vpop.f32.mrb[0].mxu0
  %v2102 = vadd.f32 %v1969, %v2101
  %v2103 = vpop.f32.mrb[0].mxu0
  %2104 = vmatprep.mubr.bf16.mxu0 0
  %2105 = vmatmul.mubr.bf16.gmra.mrb[0].mxu0 %v2039
  %v2106 = vpop.f32.mrb[0].mxu0
  %v2107 = vadd.f32 %v1974, %v2106
  %v2108 = vpop.f32.mrb[0].mxu0
  %v2109 = vpop.f32.mrb[0].mxu0
  %v2110 = vadd.f32 %v1977, %v2109
  %v2111 = vpop.f32.mrb[0].mxu0
  %2112 = vmatprep.mubr.bf16.mxu0 0
  %2113 = vmatmul.mubr.bf16.gmra.mrb[0].mxu0 %v2042
  %v2114 = vpop.f32.mrb[0].mxu0
  %v2115 = vadd.f32 %v1982, %v2114
  %v2116 = vpop.f32.mrb[0].mxu0
  %v2117 = vpop.f32.mrb[0].mxu0
  %v2118 = vadd.f32 %v1985, %v2117
  %v2119 = vpop.f32.mrb[0].mxu0
  %2120 = vmatprep.mubr.bf16.mxu0 0
  %2121 = vmatmul.mubr.bf16.gmra.mrb[0].mxu0 %v2045
  %v2122 = vpop.f32.mrb[0].mxu0
  %v2123 = vadd.f32 %v1990, %v2122
  %v2124 = vpop.f32.mrb[0].mxu0
  %v2125 = vpop.f32.mrb[0].mxu0
  %v2126 = vadd.f32 %v1993, %v2125
  %v2127 = vpop.f32.mrb[0].mxu0
  %2128 = vmatprep.mubr.bf16.mxu0 0
  %2129 = vmatmul.mubr.bf16.gmra.mrb[0].mxu0 %v2048
  %v2130 = vpop.f32.mrb[0].mxu0
  %v2131 = vadd.f32 %v1998, %v2130
  %v2132 = vpop.f32.mrb[0].mxu0
  %v2133 = vpop.f32.mrb[0].mxu0
  %v2134 = vadd.f32 %v2001, %v2133
  %v2135 = vpop.f32.mrb[0].mxu0
  %2136 = vmatprep.mubr.bf16.mxu0 0
  %2137 = vmatmul.mubr.bf16.gmra.mrb[0].mxu0 %v2051
  %v2138 = vpop.f32.mrb[0].mxu0
  %v2139 = vadd.f32 %v2006, %v2138
  %v2140 = vpop.f32.mrb[0].mxu0
  %v2141 = vpop.f32.mrb[0].mxu0
  %v2142 = vadd.f32 %v2009, %v2141
  %v2143 = vpop.f32.mrb[0].mxu0
  %2144 = vmatprep.mubr.bf16.mxu0 0
  %2145 = vmatmul.mubr.bf16.gmra.mrb[0].mxu0 %v2054
  %v2146 = vpop.f32.mrb[0].mxu0
  %v2147 = vadd.f32 %v2014, %v2146
  %v2148 = vpop.f32.mrb[0].mxu0
  %v2149 = vpop.f32.mrb[0].mxu0
  %v2150 = vadd.f32 %v2017, %v2149
  %v2151 = vpop.f32.mrb[0].mxu0
  %2152 = vdwg.mxu0
  %v2153 = vrot.slane %v1726, 2
  %v2154 = vrot.slane %v1727, 2
  %v2155 = vsel %vm460, %v2153, %v2154
  %v2156 = vrot.slane %v1728, 2
  %v2157 = vrot.slane %v1729, 2
  %v2158 = vsel %vm460, %v2156, %v2157
  %v2159 = vrot.slane %v1730, 2
  %v2160 = vrot.slane %v1731, 2
  %v2161 = vsel %vm460, %v2159, %v2160
  %v2162 = vrot.slane %v1732, 2
  %v2163 = vrot.slane %v1733, 2
  %v2164 = vsel %vm460, %v2162, %v2163
  %v2165 = vrot.slane %v1734, 2
  %v2166 = vrot.slane %v1735, 2
  %v2167 = vsel %vm460, %v2165, %v2166
  %v2168 = vrot.slane %v1736, 2
  %v2169 = vrot.slane %v1737, 2
  %v2170 = vsel %vm460, %v2168, %v2169
  %v2171 = vrot.slane %v1738, 2
  %v2172 = vrot.slane %v1739, 2
  %v2173 = vsel %vm460, %v2171, %v2172
  %v2174 = vrot.slane %v1740, 2
  %v2175 = vrot.slane %v1741, 2
  %v2176 = vsel %vm460, %v2174, %v2175
  %v2177 = vrot.slane %v1746, 2
  %v2178 = vrot.slane %v1747, 2
  %v2179 = vsel %vm460, %v2177, %v2178
  %v2180 = vrot.slane %v1748, 2
  %v2181 = vrot.slane %v1749, 2
  %v2182 = vsel %vm460, %v2180, %v2181
  %v2183 = vrot.slane %v1750, 2
  %v2184 = vrot.slane %v1751, 2
  %v2185 = vsel %vm460, %v2183, %v2184
  %v2186 = vrot.slane %v1752, 2
  %v2187 = vrot.slane %v1753, 2
  %v2188 = vsel %vm460, %v2186, %v2187
  %v2189 = vrot.slane %v1754, 2
  %v2190 = vrot.slane %v1755, 2
  %v2191 = vsel %vm460, %v2189, %v2190
  %v2192 = vrot.slane %v1756, 2
  %v2193 = vrot.slane %v1757, 2
  %v2194 = vsel %vm460, %v2192, %v2193
  %v2195 = vrot.slane %v1758, 2
  %v2196 = vrot.slane %v1759, 2
  %v2197 = vsel %vm460, %v2195, %v2196
  %v2198 = vrot.slane %v1760, 2
  %v2199 = vrot.slane %v1761, 2
  %v2200 = vsel %vm460, %v2198, %v2199
  %v2217 = vpack.c.bf16 %v2158, %v2155
  %v2218 = vpack.c.bf16 %v2164, %v2161
  %v2219 = vpack.c.bf16 %v2170, %v2167
  %v2220 = vpack.c.bf16 %v2176, %v2173
  %v2221 = vpack.c.bf16 %v2182, %v2179
  %v2222 = vpack.c.bf16 %v2188, %v2185
  %v2223 = vpack.c.bf16 %v2194, %v2191
  %v2224 = vpack.c.bf16 %v2200, %v2197
  %s2225 = scalar_lea.vmem %s6, 32
  %v2226 = vld [vmem:[%s2225] sm:$0xf]
  %v2227 = vld [vmem:[%s2225 + $0x4] sm:$0xf]
  %v2228 = vld [vmem:[%s2225 + $0x8] sm:$0xf]
  %v2229 = vld [vmem:[%s2225 + $0xc] sm:$0xf]
  %v2234 = vunpack.c.l.b16 %v2226
  %v2235 = vunpack.c.l.b16 %v2227
  %v2236 = vunpack.c.l.b16 %v2228
  %v2237 = vunpack.c.l.b16 %v2229
  %v2238 = vpack.c.b16 %v2235, %v2234
  %v2239 = vpack.c.b16 %v2237, %v2236
  %v2243 = vsel %vm1605, %v2217, 0
  %v2246 = vsel %vm1605, %v2218, 0
  %v2249 = vsel %vm1605, %v2219, 0
  %v2252 = vsel %vm1605, %v2220, 0
  %v2255 = vsel %vm1605, %v2221, 0
  %v2258 = vsel %vm1605, %v2222, 0
  %v2261 = vsel %vm1605, %v2223, 0
  %v2264 = vsel %vm1605, %v2224, 0
  %2266 = vmatprep.subr.bf16.mxu0 0
  %2267 = vmatpush1.bf16.msra.mxu0 %v2238
  %2268 = vmatprep.subr.bf16.mxu0 0
  %2269 = vmatpush1.bf16.msra.mxu0 %v2239
  %2270 = vmatprep.subr.bf16.mxu0 0
  %2271 = vmatpush1.bf16.msra.mxu0 0
  %2272 = vmatprep.subr.bf16.mxu0 0
  %2273 = vmatpush1.bf16.msra.mxu0 0
  %2274 = vmatprep.subr.bf16.mxu0 0
  %2275 = vmatpush1.bf16.msra.mxu0 0
  %2276 = vmatprep.subr.bf16.mxu0 0
  %2277 = vmatpush1.bf16.msra.mxu0 0
  %2278 = vmatprep.subr.bf16.mxu0 0
  %2279 = vmatpush1.bf16.msra.mxu0 0
  %2280 = vmatprep.subr.bf16.mxu0 0
  %2281 = vmatpush1.bf16.msra.mxu0 0
  %2282 = vmatprep.subr.bf16.mxu0 0
  %2283 = vmatpush1.bf16.msra.mxu0 0
  %2284 = vmatprep.subr.bf16.mxu0 0
  %2285 = vmatpush1.bf16.msra.mxu0 0
  %2286 = vmatprep.subr.bf16.mxu0 0
  %2287 = vmatpush1.bf16.msra.mxu0 0
  %2288 = vmatprep.subr.bf16.mxu0 0
  %2289 = vmatpush1.bf16.msra.mxu0 0
  %2290 = vmatprep.subr.bf16.mxu0 0
  %2291 = vmatpush1.bf16.msra.mxu0 0
  %2292 = vmatprep.subr.bf16.mxu0 0
  %2293 = vmatpush1.bf16.msra.mxu0 0
  %2294 = vmatprep.subr.bf16.mxu0 0
  %2295 = vmatpush1.bf16.msra.mxu0 0
  %2296 = vmatprep.subr.bf16.mxu0 0
  %2297 = vmatpush1.bf16.msra.mxu0 0
  %2298 = vmatprep.mubr.bf16.mxu0 0
  %2299 = vmatmul.mubr.bf16.gmra.mrb[0].mxu0 %v2243
  %v2300 = vpop.f32.mrb[0].mxu0
  %v2301 = vadd.f32 0.0, %v2300
  %v2302 = vpop.f32.mrb[0].mxu0
  %v2303 = vpop.f32.mrb[0].mxu0
  %v2304 = vadd.f32 0.0, %v2303
  %v2305 = vpop.f32.mrb[0].mxu0
  %2306 = vmatprep.mubr.bf16.mxu0 0
  %2307 = vmatmul.mubr.bf16.gmra.mrb[0].mxu0 %v2246
  %v2308 = vpop.f32.mrb[0].mxu0
  %v2309 = vadd.f32 0.0, %v2308
  %v2310 = vpop.f32.mrb[0].mxu0
  %v2311 = vpop.f32.mrb[0].mxu0
  %v2312 = vadd.f32 0.0, %v2311
  %v2313 = vpop.f32.mrb[0].mxu0
  %2314 = vmatprep.mubr.bf16.mxu0 0
  %2315 = vmatmul.mubr.bf16.gmra.mrb[0].mxu0 %v2249
  %v2316 = vpop.f32.mrb[0].mxu0
  %v2317 = vadd.f32 0.0, %v2316
  %v2318 = vpop.f32.mrb[0].mxu0
  %v2319 = vpop.f32.mrb[0].mxu0
  %v2320 = vadd.f32 0.0, %v2319
  %v2321 = vpop.f32.mrb[0].mxu0
  %2322 = vmatprep.mubr.bf16.mxu0 0
  %2323 = vmatmul.mubr.bf16.gmra.mrb[0].mxu0 %v2252
  %v2324 = vpop.f32.mrb[0].mxu0
  %v2325 = vadd.f32 0.0, %v2324
  %v2326 = vpop.f32.mrb[0].mxu0
  %v2327 = vpop.f32.mrb[0].mxu0
  %v2328 = vadd.f32 0.0, %v2327
  %v2329 = vpop.f32.mrb[0].mxu0
  %2330 = vmatprep.mubr.bf16.mxu0 0
  %2331 = vmatmul.mubr.bf16.gmra.mrb[0].mxu0 %v2255
  %v2332 = vpop.f32.mrb[0].mxu0
  %v2333 = vadd.f32 0.0, %v2332
  %v2334 = vpop.f32.mrb[0].mxu0
  %v2335 = vpop.f32.mrb[0].mxu0
  %v2336 = vadd.f32 0.0, %v2335
  %v2337 = vpop.f32.mrb[0].mxu0
  %2338 = vmatprep.mubr.bf16.mxu0 0
  %2339 = vmatmul.mubr.bf16.gmra.mrb[0].mxu0 %v2258
  %v2340 = vpop.f32.mrb[0].mxu0
  %v2341 = vadd.f32 0.0, %v2340
  %v2342 = vpop.f32.mrb[0].mxu0
  %v2343 = vpop.f32.mrb[0].mxu0
  %v2344 = vadd.f32 0.0, %v2343
  %v2345 = vpop.f32.mrb[0].mxu0
  %2346 = vmatprep.mubr.bf16.mxu0 0
  %2347 = vmatmul.mubr.bf16.gmra.mrb[0].mxu0 %v2261
  %v2348 = vpop.f32.mrb[0].mxu0
  %v2349 = vadd.f32 0.0, %v2348
  %v2350 = vpop.f32.mrb[0].mxu0
  %v2351 = vpop.f32.mrb[0].mxu0
  %v2352 = vadd.f32 0.0, %v2351
  %v2353 = vpop.f32.mrb[0].mxu0
  %2354 = vmatprep.mubr.bf16.mxu0 0
  %2355 = vmatmul.mubr.bf16.gmra.mrb[0].mxu0 %v2264
  %v2356 = vpop.f32.mrb[0].mxu0
  %v2357 = vadd.f32 0.0, %v2356
  %v2358 = vpop.f32.mrb[0].mxu0
  %v2359 = vpop.f32.mrb[0].mxu0
  %v2360 = vadd.f32 0.0, %v2359
  %v2361 = vpop.f32.mrb[0].mxu0
  %2362 = vdwg.mxu0
  %v2363 = vadd.f32 %v2091, %v2301
  %v2364 = vadd.f32 %v2094, %v2304
  %v2365 = vadd.f32 %v2099, %v2309
  %v2366 = vadd.f32 %v2102, %v2312
  %v2367 = vadd.f32 %v2107, %v2317
  %v2368 = vadd.f32 %v2110, %v2320
  %v2369 = vadd.f32 %v2115, %v2325
  %v2370 = vadd.f32 %v2118, %v2328
  %v2371 = vadd.f32 %v2123, %v2333
  %v2372 = vadd.f32 %v2126, %v2336
  %v2373 = vadd.f32 %v2131, %v2341
  %v2374 = vadd.f32 %v2134, %v2344
  %v2375 = vadd.f32 %v2139, %v2349
  %v2376 = vadd.f32 %v2142, %v2352
  %v2377 = vadd.f32 %v2147, %v2357
  %v2378 = vadd.f32 %v2150, %v2360
  %v2379 = vpack.c.bf16 %v1730, %v1728
  %v2380 = vpack.c.bf16 %v1734, %v1732
  %v2381 = vpack.c.bf16 %v1738, %v1736
  %v2382 = vpack.c.bf16 %v1742, %v1740
  %v2383 = vpack.c.bf16 %v1750, %v1748
  %v2384 = vpack.c.bf16 %v1754, %v1752
  %v2385 = vpack.c.bf16 %v1758, %v1756
  %v2386 = vpack.c.bf16 %v1762, %v1760
  %s2387 = scalar_lea.vmem %s6, 48
  %v2388 = vld [vmem:[%s2387] sm:$0xf]
  %v2389 = vld [vmem:[%s2387 + $0x4] sm:$0xf]
  %v2390 = vld [vmem:[%s2387 + $0x8] sm:$0xf]
  %v2391 = vld [vmem:[%s2387 + $0xc] sm:$0xf]
  %v2396 = vunpack.c.l.b16 %v2388
  %v2397 = vunpack.c.l.b16 %v2389
  %v2398 = vunpack.c.l.b16 %v2390
  %v2399 = vunpack.c.l.b16 %v2391
  %v2400 = vpack.c.b16 %v2397, %v2396
  %v2401 = vpack.c.b16 %v2399, %v2398
  %v2405 = vsel %vm1605, %v2379, 0
  %v2408 = vsel %vm1605, %v2380, 0
  %v2411 = vsel %vm1605, %v2381, 0
  %v2414 = vsel %vm1605, %v2382, 0
  %v2417 = vsel %vm1605, %v2383, 0
  %v2420 = vsel %vm1605, %v2384, 0
  %v2423 = vsel %vm1605, %v2385, 0
  %v2426 = vsel %vm1605, %v2386, 0
  %2428 = vmatprep.subr.bf16.mxu0 0
  %2429 = vmatpush1.bf16.msra.mxu0 %v2400
  %2430 = vmatprep.subr.bf16.mxu0 0
  %2431 = vmatpush1.bf16.msra.mxu0 %v2401
  %2432 = vmatprep.subr.bf16.mxu0 0
  %2433 = vmatpush1.bf16.msra.mxu0 0
  %2434 = vmatprep.subr.bf16.mxu0 0
  %2435 = vmatpush1.bf16.msra.mxu0 0
  %2436 = vmatprep.subr.bf16.mxu0 0
  %2437 = vmatpush1.bf16.msra.mxu0 0
  %2438 = vmatprep.subr.bf16.mxu0 0
  %2439 = vmatpush1.bf16.msra.mxu0 0
  %2440 = vmatprep.subr.bf16.mxu0 0
  %2441 = vmatpush1.bf16.msra.mxu0 0
  %2442 = vmatprep.subr.bf16.mxu0 0
  %2443 = vmatpush1.bf16.msra.mxu0 0
  %2444 = vmatprep.subr.bf16.mxu0 0
  %2445 = vmatpush1.bf16.msra.mxu0 0
  %2446 = vmatprep.subr.bf16.mxu0 0
  %2447 = vmatpush1.bf16.msra.mxu0 0
  %2448 = vmatprep.subr.bf16.mxu0 0
  %2449 = vmatpush1.bf16.msra.mxu0 0
  %2450 = vmatprep.subr.bf16.mxu0 0
  %2451 = vmatpush1.bf16.msra.mxu0 0
  %2452 = vmatprep.subr.bf16.mxu0 0
  %2453 = vmatpush1.bf16.msra.mxu0 0
  %2454 = vmatprep.subr.bf16.mxu0 0
  %2455 = vmatpush1.bf16.msra.mxu0 0
  %2456 = vmatprep.subr.bf16.mxu0 0
  %2457 = vmatpush1.bf16.msra.mxu0 0
  %2458 = vmatprep.subr.bf16.mxu0 0
  %2459 = vmatpush1.bf16.msra.mxu0 0
  %2460 = vmatprep.mubr.bf16.mxu0 0
  %2461 = vmatmul.mubr.bf16.gmra.mrb[0].mxu0 %v2405
  %v2462 = vpop.f32.mrb[0].mxu0
  %v2463 = vadd.f32 0.0, %v2462
  %v2464 = vpop.f32.mrb[0].mxu0
  %v2465 = vpop.f32.mrb[0].mxu0
  %v2466 = vadd.f32 0.0, %v2465
  %v2467 = vpop.f32.mrb[0].mxu0
  %2468 = vmatprep.mubr.bf16.mxu0 0
  %2469 = vmatmul.mubr.bf16.gmra.mrb[0].mxu0 %v2408
  %v2470 = vpop.f32.mrb[0].mxu0
  %v2471 = vadd.f32 0.0, %v2470
  %v2472 = vpop.f32.mrb[0].mxu0
  %v2473 = vpop.f32.mrb[0].mxu0
  %v2474 = vadd.f32 0.0, %v2473
  %v2475 = vpop.f32.mrb[0].mxu0
  %2476 = vmatprep.mubr.bf16.mxu0 0
  %2477 = vmatmul.mubr.bf16.gmra.mrb[0].mxu0 %v2411
  %v2478 = vpop.f32.mrb[0].mxu0
  %v2479 = vadd.f32 0.0, %v2478
  %v2480 = vpop.f32.mrb[0].mxu0
  %v2481 = vpop.f32.mrb[0].mxu0
  %v2482 = vadd.f32 0.0, %v2481
  %v2483 = vpop.f32.mrb[0].mxu0
  %2484 = vmatprep.mubr.bf16.mxu0 0
  %2485 = vmatmul.mubr.bf16.gmra.mrb[0].mxu0 %v2414
  %v2486 = vpop.f32.mrb[0].mxu0
  %v2487 = vadd.f32 0.0, %v2486
  %v2488 = vpop.f32.mrb[0].mxu0
  %v2489 = vpop.f32.mrb[0].mxu0
  %v2490 = vadd.f32 0.0, %v2489
  %v2491 = vpop.f32.mrb[0].mxu0
  %2492 = vmatprep.mubr.bf16.mxu0 0
  %2493 = vmatmul.mubr.bf16.gmra.mrb[0].mxu0 %v2417
  %v2494 = vpop.f32.mrb[0].mxu0
  %v2495 = vadd.f32 0.0, %v2494
  %v2496 = vpop.f32.mrb[0].mxu0
  %v2497 = vpop.f32.mrb[0].mxu0
  %v2498 = vadd.f32 0.0, %v2497
  %v2499 = vpop.f32.mrb[0].mxu0
  %2500 = vmatprep.mubr.bf16.mxu0 0
  %2501 = vmatmul.mubr.bf16.gmra.mrb[0].mxu0 %v2420
  %v2502 = vpop.f32.mrb[0].mxu0
  %v2503 = vadd.f32 0.0, %v2502
  %v2504 = vpop.f32.mrb[0].mxu0
  %v2505 = vpop.f32.mrb[0].mxu0
  %v2506 = vadd.f32 0.0, %v2505
  %v2507 = vpop.f32.mrb[0].mxu0
  %2508 = vmatprep.mubr.bf16.mxu0 0
  %2509 = vmatmul.mubr.bf16.gmra.mrb[0].mxu0 %v2423
  %v2510 = vpop.f32.mrb[0].mxu0
  %v2511 = vadd.f32 0.0, %v2510
  %v2512 = vpop.f32.mrb[0].mxu0
  %v2513 = vpop.f32.mrb[0].mxu0
  %v2514 = vadd.f32 0.0, %v2513
  %v2515 = vpop.f32.mrb[0].mxu0
  %2516 = vmatprep.mubr.bf16.mxu0 0
  %2517 = vmatmul.mubr.bf16.gmra.mrb[0].mxu0 %v2426
  %v2518 = vpop.f32.mrb[0].mxu0
  %v2519 = vadd.f32 0.0, %v2518
  %v2520 = vpop.f32.mrb[0].mxu0
  %v2521 = vpop.f32.mrb[0].mxu0
  %v2522 = vadd.f32 0.0, %v2521
  %v2523 = vpop.f32.mrb[0].mxu0
  %2524 = vdwg.mxu0
  %v2525 = vadd.f32 %v2363, %v2463
  %v2526 = vadd.f32 %v2364, %v2466
  %v2527 = vadd.f32 %v2365, %v2471
  %v2528 = vadd.f32 %v2366, %v2474
  %v2529 = vadd.f32 %v2367, %v2479
  %v2530 = vadd.f32 %v2368, %v2482
  %v2531 = vadd.f32 %v2369, %v2487
  %v2532 = vadd.f32 %v2370, %v2490
  %v2533 = vadd.f32 %v2371, %v2495
  %v2534 = vadd.f32 %v2372, %v2498
  %v2535 = vadd.f32 %v2373, %v2503
  %v2536 = vadd.f32 %v2374, %v2506
  %v2537 = vadd.f32 %v2375, %v2511
  %v2538 = vadd.f32 %v2376, %v2514
  %v2539 = vadd.f32 %v2377, %v2519
  %v2540 = vadd.f32 %v2378, %v2522
  %v2545 = vrot.slane %v1742, 1
  %v2546 = vrot.slane %v1743, 1
  %v2547 = vsel %vm135, %v2545, %v2546
  %v2548 = vrot.slane %v1762, 1
  %v2549 = vrot.slane %v1763, 1
  %v2550 = vsel %vm135, %v2548, %v2549
  %v2553 = vpack.c.bf16 %v1818, %v1815
  %v2554 = vpack.c.bf16 %v1824, %v1821
  %v2555 = vpack.c.bf16 %v1830, %v1827
  %v2556 = vpack.c.bf16 %v2547, %v1833
  %v2557 = vpack.c.bf16 %v1842, %v1839
  %v2558 = vpack.c.bf16 %v1848, %v1845
  %v2559 = vpack.c.bf16 %v1854, %v1851
  %v2560 = vpack.c.bf16 %v2550, %v1857
  %s2561 = scalar_lea.vmem %s6, 64
  %v2562 = vld [vmem:[%s2561] sm:$0xf]
  %v2563 = vld [vmem:[%s2561 + $0x4] sm:$0xf]
  %v2564 = vld [vmem:[%s2561 + $0x8] sm:$0xf]
  %v2565 = vld [vmem:[%s2561 + $0xc] sm:$0xf]
  %v2570 = vunpack.c.l.b16 %v2562
  %v2571 = vunpack.c.l.b16 %v2563
  %v2572 = vunpack.c.l.b16 %v2564
  %v2573 = vunpack.c.l.b16 %v2565
  %v2574 = vpack.c.b16 %v2571, %v2570
  %v2575 = vpack.c.b16 %v2573, %v2572
  %v2579 = vsel %vm1605, %v2553, 0
  %v2582 = vsel %vm1605, %v2554, 0
  %v2585 = vsel %vm1605, %v2555, 0
  %v2588 = vsel %vm1605, %v2556, 0
  %v2591 = vsel %vm1605, %v2557, 0
  %v2594 = vsel %vm1605, %v2558, 0
  %v2597 = vsel %vm1605, %v2559, 0
  %v2600 = vsel %vm1605, %v2560, 0
  %2602 = vmatprep.subr.bf16.mxu0 0
  %2603 = vmatpush1.bf16.msra.mxu0 %v2574
  %2604 = vmatprep.subr.bf16.mxu0 0
  %2605 = vmatpush1.bf16.msra.mxu0 %v2575
  %2606 = vmatprep.subr.bf16.mxu0 0
  %2607 = vmatpush1.bf16.msra.mxu0 0
  %2608 = vmatprep.subr.bf16.mxu0 0
  %2609 = vmatpush1.bf16.msra.mxu0 0
  %2610 = vmatprep.subr.bf16.mxu0 0
  %2611 = vmatpush1.bf16.msra.mxu0 0
  %2612 = vmatprep.subr.bf16.mxu0 0
  %2613 = vmatpush1.bf16.msra.mxu0 0
  %2614 = vmatprep.subr.bf16.mxu0 0
  %2615 = vmatpush1.bf16.msra.mxu0 0
  %2616 = vmatprep.subr.bf16.mxu0 0
  %2617 = vmatpush1.bf16.msra.mxu0 0
  %2618 = vmatprep.subr.bf16.mxu0 0
  %2619 = vmatpush1.bf16.msra.mxu0 0
  %2620 = vmatprep.subr.bf16.mxu0 0
  %2621 = vmatpush1.bf16.msra.mxu0 0
  %2622 = vmatprep.subr.bf16.mxu0 0
  %2623 = vmatpush1.bf16.msra.mxu0 0
  %2624 = vmatprep.subr.bf16.mxu0 0
  %2625 = vmatpush1.bf16.msra.mxu0 0
  %2626 = vmatprep.subr.bf16.mxu0 0
  %2627 = vmatpush1.bf16.msra.mxu0 0
  %2628 = vmatprep.subr.bf16.mxu0 0
  %2629 = vmatpush1.bf16.msra.mxu0 0
  %2630 = vmatprep.subr.bf16.mxu0 0
  %2631 = vmatpush1.bf16.msra.mxu0 0
  %2632 = vmatprep.subr.bf16.mxu0 0
  %2633 = vmatpush1.bf16.msra.mxu0 0
  %2634 = vmatprep.mubr.bf16.mxu0 0
  %2635 = vmatmul.mubr.bf16.gmra.mrb[0].mxu0 %v2579
  %v2636 = vpop.f32.mrb[0].mxu0
  %v2637 = vadd.f32 0.0, %v2636
  %v2638 = vpop.f32.mrb[0].mxu0
  %v2639 = vpop.f32.mrb[0].mxu0
  %v2640 = vadd.f32 0.0, %v2639
  %v2641 = vpop.f32.mrb[0].mxu0
  %2642 = vmatprep.mubr.bf16.mxu0 0
  %2643 = vmatmul.mubr.bf16.gmra.mrb[0].mxu0 %v2582
  %v2644 = vpop.f32.mrb[0].mxu0
  %v2645 = vadd.f32 0.0, %v2644
  %v2646 = vpop.f32.mrb[0].mxu0
  %v2647 = vpop.f32.mrb[0].mxu0
  %v2648 = vadd.f32 0.0, %v2647
  %v2649 = vpop.f32.mrb[0].mxu0
  %2650 = vmatprep.mubr.bf16.mxu0 0
  %2651 = vmatmul.mubr.bf16.gmra.mrb[0].mxu0 %v2585
  %v2652 = vpop.f32.mrb[0].mxu0
  %v2653 = vadd.f32 0.0, %v2652
  %v2654 = vpop.f32.mrb[0].mxu0
  %v2655 = vpop.f32.mrb[0].mxu0
  %v2656 = vadd.f32 0.0, %v2655
  %v2657 = vpop.f32.mrb[0].mxu0
  %2658 = vmatprep.mubr.bf16.mxu0 0
  %2659 = vmatmul.mubr.bf16.gmra.mrb[0].mxu0 %v2588
  %v2660 = vpop.f32.mrb[0].mxu0
  %v2661 = vadd.f32 0.0, %v2660
  %v2662 = vpop.f32.mrb[0].mxu0
  %v2663 = vpop.f32.mrb[0].mxu0
  %v2664 = vadd.f32 0.0, %v2663
  %v2665 = vpop.f32.mrb[0].mxu0
  %2666 = vmatprep.mubr.bf16.mxu0 0
  %2667 = vmatmul.mubr.bf16.gmra.mrb[0].mxu0 %v2591
  %v2668 = vpop.f32.mrb[0].mxu0
  %v2669 = vadd.f32 0.0, %v2668
  %v2670 = vpop.f32.mrb[0].mxu0
  %v2671 = vpop.f32.mrb[0].mxu0
  %v2672 = vadd.f32 0.0, %v2671
  %v2673 = vpop.f32.mrb[0].mxu0
  %2674 = vmatprep.mubr.bf16.mxu0 0
  %2675 = vmatmul.mubr.bf16.gmra.mrb[0].mxu0 %v2594
  %v2676 = vpop.f32.mrb[0].mxu0
  %v2677 = vadd.f32 0.0, %v2676
  %v2678 = vpop.f32.mrb[0].mxu0
  %v2679 = vpop.f32.mrb[0].mxu0
  %v2680 = vadd.f32 0.0, %v2679
  %v2681 = vpop.f32.mrb[0].mxu0
  %2682 = vmatprep.mubr.bf16.mxu0 0
  %2683 = vmatmul.mubr.bf16.gmra.mrb[0].mxu0 %v2597
  %v2684 = vpop.f32.mrb[0].mxu0
  %v2685 = vadd.f32 0.0, %v2684
  %v2686 = vpop.f32.mrb[0].mxu0
  %v2687 = vpop.f32.mrb[0].mxu0
  %v2688 = vadd.f32 0.0, %v2687
  %v2689 = vpop.f32.mrb[0].mxu0
  %2690 = vmatprep.mubr.bf16.mxu0 0
  %2691 = vmatmul.mubr.bf16.gmra.mrb[0].mxu0 %v2600
  %v2692 = vpop.f32.mrb[0].mxu0
  %v2693 = vadd.f32 0.0, %v2692
  %v2694 = vpop.f32.mrb[0].mxu0
  %v2695 = vpop.f32.mrb[0].mxu0
  %v2696 = vadd.f32 0.0, %v2695
  %v2697 = vpop.f32.mrb[0].mxu0
  %2698 = vdwg.mxu0
  %v2699 = vadd.f32 %v2525, %v2637
  %v2700 = vadd.f32 %v2526, %v2640
  %v2701 = vadd.f32 %v2527, %v2645
  %v2702 = vadd.f32 %v2528, %v2648
  %v2703 = vadd.f32 %v2529, %v2653
  %v2704 = vadd.f32 %v2530, %v2656
  %v2705 = vadd.f32 %v2531, %v2661
  %v2706 = vadd.f32 %v2532, %v2664
  %v2707 = vadd.f32 %v2533, %v2669
  %v2708 = vadd.f32 %v2534, %v2672
  %v2709 = vadd.f32 %v2535, %v2677
  %v2710 = vadd.f32 %v2536, %v2680
  %v2711 = vadd.f32 %v2537, %v2685
  %v2712 = vadd.f32 %v2538, %v2688
  %v2713 = vadd.f32 %v2539, %v2693
  %v2714 = vadd.f32 %v2540, %v2696
  %v2715 = vrot.slane %v1742, 2
  %v2716 = vrot.slane %v1743, 2
  %v2717 = vsel %vm460, %v2715, %v2716
  %v2718 = vrot.slane %v1762, 2
  %v2719 = vrot.slane %v1763, 2
  %v2720 = vsel %vm460, %v2718, %v2719
  %v2723 = vpack.c.bf16 %v2161, %v2158
  %v2724 = vpack.c.bf16 %v2167, %v2164
  %v2725 = vpack.c.bf16 %v2173, %v2170
  %v2726 = vpack.c.bf16 %v2717, %v2176
  %v2727 = vpack.c.bf16 %v2185, %v2182
  %v2728 = vpack.c.bf16 %v2191, %v2188
  %v2729 = vpack.c.bf16 %v2197, %v2194
  %v2730 = vpack.c.bf16 %v2720, %v2200
  %s2731 = scalar_lea.vmem %s6, 80
  %v2732 = vld [vmem:[%s2731] sm:$0xf]
  %v2733 = vld [vmem:[%s2731 + $0x4] sm:$0xf]
  %v2734 = vld [vmem:[%s2731 + $0x8] sm:$0xf]
  %v2735 = vld [vmem:[%s2731 + $0xc] sm:$0xf]
  %v2740 = vunpack.c.l.b16 %v2732
  %v2741 = vunpack.c.l.b16 %v2733
  %v2742 = vunpack.c.l.b16 %v2734
  %v2743 = vunpack.c.l.b16 %v2735
  %v2744 = vpack.c.b16 %v2741, %v2740
  %v2745 = vpack.c.b16 %v2743, %v2742
  %v2749 = vsel %vm1605, %v2723, 0
  %v2752 = vsel %vm1605, %v2724, 0
  %v2755 = vsel %vm1605, %v2725, 0
  %v2758 = vsel %vm1605, %v2726, 0
  %v2761 = vsel %vm1605, %v2727, 0
  %v2764 = vsel %vm1605, %v2728, 0
  %v2767 = vsel %vm1605, %v2729, 0
  %v2770 = vsel %vm1605, %v2730, 0
  %2772 = vmatprep.subr.bf16.mxu0 0
  %2773 = vmatpush1.bf16.msra.mxu0 %v2744
  %2774 = vmatprep.subr.bf16.mxu0 0
  %2775 = vmatpush1.bf16.msra.mxu0 %v2745
  %2776 = vmatprep.subr.bf16.mxu0 0
  %2777 = vmatpush1.bf16.msra.mxu0 0
  %2778 = vmatprep.subr.bf16.mxu0 0
  %2779 = vmatpush1.bf16.msra.mxu0 0
  %2780 = vmatprep.subr.bf16.mxu0 0
  %2781 = vmatpush1.bf16.msra.mxu0 0
  %2782 = vmatprep.subr.bf16.mxu0 0
  %2783 = vmatpush1.bf16.msra.mxu0 0
  %2784 = vmatprep.subr.bf16.mxu0 0
  %2785 = vmatpush1.bf16.msra.mxu0 0
  %2786 = vmatprep.subr.bf16.mxu0 0
  %2787 = vmatpush1.bf16.msra.mxu0 0
  %2788 = vmatprep.subr.bf16.mxu0 0
  %2789 = vmatpush1.bf16.msra.mxu0 0
  %2790 = vmatprep.subr.bf16.mxu0 0
  %2791 = vmatpush1.bf16.msra.mxu0 0
  %2792 = vmatprep.subr.bf16.mxu0 0
  %2793 = vmatpush1.bf16.msra.mxu0 0
  %2794 = vmatprep.subr.bf16.mxu0 0
  %2795 = vmatpush1.bf16.msra.mxu0 0
  %2796 = vmatprep.subr.bf16.mxu0 0
  %2797 = vmatpush1.bf16.msra.mxu0 0
  %2798 = vmatprep.subr.bf16.mxu0 0
  %2799 = vmatpush1.bf16.msra.mxu0 0
  %2800 = vmatprep.subr.bf16.mxu0 0
  %2801 = vmatpush1.bf16.msra.mxu0 0
  %2802 = vmatprep.subr.bf16.mxu0 0
  %2803 = vmatpush1.bf16.msra.mxu0 0
  %2804 = vmatprep.mubr.bf16.mxu0 0
  %2805 = vmatmul.mubr.bf16.gmra.mrb[0].mxu0 %v2749
  %v2806 = vpop.f32.mrb[0].mxu0
  %v2807 = vadd.f32 0.0, %v2806
  %v2808 = vpop.f32.mrb[0].mxu0
  %v2809 = vpop.f32.mrb[0].mxu0
  %v2810 = vadd.f32 0.0, %v2809
  %v2811 = vpop.f32.mrb[0].mxu0
  %2812 = vmatprep.mubr.bf16.mxu0 0
  %2813 = vmatmul.mubr.bf16.gmra.mrb[0].mxu0 %v2752
  %v2814 = vpop.f32.mrb[0].mxu0
  %v2815 = vadd.f32 0.0, %v2814
  %v2816 = vpop.f32.mrb[0].mxu0
  %v2817 = vpop.f32.mrb[0].mxu0
  %v2818 = vadd.f32 0.0, %v2817
  %v2819 = vpop.f32.mrb[0].mxu0
  %2820 = vmatprep.mubr.bf16.mxu0 0
  %2821 = vmatmul.mubr.bf16.gmra.mrb[0].mxu0 %v2755
  %v2822 = vpop.f32.mrb[0].mxu0
  %v2823 = vadd.f32 0.0, %v2822
  %v2824 = vpop.f32.mrb[0].mxu0
  %v2825 = vpop.f32.mrb[0].mxu0
  %v2826 = vadd.f32 0.0, %v2825
  %v2827 = vpop.f32.mrb[0].mxu0
  %2828 = vmatprep.mubr.bf16.mxu0 0
  %2829 = vmatmul.mubr.bf16.gmra.mrb[0].mxu0 %v2758
  %v2830 = vpop.f32.mrb[0].mxu0
  %v2831 = vadd.f32 0.0, %v2830
  %v2832 = vpop.f32.mrb[0].mxu0
  %v2833 = vpop.f32.mrb[0].mxu0
  %v2834 = vadd.f32 0.0, %v2833
  %v2835 = vpop.f32.mrb[0].mxu0
  %2836 = vmatprep.mubr.bf16.mxu0 0
  %2837 = vmatmul.mubr.bf16.gmra.mrb[0].mxu0 %v2761
  %v2838 = vpop.f32.mrb[0].mxu0
  %v2839 = vadd.f32 0.0, %v2838
  %v2840 = vpop.f32.mrb[0].mxu0
  %v2841 = vpop.f32.mrb[0].mxu0
  %v2842 = vadd.f32 0.0, %v2841
  %v2843 = vpop.f32.mrb[0].mxu0
  %2844 = vmatprep.mubr.bf16.mxu0 0
  %2845 = vmatmul.mubr.bf16.gmra.mrb[0].mxu0 %v2764
  %v2846 = vpop.f32.mrb[0].mxu0
  %v2847 = vadd.f32 0.0, %v2846
  %v2848 = vpop.f32.mrb[0].mxu0
  %v2849 = vpop.f32.mrb[0].mxu0
  %v2850 = vadd.f32 0.0, %v2849
  %v2851 = vpop.f32.mrb[0].mxu0
  %2852 = vmatprep.mubr.bf16.mxu0 0
  %2853 = vmatmul.mubr.bf16.gmra.mrb[0].mxu0 %v2767
  %v2854 = vpop.f32.mrb[0].mxu0
  %v2855 = vadd.f32 0.0, %v2854
  %v2856 = vpop.f32.mrb[0].mxu0
  %v2857 = vpop.f32.mrb[0].mxu0
  %v2858 = vadd.f32 0.0, %v2857
  %v2859 = vpop.f32.mrb[0].mxu0
  %2860 = vmatprep.mubr.bf16.mxu0 0
  %2861 = vmatmul.mubr.bf16.gmra.mrb[0].mxu0 %v2770
  %v2862 = vpop.f32.mrb[0].mxu0
  %v2863 = vadd.f32 0.0, %v2862
  %v2864 = vpop.f32.mrb[0].mxu0
  %v2865 = vpop.f32.mrb[0].mxu0
  %v2866 = vadd.f32 0.0, %v2865
  %v2867 = vpop.f32.mrb[0].mxu0
  %2868 = vdwg.mxu0
  %v2869 = vadd.f32 %v2699, %v2807
  %v2870 = vadd.f32 %v2700, %v2810
  %v2871 = vadd.f32 %v2701, %v2815
  %v2872 = vadd.f32 %v2702, %v2818
  %v2873 = vadd.f32 %v2703, %v2823
  %v2874 = vadd.f32 %v2704, %v2826
  %v2875 = vadd.f32 %v2705, %v2831
  %v2876 = vadd.f32 %v2706, %v2834
  %v2877 = vadd.f32 %v2707, %v2839
  %v2878 = vadd.f32 %v2708, %v2842
  %v2879 = vadd.f32 %v2709, %v2847
  %v2880 = vadd.f32 %v2710, %v2850
  %v2881 = vadd.f32 %v2711, %v2855
  %v2882 = vadd.f32 %v2712, %v2858
  %v2883 = vadd.f32 %v2713, %v2863
  %v2884 = vadd.f32 %v2714, %v2866
  %v2885 = vpack.c.bf16 %v1744, %v1742
  %v2886 = vpack.c.bf16 %v1764, %v1762
  %s2887 = scalar_lea.vmem %s6, 96
  %v2888 = vld [vmem:[%s2887] sm:$0xf]
  %v2889 = vld [vmem:[%s2887 + $0x4] sm:$0xf]
  %v2890 = vld [vmem:[%s2887 + $0x8] sm:$0xf]
  %v2891 = vld [vmem:[%s2887 + $0xc] sm:$0xf]
  %v2896 = vunpack.c.l.b16 %v2888
  %v2897 = vunpack.c.l.b16 %v2889
  %v2898 = vunpack.c.l.b16 %v2890
  %v2899 = vunpack.c.l.b16 %v2891
  %v2900 = vpack.c.b16 %v2897, %v2896
  %v2901 = vpack.c.b16 %v2899, %v2898
  %v2905 = vsel %vm1605, %v2885, 0
  %v2908 = vsel %vm1605, %v2886, 0
  %2910 = vmatprep.subr.bf16.mxu0 0
  %2911 = vmatpush1.bf16.msra.mxu0 %v2900
  %2912 = vmatprep.subr.bf16.mxu0 0
  %2913 = vmatpush1.bf16.msra.mxu0 %v2901
  %2914 = vmatprep.subr.bf16.mxu0 0
  %2915 = vmatpush1.bf16.msra.mxu0 0
  %2916 = vmatprep.subr.bf16.mxu0 0
  %2917 = vmatpush1.bf16.msra.mxu0 0
  %2918 = vmatprep.subr.bf16.mxu0 0
  %2919 = vmatpush1.bf16.msra.mxu0 0
  %2920 = vmatprep.subr.bf16.mxu0 0
  %2921 = vmatpush1.bf16.msra.mxu0 0
  %2922 = vmatprep.subr.bf16.mxu0 0
  %2923 = vmatpush1.bf16.msra.mxu0 0
  %2924 = vmatprep.subr.bf16.mxu0 0
  %2925 = vmatpush1.bf16.msra.mxu0 0
  %2926 = vmatprep.subr.bf16.mxu0 0
  %2927 = vmatpush1.bf16.msra.mxu0 0
  %2928 = vmatprep.subr.bf16.mxu0 0
  %2929 = vmatpush1.bf16.msra.mxu0 0
  %2930 = vmatprep.subr.bf16.mxu0 0
  %2931 = vmatpush1.bf16.msra.mxu0 0
  %2932 = vmatprep.subr.bf16.mxu0 0
  %2933 = vmatpush1.bf16.msra.mxu0 0
  %2934 = vmatprep.subr.bf16.mxu0 0
  %2935 = vmatpush1.bf16.msra.mxu0 0
  %2936 = vmatprep.subr.bf16.mxu0 0
  %2937 = vmatpush1.bf16.msra.mxu0 0
  %2938 = vmatprep.subr.bf16.mxu0 0
  %2939 = vmatpush1.bf16.msra.mxu0 0
  %2940 = vmatprep.subr.bf16.mxu0 0
  %2941 = vmatpush1.bf16.msra.mxu0 0
  %2942 = vmatprep.mubr.bf16.mxu0 0
  %2943 = vmatmul.mubr.bf16.gmra.mrb[0].mxu0 %v2036
  %v2944 = vpop.f32.mrb[0].mxu0
  %v2945 = vadd.f32 0.0, %v2944
  %v2946 = vpop.f32.mrb[0].mxu0
  %v2947 = vpop.f32.mrb[0].mxu0
  %v2948 = vadd.f32 0.0, %v2947
  %v2949 = vpop.f32.mrb[0].mxu0
  %2950 = vmatprep.mubr.bf16.mxu0 0
  %2951 = vmatmul.mubr.bf16.gmra.mrb[0].mxu0 %v2039
  %v2952 = vpop.f32.mrb[0].mxu0
  %v2953 = vadd.f32 0.0, %v2952
  %v2954 = vpop.f32.mrb[0].mxu0
  %v2955 = vpop.f32.mrb[0].mxu0
  %v2956 = vadd.f32 0.0, %v2955
  %v2957 = vpop.f32.mrb[0].mxu0
  %2958 = vmatprep.mubr.bf16.mxu0 0
  %2959 = vmatmul.mubr.bf16.gmra.mrb[0].mxu0 %v2042
  %v2960 = vpop.f32.mrb[0].mxu0
  %v2961 = vadd.f32 0.0, %v2960
  %v2962 = vpop.f32.mrb[0].mxu0
  %v2963 = vpop.f32.mrb[0].mxu0
  %v2964 = vadd.f32 0.0, %v2963
  %v2965 = vpop.f32.mrb[0].mxu0
  %2966 = vmatprep.mubr.bf16.mxu0 0
  %2967 = vmatmul.mubr.bf16.gmra.mrb[0].mxu0 %v2905
  %v2968 = vpop.f32.mrb[0].mxu0
  %v2969 = vadd.f32 0.0, %v2968
  %v2970 = vpop.f32.mrb[0].mxu0
  %v2971 = vpop.f32.mrb[0].mxu0
  %v2972 = vadd.f32 0.0, %v2971
  %v2973 = vpop.f32.mrb[0].mxu0
  %2974 = vmatprep.mubr.bf16.mxu0 0
  %2975 = vmatmul.mubr.bf16.gmra.mrb[0].mxu0 %v2048
  %v2976 = vpop.f32.mrb[0].mxu0
  %v2977 = vadd.f32 0.0, %v2976
  %v2978 = vpop.f32.mrb[0].mxu0
  %v2979 = vpop.f32.mrb[0].mxu0
  %v2980 = vadd.f32 0.0, %v2979
  %v2981 = vpop.f32.mrb[0].mxu0
  %2982 = vmatprep.mubr.bf16.mxu0 0
  %2983 = vmatmul.mubr.bf16.gmra.mrb[0].mxu0 %v2051
  %v2984 = vpop.f32.mrb[0].mxu0
  %v2985 = vadd.f32 0.0, %v2984
  %v2986 = vpop.f32.mrb[0].mxu0
  %v2987 = vpop.f32.mrb[0].mxu0
  %v2988 = vadd.f32 0.0, %v2987
  %v2989 = vpop.f32.mrb[0].mxu0
  %2990 = vmatprep.mubr.bf16.mxu0 0
  %2991 = vmatmul.mubr.bf16.gmra.mrb[0].mxu0 %v2054
  %v2992 = vpop.f32.mrb[0].mxu0
  %v2993 = vadd.f32 0.0, %v2992
  %v2994 = vpop.f32.mrb[0].mxu0
  %v2995 = vpop.f32.mrb[0].mxu0
  %v2996 = vadd.f32 0.0, %v2995
  %v2997 = vpop.f32.mrb[0].mxu0
  %2998 = vmatprep.mubr.bf16.mxu0 0
  %2999 = vmatmul.mubr.bf16.gmra.mrb[0].mxu0 %v2908
  %v3000 = vpop.f32.mrb[0].mxu0
  %v3001 = vadd.f32 0.0, %v3000
  %v3002 = vpop.f32.mrb[0].mxu0
  %v3003 = vpop.f32.mrb[0].mxu0
  %v3004 = vadd.f32 0.0, %v3003
  %v3005 = vpop.f32.mrb[0].mxu0
  %3006 = vdwg.mxu0
  %v3007 = vadd.f32 %v2869, %v2945
  %v3008 = vadd.f32 %v2870, %v2948
  %v3009 = vadd.f32 %v2871, %v2953
  %v3010 = vadd.f32 %v2872, %v2956
  %v3011 = vadd.f32 %v2873, %v2961
  %v3012 = vadd.f32 %v2874, %v2964
  %v3013 = vadd.f32 %v2875, %v2969
  %v3014 = vadd.f32 %v2876, %v2972
  %v3015 = vadd.f32 %v2877, %v2977
  %v3016 = vadd.f32 %v2878, %v2980
  %v3017 = vadd.f32 %v2879, %v2985
  %v3018 = vadd.f32 %v2880, %v2988
  %v3019 = vadd.f32 %v2881, %v2993
  %v3020 = vadd.f32 %v2882, %v2996
  %v3021 = vadd.f32 %v2883, %v3001
  %v3022 = vadd.f32 %v2884, %v3004
  %v3027 = vrot.slane %v1744, 1
  %v3028 = vrot.slane %v1745, 1
  %v3029 = vsel %vm135, %v3027, %v3028
  %v3030 = vrot.slane %v1764, 1
  %v3031 = vrot.slane %v1765, 1
  %v3032 = vsel %vm135, %v3030, %v3031
  %v3035 = vpack.c.bf16 %v3029, %v2547
  %v3036 = vpack.c.bf16 %v3032, %v2550
  %s3037 = scalar_lea.vmem %s6, 112
  %v3038 = vld [vmem:[%s3037] sm:$0xf]
  %v3039 = vld [vmem:[%s3037 + $0x4] sm:$0xf]
  %v3040 = vld [vmem:[%s3037 + $0x8] sm:$0xf]
  %v3041 = vld [vmem:[%s3037 + $0xc] sm:$0xf]
  %v3046 = vunpack.c.l.b16 %v3038
  %v3047 = vunpack.c.l.b16 %v3039
  %v3048 = vunpack.c.l.b16 %v3040
  %v3049 = vunpack.c.l.b16 %v3041
  %v3050 = vpack.c.b16 %v3047, %v3046
  %v3051 = vpack.c.b16 %v3049, %v3048
  %v3055 = vsel %vm1605, %v3035, 0
  %v3058 = vsel %vm1605, %v3036, 0
  %3060 = vmatprep.subr.bf16.mxu0 0
  %3061 = vmatpush1.bf16.msra.mxu0 %v3050
  %3062 = vmatprep.subr.bf16.mxu0 0
  %3063 = vmatpush1.bf16.msra.mxu0 %v3051
  %3064 = vmatprep.subr.bf16.mxu0 0
  %3065 = vmatpush1.bf16.msra.mxu0 0
  %3066 = vmatprep.subr.bf16.mxu0 0
  %3067 = vmatpush1.bf16.msra.mxu0 0
  %3068 = vmatprep.subr.bf16.mxu0 0
  %3069 = vmatpush1.bf16.msra.mxu0 0
  %3070 = vmatprep.subr.bf16.mxu0 0
  %3071 = vmatpush1.bf16.msra.mxu0 0
  %3072 = vmatprep.subr.bf16.mxu0 0
  %3073 = vmatpush1.bf16.msra.mxu0 0
  %3074 = vmatprep.subr.bf16.mxu0 0
  %3075 = vmatpush1.bf16.msra.mxu0 0
  %3076 = vmatprep.subr.bf16.mxu0 0
  %3077 = vmatpush1.bf16.msra.mxu0 0
  %3078 = vmatprep.subr.bf16.mxu0 0
  %3079 = vmatpush1.bf16.msra.mxu0 0
  %3080 = vmatprep.subr.bf16.mxu0 0
  %3081 = vmatpush1.bf16.msra.mxu0 0
  %3082 = vmatprep.subr.bf16.mxu0 0
  %3083 = vmatpush1.bf16.msra.mxu0 0
  %3084 = vmatprep.subr.bf16.mxu0 0
  %3085 = vmatpush1.bf16.msra.mxu0 0
  %3086 = vmatprep.subr.bf16.mxu0 0
  %3087 = vmatpush1.bf16.msra.mxu0 0
  %3088 = vmatprep.subr.bf16.mxu0 0
  %3089 = vmatpush1.bf16.msra.mxu0 0
  %3090 = vmatprep.subr.bf16.mxu0 0
  %3091 = vmatpush1.bf16.msra.mxu0 0
  %3092 = vmatprep.mubr.bf16.mxu0 0
  %3093 = vmatmul.mubr.bf16.gmra.mrb[0].mxu0 %v1903
  %v3094 = vpop.f32.mrb[0].mxu0
  %v3095 = vadd.f32 0.0, %v3094
  %v3096 = vpop.f32.mrb[0].mxu0
  %v3097 = vpop.f32.mrb[0].mxu0
  %v3098 = vadd.f32 0.0, %v3097
  %v3099 = vpop.f32.mrb[0].mxu0
  %3100 = vmatprep.mubr.bf16.mxu0 0
  %3101 = vmatmul.mubr.bf16.gmra.mrb[0].mxu0 %v1906
  %v3102 = vpop.f32.mrb[0].mxu0
  %v3103 = vadd.f32 0.0, %v3102
  %v3104 = vpop.f32.mrb[0].mxu0
  %v3105 = vpop.f32.mrb[0].mxu0
  %v3106 = vadd.f32 0.0, %v3105
  %v3107 = vpop.f32.mrb[0].mxu0
  %3108 = vmatprep.mubr.bf16.mxu0 0
  %3109 = vmatmul.mubr.bf16.gmra.mrb[0].mxu0 %v1909
  %v3110 = vpop.f32.mrb[0].mxu0
  %v3111 = vadd.f32 0.0, %v3110
  %v3112 = vpop.f32.mrb[0].mxu0
  %v3113 = vpop.f32.mrb[0].mxu0
  %v3114 = vadd.f32 0.0, %v3113
  %v3115 = vpop.f32.mrb[0].mxu0
  %3116 = vmatprep.mubr.bf16.mxu0 0
  %3117 = vmatmul.mubr.bf16.gmra.mrb[0].mxu0 %v3055
  %v3118 = vpop.f32.mrb[0].mxu0
  %v3119 = vadd.f32 0.0, %v3118
  %v3120 = vpop.f32.mrb[0].mxu0
  %v3121 = vpop.f32.mrb[0].mxu0
  %v3122 = vadd.f32 0.0, %v3121
  %v3123 = vpop.f32.mrb[0].mxu0
  %3124 = vmatprep.mubr.bf16.mxu0 0
  %3125 = vmatmul.mubr.bf16.gmra.mrb[0].mxu0 %v1915
  %v3126 = vpop.f32.mrb[0].mxu0
  %v3127 = vadd.f32 0.0, %v3126
  %v3128 = vpop.f32.mrb[0].mxu0
  %v3129 = vpop.f32.mrb[0].mxu0
  %v3130 = vadd.f32 0.0, %v3129
  %v3131 = vpop.f32.mrb[0].mxu0
  %3132 = vmatprep.mubr.bf16.mxu0 0
  %3133 = vmatmul.mubr.bf16.gmra.mrb[0].mxu0 %v1918
  %v3134 = vpop.f32.mrb[0].mxu0
  %v3135 = vadd.f32 0.0, %v3134
  %v3136 = vpop.f32.mrb[0].mxu0
  %v3137 = vpop.f32.mrb[0].mxu0
  %v3138 = vadd.f32 0.0, %v3137
  %v3139 = vpop.f32.mrb[0].mxu0
  %3140 = vmatprep.mubr.bf16.mxu0 0
  %3141 = vmatmul.mubr.bf16.gmra.mrb[0].mxu0 %v1921
  %v3142 = vpop.f32.mrb[0].mxu0
  %v3143 = vadd.f32 0.0, %v3142
  %v3144 = vpop.f32.mrb[0].mxu0
  %v3145 = vpop.f32.mrb[0].mxu0
  %v3146 = vadd.f32 0.0, %v3145
  %v3147 = vpop.f32.mrb[0].mxu0
  %3148 = vmatprep.mubr.bf16.mxu0 0
  %3149 = vmatmul.mubr.bf16.gmra.mrb[0].mxu0 %v3058
  %v3150 = vpop.f32.mrb[0].mxu0
  %v3151 = vadd.f32 0.0, %v3150
  %v3152 = vpop.f32.mrb[0].mxu0
  %v3153 = vpop.f32.mrb[0].mxu0
  %v3154 = vadd.f32 0.0, %v3153
  %v3155 = vpop.f32.mrb[0].mxu0
  %3156 = vdwg.mxu0
  %v3157 = vadd.f32 %v3007, %v3095
  %v3158 = vadd.f32 %v3008, %v3098
  %v3159 = vadd.f32 %v3009, %v3103
  %v3160 = vadd.f32 %v3010, %v3106
  %v3161 = vadd.f32 %v3011, %v3111
  %v3162 = vadd.f32 %v3012, %v3114
  %v3163 = vadd.f32 %v3013, %v3119
  %v3164 = vadd.f32 %v3014, %v3122
  %v3165 = vadd.f32 %v3015, %v3127
  %v3166 = vadd.f32 %v3016, %v3130
  %v3167 = vadd.f32 %v3017, %v3135
  %v3168 = vadd.f32 %v3018, %v3138
  %v3169 = vadd.f32 %v3019, %v3143
  %v3170 = vadd.f32 %v3020, %v3146
  %v3171 = vadd.f32 %v3021, %v3151
  %v3172 = vadd.f32 %v3022, %v3154
  %v3173 = vrot.slane %v1744, 2
  %v3174 = vrot.slane %v1745, 2
  %v3175 = vsel %vm460, %v3173, %v3174
  %v3176 = vrot.slane %v1764, 2
  %v3177 = vrot.slane %v1765, 2
  %v3178 = vsel %vm460, %v3176, %v3177
  %v3181 = vpack.c.bf16 %v3175, %v2717
  %v3182 = vpack.c.bf16 %v3178, %v2720
  %s3183 = scalar_lea.vmem %s6, 128
  %v3184 = vld [vmem:[%s3183] sm:$0xf]
  %v3185 = vld [vmem:[%s3183 + $0x4] sm:$0xf]
  %v3186 = vld [vmem:[%s3183 + $0x8] sm:$0xf]
  %v3187 = vld [vmem:[%s3183 + $0xc] sm:$0xf]
  %v3192 = vunpack.c.l.b16 %v3184
  %v3193 = vunpack.c.l.b16 %v3185
  %v3194 = vunpack.c.l.b16 %v3186
  %v3195 = vunpack.c.l.b16 %v3187
  %v3196 = vpack.c.b16 %v3193, %v3192
  %v3197 = vpack.c.b16 %v3195, %v3194
  %v3201 = vsel %vm1605, %v3181, 0
  %v3204 = vsel %vm1605, %v3182, 0
  %3206 = vmatprep.subr.bf16.mxu0 0
  %3207 = vmatpush1.bf16.msra.mxu0 %v3196
  %3208 = vmatprep.subr.bf16.mxu0 0
  %3209 = vmatpush1.bf16.msra.mxu0 %v3197
  %3210 = vmatprep.subr.bf16.mxu0 0
  %3211 = vmatpush1.bf16.msra.mxu0 0
  %3212 = vmatprep.subr.bf16.mxu0 0
  %3213 = vmatpush1.bf16.msra.mxu0 0
  %3214 = vmatprep.subr.bf16.mxu0 0
  %3215 = vmatpush1.bf16.msra.mxu0 0
  %3216 = vmatprep.subr.bf16.mxu0 0
  %3217 = vmatpush1.bf16.msra.mxu0 0
  %3218 = vmatprep.subr.bf16.mxu0 0
  %3219 = vmatpush1.bf16.msra.mxu0 0
  %3220 = vmatprep.subr.bf16.mxu0 0
  %3221 = vmatpush1.bf16.msra.mxu0 0
  %3222 = vmatprep.subr.bf16.mxu0 0
  %3223 = vmatpush1.bf16.msra.mxu0 0
  %3224 = vmatprep.subr.bf16.mxu0 0
  %3225 = vmatpush1.bf16.msra.mxu0 0
  %3226 = vmatprep.subr.bf16.mxu0 0
  %3227 = vmatpush1.bf16.msra.mxu0 0
  %3228 = vmatprep.subr.bf16.mxu0 0
  %3229 = vmatpush1.bf16.msra.mxu0 0
  %3230 = vmatprep.subr.bf16.mxu0 0
  %3231 = vmatpush1.bf16.msra.mxu0 0
  %3232 = vmatprep.subr.bf16.mxu0 0
  %3233 = vmatpush1.bf16.msra.mxu0 0
  %3234 = vmatprep.subr.bf16.mxu0 0
  %3235 = vmatpush1.bf16.msra.mxu0 0
  %3236 = vmatprep.subr.bf16.mxu0 0
  %3237 = vmatpush1.bf16.msra.mxu0 0
  %3238 = vmatprep.mubr.bf16.mxu0 0
  %3239 = vmatmul.mubr.bf16.gmra.mrb[0].mxu0 %v2246
  %v3240 = vpop.f32.mrb[0].mxu0
  %v3241 = vadd.f32 0.0, %v3240
  %v3242 = vpop.f32.mrb[0].mxu0
  %v3243 = vpop.f32.mrb[0].mxu0
  %v3244 = vadd.f32 0.0, %v3243
  %v3245 = vpop.f32.mrb[0].mxu0
  %3246 = vmatprep.mubr.bf16.mxu0 0
  %3247 = vmatmul.mubr.bf16.gmra.mrb[0].mxu0 %v2249
  %v3248 = vpop.f32.mrb[0].mxu0
  %v3249 = vadd.f32 0.0, %v3248
  %v3250 = vpop.f32.mrb[0].mxu0
  %v3251 = vpop.f32.mrb[0].mxu0
  %v3252 = vadd.f32 0.0, %v3251
  %v3253 = vpop.f32.mrb[0].mxu0
  %3254 = vmatprep.mubr.bf16.mxu0 0
  %3255 = vmatmul.mubr.bf16.gmra.mrb[0].mxu0 %v2252
  %v3256 = vpop.f32.mrb[0].mxu0
  %v3257 = vadd.f32 0.0, %v3256
  %v3258 = vpop.f32.mrb[0].mxu0
  %v3259 = vpop.f32.mrb[0].mxu0
  %v3260 = vadd.f32 0.0, %v3259
  %v3261 = vpop.f32.mrb[0].mxu0
  %3262 = vmatprep.mubr.bf16.mxu0 0
  %3263 = vmatmul.mubr.bf16.gmra.mrb[0].mxu0 %v3201
  %v3264 = vpop.f32.mrb[0].mxu0
  %v3265 = vadd.f32 0.0, %v3264
  %v3266 = vpop.f32.mrb[0].mxu0
  %v3267 = vpop.f32.mrb[0].mxu0
  %v3268 = vadd.f32 0.0, %v3267
  %v3269 = vpop.f32.mrb[0].mxu0
  %3270 = vmatprep.mubr.bf16.mxu0 0
  %3271 = vmatmul.mubr.bf16.gmra.mrb[0].mxu0 %v2258
  %v3272 = vpop.f32.mrb[0].mxu0
  %v3273 = vadd.f32 0.0, %v3272
  %v3274 = vpop.f32.mrb[0].mxu0
  %v3275 = vpop.f32.mrb[0].mxu0
  %v3276 = vadd.f32 0.0, %v3275
  %v3277 = vpop.f32.mrb[0].mxu0
  %3278 = vmatprep.mubr.bf16.mxu0 0
  %3279 = vmatmul.mubr.bf16.gmra.mrb[0].mxu0 %v2261
  %v3280 = vpop.f32.mrb[0].mxu0
  %v3281 = vadd.f32 0.0, %v3280
  %v3282 = vpop.f32.mrb[0].mxu0
  %v3283 = vpop.f32.mrb[0].mxu0
  %v3284 = vadd.f32 0.0, %v3283
  %v3285 = vpop.f32.mrb[0].mxu0
  %3286 = vmatprep.mubr.bf16.mxu0 0
  %3287 = vmatmul.mubr.bf16.gmra.mrb[0].mxu0 %v2264
  %v3288 = vpop.f32.mrb[0].mxu0
  %v3289 = vadd.f32 0.0, %v3288
  %v3290 = vpop.f32.mrb[0].mxu0
  %v3291 = vpop.f32.mrb[0].mxu0
  %v3292 = vadd.f32 0.0, %v3291
  %v3293 = vpop.f32.mrb[0].mxu0
  %3294 = vmatprep.mubr.bf16.mxu0 0
  %3295 = vmatmul.mubr.bf16.gmra.mrb[0].mxu0 %v3204
  %v3296 = vpop.f32.mrb[0].mxu0
  %v3297 = vadd.f32 0.0, %v3296
  %v3298 = vpop.f32.mrb[0].mxu0
  %v3299 = vpop.f32.mrb[0].mxu0
  %v3300 = vadd.f32 0.0, %v3299
  %v3301 = vpop.f32.mrb[0].mxu0
  %3302 = vdwg.mxu0
  %v3303 = vadd.f32 %v3157, %v3241
  %v3304 = vadd.f32 %v3158, %v3244
  %v3305 = vadd.f32 %v3159, %v3249
  %v3306 = vadd.f32 %v3160, %v3252
  %v3307 = vadd.f32 %v3161, %v3257
  %v3308 = vadd.f32 %v3162, %v3260
  %v3309 = vadd.f32 %v3163, %v3265
  %v3310 = vadd.f32 %v3164, %v3268
  %v3311 = vadd.f32 %v3165, %v3273
  %v3312 = vadd.f32 %v3166, %v3276
  %v3313 = vadd.f32 %v3167, %v3281
  %v3314 = vadd.f32 %v3168, %v3284
  %v3315 = vadd.f32 %v3169, %v3289
  %v3316 = vadd.f32 %v3170, %v3292
  %v3317 = vadd.f32 %v3171, %v3297
  %v3318 = vadd.f32 %v3172, %v3300
  %v3319 = vld [vmem:[%s7] sm:$0x1]
  %v3321 = vlaneseq
  %v3322 = vshrl.u32 %v3321, 7
  %v3323 = vsub.s32 0, %v3322
  %v3324 = vrot.slane %v3319, %v3323
  %v3326 = vmul.f32 %v3303, %v3324
  %v3327 = vmul.f32 %v3304, %v3324
  %v3328 = vmul.f32 %v3305, %v3324
  %v3329 = vmul.f32 %v3306, %v3324
  %v3330 = vmul.f32 %v3307, %v3324
  %v3331 = vmul.f32 %v3308, %v3324
  %v3332 = vmul.f32 %v3309, %v3324
  %v3333 = vmul.f32 %v3310, %v3324
  %v3334 = vmul.f32 %v3311, %v3324
  %v3335 = vmul.f32 %v3312, %v3324
  %v3336 = vmul.f32 %v3313, %v3324
  %v3337 = vmul.f32 %v3314, %v3324
  %v3338 = vmul.f32 %v3315, %v3324
  %v3339 = vmul.f32 %v3316, %v3324
  %v3340 = vmul.f32 %v3317, %v3324
  %v3341 = vmul.f32 %v3318, %v3324
  %v3342 = vld [vmem:[%s8] sm:$0x1]
  %v3344 = vlaneseq
  %v3345 = vshrl.u32 %v3344, 7
  %v3346 = vsub.s32 0, %v3345
  %v3347 = vrot.slane %v3342, %v3346
  %v3349 = vadd.f32 %v3326, %v3347
  %v3350 = vadd.f32 %v3327, %v3347
  %v3351 = vadd.f32 %v3328, %v3347
  %v3352 = vadd.f32 %v3329, %v3347
  %v3353 = vadd.f32 %v3330, %v3347
  %v3354 = vadd.f32 %v3331, %v3347
  %v3355 = vadd.f32 %v3332, %v3347
  %v3356 = vadd.f32 %v3333, %v3347
  %v3357 = vadd.f32 %v3334, %v3347
  %v3358 = vadd.f32 %v3335, %v3347
  %v3359 = vadd.f32 %v3336, %v3347
  %v3360 = vadd.f32 %v3337, %v3347
  %v3361 = vadd.f32 %v3338, %v3347
  %v3362 = vadd.f32 %v3339, %v3347
  %v3363 = vadd.f32 %v3340, %v3347
  %v3364 = vadd.f32 %v3341, %v3347
  %v3365 = vmax.f32 %v3349, 0.0
  %v3366 = vmax.f32 %v3350, 0.0
  %v3367 = vmax.f32 %v3351, 0.0
  %v3368 = vmax.f32 %v3352, 0.0
  %v3369 = vmax.f32 %v3353, 0.0
  %v3370 = vmax.f32 %v3354, 0.0
  %v3371 = vmax.f32 %v3355, 0.0
  %v3372 = vmax.f32 %v3356, 0.0
  %v3373 = vmax.f32 %v3357, 0.0
  %v3374 = vmax.f32 %v3358, 0.0
  %v3375 = vmax.f32 %v3359, 0.0
  %v3376 = vmax.f32 %v3360, 0.0
  %v3377 = vmax.f32 %v3361, 0.0
  %v3378 = vmax.f32 %v3362, 0.0
  %v3379 = vmax.f32 %v3363, 0.0
  %v3380 = vmax.f32 %v3364, 0.0
  %3381 = vst.msk [vmem:[%s1709 + $0x1] sm:$0xff] %vm1605, %v3365
  %3382 = vst.msk [vmem:[%s1709 + $0x11] sm:$0xff] %vm1605, %v3366
  %3383 = vst.msk [vmem:[%s1709 + $0x21] sm:$0xff] %vm1605, %v3367
  %3384 = vst.msk [vmem:[%s1709 + $0x31] sm:$0xff] %vm1605, %v3368
  %3385 = vst.msk [vmem:[%s1709 + $0x41] sm:$0xff] %vm1605, %v3369
  %3386 = vst.msk [vmem:[%s1709 + $0x51] sm:$0xff] %vm1605, %v3370
  %3387 = vst.msk [vmem:[%s1709 + $0x61] sm:$0xff] %vm1605, %v3371
  %3388 = vst.msk [vmem:[%s1709 + $0x71] sm:$0xff] %vm1605, %v3372
  %3389 = vst.msk [vmem:[%s1709 + $0xa1] sm:$0xff] %vm1605, %v3373
  %3390 = vst.msk [vmem:[%s1709 + $0xb1] sm:$0xff] %vm1605, %v3374
  %3391 = vst.msk [vmem:[%s1709 + $0xc1] sm:$0xff] %vm1605, %v3375
  %3392 = vst.msk [vmem:[%s1709 + $0xd1] sm:$0xff] %vm1605, %v3376
  %3393 = vst.msk [vmem:[%s1709 + $0xe1] sm:$0xff] %vm1605, %v3377
  %3394 = vst.msk [vmem:[%s1709 + $0xf1] sm:$0xff] %vm1605, %v3378
  %3395 = vst.msk [vmem:[%s1709 + $0x101] sm:$0xff] %vm1605, %v3379
  %3396 = vst.msk [vmem:[%s1709 + $0x111] sm:$0xff] %vm1605, %v3380
  %v3397 = vld [vmem:[#allocation2] sm:$0xff]
  %v3398 = vld [vmem:[#allocation2 + $0x8] sm:$0x3]
  %v3399 = vld [vmem:[#allocation2 + $0x10] sm:$0xff]
  %v3400 = vld [vmem:[#allocation2 + $0x18] sm:$0x3]
  %v3401 = vld [vmem:[#allocation2 + $0x20] sm:$0xff]
  %v3402 = vld [vmem:[#allocation2 + $0x28] sm:$0x3]
  %v3403 = vld [vmem:[#allocation2 + $0x30] sm:$0xff]
  %v3404 = vld [vmem:[#allocation2 + $0x38] sm:$0x3]
  %v3405 = vld [vmem:[#allocation2 + $0x40] sm:$0xff]
  %v3406 = vld [vmem:[#allocation2 + $0x48] sm:$0x3]
  %v3407 = vld [vmem:[#allocation2 + $0x50] sm:$0xff]
  %v3408 = vld [vmem:[#allocation2 + $0x58] sm:$0x3]
  %v3409 = vld [vmem:[#allocation2 + $0x60] sm:$0xff]
  %v3410 = vld [vmem:[#allocation2 + $0x68] sm:$0x3]
  %v3411 = vld [vmem:[#allocation2 + $0x70] sm:$0xff]
  %v3412 = vld [vmem:[#allocation2 + $0x78] sm:$0x3]
  %v3413 = vld [vmem:[#allocation2 + $0x80] sm:$0xff]
  %v3414 = vld [vmem:[#allocation2 + $0x88] sm:$0x3]
  %v3415 = vld [vmem:[#allocation2 + $0x90] sm:$0xff]
  %v3416 = vld [vmem:[#allocation2 + $0x98] sm:$0x3]
  %v3417 = vld [vmem:[#allocation2 + $0xa0] sm:$0xff]
  %v3418 = vld [vmem:[#allocation2 + $0xa8] sm:$0x3]
  %v3419 = vld [vmem:[#allocation2 + $0xb0] sm:$0xff]
  %v3420 = vld [vmem:[#allocation2 + $0xb8] sm:$0x3]
  %v3421 = vld [vmem:[#allocation2 + $0xc0] sm:$0xff]
  %v3422 = vld [vmem:[#allocation2 + $0xc8] sm:$0x3]
  %v3423 = vld [vmem:[#allocation2 + $0xd0] sm:$0xff]
  %v3424 = vld [vmem:[#allocation2 + $0xd8] sm:$0x3]
  %v3425 = vld [vmem:[#allocation2 + $0xe0] sm:$0xff]
  %v3426 = vld [vmem:[#allocation2 + $0xe8] sm:$0x3]
  %v3427 = vld [vmem:[#allocation2 + $0xf0] sm:$0xff]
  %v3428 = vld [vmem:[#allocation2 + $0xf8] sm:$0x3]
  %v3429 = vld [vmem:[#allocation2 + $0x100] sm:$0xff]
  %v3430 = vld [vmem:[#allocation2 + $0x108] sm:$0x3]
  %v3431 = vld [vmem:[#allocation2 + $0x110] sm:$0xff]
  %v3432 = vld [vmem:[#allocation2 + $0x118] sm:$0x3]
  %v3433 = vld [vmem:[#allocation2 + $0x120] sm:$0xff]
  %v3434 = vld [vmem:[#allocation2 + $0x128] sm:$0x3]
  %v3435 = vld [vmem:[#allocation2 + $0x130] sm:$0xff]
  %v3436 = vld [vmem:[#allocation2 + $0x138] sm:$0x3]
  %v3437 = vpack.c.bf16 %v3399, %v3397
  %v3438 = vpack.c.bf16 %v3403, %v3401
  %v3439 = vpack.c.bf16 %v3407, %v3405
  %v3440 = vpack.c.bf16 %v3411, %v3409
  %v3441 = vpack.c.bf16 %v3419, %v3417
  %v3442 = vpack.c.bf16 %v3423, %v3421
  %v3443 = vpack.c.bf16 %v3427, %v3425
  %v3444 = vpack.c.bf16 %v3431, %v3429
  %v3445 = vld [vmem:[%s9] sm:$0xf]
  %v3446 = vld [vmem:[%s9 + $0x4] sm:$0xf]
  %v3447 = vld [vmem:[%s9 + $0x8] sm:$0xf]
  %v3448 = vld [vmem:[%s9 + $0xc] sm:$0xf]
  %v3481 = vrot.slane %v3397, 1
  %v3482 = vrot.slane %v3398, 1
  %v3483 = vsel %vm135, %v3481, %v3482
  %v3484 = vrot.slane %v3399, 1
  %v3485 = vrot.slane %v3400, 1
  %v3486 = vsel %vm135, %v3484, %v3485
  %v3487 = vrot.slane %v3401, 1
  %v3488 = vrot.slane %v3402, 1
  %v3489 = vsel %vm135, %v3487, %v3488
  %v3490 = vrot.slane %v3403, 1
  %v3491 = vrot.slane %v3404, 1
  %v3492 = vsel %vm135, %v3490, %v3491
  %v3493 = vrot.slane %v3405, 1
  %v3494 = vrot.slane %v3406, 1
  %v3495 = vsel %vm135, %v3493, %v3494
  %v3496 = vrot.slane %v3407, 1
  %v3497 = vrot.slane %v3408, 1
  %v3498 = vsel %vm135, %v3496, %v3497
  %v3499 = vrot.slane %v3409, 1
  %v3500 = vrot.slane %v3410, 1
  %v3501 = vsel %vm135, %v3499, %v3500
  %v3502 = vrot.slane %v3411, 1
  %v3503 = vrot.slane %v3412, 1
  %v3504 = vsel %vm135, %v3502, %v3503
  %v3505 = vrot.slane %v3417, 1
  %v3506 = vrot.slane %v3418, 1
  %v3507 = vsel %vm135, %v3505, %v3506
  %v3508 = vrot.slane %v3419, 1
  %v3509 = vrot.slane %v3420, 1
  %v3510 = vsel %vm135, %v3508, %v3509
  %v3511 = vrot.slane %v3421, 1
  %v3512 = vrot.slane %v3422, 1
  %v3513 = vsel %vm135, %v3511, %v3512
  %v3514 = vrot.slane %v3423, 1
  %v3515 = vrot.slane %v3424, 1
  %v3516 = vsel %vm135, %v3514, %v3515
  %v3517 = vrot.slane %v3425, 1
  %v3518 = vrot.slane %v3426, 1
  %v3519 = vsel %vm135, %v3517, %v3518
  %v3520 = vrot.slane %v3427, 1
  %v3521 = vrot.slane %v3428, 1
  %v3522 = vsel %vm135, %v3520, %v3521
  %v3523 = vrot.slane %v3429, 1
  %v3524 = vrot.slane %v3430, 1
  %v3525 = vsel %vm135, %v3523, %v3524
  %v3526 = vrot.slane %v3431, 1
  %v3527 = vrot.slane %v3432, 1
  %v3528 = vsel %vm135, %v3526, %v3527
  %v3545 = vpack.c.bf16 %v3486, %v3483
  %v3546 = vpack.c.bf16 %v3492, %v3489
  %v3547 = vpack.c.bf16 %v3498, %v3495
  %v3548 = vpack.c.bf16 %v3504, %v3501
  %v3549 = vpack.c.bf16 %v3510, %v3507
  %v3550 = vpack.c.bf16 %v3516, %v3513
  %v3551 = vpack.c.bf16 %v3522, %v3519
  %v3552 = vpack.c.bf16 %v3528, %v3525
  %s3553 = scalar_lea.vmem %s9, 16
  %v3554 = vld [vmem:[%s3553] sm:$0xf]
  %v3555 = vld [vmem:[%s3553 + $0x4] sm:$0xf]
  %v3556 = vld [vmem:[%s3553 + $0x8] sm:$0xf]
  %v3557 = vld [vmem:[%s3553 + $0xc] sm:$0xf]
  %v3562 = vunpack.c.l.b16 %v3554
  %v3563 = vunpack.c.l.b16 %v3555
  %v3564 = vunpack.c.l.b16 %v3556
  %v3565 = vunpack.c.l.b16 %v3557
  %v3566 = vpack.c.b16 %v3563, %v3562
  %v3567 = vpack.c.b16 %v3565, %v3564
  %v3571 = vsel %vm1605, %v3545, 0
  %v3574 = vsel %vm1605, %v3546, 0
  %v3577 = vsel %vm1605, %v3547, 0
  %v3580 = vsel %vm1605, %v3548, 0
  %v3583 = vsel %vm1605, %v3549, 0
  %v3586 = vsel %vm1605, %v3550, 0
  %v3589 = vsel %vm1605, %v3551, 0
  %v3592 = vsel %vm1605, %v3552, 0
  %3594 = vmatprep.subr.bf16.mxu0 0
  %3595 = vmatpush1.bf16.msra.mxu0 %v3566
  %3596 = vmatprep.subr.bf16.mxu0 0
  %3597 = vmatpush1.bf16.msra.mxu0 %v3567
  %3598 = vmatprep.subr.bf16.mxu0 0
  %3599 = vmatpush1.bf16.msra.mxu0 0
  %3600 = vmatprep.subr.bf16.mxu0 0
  %3601 = vmatpush1.bf16.msra.mxu0 0
  %3602 = vmatprep.subr.bf16.mxu0 0
  %3603 = vmatpush1.bf16.msra.mxu0 0
  %3604 = vmatprep.subr.bf16.mxu0 0
  %3605 = vmatpush1.bf16.msra.mxu0 0
  %3606 = vmatprep.subr.bf16.mxu0 0
  %3607 = vmatpush1.bf16.msra.mxu0 0
  %3608 = vmatprep.subr.bf16.mxu0 0
  %3609 = vmatpush1.bf16.msra.mxu0 0
  %3610 = vmatprep.subr.bf16.mxu0 0
  %3611 = vmatpush1.bf16.msra.mxu0 0
  %3612 = vmatprep.subr.bf16.mxu0 0
  %3613 = vmatpush1.bf16.msra.mxu0 0
  %3614 = vmatprep.subr.bf16.mxu0 0
  %3615 = vmatpush1.bf16.msra.mxu0 0
  %3616 = vmatprep.subr.bf16.mxu0 0
  %3617 = vmatpush1.bf16.msra.mxu0 0
  %3618 = vmatprep.subr.bf16.mxu0 0
  %3619 = vmatpush1.bf16.msra.mxu0 0
  %3620 = vmatprep.subr.bf16.mxu0 0
  %3621 = vmatpush1.bf16.msra.mxu0 0
  %3622 = vmatprep.subr.bf16.mxu0 0
  %3623 = vmatpush1.bf16.msra.mxu0 0
  %3624 = vmatprep.subr.bf16.mxu0 0
  %3625 = vmatpush1.bf16.msra.mxu0 0
  %3626 = vmatprep.mubr.bf16.mxu0 0
  %3627 = vmatmul.mubr.bf16.gmra.mrb[0].mxu0 %v3571
  %v3628 = vpop.f32.mrb[0].mxu0
  %v3629 = vadd.f32 0.0, %v3628
  %v3630 = vpop.f32.mrb[0].mxu0
  %v3631 = vpop.f32.mrb[0].mxu0
  %v3632 = vadd.f32 0.0, %v3631
  %v3633 = vpop.f32.mrb[0].mxu0
  %3634 = vmatprep.mubr.bf16.mxu0 0
  %3635 = vmatmul.mubr.bf16.gmra.mrb[0].mxu0 %v3574
  %v3636 = vpop.f32.mrb[0].mxu0
  %v3637 = vadd.f32 0.0, %v3636
  %v3638 = vpop.f32.mrb[0].mxu0
  %v3639 = vpop.f32.mrb[0].mxu0
  %v3640 = vadd.f32 0.0, %v3639
  %v3641 = vpop.f32.mrb[0].mxu0
  %3642 = vmatprep.mubr.bf16.mxu0 0
  %3643 = vmatmul.mubr.bf16.gmra.mrb[0].mxu0 %v3577
  %v3644 = vpop.f32.mrb[0].mxu0
  %v3645 = vadd.f32 0.0, %v3644
  %v3646 = vpop.f32.mrb[0].mxu0
  %v3647 = vpop.f32.mrb[0].mxu0
  %v3648 = vadd.f32 0.0, %v3647
  %v3649 = vpop.f32.mrb[0].mxu0
  %3650 = vmatprep.mubr.bf16.mxu0 0
  %3651 = vmatmul.mubr.bf16.gmra.mrb[0].mxu0 %v3580
  %v3652 = vpop.f32.mrb[0].mxu0
  %v3653 = vadd.f32 0.0, %v3652
  %v3654 = vpop.f32.mrb[0].mxu0
  %v3655 = vpop.f32.mrb[0].mxu0
  %v3656 = vadd.f32 0.0, %v3655
  %v3657 = vpop.f32.mrb[0].mxu0
  %3658 = vmatprep.mubr.bf16.mxu0 0
  %3659 = vmatmul.mubr.bf16.gmra.mrb[0].mxu0 %v3583
  %v3660 = vpop.f32.mrb[0].mxu0
  %v3661 = vadd.f32 0.0, %v3660
  %v3662 = vpop.f32.mrb[0].mxu0
  %v3663 = vpop.f32.mrb[0].mxu0
  %v3664 = vadd.f32 0.0, %v3663
  %v3665 = vpop.f32.mrb[0].mxu0
  %3666 = vmatprep.mubr.bf16.mxu0 0
  %3667 = vmatmul.mubr.bf16.gmra.mrb[0].mxu0 %v3586
  %v3668 = vpop.f32.mrb[0].mxu0
  %v3669 = vadd.f32 0.0, %v3668
  %v3670 = vpop.f32.mrb[0].mxu0
  %v3671 = vpop.f32.mrb[0].mxu0
  %v3672 = vadd.f32 0.0, %v3671
  %v3673 = vpop.f32.mrb[0].mxu0
  %3674 = vmatprep.mubr.bf16.mxu0 0
  %3675 = vmatmul.mubr.bf16.gmra.mrb[0].mxu0 %v3589
  %v3676 = vpop.f32.mrb[0].mxu0
  %v3677 = vadd.f32 0.0, %v3676
  %v3678 = vpop.f32.mrb[0].mxu0
  %v3679 = vpop.f32.mrb[0].mxu0
  %v3680 = vadd.f32 0.0, %v3679
  %v3681 = vpop.f32.mrb[0].mxu0
  %3682 = vmatprep.mubr.bf16.mxu0 0
  %3683 = vmatmul.mubr.bf16.gmra.mrb[0].mxu0 %v3592
  %v3684 = vpop.f32.mrb[0].mxu0
  %v3685 = vadd.f32 0.0, %v3684
  %v3686 = vpop.f32.mrb[0].mxu0
  %v3687 = vpop.f32.mrb[0].mxu0
  %v3688 = vadd.f32 0.0, %v3687
  %v3689 = vpop.f32.mrb[0].mxu0
  %3690 = vdwg.mxu0
  %v3695 = vunpack.c.l.b16 %v3445
  %v3696 = vunpack.c.l.b16 %v3446
  %v3697 = vunpack.c.l.b16 %v3447
  %v3698 = vunpack.c.l.b16 %v3448
  %v3699 = vpack.c.b16 %v3696, %v3695
  %v3700 = vpack.c.b16 %v3698, %v3697
  %v3704 = vsel %vm1605, %v3437, 0
  %v3707 = vsel %vm1605, %v3438, 0
  %v3710 = vsel %vm1605, %v3439, 0
  %v3713 = vsel %vm1605, %v3440, 0
  %v3716 = vsel %vm1605, %v3441, 0
  %v3719 = vsel %vm1605, %v3442, 0
  %v3722 = vsel %vm1605, %v3443, 0
  %v3725 = vsel %vm1605, %v3444, 0
  %3727 = vmatprep.subr.bf16.mxu0 0
  %3728 = vmatpush1.bf16.msra.mxu0 %v3699
  %3729 = vmatprep.subr.bf16.mxu0 0
  %3730 = vmatpush1.bf16.msra.mxu0 %v3700
  %3731 = vmatprep.subr.bf16.mxu0 0
  %3732 = vmatpush1.bf16.msra.mxu0 0
  %3733 = vmatprep.subr.bf16.mxu0 0
  %3734 = vmatpush1.bf16.msra.mxu0 0
  %3735 = vmatprep.subr.bf16.mxu0 0
  %3736 = vmatpush1.bf16.msra.mxu0 0
  %3737 = vmatprep.subr.bf16.mxu0 0
  %3738 = vmatpush1.bf16.msra.mxu0 0
  %3739 = vmatprep.subr.bf16.mxu0 0
  %3740 = vmatpush1.bf16.msra.mxu0 0
  %3741 = vmatprep.subr.bf16.mxu0 0
  %3742 = vmatpush1.bf16.msra.mxu0 0
  %3743 = vmatprep.subr.bf16.mxu0 0
  %3744 = vmatpush1.bf16.msra.mxu0 0
  %3745 = vmatprep.subr.bf16.mxu0 0
  %3746 = vmatpush1.bf16.msra.mxu0 0
  %3747 = vmatprep.subr.bf16.mxu0 0
  %3748 = vmatpush1.bf16.msra.mxu0 0
  %3749 = vmatprep.subr.bf16.mxu0 0
  %3750 = vmatpush1.bf16.msra.mxu0 0
  %3751 = vmatprep.subr.bf16.mxu0 0
  %3752 = vmatpush1.bf16.msra.mxu0 0
  %3753 = vmatprep.subr.bf16.mxu0 0
  %3754 = vmatpush1.bf16.msra.mxu0 0
  %3755 = vmatprep.subr.bf16.mxu0 0
  %3756 = vmatpush1.bf16.msra.mxu0 0
  %3757 = vmatprep.subr.bf16.mxu0 0
  %3758 = vmatpush1.bf16.msra.mxu0 0
  %3759 = vmatprep.mubr.bf16.mxu0 0
  %3760 = vmatmul.mubr.bf16.gmra.mrb[0].mxu0 %v3704
  %v3761 = vpop.f32.mrb[0].mxu0
  %v3762 = vadd.f32 %v3629, %v3761
  %v3763 = vpop.f32.mrb[0].mxu0
  %v3764 = vpop.f32.mrb[0].mxu0
  %v3765 = vadd.f32 %v3632, %v3764
  %v3766 = vpop.f32.mrb[0].mxu0
  %3767 = vmatprep.mubr.bf16.mxu0 0
  %3768 = vmatmul.mubr.bf16.gmra.mrb[0].mxu0 %v3707
  %v3769 = vpop.f32.mrb[0].mxu0
  %v3770 = vadd.f32 %v3637, %v3769
  %v3771 = vpop.f32.mrb[0].mxu0
  %v3772 = vpop.f32.mrb[0].mxu0
  %v3773 = vadd.f32 %v3640, %v3772
  %v3774 = vpop.f32.mrb[0].mxu0
  %3775 = vmatprep.mubr.bf16.mxu0 0
  %3776 = vmatmul.mubr.bf16.gmra.mrb[0].mxu0 %v3710
  %v3777 = vpop.f32.mrb[0].mxu0
  %v3778 = vadd.f32 %v3645, %v3777
  %v3779 = vpop.f32.mrb[0].mxu0
  %v3780 = vpop.f32.mrb[0].mxu0
  %v3781 = vadd.f32 %v3648, %v3780
  %v3782 = vpop.f32.mrb[0].mxu0
  %3783 = vmatprep.mubr.bf16.mxu0 0
  %3784 = vmatmul.mubr.bf16.gmra.mrb[0].mxu0 %v3713
  %v3785 = vpop.f32.mrb[0].mxu0
  %v3786 = vadd.f32 %v3653, %v3785
  %v3787 = vpop.f32.mrb[0].mxu0
  %v3788 = vpop.f32.mrb[0].mxu0
  %v3789 = vadd.f32 %v3656, %v3788
  %v3790 = vpop.f32.mrb[0].mxu0
  %3791 = vmatprep.mubr.bf16.mxu0 0
  %3792 = vmatmul.mubr.bf16.gmra.mrb[0].mxu0 %v3716
  %v3793 = vpop.f32.mrb[0].mxu0
  %v3794 = vadd.f32 %v3661, %v3793
  %v3795 = vpop.f32.mrb[0].mxu0
  %v3796 = vpop.f32.mrb[0].mxu0
  %v3797 = vadd.f32 %v3664, %v3796
  %v3798 = vpop.f32.mrb[0].mxu0
  %3799 = vmatprep.mubr.bf16.mxu0 0
  %3800 = vmatmul.mubr.bf16.gmra.mrb[0].mxu0 %v3719
  %v3801 = vpop.f32.mrb[0].mxu0
  %v3802 = vadd.f32 %v3669, %v3801
  %v3803 = vpop.f32.mrb[0].mxu0
  %v3804 = vpop.f32.mrb[0].mxu0
  %v3805 = vadd.f32 %v3672, %v3804
  %v3806 = vpop.f32.mrb[0].mxu0
  %3807 = vmatprep.mubr.bf16.mxu0 0
  %3808 = vmatmul.mubr.bf16.gmra.mrb[0].mxu0 %v3722
  %v3809 = vpop.f32.mrb[0].mxu0
  %v3810 = vadd.f32 %v3677, %v3809
  %v3811 = vpop.f32.mrb[0].mxu0
  %v3812 = vpop.f32.mrb[0].mxu0
  %v3813 = vadd.f32 %v3680, %v3812
  %v3814 = vpop.f32.mrb[0].mxu0
  %3815 = vmatprep.mubr.bf16.mxu0 0
  %3816 = vmatmul.mubr.bf16.gmra.mrb[0].mxu0 %v3725
  %v3817 = vpop.f32.mrb[0].mxu0
  %v3818 = vadd.f32 %v3685, %v3817
  %v3819 = vpop.f32.mrb[0].mxu0
  %v3820 = vpop.f32.mrb[0].mxu0
  %v3821 = vadd.f32 %v3688, %v3820
  %v3822 = vpop.f32.mrb[0].mxu0
  %3823 = vdwg.mxu0
  %v3824 = vrot.slane %v3397, 2
  %v3825 = vrot.slane %v3398, 2
  %v3826 = vsel %vm460, %v3824, %v3825
  %v3827 = vrot.slane %v3399, 2
  %v3828 = vrot.slane %v3400, 2
  %v3829 = vsel %vm460, %v3827, %v3828
  %v3830 = vrot.slane %v3401, 2
  %v3831 = vrot.slane %v3402, 2
  %v3832 = vsel %vm460, %v3830, %v3831
  %v3833 = vrot.slane %v3403, 2
  %v3834 = vrot.slane %v3404, 2
  %v3835 = vsel %vm460, %v3833, %v3834
  %v3836 = vrot.slane %v3405, 2
  %v3837 = vrot.slane %v3406, 2
  %v3838 = vsel %vm460, %v3836, %v3837
  %v3839 = vrot.slane %v3407, 2
  %v3840 = vrot.slane %v3408, 2
  %v3841 = vsel %vm460, %v3839, %v3840
  %v3842 = vrot.slane %v3409, 2
  %v3843 = vrot.slane %v3410, 2
  %v3844 = vsel %vm460, %v3842, %v3843
  %v3845 = vrot.slane %v3411, 2
  %v3846 = vrot.slane %v3412, 2
  %v3847 = vsel %vm460, %v3845, %v3846
  %v3848 = vrot.slane %v3417, 2
  %v3849 = vrot.slane %v3418, 2
  %v3850 = vsel %vm460, %v3848, %v3849
  %v3851 = vrot.slane %v3419, 2
  %v3852 = vrot.slane %v3420, 2
  %v3853 = vsel %vm460, %v3851, %v3852
  %v3854 = vrot.slane %v3421, 2
  %v3855 = vrot.slane %v3422, 2
  %v3856 = vsel %vm460, %v3854, %v3855
  %v3857 = vrot.slane %v3423, 2
  %v3858 = vrot.slane %v3424, 2
  %v3859 = vsel %vm460, %v3857, %v3858
  %v3860 = vrot.slane %v3425, 2
  %v3861 = vrot.slane %v3426, 2
  %v3862 = vsel %vm460, %v3860, %v3861
  %v3863 = vrot.slane %v3427, 2
  %v3864 = vrot.slane %v3428, 2
  %v3865 = vsel %vm460, %v3863, %v3864
  %v3866 = vrot.slane %v3429, 2
  %v3867 = vrot.slane %v3430, 2
  %v3868 = vsel %vm460, %v3866, %v3867
  %v3869 = vrot.slane %v3431, 2
  %v3870 = vrot.slane %v3432, 2
  %v3871 = vsel %vm460, %v3869, %v3870
  %v3888 = vpack.c.bf16 %v3829, %v3826
  %v3889 = vpack.c.bf16 %v3835, %v3832
  %v3890 = vpack.c.bf16 %v3841, %v3838
  %v3891 = vpack.c.bf16 %v3847, %v3844
  %v3892 = vpack.c.bf16 %v3853, %v3850
  %v3893 = vpack.c.bf16 %v3859, %v3856
  %v3894 = vpack.c.bf16 %v3865, %v3862
  %v3895 = vpack.c.bf16 %v3871, %v3868
  %s3896 = scalar_lea.vmem %s9, 32
  %v3897 = vld [vmem:[%s3896] sm:$0xf]
  %v3898 = vld [vmem:[%s3896 + $0x4] sm:$0xf]
  %v3899 = vld [vmem:[%s3896 + $0x8] sm:$0xf]
  %v3900 = vld [vmem:[%s3896 + $0xc] sm:$0xf]
  %v3905 = vunpack.c.l.b16 %v3897
  %v3906 = vunpack.c.l.b16 %v3898
  %v3907 = vunpack.c.l.b16 %v3899
  %v3908 = vunpack.c.l.b16 %v3900
  %v3909 = vpack.c.b16 %v3906, %v3905
  %v3910 = vpack.c.b16 %v3908, %v3907
  %v3914 = vsel %vm1605, %v3888, 0
  %v3917 = vsel %vm1605, %v3889, 0
  %v3920 = vsel %vm1605, %v3890, 0
  %v3923 = vsel %vm1605, %v3891, 0
  %v3926 = vsel %vm1605, %v3892, 0
  %v3929 = vsel %vm1605, %v3893, 0
  %v3932 = vsel %vm1605, %v3894, 0
  %v3935 = vsel %vm1605, %v3895, 0
  %3937 = vmatprep.subr.bf16.mxu0 0
  %3938 = vmatpush1.bf16.msra.mxu0 %v3909
  %3939 = vmatprep.subr.bf16.mxu0 0
  %3940 = vmatpush1.bf16.msra.mxu0 %v3910
  %3941 = vmatprep.subr.bf16.mxu0 0
  %3942 = vmatpush1.bf16.msra.mxu0 0
  %3943 = vmatprep.subr.bf16.mxu0 0
  %3944 = vmatpush1.bf16.msra.mxu0 0
  %3945 = vmatprep.subr.bf16.mxu0 0
  %3946 = vmatpush1.bf16.msra.mxu0 0
  %3947 = vmatprep.subr.bf16.mxu0 0
  %3948 = vmatpush1.bf16.msra.mxu0 0
  %3949 = vmatprep.subr.bf16.mxu0 0
  %3950 = vmatpush1.bf16.msra.mxu0 0
  %3951 = vmatprep.subr.bf16.mxu0 0
  %3952 = vmatpush1.bf16.msra.mxu0 0
  %3953 = vmatprep.subr.bf16.mxu0 0
  %3954 = vmatpush1.bf16.msra.mxu0 0
  %3955 = vmatprep.subr.bf16.mxu0 0
  %3956 = vmatpush1.bf16.msra.mxu0 0
  %3957 = vmatprep.subr.bf16.mxu0 0
  %3958 = vmatpush1.bf16.msra.mxu0 0
  %3959 = vmatprep.subr.bf16.mxu0 0
  %3960 = vmatpush1.bf16.msra.mxu0 0
  %3961 = vmatprep.subr.bf16.mxu0 0
  %3962 = vmatpush1.bf16.msra.mxu0 0
  %3963 = vmatprep.subr.bf16.mxu0 0
  %3964 = vmatpush1.bf16.msra.mxu0 0
  %3965 = vmatprep.subr.bf16.mxu0 0
  %3966 = vmatpush1.bf16.msra.mxu0 0
  %3967 = vmatprep.subr.bf16.mxu0 0
  %3968 = vmatpush1.bf16.msra.mxu0 0
  %3969 = vmatprep.mubr.bf16.mxu0 0
  %3970 = vmatmul.mubr.bf16.gmra.mrb[0].mxu0 %v3914
  %v3971 = vpop.f32.mrb[0].mxu0
  %v3972 = vadd.f32 0.0, %v3971
  %v3973 = vpop.f32.mrb[0].mxu0
  %v3974 = vpop.f32.mrb[0].mxu0
  %v3975 = vadd.f32 0.0, %v3974
  %v3976 = vpop.f32.mrb[0].mxu0
  %3977 = vmatprep.mubr.bf16.mxu0 0
  %3978 = vmatmul.mubr.bf16.gmra.mrb[0].mxu0 %v3917
  %v3979 = vpop.f32.mrb[0].mxu0
  %v3980 = vadd.f32 0.0, %v3979
  %v3981 = vpop.f32.mrb[0].mxu0
  %v3982 = vpop.f32.mrb[0].mxu0
  %v3983 = vadd.f32 0.0, %v3982
  %v3984 = vpop.f32.mrb[0].mxu0
  %3985 = vmatprep.mubr.bf16.mxu0 0
  %3986 = vmatmul.mubr.bf16.gmra.mrb[0].mxu0 %v3920
  %v3987 = vpop.f32.mrb[0].mxu0
  %v3988 = vadd.f32 0.0, %v3987
  %v3989 = vpop.f32.mrb[0].mxu0
  %v3990 = vpop.f32.mrb[0].mxu0
  %v3991 = vadd.f32 0.0, %v3990
  %v3992 = vpop.f32.mrb[0].mxu0
  %3993 = vmatprep.mubr.bf16.mxu0 0
  %3994 = vmatmul.mubr.bf16.gmra.mrb[0].mxu0 %v3923
  %v3995 = vpop.f32.mrb[0].mxu0
  %v3996 = vadd.f32 0.0, %v3995
  %v3997 = vpop.f32.mrb[0].mxu0
  %v3998 = vpop.f32.mrb[0].mxu0
  %v3999 = vadd.f32 0.0, %v3998
  %v4000 = vpop.f32.mrb[0].mxu0
  %4001 = vmatprep.mubr.bf16.mxu0 0
  %4002 = vmatmul.mubr.bf16.gmra.mrb[0].mxu0 %v3926
  %v4003 = vpop.f32.mrb[0].mxu0
  %v4004 = vadd.f32 0.0, %v4003
  %v4005 = vpop.f32.mrb[0].mxu0
  %v4006 = vpop.f32.mrb[0].mxu0
  %v4007 = vadd.f32 0.0, %v4006
  %v4008 = vpop.f32.mrb[0].mxu0
  %4009 = vmatprep.mubr.bf16.mxu0 0
  %4010 = vmatmul.mubr.bf16.gmra.mrb[0].mxu0 %v3929
  %v4011 = vpop.f32.mrb[0].mxu0
  %v4012 = vadd.f32 0.0, %v4011
  %v4013 = vpop.f32.mrb[0].mxu0
  %v4014 = vpop.f32.mrb[0].mxu0
  %v4015 = vadd.f32 0.0, %v4014
  %v4016 = vpop.f32.mrb[0].mxu0
  %4017 = vmatprep.mubr.bf16.mxu0 0
  %4018 = vmatmul.mubr.bf16.gmra.mrb[0].mxu0 %v3932
  %v4019 = vpop.f32.mrb[0].mxu0
  %v4020 = vadd.f32 0.0, %v4019
  %v4021 = vpop.f32.mrb[0].mxu0
  %v4022 = vpop.f32.mrb[0].mxu0
  %v4023 = vadd.f32 0.0, %v4022
  %v4024 = vpop.f32.mrb[0].mxu0
  %4025 = vmatprep.mubr.bf16.mxu0 0
  %4026 = vmatmul.mubr.bf16.gmra.mrb[0].mxu0 %v3935
  %v4027 = vpop.f32.mrb[0].mxu0
  %v4028 = vadd.f32 0.0, %v4027
  %v4029 = vpop.f32.mrb[0].mxu0
  %v4030 = vpop.f32.mrb[0].mxu0
  %v4031 = vadd.f32 0.0, %v4030
  %v4032 = vpop.f32.mrb[0].mxu0
  %4033 = vdwg.mxu0
  %v4034 = vadd.f32 %v3762, %v3972
  %v4035 = vadd.f32 %v3765, %v3975
  %v4036 = vadd.f32 %v3770, %v3980
  %v4037 = vadd.f32 %v3773, %v3983
  %v4038 = vadd.f32 %v3778, %v3988
  %v4039 = vadd.f32 %v3781, %v3991
  %v4040 = vadd.f32 %v3786, %v3996
  %v4041 = vadd.f32 %v3789, %v3999
  %v4042 = vadd.f32 %v3794, %v4004
  %v4043 = vadd.f32 %v3797, %v4007
  %v4044 = vadd.f32 %v3802, %v4012
  %v4045 = vadd.f32 %v3805, %v4015
  %v4046 = vadd.f32 %v3810, %v4020
  %v4047 = vadd.f32 %v3813, %v4023
  %v4048 = vadd.f32 %v3818, %v4028
  %v4049 = vadd.f32 %v3821, %v4031
  %v4050 = vpack.c.bf16 %v3401, %v3399
  %v4051 = vpack.c.bf16 %v3405, %v3403
  %v4052 = vpack.c.bf16 %v3409, %v3407
  %v4053 = vpack.c.bf16 %v3413, %v3411
  %v4054 = vpack.c.bf16 %v3421, %v3419
  %v4055 = vpack.c.bf16 %v3425, %v3423
  %v4056 = vpack.c.bf16 %v3429, %v3427
  %v4057 = vpack.c.bf16 %v3433, %v3431
  %s4058 = scalar_lea.vmem %s9, 48
  %v4059 = vld [vmem:[%s4058] sm:$0xf]
  %v4060 = vld [vmem:[%s4058 + $0x4] sm:$0xf]
  %v4061 = vld [vmem:[%s4058 + $0x8] sm:$0xf]
  %v4062 = vld [vmem:[%s4058 + $0xc] sm:$0xf]
  %v4067 = vunpack.c.l.b16 %v4059
  %v4068 = vunpack.c.l.b16 %v4060
  %v4069 = vunpack.c.l.b16 %v4061
  %v4070 = vunpack.c.l.b16 %v4062
  %v4071 = vpack.c.b16 %v4068, %v4067
  %v4072 = vpack.c.b16 %v4070, %v4069
  %v4076 = vsel %vm1605, %v4050, 0
  %v4079 = vsel %vm1605, %v4051, 0
  %v4082 = vsel %vm1605, %v4052, 0
  %v4085 = vsel %vm1605, %v4053, 0
  %v4088 = vsel %vm1605, %v4054, 0
  %v4091 = vsel %vm1605, %v4055, 0
  %v4094 = vsel %vm1605, %v4056, 0
  %v4097 = vsel %vm1605, %v4057, 0
  %4099 = vmatprep.subr.bf16.mxu0 0
  %4100 = vmatpush1.bf16.msra.mxu0 %v4071
  %4101 = vmatprep.subr.bf16.mxu0 0
  %4102 = vmatpush1.bf16.msra.mxu0 %v4072
  %4103 = vmatprep.subr.bf16.mxu0 0
  %4104 = vmatpush1.bf16.msra.mxu0 0
  %4105 = vmatprep.subr.bf16.mxu0 0
  %4106 = vmatpush1.bf16.msra.mxu0 0
  %4107 = vmatprep.subr.bf16.mxu0 0
  %4108 = vmatpush1.bf16.msra.mxu0 0
  %4109 = vmatprep.subr.bf16.mxu0 0
  %4110 = vmatpush1.bf16.msra.mxu0 0
  %4111 = vmatprep.subr.bf16.mxu0 0
  %4112 = vmatpush1.bf16.msra.mxu0 0
  %4113 = vmatprep.subr.bf16.mxu0 0
  %4114 = vmatpush1.bf16.msra.mxu0 0
  %4115 = vmatprep.subr.bf16.mxu0 0
  %4116 = vmatpush1.bf16.msra.mxu0 0
  %4117 = vmatprep.subr.bf16.mxu0 0
  %4118 = vmatpush1.bf16.msra.mxu0 0
  %4119 = vmatprep.subr.bf16.mxu0 0
  %4120 = vmatpush1.bf16.msra.mxu0 0
  %4121 = vmatprep.subr.bf16.mxu0 0
  %4122 = vmatpush1.bf16.msra.mxu0 0
  %4123 = vmatprep.subr.bf16.mxu0 0
  %4124 = vmatpush1.bf16.msra.mxu0 0
  %4125 = vmatprep.subr.bf16.mxu0 0
  %4126 = vmatpush1.bf16.msra.mxu0 0
  %4127 = vmatprep.subr.bf16.mxu0 0
  %4128 = vmatpush1.bf16.msra.mxu0 0
  %4129 = vmatprep.subr.bf16.mxu0 0
  %4130 = vmatpush1.bf16.msra.mxu0 0
  %4131 = vmatprep.mubr.bf16.mxu0 0
  %4132 = vmatmul.mubr.bf16.gmra.mrb[0].mxu0 %v4076
  %v4133 = vpop.f32.mrb[0].mxu0
  %v4134 = vadd.f32 0.0, %v4133
  %v4135 = vpop.f32.mrb[0].mxu0
  %v4136 = vpop.f32.mrb[0].mxu0
  %v4137 = vadd.f32 0.0, %v4136
  %v4138 = vpop.f32.mrb[0].mxu0
  %4139 = vmatprep.mubr.bf16.mxu0 0
  %4140 = vmatmul.mubr.bf16.gmra.mrb[0].mxu0 %v4079
  %v4141 = vpop.f32.mrb[0].mxu0
  %v4142 = vadd.f32 0.0, %v4141
  %v4143 = vpop.f32.mrb[0].mxu0
  %v4144 = vpop.f32.mrb[0].mxu0
  %v4145 = vadd.f32 0.0, %v4144
  %v4146 = vpop.f32.mrb[0].mxu0
  %4147 = vmatprep.mubr.bf16.mxu0 0
  %4148 = vmatmul.mubr.bf16.gmra.mrb[0].mxu0 %v4082
  %v4149 = vpop.f32.mrb[0].mxu0
  %v4150 = vadd.f32 0.0, %v4149
  %v4151 = vpop.f32.mrb[0].mxu0
  %v4152 = vpop.f32.mrb[0].mxu0
  %v4153 = vadd.f32 0.0, %v4152
  %v4154 = vpop.f32.mrb[0].mxu0
  %4155 = vmatprep.mubr.bf16.mxu0 0
  %4156 = vmatmul.mubr.bf16.gmra.mrb[0].mxu0 %v4085
  %v4157 = vpop.f32.mrb[0].mxu0
  %v4158 = vadd.f32 0.0, %v4157
  %v4159 = vpop.f32.mrb[0].mxu0
  %v4160 = vpop.f32.mrb[0].mxu0
  %v4161 = vadd.f32 0.0, %v4160
  %v4162 = vpop.f32.mrb[0].mxu0
  %4163 = vmatprep.mubr.bf16.mxu0 0
  %4164 = vmatmul.mubr.bf16.gmra.mrb[0].mxu0 %v4088
  %v4165 = vpop.f32.mrb[0].mxu0
  %v4166 = vadd.f32 0.0, %v4165
  %v4167 = vpop.f32.mrb[0].mxu0
  %v4168 = vpop.f32.mrb[0].mxu0
  %v4169 = vadd.f32 0.0, %v4168
  %v4170 = vpop.f32.mrb[0].mxu0
  %4171 = vmatprep.mubr.bf16.mxu0 0
  %4172 = vmatmul.mubr.bf16.gmra.mrb[0].mxu0 %v4091
  %v4173 = vpop.f32.mrb[0].mxu0
  %v4174 = vadd.f32 0.0, %v4173
  %v4175 = vpop.f32.mrb[0].mxu0
  %v4176 = vpop.f32.mrb[0].mxu0
  %v4177 = vadd.f32 0.0, %v4176
  %v4178 = vpop.f32.mrb[0].mxu0
  %4179 = vmatprep.mubr.bf16.mxu0 0
  %4180 = vmatmul.mubr.bf16.gmra.mrb[0].mxu0 %v4094
  %v4181 = vpop.f32.mrb[0].mxu0
  %v4182 = vadd.f32 0.0, %v4181
  %v4183 = vpop.f32.mrb[0].mxu0
  %v4184 = vpop.f32.mrb[0].mxu0
  %v4185 = vadd.f32 0.0, %v4184
  %v4186 = vpop.f32.mrb[0].mxu0
  %4187 = vmatprep.mubr.bf16.mxu0 0
  %4188 = vmatmul.mubr.bf16.gmra.mrb[0].mxu0 %v4097
  %v4189 = vpop.f32.mrb[0].mxu0
  %v4190 = vadd.f32 0.0, %v4189
  %v4191 = vpop.f32.mrb[0].mxu0
  %v4192 = vpop.f32.mrb[0].mxu0
  %v4193 = vadd.f32 0.0, %v4192
  %v4194 = vpop.f32.mrb[0].mxu0
  %4195 = vdwg.mxu0
  %v4196 = vadd.f32 %v4034, %v4134
  %v4197 = vadd.f32 %v4035, %v4137
  %v4198 = vadd.f32 %v4036, %v4142
  %v4199 = vadd.f32 %v4037, %v4145
  %v4200 = vadd.f32 %v4038, %v4150
  %v4201 = vadd.f32 %v4039, %v4153
  %v4202 = vadd.f32 %v4040, %v4158
  %v4203 = vadd.f32 %v4041, %v4161
  %v4204 = vadd.f32 %v4042, %v4166
  %v4205 = vadd.f32 %v4043, %v4169
  %v4206 = vadd.f32 %v4044, %v4174
  %v4207 = vadd.f32 %v4045, %v4177
  %v4208 = vadd.f32 %v4046, %v4182
  %v4209 = vadd.f32 %v4047, %v4185
  %v4210 = vadd.f32 %v4048, %v4190
  %v4211 = vadd.f32 %v4049, %v4193
  %v4216 = vrot.slane %v3413, 1
  %v4217 = vrot.slane %v3414, 1
  %v4218 = vsel %vm135, %v4216, %v4217
  %v4219 = vrot.slane %v3433, 1
  %v4220 = vrot.slane %v3434, 1
  %v4221 = vsel %vm135, %v4219, %v4220
  %v4224 = vpack.c.bf16 %v3489, %v3486
  %v4225 = vpack.c.bf16 %v3495, %v3492
  %v4226 = vpack.c.bf16 %v3501, %v3498
  %v4227 = vpack.c.bf16 %v4218, %v3504
  %v4228 = vpack.c.bf16 %v3513, %v3510
  %v4229 = vpack.c.bf16 %v3519, %v3516
  %v4230 = vpack.c.bf16 %v3525, %v3522
  %v4231 = vpack.c.bf16 %v4221, %v3528
  %s4232 = scalar_lea.vmem %s9, 64
  %v4233 = vld [vmem:[%s4232] sm:$0xf]
  %v4234 = vld [vmem:[%s4232 + $0x4] sm:$0xf]
  %v4235 = vld [vmem:[%s4232 + $0x8] sm:$0xf]
  %v4236 = vld [vmem:[%s4232 + $0xc] sm:$0xf]
  %v4241 = vunpack.c.l.b16 %v4233
  %v4242 = vunpack.c.l.b16 %v4234
  %v4243 = vunpack.c.l.b16 %v4235
  %v4244 = vunpack.c.l.b16 %v4236
  %v4245 = vpack.c.b16 %v4242, %v4241
  %v4246 = vpack.c.b16 %v4244, %v4243
  %v4250 = vsel %vm1605, %v4224, 0
  %v4253 = vsel %vm1605, %v4225, 0
  %v4256 = vsel %vm1605, %v4226, 0
  %v4259 = vsel %vm1605, %v4227, 0
  %v4262 = vsel %vm1605, %v4228, 0
  %v4265 = vsel %vm1605, %v4229, 0
  %v4268 = vsel %vm1605, %v4230, 0
  %v4271 = vsel %vm1605, %v4231, 0
  %4273 = vmatprep.subr.bf16.mxu0 0
  %4274 = vmatpush1.bf16.msra.mxu0 %v4245
  %4275 = vmatprep.subr.bf16.mxu0 0
  %4276 = vmatpush1.bf16.msra.mxu0 %v4246
  %4277 = vmatprep.subr.bf16.mxu0 0
  %4278 = vmatpush1.bf16.msra.mxu0 0
  %4279 = vmatprep.subr.bf16.mxu0 0
  %4280 = vmatpush1.bf16.msra.mxu0 0
  %4281 = vmatprep.subr.bf16.mxu0 0
  %4282 = vmatpush1.bf16.msra.mxu0 0
  %4283 = vmatprep.subr.bf16.mxu0 0
  %4284 = vmatpush1.bf16.msra.mxu0 0
  %4285 = vmatprep.subr.bf16.mxu0 0
  %4286 = vmatpush1.bf16.msra.mxu0 0
  %4287 = vmatprep.subr.bf16.mxu0 0
  %4288 = vmatpush1.bf16.msra.mxu0 0
  %4289 = vmatprep.subr.bf16.mxu0 0
  %4290 = vmatpush1.bf16.msra.mxu0 0
  %4291 = vmatprep.subr.bf16.mxu0 0
  %4292 = vmatpush1.bf16.msra.mxu0 0
  %4293 = vmatprep.subr.bf16.mxu0 0
  %4294 = vmatpush1.bf16.msra.mxu0 0
  %4295 = vmatprep.subr.bf16.mxu0 0
  %4296 = vmatpush1.bf16.msra.mxu0 0
  %4297 = vmatprep.subr.bf16.mxu0 0
  %4298 = vmatpush1.bf16.msra.mxu0 0
  %4299 = vmatprep.subr.bf16.mxu0 0
  %4300 = vmatpush1.bf16.msra.mxu0 0
  %4301 = vmatprep.subr.bf16.mxu0 0
  %4302 = vmatpush1.bf16.msra.mxu0 0
  %4303 = vmatprep.subr.bf16.mxu0 0
  %4304 = vmatpush1.bf16.msra.mxu0 0
  %4305 = vmatprep.mubr.bf16.mxu0 0
  %4306 = vmatmul.mubr.bf16.gmra.mrb[0].mxu0 %v4250
  %v4307 = vpop.f32.mrb[0].mxu0
  %v4308 = vadd.f32 0.0, %v4307
  %v4309 = vpop.f32.mrb[0].mxu0
  %v4310 = vpop.f32.mrb[0].mxu0
  %v4311 = vadd.f32 0.0, %v4310
  %v4312 = vpop.f32.mrb[0].mxu0
  %4313 = vmatprep.mubr.bf16.mxu0 0
  %4314 = vmatmul.mubr.bf16.gmra.mrb[0].mxu0 %v4253
  %v4315 = vpop.f32.mrb[0].mxu0
  %v4316 = vadd.f32 0.0, %v4315
  %v4317 = vpop.f32.mrb[0].mxu0
  %v4318 = vpop.f32.mrb[0].mxu0
  %v4319 = vadd.f32 0.0, %v4318
  %v4320 = vpop.f32.mrb[0].mxu0
  %4321 = vmatprep.mubr.bf16.mxu0 0
  %4322 = vmatmul.mubr.bf16.gmra.mrb[0].mxu0 %v4256
  %v4323 = vpop.f32.mrb[0].mxu0
  %v4324 = vadd.f32 0.0, %v4323
  %v4325 = vpop.f32.mrb[0].mxu0
  %v4326 = vpop.f32.mrb[0].mxu0
  %v4327 = vadd.f32 0.0, %v4326
  %v4328 = vpop.f32.mrb[0].mxu0
  %4329 = vmatprep.mubr.bf16.mxu0 0
  %4330 = vmatmul.mubr.bf16.gmra.mrb[0].mxu0 %v4259
  %v4331 = vpop.f32.mrb[0].mxu0
  %v4332 = vadd.f32 0.0, %v4331
  %v4333 = vpop.f32.mrb[0].mxu0
  %v4334 = vpop.f32.mrb[0].mxu0
  %v4335 = vadd.f32 0.0, %v4334
  %v4336 = vpop.f32.mrb[0].mxu0
  %4337 = vmatprep.mubr.bf16.mxu0 0
  %4338 = vmatmul.mubr.bf16.gmra.mrb[0].mxu0 %v4262
  %v4339 = vpop.f32.mrb[0].mxu0
  %v4340 = vadd.f32 0.0, %v4339
  %v4341 = vpop.f32.mrb[0].mxu0
  %v4342 = vpop.f32.mrb[0].mxu0
  %v4343 = vadd.f32 0.0, %v4342
  %v4344 = vpop.f32.mrb[0].mxu0
  %4345 = vmatprep.mubr.bf16.mxu0 0
  %4346 = vmatmul.mubr.bf16.gmra.mrb[0].mxu0 %v4265
  %v4347 = vpop.f32.mrb[0].mxu0
  %v4348 = vadd.f32 0.0, %v4347
  %v4349 = vpop.f32.mrb[0].mxu0
  %v4350 = vpop.f32.mrb[0].mxu0
  %v4351 = vadd.f32 0.0, %v4350
  %v4352 = vpop.f32.mrb[0].mxu0
  %4353 = vmatprep.mubr.bf16.mxu0 0
  %4354 = vmatmul.mubr.bf16.gmra.mrb[0].mxu0 %v4268
  %v4355 = vpop.f32.mrb[0].mxu0
  %v4356 = vadd.f32 0.0, %v4355
  %v4357 = vpop.f32.mrb[0].mxu0
  %v4358 = vpop.f32.mrb[0].mxu0
  %v4359 = vadd.f32 0.0, %v4358
  %v4360 = vpop.f32.mrb[0].mxu0
  %4361 = vmatprep.mubr.bf16.mxu0 0
  %4362 = vmatmul.mubr.bf16.gmra.mrb[0].mxu0 %v4271
  %v4363 = vpop.f32.mrb[0].mxu0
  %v4364 = vadd.f32 0.0, %v4363
  %v4365 = vpop.f32.mrb[0].mxu0
  %v4366 = vpop.f32.mrb[0].mxu0
  %v4367 = vadd.f32 0.0, %v4366
  %v4368 = vpop.f32.mrb[0].mxu0
  %4369 = vdwg.mxu0
  %v4370 = vadd.f32 %v4196, %v4308
  %v4371 = vadd.f32 %v4197, %v4311
  %v4372 = vadd.f32 %v4198, %v4316
  %v4373 = vadd.f32 %v4199, %v4319
  %v4374 = vadd.f32 %v4200, %v4324
  %v4375 = vadd.f32 %v4201, %v4327
  %v4376 = vadd.f32 %v4202, %v4332
  %v4377 = vadd.f32 %v4203, %v4335
  %v4378 = vadd.f32 %v4204, %v4340
  %v4379 = vadd.f32 %v4205, %v4343
  %v4380 = vadd.f32 %v4206, %v4348
  %v4381 = vadd.f32 %v4207, %v4351
  %v4382 = vadd.f32 %v4208, %v4356
  %v4383 = vadd.f32 %v4209, %v4359
  %v4384 = vadd.f32 %v4210, %v4364
  %v4385 = vadd.f32 %v4211, %v4367
  %v4386 = vrot.slane %v3413, 2
  %v4387 = vrot.slane %v3414, 2
  %v4388 = vsel %vm460, %v4386, %v4387
  %v4389 = vrot.slane %v3433, 2
  %v4390 = vrot.slane %v3434, 2
  %v4391 = vsel %vm460, %v4389, %v4390
  %v4394 = vpack.c.bf16 %v3832, %v3829
  %v4395 = vpack.c.bf16 %v3838, %v3835
  %v4396 = vpack.c.bf16 %v3844, %v3841
  %v4397 = vpack.c.bf16 %v4388, %v3847
  %v4398 = vpack.c.bf16 %v3856, %v3853
  %v4399 = vpack.c.bf16 %v3862, %v3859
  %v4400 = vpack.c.bf16 %v3868, %v3865
  %v4401 = vpack.c.bf16 %v4391, %v3871
  %s4402 = scalar_lea.vmem %s9, 80
  %v4403 = vld [vmem:[%s4402] sm:$0xf]
  %v4404 = vld [vmem:[%s4402 + $0x4] sm:$0xf]
  %v4405 = vld [vmem:[%s4402 + $0x8] sm:$0xf]
  %v4406 = vld [vmem:[%s4402 + $0xc] sm:$0xf]
  %v4411 = vunpack.c.l.b16 %v4403
  %v4412 = vunpack.c.l.b16 %v4404
  %v4413 = vunpack.c.l.b16 %v4405
  %v4414 = vunpack.c.l.b16 %v4406
  %v4415 = vpack.c.b16 %v4412, %v4411
  %v4416 = vpack.c.b16 %v4414, %v4413
  %v4420 = vsel %vm1605, %v4394, 0
  %v4423 = vsel %vm1605, %v4395, 0
  %v4426 = vsel %vm1605, %v4396, 0
  %v4429 = vsel %vm1605, %v4397, 0
  %v4432 = vsel %vm1605, %v4398, 0
  %v4435 = vsel %vm1605, %v4399, 0
  %v4438 = vsel %vm1605, %v4400, 0
  %v4441 = vsel %vm1605, %v4401, 0
  %4443 = vmatprep.subr.bf16.mxu0 0
  %4444 = vmatpush1.bf16.msra.mxu0 %v4415
  %4445 = vmatprep.subr.bf16.mxu0 0
  %4446 = vmatpush1.bf16.msra.mxu0 %v4416
  %4447 = vmatprep.subr.bf16.mxu0 0
  %4448 = vmatpush1.bf16.msra.mxu0 0
  %4449 = vmatprep.subr.bf16.mxu0 0
  %4450 = vmatpush1.bf16.msra.mxu0 0
  %4451 = vmatprep.subr.bf16.mxu0 0
  %4452 = vmatpush1.bf16.msra.mxu0 0
  %4453 = vmatprep.subr.bf16.mxu0 0
  %4454 = vmatpush1.bf16.msra.mxu0 0
  %4455 = vmatprep.subr.bf16.mxu0 0
  %4456 = vmatpush1.bf16.msra.mxu0 0
  %4457 = vmatprep.subr.bf16.mxu0 0
  %4458 = vmatpush1.bf16.msra.mxu0 0
  %4459 = vmatprep.subr.bf16.mxu0 0
  %4460 = vmatpush1.bf16.msra.mxu0 0
  %4461 = vmatprep.subr.bf16.mxu0 0
  %4462 = vmatpush1.bf16.msra.mxu0 0
  %4463 = vmatprep.subr.bf16.mxu0 0
  %4464 = vmatpush1.bf16.msra.mxu0 0
  %4465 = vmatprep.subr.bf16.mxu0 0
  %4466 = vmatpush1.bf16.msra.mxu0 0
  %4467 = vmatprep.subr.bf16.mxu0 0
  %4468 = vmatpush1.bf16.msra.mxu0 0
  %4469 = vmatprep.subr.bf16.mxu0 0
  %4470 = vmatpush1.bf16.msra.mxu0 0
  %4471 = vmatprep.subr.bf16.mxu0 0
  %4472 = vmatpush1.bf16.msra.mxu0 0
  %4473 = vmatprep.subr.bf16.mxu0 0
  %4474 = vmatpush1.bf16.msra.mxu0 0
  %4475 = vmatprep.mubr.bf16.mxu0 0
  %4476 = vmatmul.mubr.bf16.gmra.mrb[0].mxu0 %v4420
  %v4477 = vpop.f32.mrb[0].mxu0
  %v4478 = vadd.f32 0.0, %v4477
  %v4479 = vpop.f32.mrb[0].mxu0
  %v4480 = vpop.f32.mrb[0].mxu0
  %v4481 = vadd.f32 0.0, %v4480
  %v4482 = vpop.f32.mrb[0].mxu0
  %4483 = vmatprep.mubr.bf16.mxu0 0
  %4484 = vmatmul.mubr.bf16.gmra.mrb[0].mxu0 %v4423
  %v4485 = vpop.f32.mrb[0].mxu0
  %v4486 = vadd.f32 0.0, %v4485
  %v4487 = vpop.f32.mrb[0].mxu0
  %v4488 = vpop.f32.mrb[0].mxu0
  %v4489 = vadd.f32 0.0, %v4488
  %v4490 = vpop.f32.mrb[0].mxu0
  %4491 = vmatprep.mubr.bf16.mxu0 0
  %4492 = vmatmul.mubr.bf16.gmra.mrb[0].mxu0 %v4426
  %v4493 = vpop.f32.mrb[0].mxu0
  %v4494 = vadd.f32 0.0, %v4493
  %v4495 = vpop.f32.mrb[0].mxu0
  %v4496 = vpop.f32.mrb[0].mxu0
  %v4497 = vadd.f32 0.0, %v4496
  %v4498 = vpop.f32.mrb[0].mxu0
  %4499 = vmatprep.mubr.bf16.mxu0 0
  %4500 = vmatmul.mubr.bf16.gmra.mrb[0].mxu0 %v4429
  %v4501 = vpop.f32.mrb[0].mxu0
  %v4502 = vadd.f32 0.0, %v4501
  %v4503 = vpop.f32.mrb[0].mxu0
  %v4504 = vpop.f32.mrb[0].mxu0
  %v4505 = vadd.f32 0.0, %v4504
  %v4506 = vpop.f32.mrb[0].mxu0
  %4507 = vmatprep.mubr.bf16.mxu0 0
  %4508 = vmatmul.mubr.bf16.gmra.mrb[0].mxu0 %v4432
  %v4509 = vpop.f32.mrb[0].mxu0
  %v4510 = vadd.f32 0.0, %v4509
  %v4511 = vpop.f32.mrb[0].mxu0
  %v4512 = vpop.f32.mrb[0].mxu0
  %v4513 = vadd.f32 0.0, %v4512
  %v4514 = vpop.f32.mrb[0].mxu0
  %4515 = vmatprep.mubr.bf16.mxu0 0
  %4516 = vmatmul.mubr.bf16.gmra.mrb[0].mxu0 %v4435
  %v4517 = vpop.f32.mrb[0].mxu0
  %v4518 = vadd.f32 0.0, %v4517
  %v4519 = vpop.f32.mrb[0].mxu0
  %v4520 = vpop.f32.mrb[0].mxu0
  %v4521 = vadd.f32 0.0, %v4520
  %v4522 = vpop.f32.mrb[0].mxu0
  %4523 = vmatprep.mubr.bf16.mxu0 0
  %4524 = vmatmul.mubr.bf16.gmra.mrb[0].mxu0 %v4438
  %v4525 = vpop.f32.mrb[0].mxu0
  %v4526 = vadd.f32 0.0, %v4525
  %v4527 = vpop.f32.mrb[0].mxu0
  %v4528 = vpop.f32.mrb[0].mxu0
  %v4529 = vadd.f32 0.0, %v4528
  %v4530 = vpop.f32.mrb[0].mxu0
  %4531 = vmatprep.mubr.bf16.mxu0 0
  %4532 = vmatmul.mubr.bf16.gmra.mrb[0].mxu0 %v4441
  %v4533 = vpop.f32.mrb[0].mxu0
  %v4534 = vadd.f32 0.0, %v4533
  %v4535 = vpop.f32.mrb[0].mxu0
  %v4536 = vpop.f32.mrb[0].mxu0
  %v4537 = vadd.f32 0.0, %v4536
  %v4538 = vpop.f32.mrb[0].mxu0
  %4539 = vdwg.mxu0
  %v4540 = vadd.f32 %v4370, %v4478
  %v4541 = vadd.f32 %v4371, %v4481
  %v4542 = vadd.f32 %v4372, %v4486
  %v4543 = vadd.f32 %v4373, %v4489
  %v4544 = vadd.f32 %v4374, %v4494
  %v4545 = vadd.f32 %v4375, %v4497
  %v4546 = vadd.f32 %v4376, %v4502
  %v4547 = vadd.f32 %v4377, %v4505
  %v4548 = vadd.f32 %v4378, %v4510
  %v4549 = vadd.f32 %v4379, %v4513
  %v4550 = vadd.f32 %v4380, %v4518
  %v4551 = vadd.f32 %v4381, %v4521
  %v4552 = vadd.f32 %v4382, %v4526
  %v4553 = vadd.f32 %v4383, %v4529
  %v4554 = vadd.f32 %v4384, %v4534
  %v4555 = vadd.f32 %v4385, %v4537
  %v4556 = vpack.c.bf16 %v3415, %v3413
  %v4557 = vpack.c.bf16 %v3435, %v3433
  %s4558 = scalar_lea.vmem %s9, 96
  %v4559 = vld [vmem:[%s4558] sm:$0xf]
  %v4560 = vld [vmem:[%s4558 + $0x4] sm:$0xf]
  %v4561 = vld [vmem:[%s4558 + $0x8] sm:$0xf]
  %v4562 = vld [vmem:[%s4558 + $0xc] sm:$0xf]
  %v4567 = vunpack.c.l.b16 %v4559
  %v4568 = vunpack.c.l.b16 %v4560
  %v4569 = vunpack.c.l.b16 %v4561
  %v4570 = vunpack.c.l.b16 %v4562
  %v4571 = vpack.c.b16 %v4568, %v4567
  %v4572 = vpack.c.b16 %v4570, %v4569
  %v4576 = vsel %vm1605, %v4556, 0
  %v4579 = vsel %vm1605, %v4557, 0
  %4581 = vmatprep.subr.bf16.mxu0 0
  %4582 = vmatpush1.bf16.msra.mxu0 %v4571
  %4583 = vmatprep.subr.bf16.mxu0 0
  %4584 = vmatpush1.bf16.msra.mxu0 %v4572
  %4585 = vmatprep.subr.bf16.mxu0 0
  %4586 = vmatpush1.bf16.msra.mxu0 0
  %4587 = vmatprep.subr.bf16.mxu0 0
  %4588 = vmatpush1.bf16.msra.mxu0 0
  %4589 = vmatprep.subr.bf16.mxu0 0
  %4590 = vmatpush1.bf16.msra.mxu0 0
  %4591 = vmatprep.subr.bf16.mxu0 0
  %4592 = vmatpush1.bf16.msra.mxu0 0
  %4593 = vmatprep.subr.bf16.mxu0 0
  %4594 = vmatpush1.bf16.msra.mxu0 0
  %4595 = vmatprep.subr.bf16.mxu0 0
  %4596 = vmatpush1.bf16.msra.mxu0 0
  %4597 = vmatprep.subr.bf16.mxu0 0
  %4598 = vmatpush1.bf16.msra.mxu0 0
  %4599 = vmatprep.subr.bf16.mxu0 0
  %4600 = vmatpush1.bf16.msra.mxu0 0
  %4601 = vmatprep.subr.bf16.mxu0 0
  %4602 = vmatpush1.bf16.msra.mxu0 0
  %4603 = vmatprep.subr.bf16.mxu0 0
  %4604 = vmatpush1.bf16.msra.mxu0 0
  %4605 = vmatprep.subr.bf16.mxu0 0
  %4606 = vmatpush1.bf16.msra.mxu0 0
  %4607 = vmatprep.subr.bf16.mxu0 0
  %4608 = vmatpush1.bf16.msra.mxu0 0
  %4609 = vmatprep.subr.bf16.mxu0 0
  %4610 = vmatpush1.bf16.msra.mxu0 0
  %4611 = vmatprep.subr.bf16.mxu0 0
  %4612 = vmatpush1.bf16.msra.mxu0 0
  %4613 = vmatprep.mubr.bf16.mxu0 0
  %4614 = vmatmul.mubr.bf16.gmra.mrb[0].mxu0 %v3707
  %v4615 = vpop.f32.mrb[0].mxu0
  %v4616 = vadd.f32 0.0, %v4615
  %v4617 = vpop.f32.mrb[0].mxu0
  %v4618 = vpop.f32.mrb[0].mxu0
  %v4619 = vadd.f32 0.0, %v4618
  %v4620 = vpop.f32.mrb[0].mxu0
  %4621 = vmatprep.mubr.bf16.mxu0 0
  %4622 = vmatmul.mubr.bf16.gmra.mrb[0].mxu0 %v3710
  %v4623 = vpop.f32.mrb[0].mxu0
  %v4624 = vadd.f32 0.0, %v4623
  %v4625 = vpop.f32.mrb[0].mxu0
  %v4626 = vpop.f32.mrb[0].mxu0
  %v4627 = vadd.f32 0.0, %v4626
  %v4628 = vpop.f32.mrb[0].mxu0
  %4629 = vmatprep.mubr.bf16.mxu0 0
  %4630 = vmatmul.mubr.bf16.gmra.mrb[0].mxu0 %v3713
  %v4631 = vpop.f32.mrb[0].mxu0
  %v4632 = vadd.f32 0.0, %v4631
  %v4633 = vpop.f32.mrb[0].mxu0
  %v4634 = vpop.f32.mrb[0].mxu0
  %v4635 = vadd.f32 0.0, %v4634
  %v4636 = vpop.f32.mrb[0].mxu0
  %4637 = vmatprep.mubr.bf16.mxu0 0
  %4638 = vmatmul.mubr.bf16.gmra.mrb[0].mxu0 %v4576
  %v4639 = vpop.f32.mrb[0].mxu0
  %v4640 = vadd.f32 0.0, %v4639
  %v4641 = vpop.f32.mrb[0].mxu0
  %v4642 = vpop.f32.mrb[0].mxu0
  %v4643 = vadd.f32 0.0, %v4642
  %v4644 = vpop.f32.mrb[0].mxu0
  %4645 = vmatprep.mubr.bf16.mxu0 0
  %4646 = vmatmul.mubr.bf16.gmra.mrb[0].mxu0 %v3719
  %v4647 = vpop.f32.mrb[0].mxu0
  %v4648 = vadd.f32 0.0, %v4647
  %v4649 = vpop.f32.mrb[0].mxu0
  %v4650 = vpop.f32.mrb[0].mxu0
  %v4651 = vadd.f32 0.0, %v4650
  %v4652 = vpop.f32.mrb[0].mxu0
  %4653 = vmatprep.mubr.bf16.mxu0 0
  %4654 = vmatmul.mubr.bf16.gmra.mrb[0].mxu0 %v3722
  %v4655 = vpop.f32.mrb[0].mxu0
  %v4656 = vadd.f32 0.0, %v4655
  %v4657 = vpop.f32.mrb[0].mxu0
  %v4658 = vpop.f32.mrb[0].mxu0
  %v4659 = vadd.f32 0.0, %v4658
  %v4660 = vpop.f32.mrb[0].mxu0
  %4661 = vmatprep.mubr.bf16.mxu0 0
  %4662 = vmatmul.mubr.bf16.gmra.mrb[0].mxu0 %v3725
  %v4663 = vpop.f32.mrb[0].mxu0
  %v4664 = vadd.f32 0.0, %v4663
  %v4665 = vpop.f32.mrb[0].mxu0
  %v4666 = vpop.f32.mrb[0].mxu0
  %v4667 = vadd.f32 0.0, %v4666
  %v4668 = vpop.f32.mrb[0].mxu0
  %4669 = vmatprep.mubr.bf16.mxu0 0
  %4670 = vmatmul.mubr.bf16.gmra.mrb[0].mxu0 %v4579
  %v4671 = vpop.f32.mrb[0].mxu0
  %v4672 = vadd.f32 0.0, %v4671
  %v4673 = vpop.f32.mrb[0].mxu0
  %v4674 = vpop.f32.mrb[0].mxu0
  %v4675 = vadd.f32 0.0, %v4674
  %v4676 = vpop.f32.mrb[0].mxu0
  %4677 = vdwg.mxu0
  %v4678 = vadd.f32 %v4540, %v4616
  %v4679 = vadd.f32 %v4541, %v4619
  %v4680 = vadd.f32 %v4542, %v4624
  %v4681 = vadd.f32 %v4543, %v4627
  %v4682 = vadd.f32 %v4544, %v4632
  %v4683 = vadd.f32 %v4545, %v4635
  %v4684 = vadd.f32 %v4546, %v4640
  %v4685 = vadd.f32 %v4547, %v4643
  %v4686 = vadd.f32 %v4548, %v4648
  %v4687 = vadd.f32 %v4549, %v4651
  %v4688 = vadd.f32 %v4550, %v4656
  %v4689 = vadd.f32 %v4551, %v4659
  %v4690 = vadd.f32 %v4552, %v4664
  %v4691 = vadd.f32 %v4553, %v4667
  %v4692 = vadd.f32 %v4554, %v4672
  %v4693 = vadd.f32 %v4555, %v4675
  %v4698 = vrot.slane %v3415, 1
  %v4699 = vrot.slane %v3416, 1
  %v4700 = vsel %vm135, %v4698, %v4699
  %v4701 = vrot.slane %v3435, 1
  %v4702 = vrot.slane %v3436, 1
  %v4703 = vsel %vm135, %v4701, %v4702
  %v4706 = vpack.c.bf16 %v4700, %v4218
  %v4707 = vpack.c.bf16 %v4703, %v4221
  %s4708 = scalar_lea.vmem %s9, 112
  %v4709 = vld [vmem:[%s4708] sm:$0xf]
  %v4710 = vld [vmem:[%s4708 + $0x4] sm:$0xf]
  %v4711 = vld [vmem:[%s4708 + $0x8] sm:$0xf]
  %v4712 = vld [vmem:[%s4708 + $0xc] sm:$0xf]
  %v4717 = vunpack.c.l.b16 %v4709
  %v4718 = vunpack.c.l.b16 %v4710
  %v4719 = vunpack.c.l.b16 %v4711
  %v4720 = vunpack.c.l.b16 %v4712
  %v4721 = vpack.c.b16 %v4718, %v4717
  %v4722 = vpack.c.b16 %v4720, %v4719
  %v4726 = vsel %vm1605, %v4706, 0
  %v4729 = vsel %vm1605, %v4707, 0
  %4731 = vmatprep.subr.bf16.mxu0 0
  %4732 = vmatpush1.bf16.msra.mxu0 %v4721
  %4733 = vmatprep.subr.bf16.mxu0 0
  %4734 = vmatpush1.bf16.msra.mxu0 %v4722
  %4735 = vmatprep.subr.bf16.mxu0 0
  %4736 = vmatpush1.bf16.msra.mxu0 0
  %4737 = vmatprep.subr.bf16.mxu0 0
  %4738 = vmatpush1.bf16.msra.mxu0 0
  %4739 = vmatprep.subr.bf16.mxu0 0
  %4740 = vmatpush1.bf16.msra.mxu0 0
  %4741 = vmatprep.subr.bf16.mxu0 0
  %4742 = vmatpush1.bf16.msra.mxu0 0
  %4743 = vmatprep.subr.bf16.mxu0 0
  %4744 = vmatpush1.bf16.msra.mxu0 0
  %4745 = vmatprep.subr.bf16.mxu0 0
  %4746 = vmatpush1.bf16.msra.mxu0 0
  %4747 = vmatprep.subr.bf16.mxu0 0
  %4748 = vmatpush1.bf16.msra.mxu0 0
  %4749 = vmatprep.subr.bf16.mxu0 0
  %4750 = vmatpush1.bf16.msra.mxu0 0
  %4751 = vmatprep.subr.bf16.mxu0 0
  %4752 = vmatpush1.bf16.msra.mxu0 0
  %4753 = vmatprep.subr.bf16.mxu0 0
  %4754 = vmatpush1.bf16.msra.mxu0 0
  %4755 = vmatprep.subr.bf16.mxu0 0
  %4756 = vmatpush1.bf16.msra.mxu0 0
  %4757 = vmatprep.subr.bf16.mxu0 0
  %4758 = vmatpush1.bf16.msra.mxu0 0
  %4759 = vmatprep.subr.bf16.mxu0 0
  %4760 = vmatpush1.bf16.msra.mxu0 0
  %4761 = vmatprep.subr.bf16.mxu0 0
  %4762 = vmatpush1.bf16.msra.mxu0 0
  %4763 = vmatprep.mubr.bf16.mxu0 0
  %4764 = vmatmul.mubr.bf16.gmra.mrb[0].mxu0 %v3574
  %v4765 = vpop.f32.mrb[0].mxu0
  %v4766 = vadd.f32 0.0, %v4765
  %v4767 = vpop.f32.mrb[0].mxu0
  %v4768 = vpop.f32.mrb[0].mxu0
  %v4769 = vadd.f32 0.0, %v4768
  %v4770 = vpop.f32.mrb[0].mxu0
  %4771 = vmatprep.mubr.bf16.mxu0 0
  %4772 = vmatmul.mubr.bf16.gmra.mrb[0].mxu0 %v3577
  %v4773 = vpop.f32.mrb[0].mxu0
  %v4774 = vadd.f32 0.0, %v4773
  %v4775 = vpop.f32.mrb[0].mxu0
  %v4776 = vpop.f32.mrb[0].mxu0
  %v4777 = vadd.f32 0.0, %v4776
  %v4778 = vpop.f32.mrb[0].mxu0
  %4779 = vmatprep.mubr.bf16.mxu0 0
  %4780 = vmatmul.mubr.bf16.gmra.mrb[0].mxu0 %v3580
  %v4781 = vpop.f32.mrb[0].mxu0
  %v4782 = vadd.f32 0.0, %v4781
  %v4783 = vpop.f32.mrb[0].mxu0
  %v4784 = vpop.f32.mrb[0].mxu0
  %v4785 = vadd.f32 0.0, %v4784
  %v4786 = vpop.f32.mrb[0].mxu0
  %4787 = vmatprep.mubr.bf16.mxu0 0
  %4788 = vmatmul.mubr.bf16.gmra.mrb[0].mxu0 %v4726
  %v4789 = vpop.f32.mrb[0].mxu0
  %v4790 = vadd.f32 0.0, %v4789
  %v4791 = vpop.f32.mrb[0].mxu0
  %v4792 = vpop.f32.mrb[0].mxu0
  %v4793 = vadd.f32 0.0, %v4792
  %v4794 = vpop.f32.mrb[0].mxu0
  %4795 = vmatprep.mubr.bf16.mxu0 0
  %4796 = vmatmul.mubr.bf16.gmra.mrb[0].mxu0 %v3586
  %v4797 = vpop.f32.mrb[0].mxu0
  %v4798 = vadd.f32 0.0, %v4797
  %v4799 = vpop.f32.mrb[0].mxu0
  %v4800 = vpop.f32.mrb[0].mxu0
  %v4801 = vadd.f32 0.0, %v4800
  %v4802 = vpop.f32.mrb[0].mxu0
  %4803 = vmatprep.mubr.bf16.mxu0 0
  %4804 = vmatmul.mubr.bf16.gmra.mrb[0].mxu0 %v3589
  %v4805 = vpop.f32.mrb[0].mxu0
  %v4806 = vadd.f32 0.0, %v4805
  %v4807 = vpop.f32.mrb[0].mxu0
  %v4808 = vpop.f32.mrb[0].mxu0
  %v4809 = vadd.f32 0.0, %v4808
  %v4810 = vpop.f32.mrb[0].mxu0
  %4811 = vmatprep.mubr.bf16.mxu0 0
  %4812 = vmatmul.mubr.bf16.gmra.mrb[0].mxu0 %v3592
  %v4813 = vpop.f32.mrb[0].mxu0
  %v4814 = vadd.f32 0.0, %v4813
  %v4815 = vpop.f32.mrb[0].mxu0
  %v4816 = vpop.f32.mrb[0].mxu0
  %v4817 = vadd.f32 0.0, %v4816
  %v4818 = vpop.f32.mrb[0].mxu0
  %4819 = vmatprep.mubr.bf16.mxu0 0
  %4820 = vmatmul.mubr.bf16.gmra.mrb[0].mxu0 %v4729
  %v4821 = vpop.f32.mrb[0].mxu0
  %v4822 = vadd.f32 0.0, %v4821
  %v4823 = vpop.f32.mrb[0].mxu0
  %v4824 = vpop.f32.mrb[0].mxu0
  %v4825 = vadd.f32 0.0, %v4824
  %v4826 = vpop.f32.mrb[0].mxu0
  %4827 = vdwg.mxu0
  %v4828 = vadd.f32 %v4678, %v4766
  %v4829 = vadd.f32 %v4679, %v4769
  %v4830 = vadd.f32 %v4680, %v4774
  %v4831 = vadd.f32 %v4681, %v4777
  %v4832 = vadd.f32 %v4682, %v4782
  %v4833 = vadd.f32 %v4683, %v4785
  %v4834 = vadd.f32 %v4684, %v4790
  %v4835 = vadd.f32 %v4685, %v4793
  %v4836 = vadd.f32 %v4686, %v4798
  %v4837 = vadd.f32 %v4687, %v4801
  %v4838 = vadd.f32 %v4688, %v4806
  %v4839 = vadd.f32 %v4689, %v4809
  %v4840 = vadd.f32 %v4690, %v4814
  %v4841 = vadd.f32 %v4691, %v4817
  %v4842 = vadd.f32 %v4692, %v4822
  %v4843 = vadd.f32 %v4693, %v4825
  %v4844 = vrot.slane %v3415, 2
  %v4845 = vrot.slane %v3416, 2
  %v4846 = vsel %vm460, %v4844, %v4845
  %v4847 = vrot.slane %v3435, 2
  %v4848 = vrot.slane %v3436, 2
  %v4849 = vsel %vm460, %v4847, %v4848
  %v4852 = vpack.c.bf16 %v4846, %v4388
  %v4853 = vpack.c.bf16 %v4849, %v4391
  %s4854 = scalar_lea.vmem %s9, 128
  %v4855 = vld [vmem:[%s4854] sm:$0xf]
  %v4856 = vld [vmem:[%s4854 + $0x4] sm:$0xf]
  %v4857 = vld [vmem:[%s4854 + $0x8] sm:$0xf]
  %v4858 = vld [vmem:[%s4854 + $0xc] sm:$0xf]
  %v4863 = vunpack.c.l.b16 %v4855
  %v4864 = vunpack.c.l.b16 %v4856
  %v4865 = vunpack.c.l.b16 %v4857
  %v4866 = vunpack.c.l.b16 %v4858
  %v4867 = vpack.c.b16 %v4864, %v4863
  %v4868 = vpack.c.b16 %v4866, %v4865
  %v4872 = vsel %vm1605, %v4852, 0
  %v4875 = vsel %vm1605, %v4853, 0
  %4877 = vmatprep.subr.bf16.mxu0 0
  %4878 = vmatpush1.bf16.msra.mxu0 %v4867
  %4879 = vmatprep.subr.bf16.mxu0 0
  %4880 = vmatpush1.bf16.msra.mxu0 %v4868
  %4881 = vmatprep.subr.bf16.mxu0 0
  %4882 = vmatpush1.bf16.msra.mxu0 0
  %4883 = vmatprep.subr.bf16.mxu0 0
  %4884 = vmatpush1.bf16.msra.mxu0 0
  %4885 = vmatprep.subr.bf16.mxu0 0
  %4886 = vmatpush1.bf16.msra.mxu0 0
  %4887 = vmatprep.subr.bf16.mxu0 0
  %4888 = vmatpush1.bf16.msra.mxu0 0
  %4889 = vmatprep.subr.bf16.mxu0 0
  %4890 = vmatpush1.bf16.msra.mxu0 0
  %4891 = vmatprep.subr.bf16.mxu0 0
  %4892 = vmatpush1.bf16.msra.mxu0 0
  %4893 = vmatprep.subr.bf16.mxu0 0
  %4894 = vmatpush1.bf16.msra.mxu0 0
  %4895 = vmatprep.subr.bf16.mxu0 0
  %4896 = vmatpush1.bf16.msra.mxu0 0
  %4897 = vmatprep.subr.bf16.mxu0 0
  %4898 = vmatpush1.bf16.msra.mxu0 0
  %4899 = vmatprep.subr.bf16.mxu0 0
  %4900 = vmatpush1.bf16.msra.mxu0 0
  %4901 = vmatprep.subr.bf16.mxu0 0
  %4902 = vmatpush1.bf16.msra.mxu0 0
  %4903 = vmatprep.subr.bf16.mxu0 0
  %4904 = vmatpush1.bf16.msra.mxu0 0
  %4905 = vmatprep.subr.bf16.mxu0 0
  %4906 = vmatpush1.bf16.msra.mxu0 0
  %4907 = vmatprep.subr.bf16.mxu0 0
  %4908 = vmatpush1.bf16.msra.mxu0 0
  %4909 = vmatprep.mubr.bf16.mxu0 0
  %4910 = vmatmul.mubr.bf16.gmra.mrb[0].mxu0 %v3917
  %v4911 = vpop.f32.mrb[0].mxu0
  %v4912 = vadd.f32 0.0, %v4911
  %v4913 = vpop.f32.mrb[0].mxu0
  %v4914 = vpop.f32.mrb[0].mxu0
  %v4915 = vadd.f32 0.0, %v4914
  %v4916 = vpop.f32.mrb[0].mxu0
  %4917 = vmatprep.mubr.bf16.mxu0 0
  %4918 = vmatmul.mubr.bf16.gmra.mrb[0].mxu0 %v3920
  %v4919 = vpop.f32.mrb[0].mxu0
  %v4920 = vadd.f32 0.0, %v4919
  %v4921 = vpop.f32.mrb[0].mxu0
  %v4922 = vpop.f32.mrb[0].mxu0
  %v4923 = vadd.f32 0.0, %v4922
  %v4924 = vpop.f32.mrb[0].mxu0
  %4925 = vmatprep.mubr.bf16.mxu0 0
  %4926 = vmatmul.mubr.bf16.gmra.mrb[0].mxu0 %v3923
  %v4927 = vpop.f32.mrb[0].mxu0
  %v4928 = vadd.f32 0.0, %v4927
  %v4929 = vpop.f32.mrb[0].mxu0
  %v4930 = vpop.f32.mrb[0].mxu0
  %v4931 = vadd.f32 0.0, %v4930
  %v4932 = vpop.f32.mrb[0].mxu0
  %4933 = vmatprep.mubr.bf16.mxu0 0
  %4934 = vmatmul.mubr.bf16.gmra.mrb[0].mxu0 %v4872
  %v4935 = vpop.f32.mrb[0].mxu0
  %v4936 = vadd.f32 0.0, %v4935
  %v4937 = vpop.f32.mrb[0].mxu0
  %v4938 = vpop.f32.mrb[0].mxu0
  %v4939 = vadd.f32 0.0, %v4938
  %v4940 = vpop.f32.mrb[0].mxu0
  %4941 = vmatprep.mubr.bf16.mxu0 0
  %4942 = vmatmul.mubr.bf16.gmra.mrb[0].mxu0 %v3929
  %v4943 = vpop.f32.mrb[0].mxu0
  %v4944 = vadd.f32 0.0, %v4943
  %v4945 = vpop.f32.mrb[0].mxu0
  %v4946 = vpop.f32.mrb[0].mxu0
  %v4947 = vadd.f32 0.0, %v4946
  %v4948 = vpop.f32.mrb[0].mxu0
  %4949 = vmatprep.mubr.bf16.mxu0 0
  %4950 = vmatmul.mubr.bf16.gmra.mrb[0].mxu0 %v3932
  %v4951 = vpop.f32.mrb[0].mxu0
  %v4952 = vadd.f32 0.0, %v4951
  %v4953 = vpop.f32.mrb[0].mxu0
  %v4954 = vpop.f32.mrb[0].mxu0
  %v4955 = vadd.f32 0.0, %v4954
  %v4956 = vpop.f32.mrb[0].mxu0
  %4957 = vmatprep.mubr.bf16.mxu0 0
  %4958 = vmatmul.mubr.bf16.gmra.mrb[0].mxu0 %v3935
  %v4959 = vpop.f32.mrb[0].mxu0
  %v4960 = vadd.f32 0.0, %v4959
  %v4961 = vpop.f32.mrb[0].mxu0
  %v4962 = vpop.f32.mrb[0].mxu0
  %v4963 = vadd.f32 0.0, %v4962
  %v4964 = vpop.f32.mrb[0].mxu0
  %4965 = vmatprep.mubr.bf16.mxu0 0
  %4966 = vmatmul.mubr.bf16.gmra.mrb[0].mxu0 %v4875
  %v4967 = vpop.f32.mrb[0].mxu0
  %v4968 = vadd.f32 0.0, %v4967
  %v4969 = vpop.f32.mrb[0].mxu0
  %v4970 = vpop.f32.mrb[0].mxu0
  %v4971 = vadd.f32 0.0, %v4970
  %v4972 = vpop.f32.mrb[0].mxu0
  %4973 = vdwg.mxu0
  %v4974 = vadd.f32 %v4828, %v4912
  %v4975 = vadd.f32 %v4829, %v4915
  %v4976 = vadd.f32 %v4830, %v4920
  %v4977 = vadd.f32 %v4831, %v4923
  %v4978 = vadd.f32 %v4832, %v4928
  %v4979 = vadd.f32 %v4833, %v4931
  %v4980 = vadd.f32 %v4834, %v4936
  %v4981 = vadd.f32 %v4835, %v4939
  %v4982 = vadd.f32 %v4836, %v4944
  %v4983 = vadd.f32 %v4837, %v4947
  %v4984 = vadd.f32 %v4838, %v4952
  %v4985 = vadd.f32 %v4839, %v4955
  %v4986 = vadd.f32 %v4840, %v4960
  %v4987 = vadd.f32 %v4841, %v4963
  %v4988 = vadd.f32 %v4842, %v4968
  %v4989 = vadd.f32 %v4843, %v4971
  %v4990 = vadd.f32 %v1589, %v4974
  %v4991 = vadd.f32 %v1590, %v4975
  %v4992 = vadd.f32 %v1591, %v4976
  %v4993 = vadd.f32 %v1592, %v4977
  %v4994 = vadd.f32 %v1593, %v4978
  %v4995 = vadd.f32 %v1594, %v4979
  %v4996 = vadd.f32 %v1595, %v4980
  %v4997 = vadd.f32 %v1596, %v4981
  %v4998 = vadd.f32 %v1597, %v4982
  %v4999 = vadd.f32 %v1598, %v4983
  %v5000 = vadd.f32 %v1599, %v4984
  %v5001 = vadd.f32 %v1600, %v4985
  %v5002 = vadd.f32 %v1601, %v4986
  %v5003 = vadd.f32 %v1602, %v4987
  %v5004 = vadd.f32 %v1603, %v4988
  %v5005 = vadd.f32 %v1604, %v4989
  %v5006 = vld [vmem:[%s10] sm:$0x1]
  %v5008 = vlaneseq
  %v5009 = vshrl.u32 %v5008, 7
  %v5010 = vsub.s32 0, %v5009
  %v5011 = vrot.slane %v5006, %v5010
  %v5013 = vmul.f32 %v4990, %v5011
  %v5014 = vmul.f32 %v4991, %v5011
  %v5015 = vmul.f32 %v4992, %v5011
  %v5016 = vmul.f32 %v4993, %v5011
  %v5017 = vmul.f32 %v4994, %v5011
  %v5018 = vmul.f32 %v4995, %v5011
  %v5019 = vmul.f32 %v4996, %v5011
  %v5020 = vmul.f32 %v4997, %v5011
  %v5021 = vmul.f32 %v4998, %v5011
  %v5022 = vmul.f32 %v4999, %v5011
  %v5023 = vmul.f32 %v5000, %v5011
  %v5024 = vmul.f32 %v5001, %v5011
  %v5025 = vmul.f32 %v5002, %v5011
  %v5026 = vmul.f32 %v5003, %v5011
  %v5027 = vmul.f32 %v5004, %v5011
  %v5028 = vmul.f32 %v5005, %v5011
  %v5029 = vld [vmem:[%s11] sm:$0x1]
  %v5031 = vlaneseq
  %v5032 = vshrl.u32 %v5031, 7
  %v5033 = vsub.s32 0, %v5032
  %v5034 = vrot.slane %v5029, %v5033
  %v5036 = vadd.f32 %v5013, %v5034
  %v5037 = vadd.f32 %v5014, %v5034
  %v5038 = vadd.f32 %v5015, %v5034
  %v5039 = vadd.f32 %v5016, %v5034
  %v5040 = vadd.f32 %v5017, %v5034
  %v5041 = vadd.f32 %v5018, %v5034
  %v5042 = vadd.f32 %v5019, %v5034
  %v5043 = vadd.f32 %v5020, %v5034
  %v5044 = vadd.f32 %v5021, %v5034
  %v5045 = vadd.f32 %v5022, %v5034
  %v5046 = vadd.f32 %v5023, %v5034
  %v5047 = vadd.f32 %v5024, %v5034
  %v5048 = vadd.f32 %v5025, %v5034
  %v5049 = vadd.f32 %v5026, %v5034
  %v5050 = vadd.f32 %v5027, %v5034
  %v5051 = vadd.f32 %v5028, %v5034
  %v5052 = vmax.f32 %v5036, 0.0
  %v5053 = vmax.f32 %v5037, 0.0
  %v5054 = vmax.f32 %v5038, 0.0
  %v5055 = vmax.f32 %v5039, 0.0
  %v5056 = vmax.f32 %v5040, 0.0
  %v5057 = vmax.f32 %v5041, 0.0
  %v5058 = vmax.f32 %v5042, 0.0
  %v5059 = vmax.f32 %v5043, 0.0
  %v5060 = vmax.f32 %v5044, 0.0
  %v5061 = vmax.f32 %v5045, 0.0
  %v5062 = vmax.f32 %v5046, 0.0
  %v5063 = vmax.f32 %v5047, 0.0
  %v5064 = vmax.f32 %v5048, 0.0
  %v5065 = vmax.f32 %v5049, 0.0
  %v5066 = vmax.f32 %v5050, 0.0
  %v5067 = vmax.f32 %v5051, 0.0
  %5068 = vst.msk [vmem:[%s1709 + $0x1] sm:$0xff] %vm1605, %v5052
  %5069 = vst.msk [vmem:[%s1709 + $0x11] sm:$0xff] %vm1605, %v5053
  %5070 = vst.msk [vmem:[%s1709 + $0x21] sm:$0xff] %vm1605, %v5054
  %5071 = vst.msk [vmem:[%s1709 + $0x31] sm:$0xff] %vm1605, %v5055
  %5072 = vst.msk [vmem:[%s1709 + $0x41] sm:$0xff] %vm1605, %v5056
  %5073 = vst.msk [vmem:[%s1709 + $0x51] sm:$0xff] %vm1605, %v5057
  %5074 = vst.msk [vmem:[%s1709 + $0x61] sm:$0xff] %vm1605, %v5058
  %5075 = vst.msk [vmem:[%s1709 + $0x71] sm:$0xff] %vm1605, %v5059
  %5076 = vst.msk [vmem:[%s1709 + $0xa1] sm:$0xff] %vm1605, %v5060
  %5077 = vst.msk [vmem:[%s1709 + $0xb1] sm:$0xff] %vm1605, %v5061
  %5078 = vst.msk [vmem:[%s1709 + $0xc1] sm:$0xff] %vm1605, %v5062
  %5079 = vst.msk [vmem:[%s1709 + $0xd1] sm:$0xff] %vm1605, %v5063
  %5080 = vst.msk [vmem:[%s1709 + $0xe1] sm:$0xff] %vm1605, %v5064
  %5081 = vst.msk [vmem:[%s1709 + $0xf1] sm:$0xff] %vm1605, %v5065
  %5082 = vst.msk [vmem:[%s1709 + $0x101] sm:$0xff] %vm1605, %v5066
  %5083 = vst.msk [vmem:[%s1709 + $0x111] sm:$0xff] %vm1605, %v5067
  %v5084 = vld [vmem:[#allocation2] sm:$0xff]
  %v5085 = vld [vmem:[#allocation2 + $0x8] sm:$0x3]
  %v5086 = vld [vmem:[#allocation2 + $0x10] sm:$0xff]
  %v5087 = vld [vmem:[#allocation2 + $0x18] sm:$0x3]
  %v5088 = vld [vmem:[#allocation2 + $0x20] sm:$0xff]
  %v5089 = vld [vmem:[#allocation2 + $0x28] sm:$0x3]
  %v5090 = vld [vmem:[#allocation2 + $0x30] sm:$0xff]
  %v5091 = vld [vmem:[#allocation2 + $0x38] sm:$0x3]
  %v5092 = vld [vmem:[#allocation2 + $0x40] sm:$0xff]
  %v5093 = vld [vmem:[#allocation2 + $0x48] sm:$0x3]
  %v5094 = vld [vmem:[#allocation2 + $0x50] sm:$0xff]
  %v5095 = vld [vmem:[#allocation2 + $0x58] sm:$0x3]
  %v5096 = vld [vmem:[#allocation2 + $0x60] sm:$0xff]
  %v5097 = vld [vmem:[#allocation2 + $0x68] sm:$0x3]
  %v5098 = vld [vmem:[#allocation2 + $0x70] sm:$0xff]
  %v5099 = vld [vmem:[#allocation2 + $0x78] sm:$0x3]
  %v5100 = vld [vmem:[#allocation2 + $0x80] sm:$0xff]
  %v5101 = vld [vmem:[#allocation2 + $0x88] sm:$0x3]
  %v5102 = vld [vmem:[#allocation2 + $0x90] sm:$0xff]
  %v5103 = vld [vmem:[#allocation2 + $0x98] sm:$0x3]
  %v5104 = vld [vmem:[#allocation2 + $0xa0] sm:$0xff]
  %v5105 = vld [vmem:[#allocation2 + $0xa8] sm:$0x3]
  %v5106 = vld [vmem:[#allocation2 + $0xb0] sm:$0xff]
  %v5107 = vld [vmem:[#allocation2 + $0xb8] sm:$0x3]
  %v5108 = vld [vmem:[#allocation2 + $0xc0] sm:$0xff]
  %v5109 = vld [vmem:[#allocation2 + $0xc8] sm:$0x3]
  %v5110 = vld [vmem:[#allocation2 + $0xd0] sm:$0xff]
  %v5111 = vld [vmem:[#allocation2 + $0xd8] sm:$0x3]
  %v5112 = vld [vmem:[#allocation2 + $0xe0] sm:$0xff]
  %v5113 = vld [vmem:[#allocation2 + $0xe8] sm:$0x3]
  %v5114 = vld [vmem:[#allocation2 + $0xf0] sm:$0xff]
  %v5115 = vld [vmem:[#allocation2 + $0xf8] sm:$0x3]
  %v5116 = vld [vmem:[#allocation2 + $0x100] sm:$0xff]
  %v5117 = vld [vmem:[#allocation2 + $0x108] sm:$0x3]
  %v5118 = vld [vmem:[#allocation2 + $0x110] sm:$0xff]
  %v5119 = vld [vmem:[#allocation2 + $0x118] sm:$0x3]
  %v5120 = vld [vmem:[#allocation2 + $0x120] sm:$0xff]
  %v5121 = vld [vmem:[#allocation2 + $0x128] sm:$0x3]
  %v5122 = vld [vmem:[#allocation2 + $0x130] sm:$0xff]
  %v5123 = vld [vmem:[#allocation2 + $0x138] sm:$0x3]
  %v5124 = vpack.c.bf16 %v5086, %v5084
  %v5125 = vpack.c.bf16 %v5090, %v5088
  %v5126 = vpack.c.bf16 %v5094, %v5092
  %v5127 = vpack.c.bf16 %v5098, %v5096
  %v5128 = vpack.c.bf16 %v5106, %v5104
  %v5129 = vpack.c.bf16 %v5110, %v5108
  %v5130 = vpack.c.bf16 %v5114, %v5112
  %v5131 = vpack.c.bf16 %v5118, %v5116
  %v5132 = vld [vmem:[%s12] sm:$0xf]
  %v5133 = vld [vmem:[%s12 + $0x4] sm:$0xf]
  %v5134 = vld [vmem:[%s12 + $0x8] sm:$0xf]
  %v5135 = vld [vmem:[%s12 + $0xc] sm:$0xf]
  %v5168 = vrot.slane %v5084, 1
  %v5169 = vrot.slane %v5085, 1
  %v5170 = vsel %vm135, %v5168, %v5169
  %v5171 = vrot.slane %v5086, 1
  %v5172 = vrot.slane %v5087, 1
  %v5173 = vsel %vm135, %v5171, %v5172
  %v5174 = vrot.slane %v5088, 1
  %v5175 = vrot.slane %v5089, 1
  %v5176 = vsel %vm135, %v5174, %v5175
  %v5177 = vrot.slane %v5090, 1
  %v5178 = vrot.slane %v5091, 1
  %v5179 = vsel %vm135, %v5177, %v5178
  %v5180 = vrot.slane %v5092, 1
  %v5181 = vrot.slane %v5093, 1
  %v5182 = vsel %vm135, %v5180, %v5181
  %v5183 = vrot.slane %v5094, 1
  %v5184 = vrot.slane %v5095, 1
  %v5185 = vsel %vm135, %v5183, %v5184
  %v5186 = vrot.slane %v5096, 1
  %v5187 = vrot.slane %v5097, 1
  %v5188 = vsel %vm135, %v5186, %v5187
  %v5189 = vrot.slane %v5098, 1
  %v5190 = vrot.slane %v5099, 1
  %v5191 = vsel %vm135, %v5189, %v5190
  %v5192 = vrot.slane %v5104, 1
  %v5193 = vrot.slane %v5105, 1
  %v5194 = vsel %vm135, %v5192, %v5193
  %v5195 = vrot.slane %v5106, 1
  %v5196 = vrot.slane %v5107, 1
  %v5197 = vsel %vm135, %v5195, %v5196
  %v5198 = vrot.slane %v5108, 1
  %v5199 = vrot.slane %v5109, 1
  %v5200 = vsel %vm135, %v5198, %v5199
  %v5201 = vrot.slane %v5110, 1
  %v5202 = vrot.slane %v5111, 1
  %v5203 = vsel %vm135, %v5201, %v5202
  %v5204 = vrot.slane %v5112, 1
  %v5205 = vrot.slane %v5113, 1
  %v5206 = vsel %vm135, %v5204, %v5205
  %v5207 = vrot.slane %v5114, 1
  %v5208 = vrot.slane %v5115, 1
  %v5209 = vsel %vm135, %v5207, %v5208
  %v5210 = vrot.slane %v5116, 1
  %v5211 = vrot.slane %v5117, 1
  %v5212 = vsel %vm135, %v5210, %v5211
  %v5213 = vrot.slane %v5118, 1
  %v5214 = vrot.slane %v5119, 1
  %v5215 = vsel %vm135, %v5213, %v5214
  %v5232 = vpack.c.bf16 %v5173, %v5170
  %v5233 = vpack.c.bf16 %v5179, %v5176
  %v5234 = vpack.c.bf16 %v5185, %v5182
  %v5235 = vpack.c.bf16 %v5191, %v5188
  %v5236 = vpack.c.bf16 %v5197, %v5194
  %v5237 = vpack.c.bf16 %v5203, %v5200
  %v5238 = vpack.c.bf16 %v5209, %v5206
  %v5239 = vpack.c.bf16 %v5215, %v5212
  %s5240 = scalar_lea.vmem %s12, 16
  %v5241 = vld [vmem:[%s5240] sm:$0xf]
  %v5242 = vld [vmem:[%s5240 + $0x4] sm:$0xf]
  %v5243 = vld [vmem:[%s5240 + $0x8] sm:$0xf]
  %v5244 = vld [vmem:[%s5240 + $0xc] sm:$0xf]
  %v5249 = vunpack.c.l.b16 %v5241
  %v5250 = vunpack.c.l.b16 %v5242
  %v5251 = vunpack.c.l.b16 %v5243
  %v5252 = vunpack.c.l.b16 %v5244
  %v5253 = vpack.c.b16 %v5250, %v5249
  %v5254 = vpack.c.b16 %v5252, %v5251
  %v5258 = vsel %vm1605, %v5232, 0
  %v5261 = vsel %vm1605, %v5233, 0
  %v5264 = vsel %vm1605, %v5234, 0
  %v5267 = vsel %vm1605, %v5235, 0
  %v5270 = vsel %vm1605, %v5236, 0
  %v5273 = vsel %vm1605, %v5237, 0
  %v5276 = vsel %vm1605, %v5238, 0
  %v5279 = vsel %vm1605, %v5239, 0
  %5281 = vmatprep.subr.bf16.mxu0 0
  %5282 = vmatpush1.bf16.msra.mxu0 %v5253
  %5283 = vmatprep.subr.bf16.mxu0 0
  %5284 = vmatpush1.bf16.msra.mxu0 %v5254
  %5285 = vmatprep.subr.bf16.mxu0 0
  %5286 = vmatpush1.bf16.msra.mxu0 0
  %5287 = vmatprep.subr.bf16.mxu0 0
  %5288 = vmatpush1.bf16.msra.mxu0 0
  %5289 = vmatprep.subr.bf16.mxu0 0
  %5290 = vmatpush1.bf16.msra.mxu0 0
  %5291 = vmatprep.subr.bf16.mxu0 0
  %5292 = vmatpush1.bf16.msra.mxu0 0
  %5293 = vmatprep.subr.bf16.mxu0 0
  %5294 = vmatpush1.bf16.msra.mxu0 0
  %5295 = vmatprep.subr.bf16.mxu0 0
  %5296 = vmatpush1.bf16.msra.mxu0 0
  %5297 = vmatprep.subr.bf16.mxu0 0
  %5298 = vmatpush1.bf16.msra.mxu0 0
  %5299 = vmatprep.subr.bf16.mxu0 0
  %5300 = vmatpush1.bf16.msra.mxu0 0
  %5301 = vmatprep.subr.bf16.mxu0 0
  %5302 = vmatpush1.bf16.msra.mxu0 0
  %5303 = vmatprep.subr.bf16.mxu0 0
  %5304 = vmatpush1.bf16.msra.mxu0 0
  %5305 = vmatprep.subr.bf16.mxu0 0
  %5306 = vmatpush1.bf16.msra.mxu0 0
  %5307 = vmatprep.subr.bf16.mxu0 0
  %5308 = vmatpush1.bf16.msra.mxu0 0
  %5309 = vmatprep.subr.bf16.mxu0 0
  %5310 = vmatpush1.bf16.msra.mxu0 0
  %5311 = vmatprep.subr.bf16.mxu0 0
  %5312 = vmatpush1.bf16.msra.mxu0 0
  %5313 = vmatprep.mubr.bf16.mxu0 0
  %5314 = vmatmul.mubr.bf16.gmra.mrb[0].mxu0 %v5258
  %v5315 = vpop.f32.mrb[0].mxu0
  %v5316 = vadd.f32 0.0, %v5315
  %v5317 = vpop.f32.mrb[0].mxu0
  %v5318 = vpop.f32.mrb[0].mxu0
  %v5319 = vadd.f32 0.0, %v5318
  %v5320 = vpop.f32.mrb[0].mxu0
  %5321 = vmatprep.mubr.bf16.mxu0 0
  %5322 = vmatmul.mubr.bf16.gmra.mrb[0].mxu0 %v5261
  %v5323 = vpop.f32.mrb[0].mxu0
  %v5324 = vadd.f32 0.0, %v5323
  %v5325 = vpop.f32.mrb[0].mxu0
  %v5326 = vpop.f32.mrb[0].mxu0
  %v5327 = vadd.f32 0.0, %v5326
  %v5328 = vpop.f32.mrb[0].mxu0
  %5329 = vmatprep.mubr.bf16.mxu0 0
  %5330 = vmatmul.mubr.bf16.gmra.mrb[0].mxu0 %v5264
  %v5331 = vpop.f32.mrb[0].mxu0
  %v5332 = vadd.f32 0.0, %v5331
  %v5333 = vpop.f32.mrb[0].mxu0
  %v5334 = vpop.f32.mrb[0].mxu0
  %v5335 = vadd.f32 0.0, %v5334
  %v5336 = vpop.f32.mrb[0].mxu0
  %5337 = vmatprep.mubr.bf16.mxu0 0
  %5338 = vmatmul.mubr.bf16.gmra.mrb[0].mxu0 %v5267
  %v5339 = vpop.f32.mrb[0].mxu0
  %v5340 = vadd.f32 0.0, %v5339
  %v5341 = vpop.f32.mrb[0].mxu0
  %v5342 = vpop.f32.mrb[0].mxu0
  %v5343 = vadd.f32 0.0, %v5342
  %v5344 = vpop.f32.mrb[0].mxu0
  %5345 = vmatprep.mubr.bf16.mxu0 0
  %5346 = vmatmul.mubr.bf16.gmra.mrb[0].mxu0 %v5270
  %v5347 = vpop.f32.mrb[0].mxu0
  %v5348 = vadd.f32 0.0, %v5347
  %v5349 = vpop.f32.mrb[0].mxu0
  %v5350 = vpop.f32.mrb[0].mxu0
  %v5351 = vadd.f32 0.0, %v5350
  %v5352 = vpop.f32.mrb[0].mxu0
  %5353 = vmatprep.mubr.bf16.mxu0 0
  %5354 = vmatmul.mubr.bf16.gmra.mrb[0].mxu0 %v5273
  %v5355 = vpop.f32.mrb[0].mxu0
  %v5356 = vadd.f32 0.0, %v5355
  %v5357 = vpop.f32.mrb[0].mxu0
  %v5358 = vpop.f32.mrb[0].mxu0
  %v5359 = vadd.f32 0.0, %v5358
  %v5360 = vpop.f32.mrb[0].mxu0
  %5361 = vmatprep.mubr.bf16.mxu0 0
  %5362 = vmatmul.mubr.bf16.gmra.mrb[0].mxu0 %v5276
  %v5363 = vpop.f32.mrb[0].mxu0
  %v5364 = vadd.f32 0.0, %v5363
  %v5365 = vpop.f32.mrb[0].mxu0
  %v5366 = vpop.f32.mrb[0].mxu0
  %v5367 = vadd.f32 0.0, %v5366
  %v5368 = vpop.f32.mrb[0].mxu0
  %5369 = vmatprep.mubr.bf16.mxu0 0
  %5370 = vmatmul.mubr.bf16.gmra.mrb[0].mxu0 %v5279
  %v5371 = vpop.f32.mrb[0].mxu0
  %v5372 = vadd.f32 0.0, %v5371
  %v5373 = vpop.f32.mrb[0].mxu0
  %v5374 = vpop.f32.mrb[0].mxu0
  %v5375 = vadd.f32 0.0, %v5374
  %v5376 = vpop.f32.mrb[0].mxu0
  %5377 = vdwg.mxu0
  %v5382 = vunpack.c.l.b16 %v5132
  %v5383 = vunpack.c.l.b16 %v5133
  %v5384 = vunpack.c.l.b16 %v5134
  %v5385 = vunpack.c.l.b16 %v5135
  %v5386 = vpack.c.b16 %v5383, %v5382
  %v5387 = vpack.c.b16 %v5385, %v5384
  %v5391 = vsel %vm1605, %v5124, 0
  %v5394 = vsel %vm1605, %v5125, 0
  %v5397 = vsel %vm1605, %v5126, 0
  %v5400 = vsel %vm1605, %v5127, 0
  %v5403 = vsel %vm1605, %v5128, 0
  %v5406 = vsel %vm1605, %v5129, 0
  %v5409 = vsel %vm1605, %v5130, 0
  %v5412 = vsel %vm1605, %v5131, 0
  %5414 = vmatprep.subr.bf16.mxu0 0
  %5415 = vmatpush1.bf16.msra.mxu0 %v5386
  %5416 = vmatprep.subr.bf16.mxu0 0
  %5417 = vmatpush1.bf16.msra.mxu0 %v5387
  %5418 = vmatprep.subr.bf16.mxu0 0
  %5419 = vmatpush1.bf16.msra.mxu0 0
  %5420 = vmatprep.subr.bf16.mxu0 0
  %5421 = vmatpush1.bf16.msra.mxu0 0
  %5422 = vmatprep.subr.bf16.mxu0 0
  %5423 = vmatpush1.bf16.msra.mxu0 0
  %5424 = vmatprep.subr.bf16.mxu0 0
  %5425 = vmatpush1.bf16.msra.mxu0 0
  %5426 = vmatprep.subr.bf16.mxu0 0
  %5427 = vmatpush1.bf16.msra.mxu0 0
  %5428 = vmatprep.subr.bf16.mxu0 0
  %5429 = vmatpush1.bf16.msra.mxu0 0
  %5430 = vmatprep.subr.bf16.mxu0 0
  %5431 = vmatpush1.bf16.msra.mxu0 0
  %5432 = vmatprep.subr.bf16.mxu0 0
  %5433 = vmatpush1.bf16.msra.mxu0 0
  %5434 = vmatprep.subr.bf16.mxu0 0
  %5435 = vmatpush1.bf16.msra.mxu0 0
  %5436 = vmatprep.subr.bf16.mxu0 0
  %5437 = vmatpush1.bf16.msra.mxu0 0
  %5438 = vmatprep.subr.bf16.mxu0 0
  %5439 = vmatpush1.bf16.msra.mxu0 0
  %5440 = vmatprep.subr.bf16.mxu0 0
  %5441 = vmatpush1.bf16.msra.mxu0 0
  %5442 = vmatprep.subr.bf16.mxu0 0
  %5443 = vmatpush1.bf16.msra.mxu0 0
  %5444 = vmatprep.subr.bf16.mxu0 0
  %5445 = vmatpush1.bf16.msra.mxu0 0
  %5446 = vmatprep.mubr.bf16.mxu0 0
  %5447 = vmatmul.mubr.bf16.gmra.mrb[0].mxu0 %v5391
  %v5448 = vpop.f32.mrb[0].mxu0
  %v5449 = vadd.f32 %v5316, %v5448
  %v5450 = vpop.f32.mrb[0].mxu0
  %v5451 = vpop.f32.mrb[0].mxu0
  %v5452 = vadd.f32 %v5319, %v5451
  %v5453 = vpop.f32.mrb[0].mxu0
  %5454 = vmatprep.mubr.bf16.mxu0 0
  %5455 = vmatmul.mubr.bf16.gmra.mrb[0].mxu0 %v5394
  %v5456 = vpop.f32.mrb[0].mxu0
  %v5457 = vadd.f32 %v5324, %v5456
  %v5458 = vpop.f32.mrb[0].mxu0
  %v5459 = vpop.f32.mrb[0].mxu0
  %v5460 = vadd.f32 %v5327, %v5459
  %v5461 = vpop.f32.mrb[0].mxu0
  %5462 = vmatprep.mubr.bf16.mxu0 0
  %5463 = vmatmul.mubr.bf16.gmra.mrb[0].mxu0 %v5397
  %v5464 = vpop.f32.mrb[0].mxu0
  %v5465 = vadd.f32 %v5332, %v5464
  %v5466 = vpop.f32.mrb[0].mxu0
  %v5467 = vpop.f32.mrb[0].mxu0
  %v5468 = vadd.f32 %v5335, %v5467
  %v5469 = vpop.f32.mrb[0].mxu0
  %5470 = vmatprep.mubr.bf16.mxu0 0
  %5471 = vmatmul.mubr.bf16.gmra.mrb[0].mxu0 %v5400
  %v5472 = vpop.f32.mrb[0].mxu0
  %v5473 = vadd.f32 %v5340, %v5472
  %v5474 = vpop.f32.mrb[0].mxu0
  %v5475 = vpop.f32.mrb[0].mxu0
  %v5476 = vadd.f32 %v5343, %v5475
  %v5477 = vpop.f32.mrb[0].mxu0
  %5478 = vmatprep.mubr.bf16.mxu0 0
  %5479 = vmatmul.mubr.bf16.gmra.mrb[0].mxu0 %v5403
  %v5480 = vpop.f32.mrb[0].mxu0
  %v5481 = vadd.f32 %v5348, %v5480
  %v5482 = vpop.f32.mrb[0].mxu0
  %v5483 = vpop.f32.mrb[0].mxu0
  %v5484 = vadd.f32 %v5351, %v5483
  %v5485 = vpop.f32.mrb[0].mxu0
  %5486 = vmatprep.mubr.bf16.mxu0 0
  %5487 = vmatmul.mubr.bf16.gmra.mrb[0].mxu0 %v5406
  %v5488 = vpop.f32.mrb[0].mxu0
  %v5489 = vadd.f32 %v5356, %v5488
  %v5490 = vpop.f32.mrb[0].mxu0
  %v5491 = vpop.f32.mrb[0].mxu0
  %v5492 = vadd.f32 %v5359, %v5491
  %v5493 = vpop.f32.mrb[0].mxu0
  %5494 = vmatprep.mubr.bf16.mxu0 0
  %5495 = vmatmul.mubr.bf16.gmra.mrb[0].mxu0 %v5409
  %v5496 = vpop.f32.mrb[0].mxu0
  %v5497 = vadd.f32 %v5364, %v5496
  %v5498 = vpop.f32.mrb[0].mxu0
  %v5499 = vpop.f32.mrb[0].mxu0
  %v5500 = vadd.f32 %v5367, %v5499
  %v5501 = vpop.f32.mrb[0].mxu0
  %5502 = vmatprep.mubr.bf16.mxu0 0
  %5503 = vmatmul.mubr.bf16.gmra.mrb[0].mxu0 %v5412
  %v5504 = vpop.f32.mrb[0].mxu0
  %v5505 = vadd.f32 %v5372, %v5504
  %v5506 = vpop.f32.mrb[0].mxu0
  %v5507 = vpop.f32.mrb[0].mxu0
  %v5508 = vadd.f32 %v5375, %v5507
  %v5509 = vpop.f32.mrb[0].mxu0
  %5510 = vdwg.mxu0
  %v5511 = vrot.slane %v5084, 2
  %v5512 = vrot.slane %v5085, 2
  %v5513 = vsel %vm460, %v5511, %v5512
  %v5514 = vrot.slane %v5086, 2
  %v5515 = vrot.slane %v5087, 2
  %v5516 = vsel %vm460, %v5514, %v5515
  %v5517 = vrot.slane %v5088, 2
  %v5518 = vrot.slane %v5089, 2
  %v5519 = vsel %vm460, %v5517, %v5518
  %v5520 = vrot.slane %v5090, 2
  %v5521 = vrot.slane %v5091, 2
  %v5522 = vsel %vm460, %v5520, %v5521
  %v5523 = vrot.slane %v5092, 2
  %v5524 = vrot.slane %v5093, 2
  %v5525 = vsel %vm460, %v5523, %v5524
  %v5526 = vrot.slane %v5094, 2
  %v5527 = vrot.slane %v5095, 2
  %v5528 = vsel %vm460, %v5526, %v5527
  %v5529 = vrot.slane %v5096, 2
  %v5530 = vrot.slane %v5097, 2
  %v5531 = vsel %vm460, %v5529, %v5530
  %v5532 = vrot.slane %v5098, 2
  %v5533 = vrot.slane %v5099, 2
  %v5534 = vsel %vm460, %v5532, %v5533
  %v5535 = vrot.slane %v5104, 2
  %v5536 = vrot.slane %v5105, 2
  %v5537 = vsel %vm460, %v5535, %v5536
  %v5538 = vrot.slane %v5106, 2
  %v5539 = vrot.slane %v5107, 2
  %v5540 = vsel %vm460, %v5538, %v5539
  %v5541 = vrot.slane %v5108, 2
  %v5542 = vrot.slane %v5109, 2
  %v5543 = vsel %vm460, %v5541, %v5542
  %v5544 = vrot.slane %v5110, 2
  %v5545 = vrot.slane %v5111, 2
  %v5546 = vsel %vm460, %v5544, %v5545
  %v5547 = vrot.slane %v5112, 2
  %v5548 = vrot.slane %v5113, 2
  %v5549 = vsel %vm460, %v5547, %v5548
  %v5550 = vrot.slane %v5114, 2
  %v5551 = vrot.slane %v5115, 2
  %v5552 = vsel %vm460, %v5550, %v5551
  %v5553 = vrot.slane %v5116, 2
  %v5554 = vrot.slane %v5117, 2
  %v5555 = vsel %vm460, %v5553, %v5554
  %v5556 = vrot.slane %v5118, 2
  %v5557 = vrot.slane %v5119, 2
  %v5558 = vsel %vm460, %v5556, %v5557
  %v5575 = vpack.c.bf16 %v5516, %v5513
  %v5576 = vpack.c.bf16 %v5522, %v5519
  %v5577 = vpack.c.bf16 %v5528, %v5525
  %v5578 = vpack.c.bf16 %v5534, %v5531
  %v5579 = vpack.c.bf16 %v5540, %v5537
  %v5580 = vpack.c.bf16 %v5546, %v5543
  %v5581 = vpack.c.bf16 %v5552, %v5549
  %v5582 = vpack.c.bf16 %v5558, %v5555
  %s5583 = scalar_lea.vmem %s12, 32
  %v5584 = vld [vmem:[%s5583] sm:$0xf]
  %v5585 = vld [vmem:[%s5583 + $0x4] sm:$0xf]
  %v5586 = vld [vmem:[%s5583 + $0x8] sm:$0xf]
  %v5587 = vld [vmem:[%s5583 + $0xc] sm:$0xf]
  %v5592 = vunpack.c.l.b16 %v5584
  %v5593 = vunpack.c.l.b16 %v5585
  %v5594 = vunpack.c.l.b16 %v5586
  %v5595 = vunpack.c.l.b16 %v5587
  %v5596 = vpack.c.b16 %v5593, %v5592
  %v5597 = vpack.c.b16 %v5595, %v5594
  %v5601 = vsel %vm1605, %v5575, 0
  %v5604 = vsel %vm1605, %v5576, 0
  %v5607 = vsel %vm1605, %v5577, 0
  %v5610 = vsel %vm1605, %v5578, 0
  %v5613 = vsel %vm1605, %v5579, 0
  %v5616 = vsel %vm1605, %v5580, 0
  %v5619 = vsel %vm1605, %v5581, 0
  %v5622 = vsel %vm1605, %v5582, 0
  %5624 = vmatprep.subr.bf16.mxu0 0
  %5625 = vmatpush1.bf16.msra.mxu0 %v5596
  %5626 = vmatprep.subr.bf16.mxu0 0
  %5627 = vmatpush1.bf16.msra.mxu0 %v5597
  %5628 = vmatprep.subr.bf16.mxu0 0
  %5629 = vmatpush1.bf16.msra.mxu0 0
  %5630 = vmatprep.subr.bf16.mxu0 0
  %5631 = vmatpush1.bf16.msra.mxu0 0
  %5632 = vmatprep.subr.bf16.mxu0 0
  %5633 = vmatpush1.bf16.msra.mxu0 0
  %5634 = vmatprep.subr.bf16.mxu0 0
  %5635 = vmatpush1.bf16.msra.mxu0 0
  %5636 = vmatprep.subr.bf16.mxu0 0
  %5637 = vmatpush1.bf16.msra.mxu0 0
  %5638 = vmatprep.subr.bf16.mxu0 0
  %5639 = vmatpush1.bf16.msra.mxu0 0
  %5640 = vmatprep.subr.bf16.mxu0 0
  %5641 = vmatpush1.bf16.msra.mxu0 0
  %5642 = vmatprep.subr.bf16.mxu0 0
  %5643 = vmatpush1.bf16.msra.mxu0 0
  %5644 = vmatprep.subr.bf16.mxu0 0
  %5645 = vmatpush1.bf16.msra.mxu0 0
  %5646 = vmatprep.subr.bf16.mxu0 0
  %5647 = vmatpush1.bf16.msra.mxu0 0
  %5648 = vmatprep.subr.bf16.mxu0 0
  %5649 = vmatpush1.bf16.msra.mxu0 0
  %5650 = vmatprep.subr.bf16.mxu0 0
  %5651 = vmatpush1.bf16.msra.mxu0 0
  %5652 = vmatprep.subr.bf16.mxu0 0
  %5653 = vmatpush1.bf16.msra.mxu0 0
  %5654 = vmatprep.subr.bf16.mxu0 0
  %5655 = vmatpush1.bf16.msra.mxu0 0
  %5656 = vmatprep.mubr.bf16.mxu0 0
  %5657 = vmatmul.mubr.bf16.gmra.mrb[0].mxu0 %v5601
  %v5658 = vpop.f32.mrb[0].mxu0
  %v5659 = vadd.f32 0.0, %v5658
  %v5660 = vpop.f32.mrb[0].mxu0
  %v5661 = vpop.f32.mrb[0].mxu0
  %v5662 = vadd.f32 0.0, %v5661
  %v5663 = vpop.f32.mrb[0].mxu0
  %5664 = vmatprep.mubr.bf16.mxu0 0
  %5665 = vmatmul.mubr.bf16.gmra.mrb[0].mxu0 %v5604
  %v5666 = vpop.f32.mrb[0].mxu0
  %v5667 = vadd.f32 0.0, %v5666
  %v5668 = vpop.f32.mrb[0].mxu0
  %v5669 = vpop.f32.mrb[0].mxu0
  %v5670 = vadd.f32 0.0, %v5669
  %v5671 = vpop.f32.mrb[0].mxu0
  %5672 = vmatprep.mubr.bf16.mxu0 0
  %5673 = vmatmul.mubr.bf16.gmra.mrb[0].mxu0 %v5607
  %v5674 = vpop.f32.mrb[0].mxu0
  %v5675 = vadd.f32 0.0, %v5674
  %v5676 = vpop.f32.mrb[0].mxu0
  %v5677 = vpop.f32.mrb[0].mxu0
  %v5678 = vadd.f32 0.0, %v5677
  %v5679 = vpop.f32.mrb[0].mxu0
  %5680 = vmatprep.mubr.bf16.mxu0 0
  %5681 = vmatmul.mubr.bf16.gmra.mrb[0].mxu0 %v5610
  %v5682 = vpop.f32.mrb[0].mxu0
  %v5683 = vadd.f32 0.0, %v5682
  %v5684 = vpop.f32.mrb[0].mxu0
  %v5685 = vpop.f32.mrb[0].mxu0
  %v5686 = vadd.f32 0.0, %v5685
  %v5687 = vpop.f32.mrb[0].mxu0
  %5688 = vmatprep.mubr.bf16.mxu0 0
  %5689 = vmatmul.mubr.bf16.gmra.mrb[0].mxu0 %v5613
  %v5690 = vpop.f32.mrb[0].mxu0
  %v5691 = vadd.f32 0.0, %v5690
  %v5692 = vpop.f32.mrb[0].mxu0
  %v5693 = vpop.f32.mrb[0].mxu0
  %v5694 = vadd.f32 0.0, %v5693
  %v5695 = vpop.f32.mrb[0].mxu0
  %5696 = vmatprep.mubr.bf16.mxu0 0
  %5697 = vmatmul.mubr.bf16.gmra.mrb[0].mxu0 %v5616
  %v5698 = vpop.f32.mrb[0].mxu0
  %v5699 = vadd.f32 0.0, %v5698
  %v5700 = vpop.f32.mrb[0].mxu0
  %v5701 = vpop.f32.mrb[0].mxu0
  %v5702 = vadd.f32 0.0, %v5701
  %v5703 = vpop.f32.mrb[0].mxu0
  %5704 = vmatprep.mubr.bf16.mxu0 0
  %5705 = vmatmul.mubr.bf16.gmra.mrb[0].mxu0 %v5619
  %v5706 = vpop.f32.mrb[0].mxu0
  %v5707 = vadd.f32 0.0, %v5706
  %v5708 = vpop.f32.mrb[0].mxu0
  %v5709 = vpop.f32.mrb[0].mxu0
  %v5710 = vadd.f32 0.0, %v5709
  %v5711 = vpop.f32.mrb[0].mxu0
  %5712 = vmatprep.mubr.bf16.mxu0 0
  %5713 = vmatmul.mubr.bf16.gmra.mrb[0].mxu0 %v5622
  %v5714 = vpop.f32.mrb[0].mxu0
  %v5715 = vadd.f32 0.0, %v5714
  %v5716 = vpop.f32.mrb[0].mxu0
  %v5717 = vpop.f32.mrb[0].mxu0
  %v5718 = vadd.f32 0.0, %v5717
  %v5719 = vpop.f32.mrb[0].mxu0
  %5720 = vdwg.mxu0
  %v5721 = vadd.f32 %v5449, %v5659
  %v5722 = vadd.f32 %v5452, %v5662
  %v5723 = vadd.f32 %v5457, %v5667
  %v5724 = vadd.f32 %v5460, %v5670
  %v5725 = vadd.f32 %v5465, %v5675
  %v5726 = vadd.f32 %v5468, %v5678
  %v5727 = vadd.f32 %v5473, %v5683
  %v5728 = vadd.f32 %v5476, %v5686
  %v5729 = vadd.f32 %v5481, %v5691
  %v5730 = vadd.f32 %v5484, %v5694
  %v5731 = vadd.f32 %v5489, %v5699
  %v5732 = vadd.f32 %v5492, %v5702
  %v5733 = vadd.f32 %v5497, %v5707
  %v5734 = vadd.f32 %v5500, %v5710
  %v5735 = vadd.f32 %v5505, %v5715
  %v5736 = vadd.f32 %v5508, %v5718
  %v5737 = vpack.c.bf16 %v5088, %v5086
  %v5738 = vpack.c.bf16 %v5092, %v5090
  %v5739 = vpack.c.bf16 %v5096, %v5094
  %v5740 = vpack.c.bf16 %v5100, %v5098
  %v5741 = vpack.c.bf16 %v5108, %v5106
  %v5742 = vpack.c.bf16 %v5112, %v5110
  %v5743 = vpack.c.bf16 %v5116, %v5114
  %v5744 = vpack.c.bf16 %v5120, %v5118
  %s5745 = scalar_lea.vmem %s12, 48
  %v5746 = vld [vmem:[%s5745] sm:$0xf]
  %v5747 = vld [vmem:[%s5745 + $0x4] sm:$0xf]
  %v5748 = vld [vmem:[%s5745 + $0x8] sm:$0xf]
  %v5749 = vld [vmem:[%s5745 + $0xc] sm:$0xf]
  %v5754 = vunpack.c.l.b16 %v5746
  %v5755 = vunpack.c.l.b16 %v5747
  %v5756 = vunpack.c.l.b16 %v5748
  %v5757 = vunpack.c.l.b16 %v5749
  %v5758 = vpack.c.b16 %v5755, %v5754
  %v5759 = vpack.c.b16 %v5757, %v5756
  %v5763 = vsel %vm1605, %v5737, 0
  %v5766 = vsel %vm1605, %v5738, 0
  %v5769 = vsel %vm1605, %v5739, 0
  %v5772 = vsel %vm1605, %v5740, 0
  %v5775 = vsel %vm1605, %v5741, 0
  %v5778 = vsel %vm1605, %v5742, 0
  %v5781 = vsel %vm1605, %v5743, 0
  %v5784 = vsel %vm1605, %v5744, 0
  %5786 = vmatprep.subr.bf16.mxu0 0
  %5787 = vmatpush1.bf16.msra.mxu0 %v5758
  %5788 = vmatprep.subr.bf16.mxu0 0
  %5789 = vmatpush1.bf16.msra.mxu0 %v5759
  %5790 = vmatprep.subr.bf16.mxu0 0
  %5791 = vmatpush1.bf16.msra.mxu0 0
  %5792 = vmatprep.subr.bf16.mxu0 0
  %5793 = vmatpush1.bf16.msra.mxu0 0
  %5794 = vmatprep.subr.bf16.mxu0 0
  %5795 = vmatpush1.bf16.msra.mxu0 0
  %5796 = vmatprep.subr.bf16.mxu0 0
  %5797 = vmatpush1.bf16.msra.mxu0 0
  %5798 = vmatprep.subr.bf16.mxu0 0
  %5799 = vmatpush1.bf16.msra.mxu0 0
  %5800 = vmatprep.subr.bf16.mxu0 0
  %5801 = vmatpush1.bf16.msra.mxu0 0
  %5802 = vmatprep.subr.bf16.mxu0 0
  %5803 = vmatpush1.bf16.msra.mxu0 0
  %5804 = vmatprep.subr.bf16.mxu0 0
  %5805 = vmatpush1.bf16.msra.mxu0 0
  %5806 = vmatprep.subr.bf16.mxu0 0
  %5807 = vmatpush1.bf16.msra.mxu0 0
  %5808 = vmatprep.subr.bf16.mxu0 0
  %5809 = vmatpush1.bf16.msra.mxu0 0
  %5810 = vmatprep.subr.bf16.mxu0 0
  %5811 = vmatpush1.bf16.msra.mxu0 0
  %5812 = vmatprep.subr.bf16.mxu0 0
  %5813 = vmatpush1.bf16.msra.mxu0 0
  %5814 = vmatprep.subr.bf16.mxu0 0
  %5815 = vmatpush1.bf16.msra.mxu0 0
  %5816 = vmatprep.subr.bf16.mxu0 0
  %5817 = vmatpush1.bf16.msra.mxu0 0
  %5818 = vmatprep.mubr.bf16.mxu0 0
  %5819 = vmatmul.mubr.bf16.gmra.mrb[0].mxu0 %v5763
  %v5820 = vpop.f32.mrb[0].mxu0
  %v5821 = vadd.f32 0.0, %v5820
  %v5822 = vpop.f32.mrb[0].mxu0
  %v5823 = vpop.f32.mrb[0].mxu0
  %v5824 = vadd.f32 0.0, %v5823
  %v5825 = vpop.f32.mrb[0].mxu0
  %5826 = vmatprep.mubr.bf16.mxu0 0
  %5827 = vmatmul.mubr.bf16.gmra.mrb[0].mxu0 %v5766
  %v5828 = vpop.f32.mrb[0].mxu0
  %v5829 = vadd.f32 0.0, %v5828
  %v5830 = vpop.f32.mrb[0].mxu0
  %v5831 = vpop.f32.mrb[0].mxu0
  %v5832 = vadd.f32 0.0, %v5831
  %v5833 = vpop.f32.mrb[0].mxu0
  %5834 = vmatprep.mubr.bf16.mxu0 0
  %5835 = vmatmul.mubr.bf16.gmra.mrb[0].mxu0 %v5769
  %v5836 = vpop.f32.mrb[0].mxu0
  %v5837 = vadd.f32 0.0, %v5836
  %v5838 = vpop.f32.mrb[0].mxu0
  %v5839 = vpop.f32.mrb[0].mxu0
  %v5840 = vadd.f32 0.0, %v5839
  %v5841 = vpop.f32.mrb[0].mxu0
  %5842 = vmatprep.mubr.bf16.mxu0 0
  %5843 = vmatmul.mubr.bf16.gmra.mrb[0].mxu0 %v5772
  %v5844 = vpop.f32.mrb[0].mxu0
  %v5845 = vadd.f32 0.0, %v5844
  %v5846 = vpop.f32.mrb[0].mxu0
  %v5847 = vpop.f32.mrb[0].mxu0
  %v5848 = vadd.f32 0.0, %v5847
  %v5849 = vpop.f32.mrb[0].mxu0
  %5850 = vmatprep.mubr.bf16.mxu0 0
  %5851 = vmatmul.mubr.bf16.gmra.mrb[0].mxu0 %v5775
  %v5852 = vpop.f32.mrb[0].mxu0
  %v5853 = vadd.f32 0.0, %v5852
  %v5854 = vpop.f32.mrb[0].mxu0
  %v5855 = vpop.f32.mrb[0].mxu0
  %v5856 = vadd.f32 0.0, %v5855
  %v5857 = vpop.f32.mrb[0].mxu0
  %5858 = vmatprep.mubr.bf16.mxu0 0
  %5859 = vmatmul.mubr.bf16.gmra.mrb[0].mxu0 %v5778
  %v5860 = vpop.f32.mrb[0].mxu0
  %v5861 = vadd.f32 0.0, %v5860
  %v5862 = vpop.f32.mrb[0].mxu0
  %v5863 = vpop.f32.mrb[0].mxu0
  %v5864 = vadd.f32 0.0, %v5863
  %v5865 = vpop.f32.mrb[0].mxu0
  %5866 = vmatprep.mubr.bf16.mxu0 0
  %5867 = vmatmul.mubr.bf16.gmra.mrb[0].mxu0 %v5781
  %v5868 = vpop.f32.mrb[0].mxu0
  %v5869 = vadd.f32 0.0, %v5868
  %v5870 = vpop.f32.mrb[0].mxu0
  %v5871 = vpop.f32.mrb[0].mxu0
  %v5872 = vadd.f32 0.0, %v5871
  %v5873 = vpop.f32.mrb[0].mxu0
  %5874 = vmatprep.mubr.bf16.mxu0 0
  %5875 = vmatmul.mubr.bf16.gmra.mrb[0].mxu0 %v5784
  %v5876 = vpop.f32.mrb[0].mxu0
  %v5877 = vadd.f32 0.0, %v5876
  %v5878 = vpop.f32.mrb[0].mxu0
  %v5879 = vpop.f32.mrb[0].mxu0
  %v5880 = vadd.f32 0.0, %v5879
  %v5881 = vpop.f32.mrb[0].mxu0
  %5882 = vdwg.mxu0
  %v5883 = vadd.f32 %v5721, %v5821
  %v5884 = vadd.f32 %v5722, %v5824
  %v5885 = vadd.f32 %v5723, %v5829
  %v5886 = vadd.f32 %v5724, %v5832
  %v5887 = vadd.f32 %v5725, %v5837
  %v5888 = vadd.f32 %v5726, %v5840
  %v5889 = vadd.f32 %v5727, %v5845
  %v5890 = vadd.f32 %v5728, %v5848
  %v5891 = vadd.f32 %v5729, %v5853
  %v5892 = vadd.f32 %v5730, %v5856
  %v5893 = vadd.f32 %v5731, %v5861
  %v5894 = vadd.f32 %v5732, %v5864
  %v5895 = vadd.f32 %v5733, %v5869
  %v5896 = vadd.f32 %v5734, %v5872
  %v5897 = vadd.f32 %v5735, %v5877
  %v5898 = vadd.f32 %v5736, %v5880
  %v5903 = vrot.slane %v5100, 1
  %v5904 = vrot.slane %v5101, 1
  %v5905 = vsel %vm135, %v5903, %v5904
  %v5906 = vrot.slane %v5120, 1
  %v5907 = vrot.slane %v5121, 1
  %v5908 = vsel %vm135, %v5906, %v5907
  %v5911 = vpack.c.bf16 %v5176, %v5173
  %v5912 = vpack.c.bf16 %v5182, %v5179
  %v5913 = vpack.c.bf16 %v5188, %v5185
  %v5914 = vpack.c.bf16 %v5905, %v5191
  %v5915 = vpack.c.bf16 %v5200, %v5197
  %v5916 = vpack.c.bf16 %v5206, %v5203
  %v5917 = vpack.c.bf16 %v5212, %v5209
  %v5918 = vpack.c.bf16 %v5908, %v5215
  %s5919 = scalar_lea.vmem %s12, 64
  %v5920 = vld [vmem:[%s5919] sm:$0xf]
  %v5921 = vld [vmem:[%s5919 + $0x4] sm:$0xf]
  %v5922 = vld [vmem:[%s5919 + $0x8] sm:$0xf]
  %v5923 = vld [vmem:[%s5919 + $0xc] sm:$0xf]
  %v5928 = vunpack.c.l.b16 %v5920
  %v5929 = vunpack.c.l.b16 %v5921
  %v5930 = vunpack.c.l.b16 %v5922
  %v5931 = vunpack.c.l.b16 %v5923
  %v5932 = vpack.c.b16 %v5929, %v5928
  %v5933 = vpack.c.b16 %v5931, %v5930
  %v5937 = vsel %vm1605, %v5911, 0
  %v5940 = vsel %vm1605, %v5912, 0
  %v5943 = vsel %vm1605, %v5913, 0
  %v5946 = vsel %vm1605, %v5914, 0
  %v5949 = vsel %vm1605, %v5915, 0
  %v5952 = vsel %vm1605, %v5916, 0
  %v5955 = vsel %vm1605, %v5917, 0
  %v5958 = vsel %vm1605, %v5918, 0
  %5960 = vmatprep.subr.bf16.mxu0 0
  %5961 = vmatpush1.bf16.msra.mxu0 %v5932
  %5962 = vmatprep.subr.bf16.mxu0 0
  %5963 = vmatpush1.bf16.msra.mxu0 %v5933
  %5964 = vmatprep.subr.bf16.mxu0 0
  %5965 = vmatpush1.bf16.msra.mxu0 0
  %5966 = vmatprep.subr.bf16.mxu0 0
  %5967 = vmatpush1.bf16.msra.mxu0 0
  %5968 = vmatprep.subr.bf16.mxu0 0
  %5969 = vmatpush1.bf16.msra.mxu0 0
  %5970 = vmatprep.subr.bf16.mxu0 0
  %5971 = vmatpush1.bf16.msra.mxu0 0
  %5972 = vmatprep.subr.bf16.mxu0 0
  %5973 = vmatpush1.bf16.msra.mxu0 0
  %5974 = vmatprep.subr.bf16.mxu0 0
  %5975 = vmatpush1.bf16.msra.mxu0 0
  %5976 = vmatprep.subr.bf16.mxu0 0
  %5977 = vmatpush1.bf16.msra.mxu0 0
  %5978 = vmatprep.subr.bf16.mxu0 0
  %5979 = vmatpush1.bf16.msra.mxu0 0
  %5980 = vmatprep.subr.bf16.mxu0 0
  %5981 = vmatpush1.bf16.msra.mxu0 0
  %5982 = vmatprep.subr.bf16.mxu0 0
  %5983 = vmatpush1.bf16.msra.mxu0 0
  %5984 = vmatprep.subr.bf16.mxu0 0
  %5985 = vmatpush1.bf16.msra.mxu0 0
  %5986 = vmatprep.subr.bf16.mxu0 0
  %5987 = vmatpush1.bf16.msra.mxu0 0
  %5988 = vmatprep.subr.bf16.mxu0 0
  %5989 = vmatpush1.bf16.msra.mxu0 0
  %5990 = vmatprep.subr.bf16.mxu0 0
  %5991 = vmatpush1.bf16.msra.mxu0 0
  %5992 = vmatprep.mubr.bf16.mxu0 0
  %5993 = vmatmul.mubr.bf16.gmra.mrb[0].mxu0 %v5937
  %v5994 = vpop.f32.mrb[0].mxu0
  %v5995 = vadd.f32 0.0, %v5994
  %v5996 = vpop.f32.mrb[0].mxu0
  %v5997 = vpop.f32.mrb[0].mxu0
  %v5998 = vadd.f32 0.0, %v5997
  %v5999 = vpop.f32.mrb[0].mxu0
  %6000 = vmatprep.mubr.bf16.mxu0 0
  %6001 = vmatmul.mubr.bf16.gmra.mrb[0].mxu0 %v5940
  %v6002 = vpop.f32.mrb[0].mxu0
  %v6003 = vadd.f32 0.0, %v6002
  %v6004 = vpop.f32.mrb[0].mxu0
  %v6005 = vpop.f32.mrb[0].mxu0
  %v6006 = vadd.f32 0.0, %v6005
  %v6007 = vpop.f32.mrb[0].mxu0
  %6008 = vmatprep.mubr.bf16.mxu0 0
  %6009 = vmatmul.mubr.bf16.gmra.mrb[0].mxu0 %v5943
  %v6010 = vpop.f32.mrb[0].mxu0
  %v6011 = vadd.f32 0.0, %v6010
  %v6012 = vpop.f32.mrb[0].mxu0
  %v6013 = vpop.f32.mrb[0].mxu0
  %v6014 = vadd.f32 0.0, %v6013
  %v6015 = vpop.f32.mrb[0].mxu0
  %6016 = vmatprep.mubr.bf16.mxu0 0
  %6017 = vmatmul.mubr.bf16.gmra.mrb[0].mxu0 %v5946
  %v6018 = vpop.f32.mrb[0].mxu0
  %v6019 = vadd.f32 0.0, %v6018
  %v6020 = vpop.f32.mrb[0].mxu0
  %v6021 = vpop.f32.mrb[0].mxu0
  %v6022 = vadd.f32 0.0, %v6021
  %v6023 = vpop.f32.mrb[0].mxu0
  %6024 = vmatprep.mubr.bf16.mxu0 0
  %6025 = vmatmul.mubr.bf16.gmra.mrb[0].mxu0 %v5949
  %v6026 = vpop.f32.mrb[0].mxu0
  %v6027 = vadd.f32 0.0, %v6026
  %v6028 = vpop.f32.mrb[0].mxu0
  %v6029 = vpop.f32.mrb[0].mxu0
  %v6030 = vadd.f32 0.0, %v6029
  %v6031 = vpop.f32.mrb[0].mxu0
  %6032 = vmatprep.mubr.bf16.mxu0 0
  %6033 = vmatmul.mubr.bf16.gmra.mrb[0].mxu0 %v5952
  %v6034 = vpop.f32.mrb[0].mxu0
  %v6035 = vadd.f32 0.0, %v6034
  %v6036 = vpop.f32.mrb[0].mxu0
  %v6037 = vpop.f32.mrb[0].mxu0
  %v6038 = vadd.f32 0.0, %v6037
  %v6039 = vpop.f32.mrb[0].mxu0
  %6040 = vmatprep.mubr.bf16.mxu0 0
  %6041 = vmatmul.mubr.bf16.gmra.mrb[0].mxu0 %v5955
  %v6042 = vpop.f32.mrb[0].mxu0
  %v6043 = vadd.f32 0.0, %v6042
  %v6044 = vpop.f32.mrb[0].mxu0
  %v6045 = vpop.f32.mrb[0].mxu0
  %v6046 = vadd.f32 0.0, %v6045
  %v6047 = vpop.f32.mrb[0].mxu0
  %6048 = vmatprep.mubr.bf16.mxu0 0
  %6049 = vmatmul.mubr.bf16.gmra.mrb[0].mxu0 %v5958
  %v6050 = vpop.f32.mrb[0].mxu0
  %v6051 = vadd.f32 0.0, %v6050
  %v6052 = vpop.f32.mrb[0].mxu0
  %v6053 = vpop.f32.mrb[0].mxu0
  %v6054 = vadd.f32 0.0, %v6053
  %v6055 = vpop.f32.mrb[0].mxu0
  %6056 = vdwg.mxu0
  %v6057 = vadd.f32 %v5883, %v5995
  %v6058 = vadd.f32 %v5884, %v5998
  %v6059 = vadd.f32 %v5885, %v6003
  %v6060 = vadd.f32 %v5886, %v6006
  %v6061 = vadd.f32 %v5887, %v6011
  %v6062 = vadd.f32 %v5888, %v6014
  %v6063 = vadd.f32 %v5889, %v6019
  %v6064 = vadd.f32 %v5890, %v6022
  %v6065 = vadd.f32 %v5891, %v6027
  %v6066 = vadd.f32 %v5892, %v6030
  %v6067 = vadd.f32 %v5893, %v6035
  %v6068 = vadd.f32 %v5894, %v6038
  %v6069 = vadd.f32 %v5895, %v6043
  %v6070 = vadd.f32 %v5896, %v6046
  %v6071 = vadd.f32 %v5897, %v6051
  %v6072 = vadd.f32 %v5898, %v6054
  %v6073 = vrot.slane %v5100, 2
  %v6074 = vrot.slane %v5101, 2
  %v6075 = vsel %vm460, %v6073, %v6074
  %v6076 = vrot.slane %v5120, 2
  %v6077 = vrot.slane %v5121, 2
  %v6078 = vsel %vm460, %v6076, %v6077
  %v6081 = vpack.c.bf16 %v5519, %v5516
  %v6082 = vpack.c.bf16 %v5525, %v5522
  %v6083 = vpack.c.bf16 %v5531, %v5528
  %v6084 = vpack.c.bf16 %v6075, %v5534
  %v6085 = vpack.c.bf16 %v5543, %v5540
  %v6086 = vpack.c.bf16 %v5549, %v5546
  %v6087 = vpack.c.bf16 %v5555, %v5552
  %v6088 = vpack.c.bf16 %v6078, %v5558
  %s6089 = scalar_lea.vmem %s12, 80
  %v6090 = vld [vmem:[%s6089] sm:$0xf]
  %v6091 = vld [vmem:[%s6089 + $0x4] sm:$0xf]
  %v6092 = vld [vmem:[%s6089 + $0x8] sm:$0xf]
  %v6093 = vld [vmem:[%s6089 + $0xc] sm:$0xf]
  %v6098 = vunpack.c.l.b16 %v6090
  %v6099 = vunpack.c.l.b16 %v6091
  %v6100 = vunpack.c.l.b16 %v6092
  %v6101 = vunpack.c.l.b16 %v6093
  %v6102 = vpack.c.b16 %v6099, %v6098
  %v6103 = vpack.c.b16 %v6101, %v6100
  %v6107 = vsel %vm1605, %v6081, 0
  %v6110 = vsel %vm1605, %v6082, 0
  %v6113 = vsel %vm1605, %v6083, 0
  %v6116 = vsel %vm1605, %v6084, 0
  %v6119 = vsel %vm1605, %v6085, 0
  %v6122 = vsel %vm1605, %v6086, 0
  %v6125 = vsel %vm1605, %v6087, 0
  %v6128 = vsel %vm1605, %v6088, 0
  %6130 = vmatprep.subr.bf16.mxu0 0
  %6131 = vmatpush1.bf16.msra.mxu0 %v6102
  %6132 = vmatprep.subr.bf16.mxu0 0
  %6133 = vmatpush1.bf16.msra.mxu0 %v6103
  %6134 = vmatprep.subr.bf16.mxu0 0
  %6135 = vmatpush1.bf16.msra.mxu0 0
  %6136 = vmatprep.subr.bf16.mxu0 0
  %6137 = vmatpush1.bf16.msra.mxu0 0
  %6138 = vmatprep.subr.bf16.mxu0 0
  %6139 = vmatpush1.bf16.msra.mxu0 0
  %6140 = vmatprep.subr.bf16.mxu0 0
  %6141 = vmatpush1.bf16.msra.mxu0 0
  %6142 = vmatprep.subr.bf16.mxu0 0
  %6143 = vmatpush1.bf16.msra.mxu0 0
  %6144 = vmatprep.subr.bf16.mxu0 0
  %6145 = vmatpush1.bf16.msra.mxu0 0
  %6146 = vmatprep.subr.bf16.mxu0 0
  %6147 = vmatpush1.bf16.msra.mxu0 0
  %6148 = vmatprep.subr.bf16.mxu0 0
  %6149 = vmatpush1.bf16.msra.mxu0 0
  %6150 = vmatprep.subr.bf16.mxu0 0
  %6151 = vmatpush1.bf16.msra.mxu0 0
  %6152 = vmatprep.subr.bf16.mxu0 0
  %6153 = vmatpush1.bf16.msra.mxu0 0
  %6154 = vmatprep.subr.bf16.mxu0 0
  %6155 = vmatpush1.bf16.msra.mxu0 0
  %6156 = vmatprep.subr.bf16.mxu0 0
  %6157 = vmatpush1.bf16.msra.mxu0 0
  %6158 = vmatprep.subr.bf16.mxu0 0
  %6159 = vmatpush1.bf16.msra.mxu0 0
  %6160 = vmatprep.subr.bf16.mxu0 0
  %6161 = vmatpush1.bf16.msra.mxu0 0
  %6162 = vmatprep.mubr.bf16.mxu0 0
  %6163 = vmatmul.mubr.bf16.gmra.mrb[0].mxu0 %v6107
  %v6164 = vpop.f32.mrb[0].mxu0
  %v6165 = vadd.f32 0.0, %v6164
  %v6166 = vpop.f32.mrb[0].mxu0
  %v6167 = vpop.f32.mrb[0].mxu0
  %v6168 = vadd.f32 0.0, %v6167
  %v6169 = vpop.f32.mrb[0].mxu0
  %6170 = vmatprep.mubr.bf16.mxu0 0
  %6171 = vmatmul.mubr.bf16.gmra.mrb[0].mxu0 %v6110
  %v6172 = vpop.f32.mrb[0].mxu0
  %v6173 = vadd.f32 0.0, %v6172
  %v6174 = vpop.f32.mrb[0].mxu0
  %v6175 = vpop.f32.mrb[0].mxu0
  %v6176 = vadd.f32 0.0, %v6175
  %v6177 = vpop.f32.mrb[0].mxu0
  %6178 = vmatprep.mubr.bf16.mxu0 0
  %6179 = vmatmul.mubr.bf16.gmra.mrb[0].mxu0 %v6113
  %v6180 = vpop.f32.mrb[0].mxu0
  %v6181 = vadd.f32 0.0, %v6180
  %v6182 = vpop.f32.mrb[0].mxu0
  %v6183 = vpop.f32.mrb[0].mxu0
  %v6184 = vadd.f32 0.0, %v6183
  %v6185 = vpop.f32.mrb[0].mxu0
  %6186 = vmatprep.mubr.bf16.mxu0 0
  %6187 = vmatmul.mubr.bf16.gmra.mrb[0].mxu0 %v6116
  %v6188 = vpop.f32.mrb[0].mxu0
  %v6189 = vadd.f32 0.0, %v6188
  %v6190 = vpop.f32.mrb[0].mxu0
  %v6191 = vpop.f32.mrb[0].mxu0
  %v6192 = vadd.f32 0.0, %v6191
  %v6193 = vpop.f32.mrb[0].mxu0
  %6194 = vmatprep.mubr.bf16.mxu0 0
  %6195 = vmatmul.mubr.bf16.gmra.mrb[0].mxu0 %v6119
  %v6196 = vpop.f32.mrb[0].mxu0
  %v6197 = vadd.f32 0.0, %v6196
  %v6198 = vpop.f32.mrb[0].mxu0
  %v6199 = vpop.f32.mrb[0].mxu0
  %v6200 = vadd.f32 0.0, %v6199
  %v6201 = vpop.f32.mrb[0].mxu0
  %6202 = vmatprep.mubr.bf16.mxu0 0
  %6203 = vmatmul.mubr.bf16.gmra.mrb[0].mxu0 %v6122
  %v6204 = vpop.f32.mrb[0].mxu0
  %v6205 = vadd.f32 0.0, %v6204
  %v6206 = vpop.f32.mrb[0].mxu0
  %v6207 = vpop.f32.mrb[0].mxu0
  %v6208 = vadd.f32 0.0, %v6207
  %v6209 = vpop.f32.mrb[0].mxu0
  %6210 = vmatprep.mubr.bf16.mxu0 0
  %6211 = vmatmul.mubr.bf16.gmra.mrb[0].mxu0 %v6125
  %v6212 = vpop.f32.mrb[0].mxu0
  %v6213 = vadd.f32 0.0, %v6212
  %v6214 = vpop.f32.mrb[0].mxu0
  %v6215 = vpop.f32.mrb[0].mxu0
  %v6216 = vadd.f32 0.0, %v6215
  %v6217 = vpop.f32.mrb[0].mxu0
  %6218 = vmatprep.mubr.bf16.mxu0 0
  %6219 = vmatmul.mubr.bf16.gmra.mrb[0].mxu0 %v6128
  %v6220 = vpop.f32.mrb[0].mxu0
  %v6221 = vadd.f32 0.0, %v6220
  %v6222 = vpop.f32.mrb[0].mxu0
  %v6223 = vpop.f32.mrb[0].mxu0
  %v6224 = vadd.f32 0.0, %v6223
  %v6225 = vpop.f32.mrb[0].mxu0
  %6226 = vdwg.mxu0
  %v6227 = vadd.f32 %v6057, %v6165
  %v6228 = vadd.f32 %v6058, %v6168
  %v6229 = vadd.f32 %v6059, %v6173
  %v6230 = vadd.f32 %v6060, %v6176
  %v6231 = vadd.f32 %v6061, %v6181
  %v6232 = vadd.f32 %v6062, %v6184
  %v6233 = vadd.f32 %v6063, %v6189
  %v6234 = vadd.f32 %v6064, %v6192
  %v6235 = vadd.f32 %v6065, %v6197
  %v6236 = vadd.f32 %v6066, %v6200
  %v6237 = vadd.f32 %v6067, %v6205
  %v6238 = vadd.f32 %v6068, %v6208
  %v6239 = vadd.f32 %v6069, %v6213
  %v6240 = vadd.f32 %v6070, %v6216
  %v6241 = vadd.f32 %v6071, %v6221
  %v6242 = vadd.f32 %v6072, %v6224
  %v6243 = vpack.c.bf16 %v5102, %v5100
  %v6244 = vpack.c.bf16 %v5122, %v5120
  %s6245 = scalar_lea.vmem %s12, 96
  %v6246 = vld [vmem:[%s6245] sm:$0xf]
  %v6247 = vld [vmem:[%s6245 + $0x4] sm:$0xf]
  %v6248 = vld [vmem:[%s6245 + $0x8] sm:$0xf]
  %v6249 = vld [vmem:[%s6245 + $0xc] sm:$0xf]
  %v6254 = vunpack.c.l.b16 %v6246
  %v6255 = vunpack.c.l.b16 %v6247
  %v6256 = vunpack.c.l.b16 %v6248
  %v6257 = vunpack.c.l.b16 %v6249
  %v6258 = vpack.c.b16 %v6255, %v6254
  %v6259 = vpack.c.b16 %v6257, %v6256
  %v6263 = vsel %vm1605, %v6243, 0
  %v6266 = vsel %vm1605, %v6244, 0
  %6268 = vmatprep.subr.bf16.mxu0 0
  %6269 = vmatpush1.bf16.msra.mxu0 %v6258
  %6270 = vmatprep.subr.bf16.mxu0 0
  %6271 = vmatpush1.bf16.msra.mxu0 %v6259
  %6272 = vmatprep.subr.bf16.mxu0 0
  %6273 = vmatpush1.bf16.msra.mxu0 0
  %6274 = vmatprep.subr.bf16.mxu0 0
  %6275 = vmatpush1.bf16.msra.mxu0 0
  %6276 = vmatprep.subr.bf16.mxu0 0
  %6277 = vmatpush1.bf16.msra.mxu0 0
  %6278 = vmatprep.subr.bf16.mxu0 0
  %6279 = vmatpush1.bf16.msra.mxu0 0
  %6280 = vmatprep.subr.bf16.mxu0 0
  %6281 = vmatpush1.bf16.msra.mxu0 0
  %6282 = vmatprep.subr.bf16.mxu0 0
  %6283 = vmatpush1.bf16.msra.mxu0 0
  %6284 = vmatprep.subr.bf16.mxu0 0
  %6285 = vmatpush1.bf16.msra.mxu0 0
  %6286 = vmatprep.subr.bf16.mxu0 0
  %6287 = vmatpush1.bf16.msra.mxu0 0
  %6288 = vmatprep.subr.bf16.mxu0 0
  %6289 = vmatpush1.bf16.msra.mxu0 0
  %6290 = vmatprep.subr.bf16.mxu0 0
  %6291 = vmatpush1.bf16.msra.mxu0 0
  %6292 = vmatprep.subr.bf16.mxu0 0
  %6293 = vmatpush1.bf16.msra.mxu0 0
  %6294 = vmatprep.subr.bf16.mxu0 0
  %6295 = vmatpush1.bf16.msra.mxu0 0
  %6296 = vmatprep.subr.bf16.mxu0 0
  %6297 = vmatpush1.bf16.msra.mxu0 0
  %6298 = vmatprep.subr.bf16.mxu0 0
  %6299 = vmatpush1.bf16.msra.mxu0 0
  %6300 = vmatprep.mubr.bf16.mxu0 0
  %6301 = vmatmul.mubr.bf16.gmra.mrb[0].mxu0 %v5394
  %v6302 = vpop.f32.mrb[0].mxu0
  %v6303 = vadd.f32 0.0, %v6302
  %v6304 = vpop.f32.mrb[0].mxu0
  %v6305 = vpop.f32.mrb[0].mxu0
  %v6306 = vadd.f32 0.0, %v6305
  %v6307 = vpop.f32.mrb[0].mxu0
  %6308 = vmatprep.mubr.bf16.mxu0 0
  %6309 = vmatmul.mubr.bf16.gmra.mrb[0].mxu0 %v5397
  %v6310 = vpop.f32.mrb[0].mxu0
  %v6311 = vadd.f32 0.0, %v6310
  %v6312 = vpop.f32.mrb[0].mxu0
  %v6313 = vpop.f32.mrb[0].mxu0
  %v6314 = vadd.f32 0.0, %v6313
  %v6315 = vpop.f32.mrb[0].mxu0
  %6316 = vmatprep.mubr.bf16.mxu0 0
  %6317 = vmatmul.mubr.bf16.gmra.mrb[0].mxu0 %v5400
  %v6318 = vpop.f32.mrb[0].mxu0
  %v6319 = vadd.f32 0.0, %v6318
  %v6320 = vpop.f32.mrb[0].mxu0
  %v6321 = vpop.f32.mrb[0].mxu0
  %v6322 = vadd.f32 0.0, %v6321
  %v6323 = vpop.f32.mrb[0].mxu0
  %6324 = vmatprep.mubr.bf16.mxu0 0
  %6325 = vmatmul.mubr.bf16.gmra.mrb[0].mxu0 %v6263
  %v6326 = vpop.f32.mrb[0].mxu0
  %v6327 = vadd.f32 0.0, %v6326
  %v6328 = vpop.f32.mrb[0].mxu0
  %v6329 = vpop.f32.mrb[0].mxu0
  %v6330 = vadd.f32 0.0, %v6329
  %v6331 = vpop.f32.mrb[0].mxu0
  %6332 = vmatprep.mubr.bf16.mxu0 0
  %6333 = vmatmul.mubr.bf16.gmra.mrb[0].mxu0 %v5406
  %v6334 = vpop.f32.mrb[0].mxu0
  %v6335 = vadd.f32 0.0, %v6334
  %v6336 = vpop.f32.mrb[0].mxu0
  %v6337 = vpop.f32.mrb[0].mxu0
  %v6338 = vadd.f32 0.0, %v6337
  %v6339 = vpop.f32.mrb[0].mxu0
  %6340 = vmatprep.mubr.bf16.mxu0 0
  %6341 = vmatmul.mubr.bf16.gmra.mrb[0].mxu0 %v5409
  %v6342 = vpop.f32.mrb[0].mxu0
  %v6343 = vadd.f32 0.0, %v6342
  %v6344 = vpop.f32.mrb[0].mxu0
  %v6345 = vpop.f32.mrb[0].mxu0
  %v6346 = vadd.f32 0.0, %v6345
  %v6347 = vpop.f32.mrb[0].mxu0
  %6348 = vmatprep.mubr.bf16.mxu0 0
  %6349 = vmatmul.mubr.bf16.gmra.mrb[0].mxu0 %v5412
  %v6350 = vpop.f32.mrb[0].mxu0
  %v6351 = vadd.f32 0.0, %v6350
  %v6352 = vpop.f32.mrb[0].mxu0
  %v6353 = vpop.f32.mrb[0].mxu0
  %v6354 = vadd.f32 0.0, %v6353
  %v6355 = vpop.f32.mrb[0].mxu0
  %6356 = vmatprep.mubr.bf16.mxu0 0
  %6357 = vmatmul.mubr.bf16.gmra.mrb[0].mxu0 %v6266
  %v6358 = vpop.f32.mrb[0].mxu0
  %v6359 = vadd.f32 0.0, %v6358
  %v6360 = vpop.f32.mrb[0].mxu0
  %v6361 = vpop.f32.mrb[0].mxu0
  %v6362 = vadd.f32 0.0, %v6361
  %v6363 = vpop.f32.mrb[0].mxu0
  %6364 = vdwg.mxu0
  %v6365 = vadd.f32 %v6227, %v6303
  %v6366 = vadd.f32 %v6228, %v6306
  %v6367 = vadd.f32 %v6229, %v6311
  %v6368 = vadd.f32 %v6230, %v6314
  %v6369 = vadd.f32 %v6231, %v6319
  %v6370 = vadd.f32 %v6232, %v6322
  %v6371 = vadd.f32 %v6233, %v6327
  %v6372 = vadd.f32 %v6234, %v6330
  %v6373 = vadd.f32 %v6235, %v6335
  %v6374 = vadd.f32 %v6236, %v6338
  %v6375 = vadd.f32 %v6237, %v6343
  %v6376 = vadd.f32 %v6238, %v6346
  %v6377 = vadd.f32 %v6239, %v6351
  %v6378 = vadd.f32 %v6240, %v6354
  %v6379 = vadd.f32 %v6241, %v6359
  %v6380 = vadd.f32 %v6242, %v6362
  %v6385 = vrot.slane %v5102, 1
  %v6386 = vrot.slane %v5103, 1
  %v6387 = vsel %vm135, %v6385, %v6386
  %v6388 = vrot.slane %v5122, 1
  %v6389 = vrot.slane %v5123, 1
  %v6390 = vsel %vm135, %v6388, %v6389
  %v6393 = vpack.c.bf16 %v6387, %v5905
  %v6394 = vpack.c.bf16 %v6390, %v5908
  %s6395 = scalar_lea.vmem %s12, 112
  %v6396 = vld [vmem:[%s6395] sm:$0xf]
  %v6397 = vld [vmem:[%s6395 + $0x4] sm:$0xf]
  %v6398 = vld [vmem:[%s6395 + $0x8] sm:$0xf]
  %v6399 = vld [vmem:[%s6395 + $0xc] sm:$0xf]
  %v6404 = vunpack.c.l.b16 %v6396
  %v6405 = vunpack.c.l.b16 %v6397
  %v6406 = vunpack.c.l.b16 %v6398
  %v6407 = vunpack.c.l.b16 %v6399
  %v6408 = vpack.c.b16 %v6405, %v6404
  %v6409 = vpack.c.b16 %v6407, %v6406
  %v6413 = vsel %vm1605, %v6393, 0
  %v6416 = vsel %vm1605, %v6394, 0
  %6418 = vmatprep.subr.bf16.mxu0 0
  %6419 = vmatpush1.bf16.msra.mxu0 %v6408
  %6420 = vmatprep.subr.bf16.mxu0 0
  %6421 = vmatpush1.bf16.msra.mxu0 %v6409
  %6422 = vmatprep.subr.bf16.mxu0 0
  %6423 = vmatpush1.bf16.msra.mxu0 0
  %6424 = vmatprep.subr.bf16.mxu0 0
  %6425 = vmatpush1.bf16.msra.mxu0 0
  %6426 = vmatprep.subr.bf16.mxu0 0
  %6427 = vmatpush1.bf16.msra.mxu0 0
  %6428 = vmatprep.subr.bf16.mxu0 0
  %6429 = vmatpush1.bf16.msra.mxu0 0
  %6430 = vmatprep.subr.bf16.mxu0 0
  %6431 = vmatpush1.bf16.msra.mxu0 0
  %6432 = vmatprep.subr.bf16.mxu0 0
  %6433 = vmatpush1.bf16.msra.mxu0 0
  %6434 = vmatprep.subr.bf16.mxu0 0
  %6435 = vmatpush1.bf16.msra.mxu0 0
  %6436 = vmatprep.subr.bf16.mxu0 0
  %6437 = vmatpush1.bf16.msra.mxu0 0
  %6438 = vmatprep.subr.bf16.mxu0 0
  %6439 = vmatpush1.bf16.msra.mxu0 0
  %6440 = vmatprep.subr.bf16.mxu0 0
  %6441 = vmatpush1.bf16.msra.mxu0 0
  %6442 = vmatprep.subr.bf16.mxu0 0
  %6443 = vmatpush1.bf16.msra.mxu0 0
  %6444 = vmatprep.subr.bf16.mxu0 0
  %6445 = vmatpush1.bf16.msra.mxu0 0
  %6446 = vmatprep.subr.bf16.mxu0 0
  %6447 = vmatpush1.bf16.msra.mxu0 0
  %6448 = vmatprep.subr.bf16.mxu0 0
  %6449 = vmatpush1.bf16.msra.mxu0 0
  %6450 = vmatprep.mubr.bf16.mxu0 0
  %6451 = vmatmul.mubr.bf16.gmra.mrb[0].mxu0 %v5261
  %v6452 = vpop.f32.mrb[0].mxu0
  %v6453 = vadd.f32 0.0, %v6452
  %v6454 = vpop.f32.mrb[0].mxu0
  %v6455 = vpop.f32.mrb[0].mxu0
  %v6456 = vadd.f32 0.0, %v6455
  %v6457 = vpop.f32.mrb[0].mxu0
  %6458 = vmatprep.mubr.bf16.mxu0 0
  %6459 = vmatmul.mubr.bf16.gmra.mrb[0].mxu0 %v5264
  %v6460 = vpop.f32.mrb[0].mxu0
  %v6461 = vadd.f32 0.0, %v6460
  %v6462 = vpop.f32.mrb[0].mxu0
  %v6463 = vpop.f32.mrb[0].mxu0
  %v6464 = vadd.f32 0.0, %v6463
  %v6465 = vpop.f32.mrb[0].mxu0
  %6466 = vmatprep.mubr.bf16.mxu0 0
  %6467 = vmatmul.mubr.bf16.gmra.mrb[0].mxu0 %v5267
  %v6468 = vpop.f32.mrb[0].mxu0
  %v6469 = vadd.f32 0.0, %v6468
  %v6470 = vpop.f32.mrb[0].mxu0
  %v6471 = vpop.f32.mrb[0].mxu0
  %v6472 = vadd.f32 0.0, %v6471
  %v6473 = vpop.f32.mrb[0].mxu0
  %6474 = vmatprep.mubr.bf16.mxu0 0
  %6475 = vmatmul.mubr.bf16.gmra.mrb[0].mxu0 %v6413
  %v6476 = vpop.f32.mrb[0].mxu0
  %v6477 = vadd.f32 0.0, %v6476
  %v6478 = vpop.f32.mrb[0].mxu0
  %v6479 = vpop.f32.mrb[0].mxu0
  %v6480 = vadd.f32 0.0, %v6479
  %v6481 = vpop.f32.mrb[0].mxu0
  %6482 = vmatprep.mubr.bf16.mxu0 0
  %6483 = vmatmul.mubr.bf16.gmra.mrb[0].mxu0 %v5273
  %v6484 = vpop.f32.mrb[0].mxu0
  %v6485 = vadd.f32 0.0, %v6484
  %v6486 = vpop.f32.mrb[0].mxu0
  %v6487 = vpop.f32.mrb[0].mxu0
  %v6488 = vadd.f32 0.0, %v6487
  %v6489 = vpop.f32.mrb[0].mxu0
  %6490 = vmatprep.mubr.bf16.mxu0 0
  %6491 = vmatmul.mubr.bf16.gmra.mrb[0].mxu0 %v5276
  %v6492 = vpop.f32.mrb[0].mxu0
  %v6493 = vadd.f32 0.0, %v6492
  %v6494 = vpop.f32.mrb[0].mxu0
  %v6495 = vpop.f32.mrb[0].mxu0
  %v6496 = vadd.f32 0.0, %v6495
  %v6497 = vpop.f32.mrb[0].mxu0
  %6498 = vmatprep.mubr.bf16.mxu0 0
  %6499 = vmatmul.mubr.bf16.gmra.mrb[0].mxu0 %v5279
  %v6500 = vpop.f32.mrb[0].mxu0
  %v6501 = vadd.f32 0.0, %v6500
  %v6502 = vpop.f32.mrb[0].mxu0
  %v6503 = vpop.f32.mrb[0].mxu0
  %v6504 = vadd.f32 0.0, %v6503
  %v6505 = vpop.f32.mrb[0].mxu0
  %6506 = vmatprep.mubr.bf16.mxu0 0
  %6507 = vmatmul.mubr.bf16.gmra.mrb[0].mxu0 %v6416
  %v6508 = vpop.f32.mrb[0].mxu0
  %v6509 = vadd.f32 0.0, %v6508
  %v6510 = vpop.f32.mrb[0].mxu0
  %v6511 = vpop.f32.mrb[0].mxu0
  %v6512 = vadd.f32 0.0, %v6511
  %v6513 = vpop.f32.mrb[0].mxu0
  %6514 = vdwg.mxu0
  %v6515 = vadd.f32 %v6365, %v6453
  %v6516 = vadd.f32 %v6366, %v6456
  %v6517 = vadd.f32 %v6367, %v6461
  %v6518 = vadd.f32 %v6368, %v6464
  %v6519 = vadd.f32 %v6369, %v6469
  %v6520 = vadd.f32 %v6370, %v6472
  %v6521 = vadd.f32 %v6371, %v6477
  %v6522 = vadd.f32 %v6372, %v6480
  %v6523 = vadd.f32 %v6373, %v6485
  %v6524 = vadd.f32 %v6374, %v6488
  %v6525 = vadd.f32 %v6375, %v6493
  %v6526 = vadd.f32 %v6376, %v6496
  %v6527 = vadd.f32 %v6377, %v6501
  %v6528 = vadd.f32 %v6378, %v6504
  %v6529 = vadd.f32 %v6379, %v6509
  %v6530 = vadd.f32 %v6380, %v6512
  %v6531 = vrot.slane %v5102, 2
  %v6532 = vrot.slane %v5103, 2
  %v6533 = vsel %vm460, %v6531, %v6532
  %v6534 = vrot.slane %v5122, 2
  %v6535 = vrot.slane %v5123, 2
  %v6536 = vsel %vm460, %v6534, %v6535
  %v6539 = vpack.c.bf16 %v6533, %v6075
  %v6540 = vpack.c.bf16 %v6536, %v6078
  %s6541 = scalar_lea.vmem %s12, 128
  %v6542 = vld [vmem:[%s6541] sm:$0xf]
  %v6543 = vld [vmem:[%s6541 + $0x4] sm:$0xf]
  %v6544 = vld [vmem:[%s6541 + $0x8] sm:$0xf]
  %v6545 = vld [vmem:[%s6541 + $0xc] sm:$0xf]
  %v6550 = vunpack.c.l.b16 %v6542
  %v6551 = vunpack.c.l.b16 %v6543
  %v6552 = vunpack.c.l.b16 %v6544
  %v6553 = vunpack.c.l.b16 %v6545
  %v6554 = vpack.c.b16 %v6551, %v6550
  %v6555 = vpack.c.b16 %v6553, %v6552
  %v6559 = vsel %vm1605, %v6539, 0
  %v6562 = vsel %vm1605, %v6540, 0
  %6564 = vmatprep.subr.bf16.mxu0 0
  %6565 = vmatpush1.bf16.msra.mxu0 %v6554
  %6566 = vmatprep.subr.bf16.mxu0 0
  %6567 = vmatpush1.bf16.msra.mxu0 %v6555
  %6568 = vmatprep.subr.bf16.mxu0 0
  %6569 = vmatpush1.bf16.msra.mxu0 0
  %6570 = vmatprep.subr.bf16.mxu0 0
  %6571 = vmatpush1.bf16.msra.mxu0 0
  %6572 = vmatprep.subr.bf16.mxu0 0
  %6573 = vmatpush1.bf16.msra.mxu0 0
  %6574 = vmatprep.subr.bf16.mxu0 0
  %6575 = vmatpush1.bf16.msra.mxu0 0
  %6576 = vmatprep.subr.bf16.mxu0 0
  %6577 = vmatpush1.bf16.msra.mxu0 0
  %6578 = vmatprep.subr.bf16.mxu0 0
  %6579 = vmatpush1.bf16.msra.mxu0 0
  %6580 = vmatprep.subr.bf16.mxu0 0
  %6581 = vmatpush1.bf16.msra.mxu0 0
  %6582 = vmatprep.subr.bf16.mxu0 0
  %6583 = vmatpush1.bf16.msra.mxu0 0
  %6584 = vmatprep.subr.bf16.mxu0 0
  %6585 = vmatpush1.bf16.msra.mxu0 0
  %6586 = vmatprep.subr.bf16.mxu0 0
  %6587 = vmatpush1.bf16.msra.mxu0 0
  %6588 = vmatprep.subr.bf16.mxu0 0
  %6589 = vmatpush1.bf16.msra.mxu0 0
  %6590 = vmatprep.subr.bf16.mxu0 0
  %6591 = vmatpush1.bf16.msra.mxu0 0
  %6592 = vmatprep.subr.bf16.mxu0 0
  %6593 = vmatpush1.bf16.msra.mxu0 0
  %6594 = vmatprep.subr.bf16.mxu0 0
  %6595 = vmatpush1.bf16.msra.mxu0 0
  %6596 = vmatprep.mubr.bf16.mxu0 0
  %6597 = vmatmul.mubr.bf16.gmra.mrb[0].mxu0 %v5604
  %v6598 = vpop.f32.mrb[0].mxu0
  %v6599 = vadd.f32 0.0, %v6598
  %v6600 = vpop.f32.mrb[0].mxu0
  %v6601 = vpop.f32.mrb[0].mxu0
  %v6602 = vadd.f32 0.0, %v6601
  %v6603 = vpop.f32.mrb[0].mxu0
  %6604 = vmatprep.mubr.bf16.mxu0 0
  %6605 = vmatmul.mubr.bf16.gmra.mrb[0].mxu0 %v5607
  %v6606 = vpop.f32.mrb[0].mxu0
  %v6607 = vadd.f32 0.0, %v6606
  %v6608 = vpop.f32.mrb[0].mxu0
  %v6609 = vpop.f32.mrb[0].mxu0
  %v6610 = vadd.f32 0.0, %v6609
  %v6611 = vpop.f32.mrb[0].mxu0
  %6612 = vmatprep.mubr.bf16.mxu0 0
  %6613 = vmatmul.mubr.bf16.gmra.mrb[0].mxu0 %v5610
  %v6614 = vpop.f32.mrb[0].mxu0
  %v6615 = vadd.f32 0.0, %v6614
  %v6616 = vpop.f32.mrb[0].mxu0
  %v6617 = vpop.f32.mrb[0].mxu0
  %v6618 = vadd.f32 0.0, %v6617
  %v6619 = vpop.f32.mrb[0].mxu0
  %6620 = vmatprep.mubr.bf16.mxu0 0
  %6621 = vmatmul.mubr.bf16.gmra.mrb[0].mxu0 %v6559
  %v6622 = vpop.f32.mrb[0].mxu0
  %v6623 = vadd.f32 0.0, %v6622
  %v6624 = vpop.f32.mrb[0].mxu0
  %v6625 = vpop.f32.mrb[0].mxu0
  %v6626 = vadd.f32 0.0, %v6625
  %v6627 = vpop.f32.mrb[0].mxu0
  %6628 = vmatprep.mubr.bf16.mxu0 0
  %6629 = vmatmul.mubr.bf16.gmra.mrb[0].mxu0 %v5616
  %v6630 = vpop.f32.mrb[0].mxu0
  %v6631 = vadd.f32 0.0, %v6630
  %v6632 = vpop.f32.mrb[0].mxu0
  %v6633 = vpop.f32.mrb[0].mxu0
  %v6634 = vadd.f32 0.0, %v6633
  %v6635 = vpop.f32.mrb[0].mxu0
  %6636 = vmatprep.mubr.bf16.mxu0 0
  %6637 = vmatmul.mubr.bf16.gmra.mrb[0].mxu0 %v5619
  %v6638 = vpop.f32.mrb[0].mxu0
  %v6639 = vadd.f32 0.0, %v6638
  %v6640 = vpop.f32.mrb[0].mxu0
  %v6641 = vpop.f32.mrb[0].mxu0
  %v6642 = vadd.f32 0.0, %v6641
  %v6643 = vpop.f32.mrb[0].mxu0
  %6644 = vmatprep.mubr.bf16.mxu0 0
  %6645 = vmatmul.mubr.bf16.gmra.mrb[0].mxu0 %v5622
  %v6646 = vpop.f32.mrb[0].mxu0
  %v6647 = vadd.f32 0.0, %v6646
  %v6648 = vpop.f32.mrb[0].mxu0
  %v6649 = vpop.f32.mrb[0].mxu0
  %v6650 = vadd.f32 0.0, %v6649
  %v6651 = vpop.f32.mrb[0].mxu0
  %6652 = vmatprep.mubr.bf16.mxu0 0
  %6653 = vmatmul.mubr.bf16.gmra.mrb[0].mxu0 %v6562
  %v6654 = vpop.f32.mrb[0].mxu0
  %v6655 = vadd.f32 0.0, %v6654
  %v6656 = vpop.f32.mrb[0].mxu0
  %v6657 = vpop.f32.mrb[0].mxu0
  %v6658 = vadd.f32 0.0, %v6657
  %v6659 = vpop.f32.mrb[0].mxu0
  %6660 = vdwg.mxu0
  %v6661 = vadd.f32 %v6515, %v6599
  %v6662 = vadd.f32 %v6516, %v6602
  %v6663 = vadd.f32 %v6517, %v6607
  %v6664 = vadd.f32 %v6518, %v6610
  %v6665 = vadd.f32 %v6519, %v6615
  %v6666 = vadd.f32 %v6520, %v6618
  %v6667 = vadd.f32 %v6521, %v6623
  %v6668 = vadd.f32 %v6522, %v6626
  %v6669 = vadd.f32 %v6523, %v6631
  %v6670 = vadd.f32 %v6524, %v6634
  %v6671 = vadd.f32 %v6525, %v6639
  %v6672 = vadd.f32 %v6526, %v6642
  %v6673 = vadd.f32 %v6527, %v6647
  %v6674 = vadd.f32 %v6528, %v6650
  %v6675 = vadd.f32 %v6529, %v6655
  %v6676 = vadd.f32 %v6530, %v6658
  %v6677 = vld [vmem:[%s13] sm:$0x1]
  %v6679 = vlaneseq
  %v6680 = vshrl.u32 %v6679, 7
  %v6681 = vsub.s32 0, %v6680
  %v6682 = vrot.slane %v6677, %v6681
  %v6684 = vmul.f32 %v6661, %v6682
  %v6685 = vmul.f32 %v6662, %v6682
  %v6686 = vmul.f32 %v6663, %v6682
  %v6687 = vmul.f32 %v6664, %v6682
  %v6688 = vmul.f32 %v6665, %v6682
  %v6689 = vmul.f32 %v6666, %v6682
  %v6690 = vmul.f32 %v6667, %v6682
  %v6691 = vmul.f32 %v6668, %v6682
  %v6692 = vmul.f32 %v6669, %v6682
  %v6693 = vmul.f32 %v6670, %v6682
  %v6694 = vmul.f32 %v6671, %v6682
  %v6695 = vmul.f32 %v6672, %v6682
  %v6696 = vmul.f32 %v6673, %v6682
  %v6697 = vmul.f32 %v6674, %v6682
  %v6698 = vmul.f32 %v6675, %v6682
  %v6699 = vmul.f32 %v6676, %v6682
  %v6700 = vld [vmem:[%s14] sm:$0x1]
  %v6702 = vlaneseq
  %v6703 = vshrl.u32 %v6702, 7
  %v6704 = vsub.s32 0, %v6703
  %v6705 = vrot.slane %v6700, %v6704
  %v6707 = vadd.f32 %v6684, %v6705
  %v6708 = vadd.f32 %v6685, %v6705
  %v6709 = vadd.f32 %v6686, %v6705
  %v6710 = vadd.f32 %v6687, %v6705
  %v6711 = vadd.f32 %v6688, %v6705
  %v6712 = vadd.f32 %v6689, %v6705
  %v6713 = vadd.f32 %v6690, %v6705
  %v6714 = vadd.f32 %v6691, %v6705
  %v6715 = vadd.f32 %v6692, %v6705
  %v6716 = vadd.f32 %v6693, %v6705
  %v6717 = vadd.f32 %v6694, %v6705
  %v6718 = vadd.f32 %v6695, %v6705
  %v6719 = vadd.f32 %v6696, %v6705
  %v6720 = vadd.f32 %v6697, %v6705
  %v6721 = vadd.f32 %v6698, %v6705
  %v6722 = vadd.f32 %v6699, %v6705
  %v6723 = vmax.f32 %v6707, 0.0
  %v6724 = vmax.f32 %v6708, 0.0
  %v6725 = vmax.f32 %v6709, 0.0
  %v6726 = vmax.f32 %v6710, 0.0
  %v6727 = vmax.f32 %v6711, 0.0
  %v6728 = vmax.f32 %v6712, 0.0
  %v6729 = vmax.f32 %v6713, 0.0
  %v6730 = vmax.f32 %v6714, 0.0
  %v6731 = vmax.f32 %v6715, 0.0
  %v6732 = vmax.f32 %v6716, 0.0
  %v6733 = vmax.f32 %v6717, 0.0
  %v6734 = vmax.f32 %v6718, 0.0
  %v6735 = vmax.f32 %v6719, 0.0
  %v6736 = vmax.f32 %v6720, 0.0
  %v6737 = vmax.f32 %v6721, 0.0
  %v6738 = vmax.f32 %v6722, 0.0
  %6739 = vst.msk [vmem:[%s1709 + $0x1] sm:$0xff] %vm1605, %v6723
  %6740 = vst.msk [vmem:[%s1709 + $0x11] sm:$0xff] %vm1605, %v6724
  %6741 = vst.msk [vmem:[%s1709 + $0x21] sm:$0xff] %vm1605, %v6725
  %6742 = vst.msk [vmem:[%s1709 + $0x31] sm:$0xff] %vm1605, %v6726
  %6743 = vst.msk [vmem:[%s1709 + $0x41] sm:$0xff] %vm1605, %v6727
  %6744 = vst.msk [vmem:[%s1709 + $0x51] sm:$0xff] %vm1605, %v6728
  %6745 = vst.msk [vmem:[%s1709 + $0x61] sm:$0xff] %vm1605, %v6729
  %6746 = vst.msk [vmem:[%s1709 + $0x71] sm:$0xff] %vm1605, %v6730
  %6747 = vst.msk [vmem:[%s1709 + $0xa1] sm:$0xff] %vm1605, %v6731
  %6748 = vst.msk [vmem:[%s1709 + $0xb1] sm:$0xff] %vm1605, %v6732
  %6749 = vst.msk [vmem:[%s1709 + $0xc1] sm:$0xff] %vm1605, %v6733
  %6750 = vst.msk [vmem:[%s1709 + $0xd1] sm:$0xff] %vm1605, %v6734
  %6751 = vst.msk [vmem:[%s1709 + $0xe1] sm:$0xff] %vm1605, %v6735
  %6752 = vst.msk [vmem:[%s1709 + $0xf1] sm:$0xff] %vm1605, %v6736
  %6753 = vst.msk [vmem:[%s1709 + $0x101] sm:$0xff] %vm1605, %v6737
  %6754 = vst.msk [vmem:[%s1709 + $0x111] sm:$0xff] %vm1605, %v6738
  %v6755 = vld [vmem:[#allocation2] sm:$0xff]
  %v6756 = vld [vmem:[#allocation2 + $0x8] sm:$0x3]
  %v6757 = vld [vmem:[#allocation2 + $0x10] sm:$0xff]
  %v6758 = vld [vmem:[#allocation2 + $0x18] sm:$0x3]
  %v6759 = vld [vmem:[#allocation2 + $0x20] sm:$0xff]
  %v6760 = vld [vmem:[#allocation2 + $0x28] sm:$0x3]
  %v6761 = vld [vmem:[#allocation2 + $0x30] sm:$0xff]
  %v6762 = vld [vmem:[#allocation2 + $0x38] sm:$0x3]
  %v6763 = vld [vmem:[#allocation2 + $0x40] sm:$0xff]
  %v6764 = vld [vmem:[#allocation2 + $0x48] sm:$0x3]
  %v6765 = vld [vmem:[#allocation2 + $0x50] sm:$0xff]
  %v6766 = vld [vmem:[#allocation2 + $0x58] sm:$0x3]
  %v6767 = vld [vmem:[#allocation2 + $0x60] sm:$0xff]
  %v6768 = vld [vmem:[#allocation2 + $0x68] sm:$0x3]
  %v6769 = vld [vmem:[#allocation2 + $0x70] sm:$0xff]
  %v6770 = vld [vmem:[#allocation2 + $0x78] sm:$0x3]
  %v6771 = vld [vmem:[#allocation2 + $0x80] sm:$0xff]
  %v6772 = vld [vmem:[#allocation2 + $0x88] sm:$0x3]
  %v6773 = vld [vmem:[#allocation2 + $0x90] sm:$0xff]
  %v6774 = vld [vmem:[#allocation2 + $0x98] sm:$0x3]
  %v6775 = vld [vmem:[#allocation2 + $0xa0] sm:$0xff]
  %v6776 = vld [vmem:[#allocation2 + $0xa8] sm:$0x3]
  %v6777 = vld [vmem:[#allocation2 + $0xb0] sm:$0xff]
  %v6778 = vld [vmem:[#allocation2 + $0xb8] sm:$0x3]
  %v6779 = vld [vmem:[#allocation2 + $0xc0] sm:$0xff]
  %v6780 = vld [vmem:[#allocation2 + $0xc8] sm:$0x3]
  %v6781 = vld [vmem:[#allocation2 + $0xd0] sm:$0xff]
  %v6782 = vld [vmem:[#allocation2 + $0xd8] sm:$0x3]
  %v6783 = vld [vmem:[#allocation2 + $0xe0] sm:$0xff]
  %v6784 = vld [vmem:[#allocation2 + $0xe8] sm:$0x3]
  %v6785 = vld [vmem:[#allocation2 + $0xf0] sm:$0xff]
  %v6786 = vld [vmem:[#allocation2 + $0xf8] sm:$0x3]
  %v6787 = vld [vmem:[#allocation2 + $0x100] sm:$0xff]
  %v6788 = vld [vmem:[#allocation2 + $0x108] sm:$0x3]
  %v6789 = vld [vmem:[#allocation2 + $0x110] sm:$0xff]
  %v6790 = vld [vmem:[#allocation2 + $0x118] sm:$0x3]
  %v6791 = vld [vmem:[#allocation2 + $0x120] sm:$0xff]
  %v6792 = vld [vmem:[#allocation2 + $0x128] sm:$0x3]
  %v6793 = vld [vmem:[#allocation2 + $0x130] sm:$0xff]
  %v6794 = vld [vmem:[#allocation2 + $0x138] sm:$0x3]
  %v6795 = vpack.c.bf16 %v6757, %v6755
  %v6796 = vpack.c.bf16 %v6761, %v6759
  %v6797 = vpack.c.bf16 %v6765, %v6763
  %v6798 = vpack.c.bf16 %v6769, %v6767
  %v6799 = vpack.c.bf16 %v6777, %v6775
  %v6800 = vpack.c.bf16 %v6781, %v6779
  %v6801 = vpack.c.bf16 %v6785, %v6783
  %v6802 = vpack.c.bf16 %v6789, %v6787
  %v6803 = vld [vmem:[%s15] sm:$0xf]
  %v6804 = vld [vmem:[%s15 + $0x4] sm:$0xf]
  %v6805 = vld [vmem:[%s15 + $0x8] sm:$0xf]
  %v6806 = vld [vmem:[%s15 + $0xc] sm:$0xf]
  %v6839 = vrot.slane %v6755, 1
  %v6840 = vrot.slane %v6756, 1
  %v6841 = vsel %vm135, %v6839, %v6840
  %v6842 = vrot.slane %v6757, 1
  %v6843 = vrot.slane %v6758, 1
  %v6844 = vsel %vm135, %v6842, %v6843
  %v6845 = vrot.slane %v6759, 1
  %v6846 = vrot.slane %v6760, 1
  %v6847 = vsel %vm135, %v6845, %v6846
  %v6848 = vrot.slane %v6761, 1
  %v6849 = vrot.slane %v6762, 1
  %v6850 = vsel %vm135, %v6848, %v6849
  %v6851 = vrot.slane %v6763, 1
  %v6852 = vrot.slane %v6764, 1
  %v6853 = vsel %vm135, %v6851, %v6852
  %v6854 = vrot.slane %v6765, 1
  %v6855 = vrot.slane %v6766, 1
  %v6856 = vsel %vm135, %v6854, %v6855
  %v6857 = vrot.slane %v6767, 1
  %v6858 = vrot.slane %v6768, 1
  %v6859 = vsel %vm135, %v6857, %v6858
  %v6860 = vrot.slane %v6769, 1
  %v6861 = vrot.slane %v6770, 1
  %v6862 = vsel %vm135, %v6860, %v6861
  %v6863 = vrot.slane %v6775, 1
  %v6864 = vrot.slane %v6776, 1
  %v6865 = vsel %vm135, %v6863, %v6864
  %v6866 = vrot.slane %v6777, 1
  %v6867 = vrot.slane %v6778, 1
  %v6868 = vsel %vm135, %v6866, %v6867
  %v6869 = vrot.slane %v6779, 1
  %v6870 = vrot.slane %v6780, 1
  %v6871 = vsel %vm135, %v6869, %v6870
  %v6872 = vrot.slane %v6781, 1
  %v6873 = vrot.slane %v6782, 1
  %v6874 = vsel %vm135, %v6872, %v6873
  %v6875 = vrot.slane %v6783, 1
  %v6876 = vrot.slane %v6784, 1
  %v6877 = vsel %vm135, %v6875, %v6876
  %v6878 = vrot.slane %v6785, 1
  %v6879 = vrot.slane %v6786, 1
  %v6880 = vsel %vm135, %v6878, %v6879
  %v6881 = vrot.slane %v6787, 1
  %v6882 = vrot.slane %v6788, 1
  %v6883 = vsel %vm135, %v6881, %v6882
  %v6884 = vrot.slane %v6789, 1
  %v6885 = vrot.slane %v6790, 1
  %v6886 = vsel %vm135, %v6884, %v6885
  %v6903 = vpack.c.bf16 %v6844, %v6841
  %v6904 = vpack.c.bf16 %v6850, %v6847
  %v6905 = vpack.c.bf16 %v6856, %v6853
  %v6906 = vpack.c.bf16 %v6862, %v6859
  %v6907 = vpack.c.bf16 %v6868, %v6865
  %v6908 = vpack.c.bf16 %v6874, %v6871
  %v6909 = vpack.c.bf16 %v6880, %v6877
  %v6910 = vpack.c.bf16 %v6886, %v6883
  %s6911 = scalar_lea.vmem %s15, 16
  %v6912 = vld [vmem:[%s6911] sm:$0xf]
  %v6913 = vld [vmem:[%s6911 + $0x4] sm:$0xf]
  %v6914 = vld [vmem:[%s6911 + $0x8] sm:$0xf]
  %v6915 = vld [vmem:[%s6911 + $0xc] sm:$0xf]
  %v6920 = vunpack.c.l.b16 %v6912
  %v6921 = vunpack.c.l.b16 %v6913
  %v6922 = vunpack.c.l.b16 %v6914
  %v6923 = vunpack.c.l.b16 %v6915
  %v6924 = vpack.c.b16 %v6921, %v6920
  %v6925 = vpack.c.b16 %v6923, %v6922
  %v6929 = vsel %vm1605, %v6903, 0
  %v6932 = vsel %vm1605, %v6904, 0
  %v6935 = vsel %vm1605, %v6905, 0
  %v6938 = vsel %vm1605, %v6906, 0
  %v6941 = vsel %vm1605, %v6907, 0
  %v6944 = vsel %vm1605, %v6908, 0
  %v6947 = vsel %vm1605, %v6909, 0
  %v6950 = vsel %vm1605, %v6910, 0
  %6952 = vmatprep.subr.bf16.mxu0 0
  %6953 = vmatpush1.bf16.msra.mxu0 %v6924
  %6954 = vmatprep.subr.bf16.mxu0 0
  %6955 = vmatpush1.bf16.msra.mxu0 %v6925
  %6956 = vmatprep.subr.bf16.mxu0 0
  %6957 = vmatpush1.bf16.msra.mxu0 0
  %6958 = vmatprep.subr.bf16.mxu0 0
  %6959 = vmatpush1.bf16.msra.mxu0 0
  %6960 = vmatprep.subr.bf16.mxu0 0
  %6961 = vmatpush1.bf16.msra.mxu0 0
  %6962 = vmatprep.subr.bf16.mxu0 0
  %6963 = vmatpush1.bf16.msra.mxu0 0
  %6964 = vmatprep.subr.bf16.mxu0 0
  %6965 = vmatpush1.bf16.msra.mxu0 0
  %6966 = vmatprep.subr.bf16.mxu0 0
  %6967 = vmatpush1.bf16.msra.mxu0 0
  %6968 = vmatprep.subr.bf16.mxu0 0
  %6969 = vmatpush1.bf16.msra.mxu0 0
  %6970 = vmatprep.subr.bf16.mxu0 0
  %6971 = vmatpush1.bf16.msra.mxu0 0
  %6972 = vmatprep.subr.bf16.mxu0 0
  %6973 = vmatpush1.bf16.msra.mxu0 0
  %6974 = vmatprep.subr.bf16.mxu0 0
  %6975 = vmatpush1.bf16.msra.mxu0 0
  %6976 = vmatprep.subr.bf16.mxu0 0
  %6977 = vmatpush1.bf16.msra.mxu0 0
  %6978 = vmatprep.subr.bf16.mxu0 0
  %6979 = vmatpush1.bf16.msra.mxu0 0
  %6980 = vmatprep.subr.bf16.mxu0 0
  %6981 = vmatpush1.bf16.msra.mxu0 0
  %6982 = vmatprep.subr.bf16.mxu0 0
  %6983 = vmatpush1.bf16.msra.mxu0 0
  %6984 = vmatprep.mubr.bf16.mxu0 0
  %6985 = vmatmul.mubr.bf16.gmra.mrb[0].mxu0 %v6929
  %v6986 = vpop.f32.mrb[0].mxu0
  %v6987 = vadd.f32 0.0, %v6986
  %v6988 = vpop.f32.mrb[0].mxu0
  %v6989 = vpop.f32.mrb[0].mxu0
  %v6990 = vadd.f32 0.0, %v6989
  %v6991 = vpop.f32.mrb[0].mxu0
  %6992 = vmatprep.mubr.bf16.mxu0 0
  %6993 = vmatmul.mubr.bf16.gmra.mrb[0].mxu0 %v6932
  %v6994 = vpop.f32.mrb[0].mxu0
  %v6995 = vadd.f32 0.0, %v6994
  %v6996 = vpop.f32.mrb[0].mxu0
  %v6997 = vpop.f32.mrb[0].mxu0
  %v6998 = vadd.f32 0.0, %v6997
  %v6999 = vpop.f32.mrb[0].mxu0
  %7000 = vmatprep.mubr.bf16.mxu0 0
  %7001 = vmatmul.mubr.bf16.gmra.mrb[0].mxu0 %v6935
  %v7002 = vpop.f32.mrb[0].mxu0
  %v7003 = vadd.f32 0.0, %v7002
  %v7004 = vpop.f32.mrb[0].mxu0
  %v7005 = vpop.f32.mrb[0].mxu0
  %v7006 = vadd.f32 0.0, %v7005
  %v7007 = vpop.f32.mrb[0].mxu0
  %7008 = vmatprep.mubr.bf16.mxu0 0
  %7009 = vmatmul.mubr.bf16.gmra.mrb[0].mxu0 %v6938
  %v7010 = vpop.f32.mrb[0].mxu0
  %v7011 = vadd.f32 0.0, %v7010
  %v7012 = vpop.f32.mrb[0].mxu0
  %v7013 = vpop.f32.mrb[0].mxu0
  %v7014 = vadd.f32 0.0, %v7013
  %v7015 = vpop.f32.mrb[0].mxu0
  %7016 = vmatprep.mubr.bf16.mxu0 0
  %7017 = vmatmul.mubr.bf16.gmra.mrb[0].mxu0 %v6941
  %v7018 = vpop.f32.mrb[0].mxu0
  %v7019 = vadd.f32 0.0, %v7018
  %v7020 = vpop.f32.mrb[0].mxu0
  %v7021 = vpop.f32.mrb[0].mxu0
  %v7022 = vadd.f32 0.0, %v7021
  %v7023 = vpop.f32.mrb[0].mxu0
  %7024 = vmatprep.mubr.bf16.mxu0 0
  %7025 = vmatmul.mubr.bf16.gmra.mrb[0].mxu0 %v6944
  %v7026 = vpop.f32.mrb[0].mxu0
  %v7027 = vadd.f32 0.0, %v7026
  %v7028 = vpop.f32.mrb[0].mxu0
  %v7029 = vpop.f32.mrb[0].mxu0
  %v7030 = vadd.f32 0.0, %v7029
  %v7031 = vpop.f32.mrb[0].mxu0
  %7032 = vmatprep.mubr.bf16.mxu0 0
  %7033 = vmatmul.mubr.bf16.gmra.mrb[0].mxu0 %v6947
  %v7034 = vpop.f32.mrb[0].mxu0
  %v7035 = vadd.f32 0.0, %v7034
  %v7036 = vpop.f32.mrb[0].mxu0
  %v7037 = vpop.f32.mrb[0].mxu0
  %v7038 = vadd.f32 0.0, %v7037
  %v7039 = vpop.f32.mrb[0].mxu0
  %7040 = vmatprep.mubr.bf16.mxu0 0
  %7041 = vmatmul.mubr.bf16.gmra.mrb[0].mxu0 %v6950
  %v7042 = vpop.f32.mrb[0].mxu0
  %v7043 = vadd.f32 0.0, %v7042
  %v7044 = vpop.f32.mrb[0].mxu0
  %v7045 = vpop.f32.mrb[0].mxu0
  %v7046 = vadd.f32 0.0, %v7045
  %v7047 = vpop.f32.mrb[0].mxu0
  %7048 = vdwg.mxu0
  %v7053 = vunpack.c.l.b16 %v6803
  %v7054 = vunpack.c.l.b16 %v6804
  %v7055 = vunpack.c.l.b16 %v6805
  %v7056 = vunpack.c.l.b16 %v6806
  %v7057 = vpack.c.b16 %v7054, %v7053
  %v7058 = vpack.c.b16 %v7056, %v7055
  %v7062 = vsel %vm1605, %v6795, 0
  %v7065 = vsel %vm1605, %v6796, 0
  %v7068 = vsel %vm1605, %v6797, 0
  %v7071 = vsel %vm1605, %v6798, 0
  %v7074 = vsel %vm1605, %v6799, 0
  %v7077 = vsel %vm1605, %v6800, 0
  %v7080 = vsel %vm1605, %v6801, 0
  %v7083 = vsel %vm1605, %v6802, 0
  %7085 = vmatprep.subr.bf16.mxu0 0
  %7086 = vmatpush1.bf16.msra.mxu0 %v7057
  %7087 = vmatprep.subr.bf16.mxu0 0
  %7088 = vmatpush1.bf16.msra.mxu0 %v7058
  %7089 = vmatprep.subr.bf16.mxu0 0
  %7090 = vmatpush1.bf16.msra.mxu0 0
  %7091 = vmatprep.subr.bf16.mxu0 0
  %7092 = vmatpush1.bf16.msra.mxu0 0
  %7093 = vmatprep.subr.bf16.mxu0 0
  %7094 = vmatpush1.bf16.msra.mxu0 0
  %7095 = vmatprep.subr.bf16.mxu0 0
  %7096 = vmatpush1.bf16.msra.mxu0 0
  %7097 = vmatprep.subr.bf16.mxu0 0
  %7098 = vmatpush1.bf16.msra.mxu0 0
  %7099 = vmatprep.subr.bf16.mxu0 0
  %7100 = vmatpush1.bf16.msra.mxu0 0
  %7101 = vmatprep.subr.bf16.mxu0 0
  %7102 = vmatpush1.bf16.msra.mxu0 0
  %7103 = vmatprep.subr.bf16.mxu0 0
  %7104 = vmatpush1.bf16.msra.mxu0 0
  %7105 = vmatprep.subr.bf16.mxu0 0
  %7106 = vmatpush1.bf16.msra.mxu0 0
  %7107 = vmatprep.subr.bf16.mxu0 0
  %7108 = vmatpush1.bf16.msra.mxu0 0
  %7109 = vmatprep.subr.bf16.mxu0 0
  %7110 = vmatpush1.bf16.msra.mxu0 0
  %7111 = vmatprep.subr.bf16.mxu0 0
  %7112 = vmatpush1.bf16.msra.mxu0 0
  %7113 = vmatprep.subr.bf16.mxu0 0
  %7114 = vmatpush1.bf16.msra.mxu0 0
  %7115 = vmatprep.subr.bf16.mxu0 0
  %7116 = vmatpush1.bf16.msra.mxu0 0
  %7117 = vmatprep.mubr.bf16.mxu0 0
  %7118 = vmatmul.mubr.bf16.gmra.mrb[0].mxu0 %v7062
  %v7119 = vpop.f32.mrb[0].mxu0
  %v7120 = vadd.f32 %v6987, %v7119
  %v7121 = vpop.f32.mrb[0].mxu0
  %v7122 = vpop.f32.mrb[0].mxu0
  %v7123 = vadd.f32 %v6990, %v7122
  %v7124 = vpop.f32.mrb[0].mxu0
  %7125 = vmatprep.mubr.bf16.mxu0 0
  %7126 = vmatmul.mubr.bf16.gmra.mrb[0].mxu0 %v7065
  %v7127 = vpop.f32.mrb[0].mxu0
  %v7128 = vadd.f32 %v6995, %v7127
  %v7129 = vpop.f32.mrb[0].mxu0
  %v7130 = vpop.f32.mrb[0].mxu0
  %v7131 = vadd.f32 %v6998, %v7130
  %v7132 = vpop.f32.mrb[0].mxu0
  %7133 = vmatprep.mubr.bf16.mxu0 0
  %7134 = vmatmul.mubr.bf16.gmra.mrb[0].mxu0 %v7068
  %v7135 = vpop.f32.mrb[0].mxu0
  %v7136 = vadd.f32 %v7003, %v7135
  %v7137 = vpop.f32.mrb[0].mxu0
  %v7138 = vpop.f32.mrb[0].mxu0
  %v7139 = vadd.f32 %v7006, %v7138
  %v7140 = vpop.f32.mrb[0].mxu0
  %7141 = vmatprep.mubr.bf16.mxu0 0
  %7142 = vmatmul.mubr.bf16.gmra.mrb[0].mxu0 %v7071
  %v7143 = vpop.f32.mrb[0].mxu0
  %v7144 = vadd.f32 %v7011, %v7143
  %v7145 = vpop.f32.mrb[0].mxu0
  %v7146 = vpop.f32.mrb[0].mxu0
  %v7147 = vadd.f32 %v7014, %v7146
  %v7148 = vpop.f32.mrb[0].mxu0
  %7149 = vmatprep.mubr.bf16.mxu0 0
  %7150 = vmatmul.mubr.bf16.gmra.mrb[0].mxu0 %v7074
  %v7151 = vpop.f32.mrb[0].mxu0
  %v7152 = vadd.f32 %v7019, %v7151
  %v7153 = vpop.f32.mrb[0].mxu0
  %v7154 = vpop.f32.mrb[0].mxu0
  %v7155 = vadd.f32 %v7022, %v7154
  %v7156 = vpop.f32.mrb[0].mxu0
  %7157 = vmatprep.mubr.bf16.mxu0 0
  %7158 = vmatmul.mubr.bf16.gmra.mrb[0].mxu0 %v7077
  %v7159 = vpop.f32.mrb[0].mxu0
  %v7160 = vadd.f32 %v7027, %v7159
  %v7161 = vpop.f32.mrb[0].mxu0
  %v7162 = vpop.f32.mrb[0].mxu0
  %v7163 = vadd.f32 %v7030, %v7162
  %v7164 = vpop.f32.mrb[0].mxu0
  %7165 = vmatprep.mubr.bf16.mxu0 0
  %7166 = vmatmul.mubr.bf16.gmra.mrb[0].mxu0 %v7080
  %v7167 = vpop.f32.mrb[0].mxu0
  %v7168 = vadd.f32 %v7035, %v7167
  %v7169 = vpop.f32.mrb[0].mxu0
  %v7170 = vpop.f32.mrb[0].mxu0
  %v7171 = vadd.f32 %v7038, %v7170
  %v7172 = vpop.f32.mrb[0].mxu0
  %7173 = vmatprep.mubr.bf16.mxu0 0
  %7174 = vmatmul.mubr.bf16.gmra.mrb[0].mxu0 %v7083
  %v7175 = vpop.f32.mrb[0].mxu0
  %v7176 = vadd.f32 %v7043, %v7175
  %v7177 = vpop.f32.mrb[0].mxu0
  %v7178 = vpop.f32.mrb[0].mxu0
  %v7179 = vadd.f32 %v7046, %v7178
  %v7180 = vpop.f32.mrb[0].mxu0
  %7181 = vdwg.mxu0
  %v7182 = vrot.slane %v6755, 2
  %v7183 = vrot.slane %v6756, 2
  %v7184 = vsel %vm460, %v7182, %v7183
  %v7185 = vrot.slane %v6757, 2
  %v7186 = vrot.slane %v6758, 2
  %v7187 = vsel %vm460, %v7185, %v7186
  %v7188 = vrot.slane %v6759, 2
  %v7189 = vrot.slane %v6760, 2
  %v7190 = vsel %vm460, %v7188, %v7189
  %v7191 = vrot.slane %v6761, 2
  %v7192 = vrot.slane %v6762, 2
  %v7193 = vsel %vm460, %v7191, %v7192
  %v7194 = vrot.slane %v6763, 2
  %v7195 = vrot.slane %v6764, 2
  %v7196 = vsel %vm460, %v7194, %v7195
  %v7197 = vrot.slane %v6765, 2
  %v7198 = vrot.slane %v6766, 2
  %v7199 = vsel %vm460, %v7197, %v7198
  %v7200 = vrot.slane %v6767, 2
  %v7201 = vrot.slane %v6768, 2
  %v7202 = vsel %vm460, %v7200, %v7201
  %v7203 = vrot.slane %v6769, 2
  %v7204 = vrot.slane %v6770, 2
  %v7205 = vsel %vm460, %v7203, %v7204
  %v7206 = vrot.slane %v6775, 2
  %v7207 = vrot.slane %v6776, 2
  %v7208 = vsel %vm460, %v7206, %v7207
  %v7209 = vrot.slane %v6777, 2
  %v7210 = vrot.slane %v6778, 2
  %v7211 = vsel %vm460, %v7209, %v7210
  %v7212 = vrot.slane %v6779, 2
  %v7213 = vrot.slane %v6780, 2
  %v7214 = vsel %vm460, %v7212, %v7213
  %v7215 = vrot.slane %v6781, 2
  %v7216 = vrot.slane %v6782, 2
  %v7217 = vsel %vm460, %v7215, %v7216
  %v7218 = vrot.slane %v6783, 2
  %v7219 = vrot.slane %v6784, 2
  %v7220 = vsel %vm460, %v7218, %v7219
  %v7221 = vrot.slane %v6785, 2
  %v7222 = vrot.slane %v6786, 2
  %v7223 = vsel %vm460, %v7221, %v7222
  %v7224 = vrot.slane %v6787, 2
  %v7225 = vrot.slane %v6788, 2
  %v7226 = vsel %vm460, %v7224, %v7225
  %v7227 = vrot.slane %v6789, 2
  %v7228 = vrot.slane %v6790, 2
  %v7229 = vsel %vm460, %v7227, %v7228
  %v7246 = vpack.c.bf16 %v7187, %v7184
  %v7247 = vpack.c.bf16 %v7193, %v7190
  %v7248 = vpack.c.bf16 %v7199, %v7196
  %v7249 = vpack.c.bf16 %v7205, %v7202
  %v7250 = vpack.c.bf16 %v7211, %v7208
  %v7251 = vpack.c.bf16 %v7217, %v7214
  %v7252 = vpack.c.bf16 %v7223, %v7220
  %v7253 = vpack.c.bf16 %v7229, %v7226
  %s7254 = scalar_lea.vmem %s15, 32
  %v7255 = vld [vmem:[%s7254] sm:$0xf]
  %v7256 = vld [vmem:[%s7254 + $0x4] sm:$0xf]
  %v7257 = vld [vmem:[%s7254 + $0x8] sm:$0xf]
  %v7258 = vld [vmem:[%s7254 + $0xc] sm:$0xf]
  %v7263 = vunpack.c.l.b16 %v7255
  %v7264 = vunpack.c.l.b16 %v7256
  %v7265 = vunpack.c.l.b16 %v7257
  %v7266 = vunpack.c.l.b16 %v7258
  %v7267 = vpack.c.b16 %v7264, %v7263
  %v7268 = vpack.c.b16 %v7266, %v7265
  %v7272 = vsel %vm1605, %v7246, 0
  %v7275 = vsel %vm1605, %v7247, 0
  %v7278 = vsel %vm1605, %v7248, 0
  %v7281 = vsel %vm1605, %v7249, 0
  %v7284 = vsel %vm1605, %v7250, 0
  %v7287 = vsel %vm1605, %v7251, 0
  %v7290 = vsel %vm1605, %v7252, 0
  %v7293 = vsel %vm1605, %v7253, 0
  %7295 = vmatprep.subr.bf16.mxu0 0
  %7296 = vmatpush1.bf16.msra.mxu0 %v7267
  %7297 = vmatprep.subr.bf16.mxu0 0
  %7298 = vmatpush1.bf16.msra.mxu0 %v7268
  %7299 = vmatprep.subr.bf16.mxu0 0
  %7300 = vmatpush1.bf16.msra.mxu0 0
  %7301 = vmatprep.subr.bf16.mxu0 0
  %7302 = vmatpush1.bf16.msra.mxu0 0
  %7303 = vmatprep.subr.bf16.mxu0 0
  %7304 = vmatpush1.bf16.msra.mxu0 0
  %7305 = vmatprep.subr.bf16.mxu0 0
  %7306 = vmatpush1.bf16.msra.mxu0 0
  %7307 = vmatprep.subr.bf16.mxu0 0
  %7308 = vmatpush1.bf16.msra.mxu0 0
  %7309 = vmatprep.subr.bf16.mxu0 0
  %7310 = vmatpush1.bf16.msra.mxu0 0
  %7311 = vmatprep.subr.bf16.mxu0 0
  %7312 = vmatpush1.bf16.msra.mxu0 0
  %7313 = vmatprep.subr.bf16.mxu0 0
  %7314 = vmatpush1.bf16.msra.mxu0 0
  %7315 = vmatprep.subr.bf16.mxu0 0
  %7316 = vmatpush1.bf16.msra.mxu0 0
  %7317 = vmatprep.subr.bf16.mxu0 0
  %7318 = vmatpush1.bf16.msra.mxu0 0
  %7319 = vmatprep.subr.bf16.mxu0 0
  %7320 = vmatpush1.bf16.msra.mxu0 0
  %7321 = vmatprep.subr.bf16.mxu0 0
  %7322 = vmatpush1.bf16.msra.mxu0 0
  %7323 = vmatprep.subr.bf16.mxu0 0
  %7324 = vmatpush1.bf16.msra.mxu0 0
  %7325 = vmatprep.subr.bf16.mxu0 0
  %7326 = vmatpush1.bf16.msra.mxu0 0
  %7327 = vmatprep.mubr.bf16.mxu0 0
  %7328 = vmatmul.mubr.bf16.gmra.mrb[0].mxu0 %v7272
  %v7329 = vpop.f32.mrb[0].mxu0
  %v7330 = vadd.f32 0.0, %v7329
  %v7331 = vpop.f32.mrb[0].mxu0
  %v7332 = vpop.f32.mrb[0].mxu0
  %v7333 = vadd.f32 0.0, %v7332
  %v7334 = vpop.f32.mrb[0].mxu0
  %7335 = vmatprep.mubr.bf16.mxu0 0
  %7336 = vmatmul.mubr.bf16.gmra.mrb[0].mxu0 %v7275
  %v7337 = vpop.f32.mrb[0].mxu0
  %v7338 = vadd.f32 0.0, %v7337
  %v7339 = vpop.f32.mrb[0].mxu0
  %v7340 = vpop.f32.mrb[0].mxu0
  %v7341 = vadd.f32 0.0, %v7340
  %v7342 = vpop.f32.mrb[0].mxu0
  %7343 = vmatprep.mubr.bf16.mxu0 0
  %7344 = vmatmul.mubr.bf16.gmra.mrb[0].mxu0 %v7278
  %v7345 = vpop.f32.mrb[0].mxu0
  %v7346 = vadd.f32 0.0, %v7345
  %v7347 = vpop.f32.mrb[0].mxu0
  %v7348 = vpop.f32.mrb[0].mxu0
  %v7349 = vadd.f32 0.0, %v7348
  %v7350 = vpop.f32.mrb[0].mxu0
  %7351 = vmatprep.mubr.bf16.mxu0 0
  %7352 = vmatmul.mubr.bf16.gmra.mrb[0].mxu0 %v7281
  %v7353 = vpop.f32.mrb[0].mxu0
  %v7354 = vadd.f32 0.0, %v7353
  %v7355 = vpop.f32.mrb[0].mxu0
  %v7356 = vpop.f32.mrb[0].mxu0
  %v7357 = vadd.f32 0.0, %v7356
  %v7358 = vpop.f32.mrb[0].mxu0
  %7359 = vmatprep.mubr.bf16.mxu0 0
  %7360 = vmatmul.mubr.bf16.gmra.mrb[0].mxu0 %v7284
  %v7361 = vpop.f32.mrb[0].mxu0
  %v7362 = vadd.f32 0.0, %v7361
  %v7363 = vpop.f32.mrb[0].mxu0
  %v7364 = vpop.f32.mrb[0].mxu0
  %v7365 = vadd.f32 0.0, %v7364
  %v7366 = vpop.f32.mrb[0].mxu0
  %7367 = vmatprep.mubr.bf16.mxu0 0
  %7368 = vmatmul.mubr.bf16.gmra.mrb[0].mxu0 %v7287
  %v7369 = vpop.f32.mrb[0].mxu0
  %v7370 = vadd.f32 0.0, %v7369
  %v7371 = vpop.f32.mrb[0].mxu0
  %v7372 = vpop.f32.mrb[0].mxu0
  %v7373 = vadd.f32 0.0, %v7372
  %v7374 = vpop.f32.mrb[0].mxu0
  %7375 = vmatprep.mubr.bf16.mxu0 0
  %7376 = vmatmul.mubr.bf16.gmra.mrb[0].mxu0 %v7290
  %v7377 = vpop.f32.mrb[0].mxu0
  %v7378 = vadd.f32 0.0, %v7377
  %v7379 = vpop.f32.mrb[0].mxu0
  %v7380 = vpop.f32.mrb[0].mxu0
  %v7381 = vadd.f32 0.0, %v7380
  %v7382 = vpop.f32.mrb[0].mxu0
  %7383 = vmatprep.mubr.bf16.mxu0 0
  %7384 = vmatmul.mubr.bf16.gmra.mrb[0].mxu0 %v7293
  %v7385 = vpop.f32.mrb[0].mxu0
  %v7386 = vadd.f32 0.0, %v7385
  %v7387 = vpop.f32.mrb[0].mxu0
  %v7388 = vpop.f32.mrb[0].mxu0
  %v7389 = vadd.f32 0.0, %v7388
  %v7390 = vpop.f32.mrb[0].mxu0
  %7391 = vdwg.mxu0
  %v7392 = vadd.f32 %v7120, %v7330
  %v7393 = vadd.f32 %v7123, %v7333
  %v7394 = vadd.f32 %v7128, %v7338
  %v7395 = vadd.f32 %v7131, %v7341
  %v7396 = vadd.f32 %v7136, %v7346
  %v7397 = vadd.f32 %v7139, %v7349
  %v7398 = vadd.f32 %v7144, %v7354
  %v7399 = vadd.f32 %v7147, %v7357
  %v7400 = vadd.f32 %v7152, %v7362
  %v7401 = vadd.f32 %v7155, %v7365
  %v7402 = vadd.f32 %v7160, %v7370
  %v7403 = vadd.f32 %v7163, %v7373
  %v7404 = vadd.f32 %v7168, %v7378
  %v7405 = vadd.f32 %v7171, %v7381
  %v7406 = vadd.f32 %v7176, %v7386
  %v7407 = vadd.f32 %v7179, %v7389
  %v7408 = vpack.c.bf16 %v6759, %v6757
  %v7409 = vpack.c.bf16 %v6763, %v6761
  %v7410 = vpack.c.bf16 %v6767, %v6765
  %v7411 = vpack.c.bf16 %v6771, %v6769
  %v7412 = vpack.c.bf16 %v6779, %v6777
  %v7413 = vpack.c.bf16 %v6783, %v6781
  %v7414 = vpack.c.bf16 %v6787, %v6785
  %v7415 = vpack.c.bf16 %v6791, %v6789
  %s7416 = scalar_lea.vmem %s15, 48
  %v7417 = vld [vmem:[%s7416] sm:$0xf]
  %v7418 = vld [vmem:[%s7416 + $0x4] sm:$0xf]
  %v7419 = vld [vmem:[%s7416 + $0x8] sm:$0xf]
  %v7420 = vld [vmem:[%s7416 + $0xc] sm:$0xf]
  %v7425 = vunpack.c.l.b16 %v7417
  %v7426 = vunpack.c.l.b16 %v7418
  %v7427 = vunpack.c.l.b16 %v7419
  %v7428 = vunpack.c.l.b16 %v7420
  %v7429 = vpack.c.b16 %v7426, %v7425
  %v7430 = vpack.c.b16 %v7428, %v7427
  %v7434 = vsel %vm1605, %v7408, 0
  %v7437 = vsel %vm1605, %v7409, 0
  %v7440 = vsel %vm1605, %v7410, 0
  %v7443 = vsel %vm1605, %v7411, 0
  %v7446 = vsel %vm1605, %v7412, 0
  %v7449 = vsel %vm1605, %v7413, 0
  %v7452 = vsel %vm1605, %v7414, 0
  %v7455 = vsel %vm1605, %v7415, 0
  %7457 = vmatprep.subr.bf16.mxu0 0
  %7458 = vmatpush1.bf16.msra.mxu0 %v7429
  %7459 = vmatprep.subr.bf16.mxu0 0
  %7460 = vmatpush1.bf16.msra.mxu0 %v7430
  %7461 = vmatprep.subr.bf16.mxu0 0
  %7462 = vmatpush1.bf16.msra.mxu0 0
  %7463 = vmatprep.subr.bf16.mxu0 0
  %7464 = vmatpush1.bf16.msra.mxu0 0
  %7465 = vmatprep.subr.bf16.mxu0 0
  %7466 = vmatpush1.bf16.msra.mxu0 0
  %7467 = vmatprep.subr.bf16.mxu0 0
  %7468 = vmatpush1.bf16.msra.mxu0 0
  %7469 = vmatprep.subr.bf16.mxu0 0
  %7470 = vmatpush1.bf16.msra.mxu0 0
  %7471 = vmatprep.subr.bf16.mxu0 0
  %7472 = vmatpush1.bf16.msra.mxu0 0
  %7473 = vmatprep.subr.bf16.mxu0 0
  %7474 = vmatpush1.bf16.msra.mxu0 0
  %7475 = vmatprep.subr.bf16.mxu0 0
  %7476 = vmatpush1.bf16.msra.mxu0 0
  %7477 = vmatprep.subr.bf16.mxu0 0
  %7478 = vmatpush1.bf16.msra.mxu0 0
  %7479 = vmatprep.subr.bf16.mxu0 0
  %7480 = vmatpush1.bf16.msra.mxu0 0
  %7481 = vmatprep.subr.bf16.mxu0 0
  %7482 = vmatpush1.bf16.msra.mxu0 0
  %7483 = vmatprep.subr.bf16.mxu0 0
  %7484 = vmatpush1.bf16.msra.mxu0 0
  %7485 = vmatprep.subr.bf16.mxu0 0
  %7486 = vmatpush1.bf16.msra.mxu0 0
  %7487 = vmatprep.subr.bf16.mxu0 0
  %7488 = vmatpush1.bf16.msra.mxu0 0
  %7489 = vmatprep.mubr.bf16.mxu0 0
  %7490 = vmatmul.mubr.bf16.gmra.mrb[0].mxu0 %v7434
  %v7491 = vpop.f32.mrb[0].mxu0
  %v7492 = vadd.f32 0.0, %v7491
  %v7493 = vpop.f32.mrb[0].mxu0
  %v7494 = vpop.f32.mrb[0].mxu0
  %v7495 = vadd.f32 0.0, %v7494
  %v7496 = vpop.f32.mrb[0].mxu0
  %7497 = vmatprep.mubr.bf16.mxu0 0
  %7498 = vmatmul.mubr.bf16.gmra.mrb[0].mxu0 %v7437
  %v7499 = vpop.f32.mrb[0].mxu0
  %v7500 = vadd.f32 0.0, %v7499
  %v7501 = vpop.f32.mrb[0].mxu0
  %v7502 = vpop.f32.mrb[0].mxu0
  %v7503 = vadd.f32 0.0, %v7502
  %v7504 = vpop.f32.mrb[0].mxu0
  %7505 = vmatprep.mubr.bf16.mxu0 0
  %7506 = vmatmul.mubr.bf16.gmra.mrb[0].mxu0 %v7440
  %v7507 = vpop.f32.mrb[0].mxu0
  %v7508 = vadd.f32 0.0, %v7507
  %v7509 = vpop.f32.mrb[0].mxu0
  %v7510 = vpop.f32.mrb[0].mxu0
  %v7511 = vadd.f32 0.0, %v7510
  %v7512 = vpop.f32.mrb[0].mxu0
  %7513 = vmatprep.mubr.bf16.mxu0 0
  %7514 = vmatmul.mubr.bf16.gmra.mrb[0].mxu0 %v7443
  %v7515 = vpop.f32.mrb[0].mxu0
  %v7516 = vadd.f32 0.0, %v7515
  %v7517 = vpop.f32.mrb[0].mxu0
  %v7518 = vpop.f32.mrb[0].mxu0
  %v7519 = vadd.f32 0.0, %v7518
  %v7520 = vpop.f32.mrb[0].mxu0
  %7521 = vmatprep.mubr.bf16.mxu0 0
  %7522 = vmatmul.mubr.bf16.gmra.mrb[0].mxu0 %v7446
  %v7523 = vpop.f32.mrb[0].mxu0
  %v7524 = vadd.f32 0.0, %v7523
  %v7525 = vpop.f32.mrb[0].mxu0
  %v7526 = vpop.f32.mrb[0].mxu0
  %v7527 = vadd.f32 0.0, %v7526
  %v7528 = vpop.f32.mrb[0].mxu0
  %7529 = vmatprep.mubr.bf16.mxu0 0
  %7530 = vmatmul.mubr.bf16.gmra.mrb[0].mxu0 %v7449
  %v7531 = vpop.f32.mrb[0].mxu0
  %v7532 = vadd.f32 0.0, %v7531
  %v7533 = vpop.f32.mrb[0].mxu0
  %v7534 = vpop.f32.mrb[0].mxu0
  %v7535 = vadd.f32 0.0, %v7534
  %v7536 = vpop.f32.mrb[0].mxu0
  %7537 = vmatprep.mubr.bf16.mxu0 0
  %7538 = vmatmul.mubr.bf16.gmra.mrb[0].mxu0 %v7452
  %v7539 = vpop.f32.mrb[0].mxu0
  %v7540 = vadd.f32 0.0, %v7539
  %v7541 = vpop.f32.mrb[0].mxu0
  %v7542 = vpop.f32.mrb[0].mxu0
  %v7543 = vadd.f32 0.0, %v7542
  %v7544 = vpop.f32.mrb[0].mxu0
  %7545 = vmatprep.mubr.bf16.mxu0 0
  %7546 = vmatmul.mubr.bf16.gmra.mrb[0].mxu0 %v7455
  %v7547 = vpop.f32.mrb[0].mxu0
  %v7548 = vadd.f32 0.0, %v7547
  %v7549 = vpop.f32.mrb[0].mxu0
  %v7550 = vpop.f32.mrb[0].mxu0
  %v7551 = vadd.f32 0.0, %v7550
  %v7552 = vpop.f32.mrb[0].mxu0
  %7553 = vdwg.mxu0
  %v7554 = vadd.f32 %v7392, %v7492
  %v7555 = vadd.f32 %v7393, %v7495
  %v7556 = vadd.f32 %v7394, %v7500
  %v7557 = vadd.f32 %v7395, %v7503
  %v7558 = vadd.f32 %v7396, %v7508
  %v7559 = vadd.f32 %v7397, %v7511
  %v7560 = vadd.f32 %v7398, %v7516
  %v7561 = vadd.f32 %v7399, %v7519
  %v7562 = vadd.f32 %v7400, %v7524
  %v7563 = vadd.f32 %v7401, %v7527
  %v7564 = vadd.f32 %v7402, %v7532
  %v7565 = vadd.f32 %v7403, %v7535
  %v7566 = vadd.f32 %v7404, %v7540
  %v7567 = vadd.f32 %v7405, %v7543
  %v7568 = vadd.f32 %v7406, %v7548
  %v7569 = vadd.f32 %v7407, %v7551
  %v7574 = vrot.slane %v6771, 1
  %v7575 = vrot.slane %v6772, 1
  %v7576 = vsel %vm135, %v7574, %v7575
  %v7577 = vrot.slane %v6791, 1
  %v7578 = vrot.slane %v6792, 1
  %v7579 = vsel %vm135, %v7577, %v7578
  %v7582 = vpack.c.bf16 %v6847, %v6844
  %v7583 = vpack.c.bf16 %v6853, %v6850
  %v7584 = vpack.c.bf16 %v6859, %v6856
  %v7585 = vpack.c.bf16 %v7576, %v6862
  %v7586 = vpack.c.bf16 %v6871, %v6868
  %v7587 = vpack.c.bf16 %v6877, %v6874
  %v7588 = vpack.c.bf16 %v6883, %v6880
  %v7589 = vpack.c.bf16 %v7579, %v6886
  %s7590 = scalar_lea.vmem %s15, 64
  %v7591 = vld [vmem:[%s7590] sm:$0xf]
  %v7592 = vld [vmem:[%s7590 + $0x4] sm:$0xf]
  %v7593 = vld [vmem:[%s7590 + $0x8] sm:$0xf]
  %v7594 = vld [vmem:[%s7590 + $0xc] sm:$0xf]
  %v7599 = vunpack.c.l.b16 %v7591
  %v7600 = vunpack.c.l.b16 %v7592
  %v7601 = vunpack.c.l.b16 %v7593
  %v7602 = vunpack.c.l.b16 %v7594
  %v7603 = vpack.c.b16 %v7600, %v7599
  %v7604 = vpack.c.b16 %v7602, %v7601
  %v7608 = vsel %vm1605, %v7582, 0
  %v7611 = vsel %vm1605, %v7583, 0
  %v7614 = vsel %vm1605, %v7584, 0
  %v7617 = vsel %vm1605, %v7585, 0
  %v7620 = vsel %vm1605, %v7586, 0
  %v7623 = vsel %vm1605, %v7587, 0
  %v7626 = vsel %vm1605, %v7588, 0
  %v7629 = vsel %vm1605, %v7589, 0
  %7631 = vmatprep.subr.bf16.mxu0 0
  %7632 = vmatpush1.bf16.msra.mxu0 %v7603
  %7633 = vmatprep.subr.bf16.mxu0 0
  %7634 = vmatpush1.bf16.msra.mxu0 %v7604
  %7635 = vmatprep.subr.bf16.mxu0 0
  %7636 = vmatpush1.bf16.msra.mxu0 0
  %7637 = vmatprep.subr.bf16.mxu0 0
  %7638 = vmatpush1.bf16.msra.mxu0 0
  %7639 = vmatprep.subr.bf16.mxu0 0
  %7640 = vmatpush1.bf16.msra.mxu0 0
  %7641 = vmatprep.subr.bf16.mxu0 0
  %7642 = vmatpush1.bf16.msra.mxu0 0
  %7643 = vmatprep.subr.bf16.mxu0 0
  %7644 = vmatpush1.bf16.msra.mxu0 0
  %7645 = vmatprep.subr.bf16.mxu0 0
  %7646 = vmatpush1.bf16.msra.mxu0 0
  %7647 = vmatprep.subr.bf16.mxu0 0
  %7648 = vmatpush1.bf16.msra.mxu0 0
  %7649 = vmatprep.subr.bf16.mxu0 0
  %7650 = vmatpush1.bf16.msra.mxu0 0
  %7651 = vmatprep.subr.bf16.mxu0 0
  %7652 = vmatpush1.bf16.msra.mxu0 0
  %7653 = vmatprep.subr.bf16.mxu0 0
  %7654 = vmatpush1.bf16.msra.mxu0 0
  %7655 = vmatprep.subr.bf16.mxu0 0
  %7656 = vmatpush1.bf16.msra.mxu0 0
  %7657 = vmatprep.subr.bf16.mxu0 0
  %7658 = vmatpush1.bf16.msra.mxu0 0
  %7659 = vmatprep.subr.bf16.mxu0 0
  %7660 = vmatpush1.bf16.msra.mxu0 0
  %7661 = vmatprep.subr.bf16.mxu0 0
  %7662 = vmatpush1.bf16.msra.mxu0 0
  %7663 = vmatprep.mubr.bf16.mxu0 0
  %7664 = vmatmul.mubr.bf16.gmra.mrb[0].mxu0 %v7608
  %v7665 = vpop.f32.mrb[0].mxu0
  %v7666 = vadd.f32 0.0, %v7665
  %v7667 = vpop.f32.mrb[0].mxu0
  %v7668 = vpop.f32.mrb[0].mxu0
  %v7669 = vadd.f32 0.0, %v7668
  %v7670 = vpop.f32.mrb[0].mxu0
  %7671 = vmatprep.mubr.bf16.mxu0 0
  %7672 = vmatmul.mubr.bf16.gmra.mrb[0].mxu0 %v7611
  %v7673 = vpop.f32.mrb[0].mxu0
  %v7674 = vadd.f32 0.0, %v7673
  %v7675 = vpop.f32.mrb[0].mxu0
  %v7676 = vpop.f32.mrb[0].mxu0
  %v7677 = vadd.f32 0.0, %v7676
  %v7678 = vpop.f32.mrb[0].mxu0
  %7679 = vmatprep.mubr.bf16.mxu0 0
  %7680 = vmatmul.mubr.bf16.gmra.mrb[0].mxu0 %v7614
  %v7681 = vpop.f32.mrb[0].mxu0
  %v7682 = vadd.f32 0.0, %v7681
  %v7683 = vpop.f32.mrb[0].mxu0
  %v7684 = vpop.f32.mrb[0].mxu0
  %v7685 = vadd.f32 0.0, %v7684
  %v7686 = vpop.f32.mrb[0].mxu0
  %7687 = vmatprep.mubr.bf16.mxu0 0
  %7688 = vmatmul.mubr.bf16.gmra.mrb[0].mxu0 %v7617
  %v7689 = vpop.f32.mrb[0].mxu0
  %v7690 = vadd.f32 0.0, %v7689
  %v7691 = vpop.f32.mrb[0].mxu0
  %v7692 = vpop.f32.mrb[0].mxu0
  %v7693 = vadd.f32 0.0, %v7692
  %v7694 = vpop.f32.mrb[0].mxu0
  %7695 = vmatprep.mubr.bf16.mxu0 0
  %7696 = vmatmul.mubr.bf16.gmra.mrb[0].mxu0 %v7620
  %v7697 = vpop.f32.mrb[0].mxu0
  %v7698 = vadd.f32 0.0, %v7697
  %v7699 = vpop.f32.mrb[0].mxu0
  %v7700 = vpop.f32.mrb[0].mxu0
  %v7701 = vadd.f32 0.0, %v7700
  %v7702 = vpop.f32.mrb[0].mxu0
  %7703 = vmatprep.mubr.bf16.mxu0 0
  %7704 = vmatmul.mubr.bf16.gmra.mrb[0].mxu0 %v7623
  %v7705 = vpop.f32.mrb[0].mxu0
  %v7706 = vadd.f32 0.0, %v7705
  %v7707 = vpop.f32.mrb[0].mxu0
  %v7708 = vpop.f32.mrb[0].mxu0
  %v7709 = vadd.f32 0.0, %v7708
  %v7710 = vpop.f32.mrb[0].mxu0
  %7711 = vmatprep.mubr.bf16.mxu0 0
  %7712 = vmatmul.mubr.bf16.gmra.mrb[0].mxu0 %v7626
  %v7713 = vpop.f32.mrb[0].mxu0
  %v7714 = vadd.f32 0.0, %v7713
  %v7715 = vpop.f32.mrb[0].mxu0
  %v7716 = vpop.f32.mrb[0].mxu0
  %v7717 = vadd.f32 0.0, %v7716
  %v7718 = vpop.f32.mrb[0].mxu0
  %7719 = vmatprep.mubr.bf16.mxu0 0
  %7720 = vmatmul.mubr.bf16.gmra.mrb[0].mxu0 %v7629
  %v7721 = vpop.f32.mrb[0].mxu0
  %v7722 = vadd.f32 0.0, %v7721
  %v7723 = vpop.f32.mrb[0].mxu0
  %v7724 = vpop.f32.mrb[0].mxu0
  %v7725 = vadd.f32 0.0, %v7724
  %v7726 = vpop.f32.mrb[0].mxu0
  %7727 = vdwg.mxu0
  %v7728 = vadd.f32 %v7554, %v7666
  %v7729 = vadd.f32 %v7555, %v7669
  %v7730 = vadd.f32 %v7556, %v7674
  %v7731 = vadd.f32 %v7557, %v7677
  %v7732 = vadd.f32 %v7558, %v7682
  %v7733 = vadd.f32 %v7559, %v7685
  %v7734 = vadd.f32 %v7560, %v7690
  %v7735 = vadd.f32 %v7561, %v7693
  %v7736 = vadd.f32 %v7562, %v7698
  %v7737 = vadd.f32 %v7563, %v7701
  %v7738 = vadd.f32 %v7564, %v7706
  %v7739 = vadd.f32 %v7565, %v7709
  %v7740 = vadd.f32 %v7566, %v7714
  %v7741 = vadd.f32 %v7567, %v7717
  %v7742 = vadd.f32 %v7568, %v7722
  %v7743 = vadd.f32 %v7569, %v7725
  %v7744 = vrot.slane %v6771, 2
  %v7745 = vrot.slane %v6772, 2
  %v7746 = vsel %vm460, %v7744, %v7745
  %v7747 = vrot.slane %v6791, 2
  %v7748 = vrot.slane %v6792, 2
  %v7749 = vsel %vm460, %v7747, %v7748
  %v7752 = vpack.c.bf16 %v7190, %v7187
  %v7753 = vpack.c.bf16 %v7196, %v7193
  %v7754 = vpack.c.bf16 %v7202, %v7199
  %v7755 = vpack.c.bf16 %v7746, %v7205
  %v7756 = vpack.c.bf16 %v7214, %v7211
  %v7757 = vpack.c.bf16 %v7220, %v7217
  %v7758 = vpack.c.bf16 %v7226, %v7223
  %v7759 = vpack.c.bf16 %v7749, %v7229
  %s7760 = scalar_lea.vmem %s15, 80
  %v7761 = vld [vmem:[%s7760] sm:$0xf]
  %v7762 = vld [vmem:[%s7760 + $0x4] sm:$0xf]
  %v7763 = vld [vmem:[%s7760 + $0x8] sm:$0xf]
  %v7764 = vld [vmem:[%s7760 + $0xc] sm:$0xf]
  %v7769 = vunpack.c.l.b16 %v7761
  %v7770 = vunpack.c.l.b16 %v7762
  %v7771 = vunpack.c.l.b16 %v7763
  %v7772 = vunpack.c.l.b16 %v7764
  %v7773 = vpack.c.b16 %v7770, %v7769
  %v7774 = vpack.c.b16 %v7772, %v7771
  %v7778 = vsel %vm1605, %v7752, 0
  %v7781 = vsel %vm1605, %v7753, 0
  %v7784 = vsel %vm1605, %v7754, 0
  %v7787 = vsel %vm1605, %v7755, 0
  %v7790 = vsel %vm1605, %v7756, 0
  %v7793 = vsel %vm1605, %v7757, 0
  %v7796 = vsel %vm1605, %v7758, 0
  %v7799 = vsel %vm1605, %v7759, 0
  %7801 = vmatprep.subr.bf16.mxu0 0
  %7802 = vmatpush1.bf16.msra.mxu0 %v7773
  %7803 = vmatprep.subr.bf16.mxu0 0
  %7804 = vmatpush1.bf16.msra.mxu0 %v7774
  %7805 = vmatprep.subr.bf16.mxu0 0
  %7806 = vmatpush1.bf16.msra.mxu0 0
  %7807 = vmatprep.subr.bf16.mxu0 0
  %7808 = vmatpush1.bf16.msra.mxu0 0
  %7809 = vmatprep.subr.bf16.mxu0 0
  %7810 = vmatpush1.bf16.msra.mxu0 0
  %7811 = vmatprep.subr.bf16.mxu0 0
  %7812 = vmatpush1.bf16.msra.mxu0 0
  %7813 = vmatprep.subr.bf16.mxu0 0
  %7814 = vmatpush1.bf16.msra.mxu0 0
  %7815 = vmatprep.subr.bf16.mxu0 0
  %7816 = vmatpush1.bf16.msra.mxu0 0
  %7817 = vmatprep.subr.bf16.mxu0 0
  %7818 = vmatpush1.bf16.msra.mxu0 0
  %7819 = vmatprep.subr.bf16.mxu0 0
  %7820 = vmatpush1.bf16.msra.mxu0 0
  %7821 = vmatprep.subr.bf16.mxu0 0
  %7822 = vmatpush1.bf16.msra.mxu0 0
  %7823 = vmatprep.subr.bf16.mxu0 0
  %7824 = vmatpush1.bf16.msra.mxu0 0
  %7825 = vmatprep.subr.bf16.mxu0 0
  %7826 = vmatpush1.bf16.msra.mxu0 0
  %7827 = vmatprep.subr.bf16.mxu0 0
  %7828 = vmatpush1.bf16.msra.mxu0 0
  %7829 = vmatprep.subr.bf16.mxu0 0
  %7830 = vmatpush1.bf16.msra.mxu0 0
  %7831 = vmatprep.subr.bf16.mxu0 0
  %7832 = vmatpush1.bf16.msra.mxu0 0
  %7833 = vmatprep.mubr.bf16.mxu0 0
  %7834 = vmatmul.mubr.bf16.gmra.mrb[0].mxu0 %v7778
  %v7835 = vpop.f32.mrb[0].mxu0
  %v7836 = vadd.f32 0.0, %v7835
  %v7837 = vpop.f32.mrb[0].mxu0
  %v7838 = vpop.f32.mrb[0].mxu0
  %v7839 = vadd.f32 0.0, %v7838
  %v7840 = vpop.f32.mrb[0].mxu0
  %7841 = vmatprep.mubr.bf16.mxu0 0
  %7842 = vmatmul.mubr.bf16.gmra.mrb[0].mxu0 %v7781
  %v7843 = vpop.f32.mrb[0].mxu0
  %v7844 = vadd.f32 0.0, %v7843
  %v7845 = vpop.f32.mrb[0].mxu0
  %v7846 = vpop.f32.mrb[0].mxu0
  %v7847 = vadd.f32 0.0, %v7846
  %v7848 = vpop.f32.mrb[0].mxu0
  %7849 = vmatprep.mubr.bf16.mxu0 0
  %7850 = vmatmul.mubr.bf16.gmra.mrb[0].mxu0 %v7784
  %v7851 = vpop.f32.mrb[0].mxu0
  %v7852 = vadd.f32 0.0, %v7851
  %v7853 = vpop.f32.mrb[0].mxu0
  %v7854 = vpop.f32.mrb[0].mxu0
  %v7855 = vadd.f32 0.0, %v7854
  %v7856 = vpop.f32.mrb[0].mxu0
  %7857 = vmatprep.mubr.bf16.mxu0 0
  %7858 = vmatmul.mubr.bf16.gmra.mrb[0].mxu0 %v7787
  %v7859 = vpop.f32.mrb[0].mxu0
  %v7860 = vadd.f32 0.0, %v7859
  %v7861 = vpop.f32.mrb[0].mxu0
  %v7862 = vpop.f32.mrb[0].mxu0
  %v7863 = vadd.f32 0.0, %v7862
  %v7864 = vpop.f32.mrb[0].mxu0
  %7865 = vmatprep.mubr.bf16.mxu0 0
  %7866 = vmatmul.mubr.bf16.gmra.mrb[0].mxu0 %v7790
  %v7867 = vpop.f32.mrb[0].mxu0
  %v7868 = vadd.f32 0.0, %v7867
  %v7869 = vpop.f32.mrb[0].mxu0
  %v7870 = vpop.f32.mrb[0].mxu0
  %v7871 = vadd.f32 0.0, %v7870
  %v7872 = vpop.f32.mrb[0].mxu0
  %7873 = vmatprep.mubr.bf16.mxu0 0
  %7874 = vmatmul.mubr.bf16.gmra.mrb[0].mxu0 %v7793
  %v7875 = vpop.f32.mrb[0].mxu0
  %v7876 = vadd.f32 0.0, %v7875
  %v7877 = vpop.f32.mrb[0].mxu0
  %v7878 = vpop.f32.mrb[0].mxu0
  %v7879 = vadd.f32 0.0, %v7878
  %v7880 = vpop.f32.mrb[0].mxu0
  %7881 = vmatprep.mubr.bf16.mxu0 0
  %7882 = vmatmul.mubr.bf16.gmra.mrb[0].mxu0 %v7796
  %v7883 = vpop.f32.mrb[0].mxu0
  %v7884 = vadd.f32 0.0, %v7883
  %v7885 = vpop.f32.mrb[0].mxu0
  %v7886 = vpop.f32.mrb[0].mxu0
  %v7887 = vadd.f32 0.0, %v7886
  %v7888 = vpop.f32.mrb[0].mxu0
  %7889 = vmatprep.mubr.bf16.mxu0 0
  %7890 = vmatmul.mubr.bf16.gmra.mrb[0].mxu0 %v7799
  %v7891 = vpop.f32.mrb[0].mxu0
  %v7892 = vadd.f32 0.0, %v7891
  %v7893 = vpop.f32.mrb[0].mxu0
  %v7894 = vpop.f32.mrb[0].mxu0
  %v7895 = vadd.f32 0.0, %v7894
  %v7896 = vpop.f32.mrb[0].mxu0
  %7897 = vdwg.mxu0
  %v7898 = vadd.f32 %v7728, %v7836
  %v7899 = vadd.f32 %v7729, %v7839
  %v7900 = vadd.f32 %v7730, %v7844
  %v7901 = vadd.f32 %v7731, %v7847
  %v7902 = vadd.f32 %v7732, %v7852
  %v7903 = vadd.f32 %v7733, %v7855
  %v7904 = vadd.f32 %v7734, %v7860
  %v7905 = vadd.f32 %v7735, %v7863
  %v7906 = vadd.f32 %v7736, %v7868
  %v7907 = vadd.f32 %v7737, %v7871
  %v7908 = vadd.f32 %v7738, %v7876
  %v7909 = vadd.f32 %v7739, %v7879
  %v7910 = vadd.f32 %v7740, %v7884
  %v7911 = vadd.f32 %v7741, %v7887
  %v7912 = vadd.f32 %v7742, %v7892
  %v7913 = vadd.f32 %v7743, %v7895
  %v7914 = vpack.c.bf16 %v6773, %v6771
  %v7915 = vpack.c.bf16 %v6793, %v6791
  %s7916 = scalar_lea.vmem %s15, 96
  %v7917 = vld [vmem:[%s7916] sm:$0xf]
  %v7918 = vld [vmem:[%s7916 + $0x4] sm:$0xf]
  %v7919 = vld [vmem:[%s7916 + $0x8] sm:$0xf]
  %v7920 = vld [vmem:[%s7916 + $0xc] sm:$0xf]
  %v7925 = vunpack.c.l.b16 %v7917
  %v7926 = vunpack.c.l.b16 %v7918
  %v7927 = vunpack.c.l.b16 %v7919
  %v7928 = vunpack.c.l.b16 %v7920
  %v7929 = vpack.c.b16 %v7926, %v7925
  %v7930 = vpack.c.b16 %v7928, %v7927
  %v7934 = vsel %vm1605, %v7914, 0
  %v7937 = vsel %vm1605, %v7915, 0
  %7939 = vmatprep.subr.bf16.mxu0 0
  %7940 = vmatpush1.bf16.msra.mxu0 %v7929
  %7941 = vmatprep.subr.bf16.mxu0 0
  %7942 = vmatpush1.bf16.msra.mxu0 %v7930
  %7943 = vmatprep.subr.bf16.mxu0 0
  %7944 = vmatpush1.bf16.msra.mxu0 0
  %7945 = vmatprep.subr.bf16.mxu0 0
  %7946 = vmatpush1.bf16.msra.mxu0 0
  %7947 = vmatprep.subr.bf16.mxu0 0
  %7948 = vmatpush1.bf16.msra.mxu0 0
  %7949 = vmatprep.subr.bf16.mxu0 0
  %7950 = vmatpush1.bf16.msra.mxu0 0
  %7951 = vmatprep.subr.bf16.mxu0 0
  %7952 = vmatpush1.bf16.msra.mxu0 0
  %7953 = vmatprep.subr.bf16.mxu0 0
  %7954 = vmatpush1.bf16.msra.mxu0 0
  %7955 = vmatprep.subr.bf16.mxu0 0
  %7956 = vmatpush1.bf16.msra.mxu0 0
  %7957 = vmatprep.subr.bf16.mxu0 0
  %7958 = vmatpush1.bf16.msra.mxu0 0
  %7959 = vmatprep.subr.bf16.mxu0 0
  %7960 = vmatpush1.bf16.msra.mxu0 0
  %7961 = vmatprep.subr.bf16.mxu0 0
  %7962 = vmatpush1.bf16.msra.mxu0 0
  %7963 = vmatprep.subr.bf16.mxu0 0
  %7964 = vmatpush1.bf16.msra.mxu0 0
  %7965 = vmatprep.subr.bf16.mxu0 0
  %7966 = vmatpush1.bf16.msra.mxu0 0
  %7967 = vmatprep.subr.bf16.mxu0 0
  %7968 = vmatpush1.bf16.msra.mxu0 0
  %7969 = vmatprep.subr.bf16.mxu0 0
  %7970 = vmatpush1.bf16.msra.mxu0 0
  %7971 = vmatprep.mubr.bf16.mxu0 0
  %7972 = vmatmul.mubr.bf16.gmra.mrb[0].mxu0 %v7065
  %v7973 = vpop.f32.mrb[0].mxu0
  %v7974 = vadd.f32 0.0, %v7973
  %v7975 = vpop.f32.mrb[0].mxu0
  %v7976 = vpop.f32.mrb[0].mxu0
  %v7977 = vadd.f32 0.0, %v7976
  %v7978 = vpop.f32.mrb[0].mxu0
  %7979 = vmatprep.mubr.bf16.mxu0 0
  %7980 = vmatmul.mubr.bf16.gmra.mrb[0].mxu0 %v7068
  %v7981 = vpop.f32.mrb[0].mxu0
  %v7982 = vadd.f32 0.0, %v7981
  %v7983 = vpop.f32.mrb[0].mxu0
  %v7984 = vpop.f32.mrb[0].mxu0
  %v7985 = vadd.f32 0.0, %v7984
  %v7986 = vpop.f32.mrb[0].mxu0
  %7987 = vmatprep.mubr.bf16.mxu0 0
  %7988 = vmatmul.mubr.bf16.gmra.mrb[0].mxu0 %v7071
  %v7989 = vpop.f32.mrb[0].mxu0
  %v7990 = vadd.f32 0.0, %v7989
  %v7991 = vpop.f32.mrb[0].mxu0
  %v7992 = vpop.f32.mrb[0].mxu0
  %v7993 = vadd.f32 0.0, %v7992
  %v7994 = vpop.f32.mrb[0].mxu0
  %7995 = vmatprep.mubr.bf16.mxu0 0
  %7996 = vmatmul.mubr.bf16.gmra.mrb[0].mxu0 %v7934
  %v7997 = vpop.f32.mrb[0].mxu0
  %v7998 = vadd.f32 0.0, %v7997
  %v7999 = vpop.f32.mrb[0].mxu0
  %v8000 = vpop.f32.mrb[0].mxu0
  %v8001 = vadd.f32 0.0, %v8000
  %v8002 = vpop.f32.mrb[0].mxu0
  %8003 = vmatprep.mubr.bf16.mxu0 0
  %8004 = vmatmul.mubr.bf16.gmra.mrb[0].mxu0 %v7077
  %v8005 = vpop.f32.mrb[0].mxu0
  %v8006 = vadd.f32 0.0, %v8005
  %v8007 = vpop.f32.mrb[0].mxu0
  %v8008 = vpop.f32.mrb[0].mxu0
  %v8009 = vadd.f32 0.0, %v8008
  %v8010 = vpop.f32.mrb[0].mxu0
  %8011 = vmatprep.mubr.bf16.mxu0 0
  %8012 = vmatmul.mubr.bf16.gmra.mrb[0].mxu0 %v7080
  %v8013 = vpop.f32.mrb[0].mxu0
  %v8014 = vadd.f32 0.0, %v8013
  %v8015 = vpop.f32.mrb[0].mxu0
  %v8016 = vpop.f32.mrb[0].mxu0
  %v8017 = vadd.f32 0.0, %v8016
  %v8018 = vpop.f32.mrb[0].mxu0
  %8019 = vmatprep.mubr.bf16.mxu0 0
  %8020 = vmatmul.mubr.bf16.gmra.mrb[0].mxu0 %v7083
  %v8021 = vpop.f32.mrb[0].mxu0
  %v8022 = vadd.f32 0.0, %v8021
  %v8023 = vpop.f32.mrb[0].mxu0
  %v8024 = vpop.f32.mrb[0].mxu0
  %v8025 = vadd.f32 0.0, %v8024
  %v8026 = vpop.f32.mrb[0].mxu0
  %8027 = vmatprep.mubr.bf16.mxu0 0
  %8028 = vmatmul.mubr.bf16.gmra.mrb[0].mxu0 %v7937
  %v8029 = vpop.f32.mrb[0].mxu0
  %v8030 = vadd.f32 0.0, %v8029
  %v8031 = vpop.f32.mrb[0].mxu0
  %v8032 = vpop.f32.mrb[0].mxu0
  %v8033 = vadd.f32 0.0, %v8032
  %v8034 = vpop.f32.mrb[0].mxu0
  %8035 = vdwg.mxu0
  %v8036 = vadd.f32 %v7898, %v7974
  %v8037 = vadd.f32 %v7899, %v7977
  %v8038 = vadd.f32 %v7900, %v7982
  %v8039 = vadd.f32 %v7901, %v7985
  %v8040 = vadd.f32 %v7902, %v7990
  %v8041 = vadd.f32 %v7903, %v7993
  %v8042 = vadd.f32 %v7904, %v7998
  %v8043 = vadd.f32 %v7905, %v8001
  %v8044 = vadd.f32 %v7906, %v8006
  %v8045 = vadd.f32 %v7907, %v8009
  %v8046 = vadd.f32 %v7908, %v8014
  %v8047 = vadd.f32 %v7909, %v8017
  %v8048 = vadd.f32 %v7910, %v8022
  %v8049 = vadd.f32 %v7911, %v8025
  %v8050 = vadd.f32 %v7912, %v8030
  %v8051 = vadd.f32 %v7913, %v8033
  %v8056 = vrot.slane %v6773, 1
  %v8057 = vrot.slane %v6774, 1
  %v8058 = vsel %vm135, %v8056, %v8057
  %v8059 = vrot.slane %v6793, 1
  %v8060 = vrot.slane %v6794, 1
  %v8061 = vsel %vm135, %v8059, %v8060
  %v8064 = vpack.c.bf16 %v8058, %v7576
  %v8065 = vpack.c.bf16 %v8061, %v7579
  %s8066 = scalar_lea.vmem %s15, 112
  %v8067 = vld [vmem:[%s8066] sm:$0xf]
  %v8068 = vld [vmem:[%s8066 + $0x4] sm:$0xf]
  %v8069 = vld [vmem:[%s8066 + $0x8] sm:$0xf]
  %v8070 = vld [vmem:[%s8066 + $0xc] sm:$0xf]
  %v8075 = vunpack.c.l.b16 %v8067
  %v8076 = vunpack.c.l.b16 %v8068
  %v8077 = vunpack.c.l.b16 %v8069
  %v8078 = vunpack.c.l.b16 %v8070
  %v8079 = vpack.c.b16 %v8076, %v8075
  %v8080 = vpack.c.b16 %v8078, %v8077
  %v8084 = vsel %vm1605, %v8064, 0
  %v8087 = vsel %vm1605, %v8065, 0
  %8089 = vmatprep.subr.bf16.mxu0 0
  %8090 = vmatpush1.bf16.msra.mxu0 %v8079
  %8091 = vmatprep.subr.bf16.mxu0 0
  %8092 = vmatpush1.bf16.msra.mxu0 %v8080
  %8093 = vmatprep.subr.bf16.mxu0 0
  %8094 = vmatpush1.bf16.msra.mxu0 0
  %8095 = vmatprep.subr.bf16.mxu0 0
  %8096 = vmatpush1.bf16.msra.mxu0 0
  %8097 = vmatprep.subr.bf16.mxu0 0
  %8098 = vmatpush1.bf16.msra.mxu0 0
  %8099 = vmatprep.subr.bf16.mxu0 0
  %8100 = vmatpush1.bf16.msra.mxu0 0
  %8101 = vmatprep.subr.bf16.mxu0 0
  %8102 = vmatpush1.bf16.msra.mxu0 0
  %8103 = vmatprep.subr.bf16.mxu0 0
  %8104 = vmatpush1.bf16.msra.mxu0 0
  %8105 = vmatprep.subr.bf16.mxu0 0
  %8106 = vmatpush1.bf16.msra.mxu0 0
  %8107 = vmatprep.subr.bf16.mxu0 0
  %8108 = vmatpush1.bf16.msra.mxu0 0
  %8109 = vmatprep.subr.bf16.mxu0 0
  %8110 = vmatpush1.bf16.msra.mxu0 0
  %8111 = vmatprep.subr.bf16.mxu0 0
  %8112 = vmatpush1.bf16.msra.mxu0 0
  %8113 = vmatprep.subr.bf16.mxu0 0
  %8114 = vmatpush1.bf16.msra.mxu0 0
  %8115 = vmatprep.subr.bf16.mxu0 0
  %8116 = vmatpush1.bf16.msra.mxu0 0
  %8117 = vmatprep.subr.bf16.mxu0 0
  %8118 = vmatpush1.bf16.msra.mxu0 0
  %8119 = vmatprep.subr.bf16.mxu0 0
  %8120 = vmatpush1.bf16.msra.mxu0 0
  %8121 = vmatprep.mubr.bf16.mxu0 0
  %8122 = vmatmul.mubr.bf16.gmra.mrb[0].mxu0 %v6932
  %v8123 = vpop.f32.mrb[0].mxu0
  %v8124 = vadd.f32 0.0, %v8123
  %v8125 = vpop.f32.mrb[0].mxu0
  %v8126 = vpop.f32.mrb[0].mxu0
  %v8127 = vadd.f32 0.0, %v8126
  %v8128 = vpop.f32.mrb[0].mxu0
  %8129 = vmatprep.mubr.bf16.mxu0 0
  %8130 = vmatmul.mubr.bf16.gmra.mrb[0].mxu0 %v6935
  %v8131 = vpop.f32.mrb[0].mxu0
  %v8132 = vadd.f32 0.0, %v8131
  %v8133 = vpop.f32.mrb[0].mxu0
  %v8134 = vpop.f32.mrb[0].mxu0
  %v8135 = vadd.f32 0.0, %v8134
  %v8136 = vpop.f32.mrb[0].mxu0
  %8137 = vmatprep.mubr.bf16.mxu0 0
  %8138 = vmatmul.mubr.bf16.gmra.mrb[0].mxu0 %v6938
  %v8139 = vpop.f32.mrb[0].mxu0
  %v8140 = vadd.f32 0.0, %v8139
  %v8141 = vpop.f32.mrb[0].mxu0
  %v8142 = vpop.f32.mrb[0].mxu0
  %v8143 = vadd.f32 0.0, %v8142
  %v8144 = vpop.f32.mrb[0].mxu0
  %8145 = vmatprep.mubr.bf16.mxu0 0
  %8146 = vmatmul.mubr.bf16.gmra.mrb[0].mxu0 %v8084
  %v8147 = vpop.f32.mrb[0].mxu0
  %v8148 = vadd.f32 0.0, %v8147
  %v8149 = vpop.f32.mrb[0].mxu0
  %v8150 = vpop.f32.mrb[0].mxu0
  %v8151 = vadd.f32 0.0, %v8150
  %v8152 = vpop.f32.mrb[0].mxu0
  %8153 = vmatprep.mubr.bf16.mxu0 0
  %8154 = vmatmul.mubr.bf16.gmra.mrb[0].mxu0 %v6944
  %v8155 = vpop.f32.mrb[0].mxu0
  %v8156 = vadd.f32 0.0, %v8155
  %v8157 = vpop.f32.mrb[0].mxu0
  %v8158 = vpop.f32.mrb[0].mxu0
  %v8159 = vadd.f32 0.0, %v8158
  %v8160 = vpop.f32.mrb[0].mxu0
  %8161 = vmatprep.mubr.bf16.mxu0 0
  %8162 = vmatmul.mubr.bf16.gmra.mrb[0].mxu0 %v6947
  %v8163 = vpop.f32.mrb[0].mxu0
  %v8164 = vadd.f32 0.0, %v8163
  %v8165 = vpop.f32.mrb[0].mxu0
  %v8166 = vpop.f32.mrb[0].mxu0
  %v8167 = vadd.f32 0.0, %v8166
  %v8168 = vpop.f32.mrb[0].mxu0
  %8169 = vmatprep.mubr.bf16.mxu0 0
  %8170 = vmatmul.mubr.bf16.gmra.mrb[0].mxu0 %v6950
  %v8171 = vpop.f32.mrb[0].mxu0
  %v8172 = vadd.f32 0.0, %v8171
  %v8173 = vpop.f32.mrb[0].mxu0
  %v8174 = vpop.f32.mrb[0].mxu0
  %v8175 = vadd.f32 0.0, %v8174
  %v8176 = vpop.f32.mrb[0].mxu0
  %8177 = vmatprep.mubr.bf16.mxu0 0
  %8178 = vmatmul.mubr.bf16.gmra.mrb[0].mxu0 %v8087
  %v8179 = vpop.f32.mrb[0].mxu0
  %v8180 = vadd.f32 0.0, %v8179
  %v8181 = vpop.f32.mrb[0].mxu0
  %v8182 = vpop.f32.mrb[0].mxu0
  %v8183 = vadd.f32 0.0, %v8182
  %v8184 = vpop.f32.mrb[0].mxu0
  %8185 = vdwg.mxu0
  %v8186 = vadd.f32 %v8036, %v8124
  %v8187 = vadd.f32 %v8037, %v8127
  %v8188 = vadd.f32 %v8038, %v8132
  %v8189 = vadd.f32 %v8039, %v8135
  %v8190 = vadd.f32 %v8040, %v8140
  %v8191 = vadd.f32 %v8041, %v8143
  %v8192 = vadd.f32 %v8042, %v8148
  %v8193 = vadd.f32 %v8043, %v8151
  %v8194 = vadd.f32 %v8044, %v8156
  %v8195 = vadd.f32 %v8045, %v8159
  %v8196 = vadd.f32 %v8046, %v8164
  %v8197 = vadd.f32 %v8047, %v8167
  %v8198 = vadd.f32 %v8048, %v8172
  %v8199 = vadd.f32 %v8049, %v8175
  %v8200 = vadd.f32 %v8050, %v8180
  %v8201 = vadd.f32 %v8051, %v8183
  %v8202 = vrot.slane %v6773, 2
  %v8203 = vrot.slane %v6774, 2
  %v8204 = vsel %vm460, %v8202, %v8203
  %v8205 = vrot.slane %v6793, 2
  %v8206 = vrot.slane %v6794, 2
  %v8207 = vsel %vm460, %v8205, %v8206
  %v8210 = vpack.c.bf16 %v8204, %v7746
  %v8211 = vpack.c.bf16 %v8207, %v7749
  %s8212 = scalar_lea.vmem %s15, 128
  %v8213 = vld [vmem:[%s8212] sm:$0xf]
  %v8214 = vld [vmem:[%s8212 + $0x4] sm:$0xf]
  %v8215 = vld [vmem:[%s8212 + $0x8] sm:$0xf]
  %v8216 = vld [vmem:[%s8212 + $0xc] sm:$0xf]
  %v8221 = vunpack.c.l.b16 %v8213
  %v8222 = vunpack.c.l.b16 %v8214
  %v8223 = vunpack.c.l.b16 %v8215
  %v8224 = vunpack.c.l.b16 %v8216
  %v8225 = vpack.c.b16 %v8222, %v8221
  %v8226 = vpack.c.b16 %v8224, %v8223
  %v8230 = vsel %vm1605, %v8210, 0
  %v8233 = vsel %vm1605, %v8211, 0
  %8235 = vmatprep.subr.bf16.mxu0 0
  %8236 = vmatpush1.bf16.msra.mxu0 %v8225
  %8237 = vmatprep.subr.bf16.mxu0 0
  %8238 = vmatpush1.bf16.msra.mxu0 %v8226
  %8239 = vmatprep.subr.bf16.mxu0 0
  %8240 = vmatpush1.bf16.msra.mxu0 0
  %8241 = vmatprep.subr.bf16.mxu0 0
  %8242 = vmatpush1.bf16.msra.mxu0 0
  %8243 = vmatprep.subr.bf16.mxu0 0
  %8244 = vmatpush1.bf16.msra.mxu0 0
  %8245 = vmatprep.subr.bf16.mxu0 0
  %8246 = vmatpush1.bf16.msra.mxu0 0
  %8247 = vmatprep.subr.bf16.mxu0 0
  %8248 = vmatpush1.bf16.msra.mxu0 0
  %8249 = vmatprep.subr.bf16.mxu0 0
  %8250 = vmatpush1.bf16.msra.mxu0 0
  %8251 = vmatprep.subr.bf16.mxu0 0
  %8252 = vmatpush1.bf16.msra.mxu0 0
  %8253 = vmatprep.subr.bf16.mxu0 0
  %8254 = vmatpush1.bf16.msra.mxu0 0
  %8255 = vmatprep.subr.bf16.mxu0 0
  %8256 = vmatpush1.bf16.msra.mxu0 0
  %8257 = vmatprep.subr.bf16.mxu0 0
  %8258 = vmatpush1.bf16.msra.mxu0 0
  %8259 = vmatprep.subr.bf16.mxu0 0
  %8260 = vmatpush1.bf16.msra.mxu0 0
  %8261 = vmatprep.subr.bf16.mxu0 0
  %8262 = vmatpush1.bf16.msra.mxu0 0
  %8263 = vmatprep.subr.bf16.mxu0 0
  %8264 = vmatpush1.bf16.msra.mxu0 0
  %8265 = vmatprep.subr.bf16.mxu0 0
  %8266 = vmatpush1.bf16.msra.mxu0 0
  %8267 = vmatprep.mubr.bf16.mxu0 0
  %8268 = vmatmul.mubr.bf16.gmra.mrb[0].mxu0 %v7275
  %v8269 = vpop.f32.mrb[0].mxu0
  %v8270 = vadd.f32 0.0, %v8269
  %v8271 = vpop.f32.mrb[0].mxu0
  %v8272 = vpop.f32.mrb[0].mxu0
  %v8273 = vadd.f32 0.0, %v8272
  %v8274 = vpop.f32.mrb[0].mxu0
  %8275 = vmatprep.mubr.bf16.mxu0 0
  %8276 = vmatmul.mubr.bf16.gmra.mrb[0].mxu0 %v7278
  %v8277 = vpop.f32.mrb[0].mxu0
  %v8278 = vadd.f32 0.0, %v8277
  %v8279 = vpop.f32.mrb[0].mxu0
  %v8280 = vpop.f32.mrb[0].mxu0
  %v8281 = vadd.f32 0.0, %v8280
  %v8282 = vpop.f32.mrb[0].mxu0
  %8283 = vmatprep.mubr.bf16.mxu0 0
  %8284 = vmatmul.mubr.bf16.gmra.mrb[0].mxu0 %v7281
  %v8285 = vpop.f32.mrb[0].mxu0
  %v8286 = vadd.f32 0.0, %v8285
  %v8287 = vpop.f32.mrb[0].mxu0
  %v8288 = vpop.f32.mrb[0].mxu0
  %v8289 = vadd.f32 0.0, %v8288
  %v8290 = vpop.f32.mrb[0].mxu0
  %8291 = vmatprep.mubr.bf16.mxu0 0
  %8292 = vmatmul.mubr.bf16.gmra.mrb[0].mxu0 %v8230
  %v8293 = vpop.f32.mrb[0].mxu0
  %v8294 = vadd.f32 0.0, %v8293
  %v8295 = vpop.f32.mrb[0].mxu0
  %v8296 = vpop.f32.mrb[0].mxu0
  %v8297 = vadd.f32 0.0, %v8296
  %v8298 = vpop.f32.mrb[0].mxu0
  %8299 = vmatprep.mubr.bf16.mxu0 0
  %8300 = vmatmul.mubr.bf16.gmra.mrb[0].mxu0 %v7287
  %v8301 = vpop.f32.mrb[0].mxu0
  %v8302 = vadd.f32 0.0, %v8301
  %v8303 = vpop.f32.mrb[0].mxu0
  %v8304 = vpop.f32.mrb[0].mxu0
  %v8305 = vadd.f32 0.0, %v8304
  %v8306 = vpop.f32.mrb[0].mxu0
  %8307 = vmatprep.mubr.bf16.mxu0 0
  %8308 = vmatmul.mubr.bf16.gmra.mrb[0].mxu0 %v7290
  %v8309 = vpop.f32.mrb[0].mxu0
  %v8310 = vadd.f32 0.0, %v8309
  %v8311 = vpop.f32.mrb[0].mxu0
  %v8312 = vpop.f32.mrb[0].mxu0
  %v8313 = vadd.f32 0.0, %v8312
  %v8314 = vpop.f32.mrb[0].mxu0
  %8315 = vmatprep.mubr.bf16.mxu0 0
  %8316 = vmatmul.mubr.bf16.gmra.mrb[0].mxu0 %v7293
  %v8317 = vpop.f32.mrb[0].mxu0
  %v8318 = vadd.f32 0.0, %v8317
  %v8319 = vpop.f32.mrb[0].mxu0
  %v8320 = vpop.f32.mrb[0].mxu0
  %v8321 = vadd.f32 0.0, %v8320
  %v8322 = vpop.f32.mrb[0].mxu0
  %8323 = vmatprep.mubr.bf16.mxu0 0
  %8324 = vmatmul.mubr.bf16.gmra.mrb[0].mxu0 %v8233
  %v8325 = vpop.f32.mrb[0].mxu0
  %v8326 = vadd.f32 0.0, %v8325
  %v8327 = vpop.f32.mrb[0].mxu0
  %v8328 = vpop.f32.mrb[0].mxu0
  %v8329 = vadd.f32 0.0, %v8328
  %v8330 = vpop.f32.mrb[0].mxu0
  %8331 = vdwg.mxu0
  %v8332 = vadd.f32 %v8186, %v8270
  %v8333 = vadd.f32 %v8187, %v8273
  %v8334 = vadd.f32 %v8188, %v8278
  %v8335 = vadd.f32 %v8189, %v8281
  %v8336 = vadd.f32 %v8190, %v8286
  %v8337 = vadd.f32 %v8191, %v8289
  %v8338 = vadd.f32 %v8192, %v8294
  %v8339 = vadd.f32 %v8193, %v8297
  %v8340 = vadd.f32 %v8194, %v8302
  %v8341 = vadd.f32 %v8195, %v8305
  %v8342 = vadd.f32 %v8196, %v8310
  %v8343 = vadd.f32 %v8197, %v8313
  %v8344 = vadd.f32 %v8198, %v8318
  %v8345 = vadd.f32 %v8199, %v8321
  %v8346 = vadd.f32 %v8200, %v8326
  %v8347 = vadd.f32 %v8201, %v8329
  %v8348 = vadd.f32 %v4990, %v8332
  %v8349 = vadd.f32 %v4991, %v8333
  %v8350 = vadd.f32 %v4992, %v8334
  %v8351 = vadd.f32 %v4993, %v8335
  %v8352 = vadd.f32 %v4994, %v8336
  %v8353 = vadd.f32 %v4995, %v8337
  %v8354 = vadd.f32 %v4996, %v8338
  %v8355 = vadd.f32 %v4997, %v8339
  %v8356 = vadd.f32 %v4998, %v8340
  %v8357 = vadd.f32 %v4999, %v8341
  %v8358 = vadd.f32 %v5000, %v8342
  %v8359 = vadd.f32 %v5001, %v8343
  %v8360 = vadd.f32 %v5002, %v8344
  %v8361 = vadd.f32 %v5003, %v8345
  %v8362 = vadd.f32 %v5004, %v8346
  %v8363 = vadd.f32 %v5005, %v8347
  %8364 = vst.msk [vmem:[%s16] sm:$0xff] %vm1605, %v8348
  %8365 = vst.msk [vmem:[%s16 + $0x8] sm:$0xff] %vm1605, %v8349
  %8366 = vst.msk [vmem:[%s16 + $0x10] sm:$0xff] %vm1605, %v8350
  %8367 = vst.msk [vmem:[%s16 + $0x18] sm:$0xff] %vm1605, %v8351
  %8368 = vst.msk [vmem:[%s16 + $0x20] sm:$0xff] %vm1605, %v8352
  %8369 = vst.msk [vmem:[%s16 + $0x28] sm:$0xff] %vm1605, %v8353
  %8370 = vst.msk [vmem:[%s16 + $0x30] sm:$0xff] %vm1605, %v8354
  %8371 = vst.msk [vmem:[%s16 + $0x38] sm:$0xff] %vm1605, %v8355
  %8372 = vst.msk [vmem:[%s16 + $0x40] sm:$0xff] %vm1605, %v8356
  %8373 = vst.msk [vmem:[%s16 + $0x48] sm:$0xff] %vm1605, %v8357
  %8374 = vst.msk [vmem:[%s16 + $0x50] sm:$0xff] %vm1605, %v8358
  %8375 = vst.msk [vmem:[%s16 + $0x58] sm:$0xff] %vm1605, %v8359
  %8376 = vst.msk [vmem:[%s16 + $0x60] sm:$0xff] %vm1605, %v8360
  %8377 = vst.msk [vmem:[%s16 + $0x68] sm:$0xff] %vm1605, %v8361
  %8378 = vst.msk [vmem:[%s16 + $0x70] sm:$0xff] %vm1605, %v8362
  %8379 = vst.msk [vmem:[%s16 + $0x78] sm:$0xff] %vm1605, %v8363
  // Predicated region
  $region66: #{resnet_forward.2} parent=0 // pred_check
    _
  $region67: #{resnet_forward.2} parent=0 // pred_check_branch
    %8381 = sbr.rel (0) target = $region69
  $region68: #{resnet_forward.2} parent=0 // pred_region
    _
  $region69: #{resnet_forward.2} parent=0 // pred_fallthru
    _
  // Predicated region
  $region70: #{resnet_forward.2} parent=0 // pred_check
    _
  $region71: #{resnet_forward.2} parent=0 // pred_check_branch
    %8383 = sbr.rel (0) target = $region73
  $region72: #{resnet_forward.2} parent=0 // pred_region
    _
  $region73: #{resnet_forward.2} parent=0 // pred_fallthru
    _

</llo_original>
